<compile_context>
chip_gen: v5e
topology: v5e:2x2
jax: 0.10.0
libtpu: 0.0.40
codegen_flags: <defaults>
</compile_context>

<pallas_src>
import functools

import jax
import jax.numpy as jnp
from jax import lax
from jax.experimental import pallas as pl
from jax.experimental.pallas import tpu as pltpu


def _round_up(x, m):
    return (x + m - 1) // m * m


# ----------------------------------------------------------------------------
# Fused DnCNN kernel (one grid step = one image).
# ----------------------------------------------------------------------------
def _dncnn_fused_kernel(mask_ref, x0_ref, wh_ref, bh_ref, wb_ref, sb_ref, tb_ref,
                        wt_ref, bt_ref, out_ref, acc_ref, act_ref,
                        *, H, W, nb_body, io_pad, nc, r_c, r_pad):
    P = W + 2                    # padded row width
    q0 = P + 1                   # flat offset of interior pixel (i=1, j=1)
    f32 = jnp.float32
    bf16 = jnp.bfloat16

    mask = mask_ref[...]         # (r_c, 1) f32: 1 on interior pixels, 0 on border

    # Zero the padded VMEM activation buffer once -> conv zero-padding semantics.
    act_ref[...] = jnp.zeros_like(act_ref)

    # ---- head: conv(in_nc -> nc) + bias + ReLU -----------------------------
    acc_ref[...] = jnp.zeros_like(acc_ref)
    for t in range(9):
        dy, dx = divmod(t, 3)
        a = x0_ref[0, pl.ds(dy * P + dx, r_c), :].astype(bf16)
        acc_ref[...] += jnp.dot(a, wh_ref[t], preferred_element_type=f32)
    y = jnp.maximum(acc_ref[...] + bh_ref[...], 0.0) * mask
    act_ref[pl.ds(q0, r_c), :] = y

    # ---- body: (nb-2) x [conv(nc->nc) + folded BN + ReLU] ------------------
    def body_layer(l, carry):
        w_l = wb_ref[l]          # (9, nc, nc) bf16, resident in VMEM
        s_l = sb_ref[l]          # (1, nc) f32  folded BN scale
        t_l = tb_ref[l]          # (1, nc) f32  folded BN shift (incl. conv bias)
        acc_ref[...] = jnp.zeros_like(acc_ref)
        for t in range(9):
            dy, dx = divmod(t, 3)
            a = act_ref[pl.ds(dy * P + dx, r_c), :].astype(bf16)
            acc_ref[...] += jnp.dot(a, w_l[t], preferred_element_type=f32)
        y = jnp.maximum(acc_ref[...] * s_l + t_l, 0.0) * mask
        act_ref[pl.ds(q0, r_c), :] = y     # in-place: all reads happen above
        return carry

    lax.fori_loop(0, nb_body, body_layer, 0)

    # ---- tail: conv(nc -> out_nc) + bias, fused residual o = x0 - n --------
    acc_t = jnp.zeros((r_c, io_pad), f32)
    for t in range(9):
        dy, dx = divmod(t, 3)
        a = act_ref[pl.ds(dy * P + dx, r_c), :].astype(bf16)
        acc_t = acc_t + jnp.dot(a, wt_ref[t], preferred_element_type=f32)
    n = acc_t + bt_ref[...]
    x0c = x0_ref[0, pl.ds(q0, r_c), :]           # f32 original (residual in f32)
    out_ref[...] = jnp.zeros_like(out_ref)
    out_ref[0, pl.ds(q0, r_c), :] = (x0c - n).astype(out_ref.dtype)


# ----------------------------------------------------------------------------
# Wrapper: layout / dtype prep + pallas_call.
# ----------------------------------------------------------------------------
def dncnn_forward_pallas(params, x_nchw, *, io_pad=8):
    N, in_nc, H, W = x_nchw.shape
    nc = params["head"]["w"].shape[0]
    out_nc = params["tail"]["w"].shape[0]
    nb_body = len(params["body"])
    assert in_nc == out_nc and in_nc <= io_pad, "residual x - n needs in_nc == out_nc"

    P, Hp = W + 2, H + 2
    r_c = _round_up((H - 1) * P + W, 8)                  # computed output rows
    r_pad = _round_up(max(Hp * P, 2 * P + 2 + r_c), 8)   # padded flat activation rows
    eps = 1e-4                                           # BatchNorm2d eps

    def w_to_9(w):  # PyTorch (O, I, 3, 3) -> (9, I, O)
        return jnp.transpose(w, (2, 3, 1, 0)).reshape(9, w.shape[1], w.shape[0])

    # head
    wh = jnp.zeros((9, io_pad, nc), jnp.float32)
    wh = wh.at[:, :in_nc, :].set(w_to_9(params["head"]["w"])).astype(jnp.bfloat16)
    bh = params["head"]["b"].reshape(1, nc).astype(jnp.float32)

    # body: fold eval-mode BN into per-channel scale / shift
    wb, sb, tb = [], [], []
    for lyr in params["body"]:
        s = lyr["gamma"] / jnp.sqrt(lyr["rvar"] + eps)
        shift = s * (lyr["b"] - lyr["rmean"]) + lyr["beta"]
        wb.append(w_to_9(lyr["w"]))
        sb.append(s.reshape(1, nc))
        tb.append(shift.reshape(1, nc))
    wb = jnp.stack(wb).astype(jnp.bfloat16)              # (nb_body, 9, nc, nc)
    sb = jnp.stack(sb).astype(jnp.float32)               # (nb_body, 1, nc)
    tb = jnp.stack(tb).astype(jnp.float32)

    # tail (output channels zero-padded to io_pad lanes)
    wt = jnp.zeros((9, nc, io_pad), jnp.float32)
    wt = wt.at[:, :, :out_nc].set(w_to_9(params["tail"]["w"])).astype(jnp.bfloat16)
    bt = jnp.zeros((1, io_pad), jnp.float32)
    bt = bt.at[:, :out_nc].set(params["tail"]["b"].reshape(1, out_nc))

    # input: NCHW -> flat zero-padded NHWC rows, channels padded to io_pad
    x_nhwc = jnp.transpose(x_nchw, (0, 2, 3, 1)).astype(jnp.float32)
    x0p = jnp.pad(x_nhwc, ((0, 0), (1, 1), (1, 1), (0, io_pad - in_nc)))
    x0p = x0p.reshape(N, Hp * P, io_pad)
    x0p = jnp.pad(x0p, ((0, 0), (0, r_pad - Hp * P), (0, 0)))

    # interior mask over the r_c computed rows
    q = P + 1 + jnp.arange(r_c)
    qi, qj = q // P, q % P
    mask = ((qi >= 1) & (qi <= H) & (qj >= 1) & (qj <= W)).astype(jnp.float32)
    mask = mask.reshape(r_c, 1)

    kern = functools.partial(_dncnn_fused_kernel, H=H, W=W, nb_body=nb_body,
                             io_pad=io_pad, nc=nc, r_c=r_c, r_pad=r_pad)

    out_flat = pl.pallas_call(
        kern,
        out_shape=jax.ShapeDtypeStruct((N, r_pad, io_pad), jnp.float32),
        grid_spec=pltpu.PrefetchScalarGridSpec(
            num_scalar_prefetch=0,
            grid=(N,),
            in_specs=[
                pl.BlockSpec((r_c, 1), lambda n: (0, 0)),                   # mask
                pl.BlockSpec((1, r_pad, io_pad), lambda n: (n, 0, 0)),      # x0 (flat, padded)
                pl.BlockSpec((9, io_pad, nc), lambda n: (0, 0, 0)),         # head W
                pl.BlockSpec((1, nc), lambda n: (0, 0)),                    # head bias
                pl.BlockSpec((nb_body, 9, nc, nc), lambda n: (0, 0, 0, 0)),  # body W (resident)
                pl.BlockSpec((nb_body, 1, nc), lambda n: (0, 0, 0)),        # body scale
                pl.BlockSpec((nb_body, 1, nc), lambda n: (0, 0, 0)),        # body shift
                pl.BlockSpec((9, nc, io_pad), lambda n: (0, 0, 0)),         # tail W
                pl.BlockSpec((1, io_pad), lambda n: (0, 0)),                # tail bias
            ],
            out_specs=pl.BlockSpec((1, r_pad, io_pad), lambda n: (n, 0, 0)),
            scratch_shapes=[
                pltpu.VMEM((r_c, nc), jnp.float32),     # f32 conv accumulator
                pltpu.VMEM((r_pad, nc), jnp.float32),   # VMEM-resident padded activation
            ],
        ),
        compiler_params=pltpu.CompilerParams(
            dimension_semantics=("parallel",),
            vmem_limit_bytes=32 * 1024 * 1024,
        ),
    )(mask, x0p, wh, bh, wb, sb, tb, wt, bt)

    # un-flatten: take the interior pixels, drop channel padding, back to NCHW
    out = out_flat[:, :Hp * P, :].reshape(N, Hp, P, io_pad)
    out = out[:, 1:H + 1, 1:W + 1, :out_nc]
    return jnp.transpose(out, (0, 3, 1, 2))


# ----------------------------------------------------------------------------
# Deterministic synthetic parameters (PyTorch layout) + pure-JAX reference.
# ----------------------------------------------------------------------------
def init_dncnn_params(key, in_nc=1, out_nc=1, nc=64, nb=17):
    def nrm(k, shape, std):
        return jax.random.normal(k, shape, jnp.float32) * std

    params = {}
    key, k1, k2 = jax.random.split(key, 3)
    params["head"] = {"w": nrm(k1, (nc, in_nc, 3, 3), 0.4),
                      "b": nrm(k2, (nc,), 0.01)}
    body = []
    for _ in range(nb - 2):
        key, kw, kb, kg, kbe, km, kv = jax.random.split(key, 7)
        body.append({
            "w": nrm(kw, (nc, nc, 3, 3), 0.06),
            "b": nrm(kb, (nc,), 0.01),
            "gamma": 1.0 + nrm(kg, (nc,), 0.05),
            "beta": nrm(kbe, (nc,), 0.05),
            "rmean": nrm(km, (nc,), 0.05),
            "rvar": 1.0 + jnp.abs(nrm(kv, (nc,), 0.05)),
        })
    params["body"] = body
    key, k1, k2 = jax.random.split(key, 3)
    params["tail"] = {"w": nrm(k1, (out_nc, nc, 3, 3), 0.05),
                      "b": nrm(k2, (out_nc,), 0.01)}
    return params


def dncnn_reference(params, x_nchw):
    """Pure-JAX f32 reference (eval-mode BN), matches the PyTorch forward."""
    eps = 1e-4

    def conv(x, w, b):
        y = lax.conv_general_dilated(x, w, window_strides=(1, 1),
                                     padding=((1, 1), (1, 1)),
                                     dimension_numbers=("NCHW", "OIHW", "NCHW"))
        return y + b[None, :, None, None]

    h = jax.nn.relu(conv(x_nchw, params["head"]["w"], params["head"]["b"]))
    for lyr in params["body"]:
        y = conv(h, lyr["w"], lyr["b"])
        s = lyr["gamma"] / jnp.sqrt(lyr["rvar"] + eps)
        y = s[None, :, None, None] * (y - lyr["rmean"][None, :, None, None]) \
            + lyr["beta"][None, :, None, None]
        h = jax.nn.relu(y)
    n = conv(h, params["tail"]["w"], params["tail"]["b"])
    return x_nchw - n


if __name__ == "__main__":
    key = jax.random.PRNGKey(0)
    kp, kx = jax.random.split(key)

    in_nc, out_nc, nc, nb = 1, 1, 64, 17
    params = init_dncnn_params(kp, in_nc=in_nc, out_nc=out_nc, nc=nc, nb=nb)

    # small deterministic input, NCHW like PyTorch
    x = jax.random.normal(kx, (2, in_nc, 16, 16), jnp.float32)

    fwd = jax.jit(lambda xx: dncnn_forward_pallas(params, xx))
    y = fwd(x)
    jax.block_until_ready(y)

    assert y.shape == (2, out_nc, 16, 16)
    assert bool(jnp.all(jnp.isfinite(y)))

    # sanity-check against a pure-JAX f32 reference (bf16 matmuls -> loose tolerance)
    y_ref = dncnn_reference(params, x)
    err = float(jnp.max(jnp.abs(y - y_ref)))
    tol = 0.1 * (1.0 + float(jnp.max(jnp.abs(y_ref))))
    assert err < tol, f"mismatch vs reference: {err} (tol {tol})"

    print("KERNEL_OK")
</pallas_src>

<mosaic_0001>
module attributes {stable_mosaic.version = 11 : i64} {
  func.func @_dncnn_fused_kernel(%arg0: i32, %arg1: memref<288x1xf32, #tpu.memory_space<vmem>>, %arg2: memref<1x328x8xf32, #tpu.memory_space<vmem>>, %arg3: memref<9x8x64xbf16, #tpu.memory_space<vmem>>, %arg4: memref<1x64xf32, #tpu.memory_space<vmem>>, %arg5: memref<15x9x64x64xbf16, #tpu.memory_space<vmem>>, %arg6: memref<15x1x64xf32, #tpu.memory_space<vmem>>, %arg7: memref<15x1x64xf32, #tpu.memory_space<vmem>>, %arg8: memref<9x64x8xbf16, #tpu.memory_space<vmem>>, %arg9: memref<1x8xf32, #tpu.memory_space<vmem>>, %arg10: memref<1x328x8xf32, #tpu.memory_space<vmem>>, %arg11: memref<288x64xf32, #tpu.memory_space<vmem>>, %arg12: memref<328x64xf32, #tpu.memory_space<vmem>>) attributes {dimension_semantics = [#tpu.dimension_semantics<parallel>], iteration_bounds = array<i64: 2>, scalar_prefetch = 0 : i64, scratch_operands = 2 : i64, tpu.core_type = #tpu.core_type<tc>, window_params = [{pipeline_mode = #tpu.pipeline_mode<synchronous>, transform_indices = @transform_0, window_bounds = array<i64: 288, 1>}, {transform_indices = @transform_1, window_bounds = array<i64: 1, 328, 8>}, {pipeline_mode = #tpu.pipeline_mode<synchronous>, transform_indices = @transform_2, window_bounds = array<i64: 9, 8, 64>}, {pipeline_mode = #tpu.pipeline_mode<synchronous>, transform_indices = @transform_3, window_bounds = array<i64: 1, 64>}, {pipeline_mode = #tpu.pipeline_mode<synchronous>, transform_indices = @transform_4, window_bounds = array<i64: 15, 9, 64, 64>}, {pipeline_mode = #tpu.pipeline_mode<synchronous>, transform_indices = @transform_5, window_bounds = array<i64: 15, 1, 64>}, {pipeline_mode = #tpu.pipeline_mode<synchronous>, transform_indices = @transform_6, window_bounds = array<i64: 15, 1, 64>}, {pipeline_mode = #tpu.pipeline_mode<synchronous>, transform_indices = @transform_7, window_bounds = array<i64: 9, 64, 8>}, {pipeline_mode = #tpu.pipeline_mode<synchronous>, transform_indices = @transform_8, window_bounds = array<i64: 1, 8>}, {transform_indices = @transform_9, window_bounds = array<i64: 1, 328, 8>}]} {
    %c0 = arith.constant 0 : index
    %c0_0 = arith.constant 0 : index
    %0 = vector.load %arg1[%c0, %c0_0] : memref<288x1xf32, #tpu.memory_space<vmem>>, vector<288x1xf32>
    %cst = arith.constant 0.000000e+00 : f32
    %1 = vector.broadcast %cst : f32 to vector<328x64xf32>
    %c0_1 = arith.constant 0 : index
    %c0_2 = arith.constant 0 : index
    %2 = vector.load %arg12[%c0_1, %c0_2] : memref<328x64xf32, #tpu.memory_space<vmem>>, vector<328x64xf32>
    tpu.vector_store %arg12[%c0_1, %c0_2], %1 {strides = array<i32>} : memref<328x64xf32, #tpu.memory_space<vmem>>, vector<328x64xf32>,
    %cst_3 = arith.constant 0.000000e+00 : f32
    %3 = vector.broadcast %cst_3 : f32 to vector<288x64xf32>
    %c0_4 = arith.constant 0 : index
    %c0_5 = arith.constant 0 : index
    %4 = vector.load %arg11[%c0_4, %c0_5] : memref<288x64xf32, #tpu.memory_space<vmem>>, vector<288x64xf32>
    tpu.vector_store %arg11[%c0_4, %c0_5], %3 {strides = array<i32>} : memref<288x64xf32, #tpu.memory_space<vmem>>, vector<288x64xf32>,
    %c0_6 = arith.constant 0 : index
    %c0_7 = arith.constant 0 : index
    %c0_8 = arith.constant 0 : index
    %5 = vector.load %arg2[%c0_6, %c0_7, %c0_8] : memref<1x328x8xf32, #tpu.memory_space<vmem>>, vector<1x288x8xf32>
    %6 = vector.shape_cast %5 : vector<1x288x8xf32> to vector<288x8xf32>
    %7 = arith.truncf %6 : vector<288x8xf32> to vector<288x8xbf16>
    %c0_9 = arith.constant 0 : index
    %c0_10 = arith.constant 0 : index
    %8 = vector.load %arg11[%c0_9, %c0_10] : memref<288x64xf32, #tpu.memory_space<vmem>>, vector<288x64xf32>
    %c0_11 = arith.constant 0 : index
    %c0_12 = arith.constant 0 : index
    %c0_13 = arith.constant 0 : index
    %9 = vector.load %arg3[%c0_11, %c0_12, %c0_13] : memref<9x8x64xbf16, #tpu.memory_space<vmem>>, vector<1x8x64xbf16>
    %10 = vector.shape_cast %9 : vector<1x8x64xbf16> to vector<8x64xbf16>
    %cst_14 = arith.constant dense<0.000000e+00> : vector<288x64xf32>
    %11 = tpu.matmul %7, %10, %cst_14 {dimension_numbers = #tpu.dot_dimension_numbers<[1], [0], [0], [1], [0, 0, 1, 1], [], []>} : vector<288x8xbf16>, vector<8x64xbf16>, vector<288x64xf32> -> vector<288x64xf32>
    %12 = arith.addf %8, %11 : vector<288x64xf32>
    %c0_15 = arith.constant 0 : index
    %c0_16 = arith.constant 0 : index
    %13 = vector.load %arg11[%c0_15, %c0_16] : memref<288x64xf32, #tpu.memory_space<vmem>>, vector<288x64xf32>
    tpu.vector_store %arg11[%c0_15, %c0_16], %12 {strides = array<i32>} : memref<288x64xf32, #tpu.memory_space<vmem>>, vector<288x64xf32>,
    %c0_17 = arith.constant 0 : index
    %c1 = arith.constant 1 : index
    %c0_18 = arith.constant 0 : index
    %14 = vector.load %arg2[%c0_17, %c1, %c0_18] : memref<1x328x8xf32, #tpu.memory_space<vmem>>, vector<1x288x8xf32>
    %15 = vector.shape_cast %14 : vector<1x288x8xf32> to vector<288x8xf32>
    %16 = arith.truncf %15 : vector<288x8xf32> to vector<288x8xbf16>
    %c0_19 = arith.constant 0 : index
    %c0_20 = arith.constant 0 : index
    %17 = vector.load %arg11[%c0_19, %c0_20] : memref<288x64xf32, #tpu.memory_space<vmem>>, vector<288x64xf32>
    %c1_21 = arith.constant 1 : index
    %c0_22 = arith.constant 0 : index
    %c0_23 = arith.constant 0 : index
    %18 = vector.load %arg3[%c1_21, %c0_22, %c0_23] : memref<9x8x64xbf16, #tpu.memory_space<vmem>>, vector<1x8x64xbf16>
    %19 = vector.shape_cast %18 : vector<1x8x64xbf16> to vector<8x64xbf16>
    %cst_24 = arith.constant dense<0.000000e+00> : vector<288x64xf32>
    %20 = tpu.matmul %16, %19, %cst_24 {dimension_numbers = #tpu.dot_dimension_numbers<[1], [0], [0], [1], [0, 0, 1, 1], [], []>} : vector<288x8xbf16>, vector<8x64xbf16>, vector<288x64xf32> -> vector<288x64xf32>
    %21 = arith.addf %17, %20 : vector<288x64xf32>
    %c0_25 = arith.constant 0 : index
    %c0_26 = arith.constant 0 : index
    %22 = vector.load %arg11[%c0_25, %c0_26] : memref<288x64xf32, #tpu.memory_space<vmem>>, vector<288x64xf32>
    tpu.vector_store %arg11[%c0_25, %c0_26], %21 {strides = array<i32>} : memref<288x64xf32, #tpu.memory_space<vmem>>, vector<288x64xf32>,
    %c0_27 = arith.constant 0 : index
    %c2 = arith.constant 2 : index
    %c0_28 = arith.constant 0 : index
    %23 = vector.load %arg2[%c0_27, %c2, %c0_28] : memref<1x328x8xf32, #tpu.memory_space<vmem>>, vector<1x288x8xf32>
    %24 = vector.shape_cast %23 : vector<1x288x8xf32> to vector<288x8xf32>
    %25 = arith.truncf %24 : vector<288x8xf32> to vector<288x8xbf16>
    %c0_29 = arith.constant 0 : index
    %c0_30 = arith.constant 0 : index
    %26 = vector.load %arg11[%c0_29, %c0_30] : memref<288x64xf32, #tpu.memory_space<vmem>>, vector<288x64xf32>
    %c2_31 = arith.constant 2 : index
    %c0_32 = arith.constant 0 : index
    %c0_33 = arith.constant 0 : index
    %27 = vector.load %arg3[%c2_31, %c0_32, %c0_33] : memref<9x8x64xbf16, #tpu.memory_space<vmem>>, vector<1x8x64xbf16>
    %28 = vector.shape_cast %27 : vector<1x8x64xbf16> to vector<8x64xbf16>
    %cst_34 = arith.constant dense<0.000000e+00> : vector<288x64xf32>
    %29 = tpu.matmul %25, %28, %cst_34 {dimension_numbers = #tpu.dot_dimension_numbers<[1], [0], [0], [1], [0, 0, 1, 1], [], []>} : vector<288x8xbf16>, vector<8x64xbf16>, vector<288x64xf32> -> vector<288x64xf32>
    %30 = arith.addf %26, %29 : vector<288x64xf32>
    %c0_35 = arith.constant 0 : index
    %c0_36 = arith.constant 0 : index
    %31 = vector.load %arg11[%c0_35, %c0_36] : memref<288x64xf32, #tpu.memory_space<vmem>>, vector<288x64xf32>
    tpu.vector_store %arg11[%c0_35, %c0_36], %30 {strides = array<i32>} : memref<288x64xf32, #tpu.memory_space<vmem>>, vector<288x64xf32>,
    %c0_37 = arith.constant 0 : index
    %c18 = arith.constant 18 : index
    %c0_38 = arith.constant 0 : index
    %32 = vector.load %arg2[%c0_37, %c18, %c0_38] : memref<1x328x8xf32, #tpu.memory_space<vmem>>, vector<1x288x8xf32>
    %33 = vector.shape_cast %32 : vector<1x288x8xf32> to vector<288x8xf32>
    %34 = arith.truncf %33 : vector<288x8xf32> to vector<288x8xbf16>
    %c0_39 = arith.constant 0 : index
    %c0_40 = arith.constant 0 : index
    %35 = vector.load %arg11[%c0_39, %c0_40] : memref<288x64xf32, #tpu.memory_space<vmem>>, vector<288x64xf32>
    %c3 = arith.constant 3 : index
    %c0_41 = arith.constant 0 : index
    %c0_42 = arith.constant 0 : index
    %36 = vector.load %arg3[%c3, %c0_41, %c0_42] : memref<9x8x64xbf16, #tpu.memory_space<vmem>>, vector<1x8x64xbf16>
    %37 = vector.shape_cast %36 : vector<1x8x64xbf16> to vector<8x64xbf16>
    %cst_43 = arith.constant dense<0.000000e+00> : vector<288x64xf32>
    %38 = tpu.matmul %34, %37, %cst_43 {dimension_numbers = #tpu.dot_dimension_numbers<[1], [0], [0], [1], [0, 0, 1, 1], [], []>} : vector<288x8xbf16>, vector<8x64xbf16>, vector<288x64xf32> -> vector<288x64xf32>
    %39 = arith.addf %35, %38 : vector<288x64xf32>
    %c0_44 = arith.constant 0 : index
    %c0_45 = arith.constant 0 : index
    %40 = vector.load %arg11[%c0_44, %c0_45] : memref<288x64xf32, #tpu.memory_space<vmem>>, vector<288x64xf32>
    tpu.vector_store %arg11[%c0_44, %c0_45], %39 {strides = array<i32>} : memref<288x64xf32, #tpu.memory_space<vmem>>, vector<288x64xf32>,
    %c0_46 = arith.constant 0 : index
    %c19 = arith.constant 19 : index
    %c0_47 = arith.constant 0 : index
    %41 = vector.load %arg2[%c0_46, %c19, %c0_47] : memref<1x328x8xf32, #tpu.memory_space<vmem>>, vector<1x288x8xf32>
    %42 = vector.shape_cast %41 : vector<1x288x8xf32> to vector<288x8xf32>
    %43 = arith.truncf %42 : vector<288x8xf32> to vector<288x8xbf16>
    %c0_48 = arith.constant 0 : index
    %c0_49 = arith.constant 0 : index
    %44 = vector.load %arg11[%c0_48, %c0_49] : memref<288x64xf32, #tpu.memory_space<vmem>>, vector<288x64xf32>
    %c4 = arith.constant 4 : index
    %c0_50 = arith.constant 0 : index
    %c0_51 = arith.constant 0 : index
    %45 = vector.load %arg3[%c4, %c0_50, %c0_51] : memref<9x8x64xbf16, #tpu.memory_space<vmem>>, vector<1x8x64xbf16>
    %46 = vector.shape_cast %45 : vector<1x8x64xbf16> to vector<8x64xbf16>
    %cst_52 = arith.constant dense<0.000000e+00> : vector<288x64xf32>
    %47 = tpu.matmul %43, %46, %cst_52 {dimension_numbers = #tpu.dot_dimension_numbers<[1], [0], [0], [1], [0, 0, 1, 1], [], []>} : vector<288x8xbf16>, vector<8x64xbf16>, vector<288x64xf32> -> vector<288x64xf32>
    %48 = arith.addf %44, %47 : vector<288x64xf32>
    %c0_53 = arith.constant 0 : index
    %c0_54 = arith.constant 0 : index
    %49 = vector.load %arg11[%c0_53, %c0_54] : memref<288x64xf32, #tpu.memory_space<vmem>>, vector<288x64xf32>
    tpu.vector_store %arg11[%c0_53, %c0_54], %48 {strides = array<i32>} : memref<288x64xf32, #tpu.memory_space<vmem>>, vector<288x64xf32>,
    %c0_55 = arith.constant 0 : index
    %c20 = arith.constant 20 : index
    %c0_56 = arith.constant 0 : index
    %50 = vector.load %arg2[%c0_55, %c20, %c0_56] : memref<1x328x8xf32, #tpu.memory_space<vmem>>, vector<1x288x8xf32>
    %51 = vector.shape_cast %50 : vector<1x288x8xf32> to vector<288x8xf32>
    %52 = arith.truncf %51 : vector<288x8xf32> to vector<288x8xbf16>
    %c0_57 = arith.constant 0 : index
    %c0_58 = arith.constant 0 : index
    %53 = vector.load %arg11[%c0_57, %c0_58] : memref<288x64xf32, #tpu.memory_space<vmem>>, vector<288x64xf32>
    %c5 = arith.constant 5 : index
    %c0_59 = arith.constant 0 : index
    %c0_60 = arith.constant 0 : index
    %54 = vector.load %arg3[%c5, %c0_59, %c0_60] : memref<9x8x64xbf16, #tpu.memory_space<vmem>>, vector<1x8x64xbf16>
    %55 = vector.shape_cast %54 : vector<1x8x64xbf16> to vector<8x64xbf16>
    %cst_61 = arith.constant dense<0.000000e+00> : vector<288x64xf32>
    %56 = tpu.matmul %52, %55, %cst_61 {dimension_numbers = #tpu.dot_dimension_numbers<[1], [0], [0], [1], [0, 0, 1, 1], [], []>} : vector<288x8xbf16>, vector<8x64xbf16>, vector<288x64xf32> -> vector<288x64xf32>
    %57 = arith.addf %53, %56 : vector<288x64xf32>
    %c0_62 = arith.constant 0 : index
    %c0_63 = arith.constant 0 : index
    %58 = vector.load %arg11[%c0_62, %c0_63] : memref<288x64xf32, #tpu.memory_space<vmem>>, vector<288x64xf32>
    tpu.vector_store %arg11[%c0_62, %c0_63], %57 {strides = array<i32>} : memref<288x64xf32, #tpu.memory_space<vmem>>, vector<288x64xf32>,
    %c0_64 = arith.constant 0 : index
    %c36 = arith.constant 36 : index
    %c0_65 = arith.constant 0 : index
    %59 = vector.load %arg2[%c0_64, %c36, %c0_65] : memref<1x328x8xf32, #tpu.memory_space<vmem>>, vector<1x288x8xf32>
    %60 = vector.shape_cast %59 : vector<1x288x8xf32> to vector<288x8xf32>
    %61 = arith.truncf %60 : vector<288x8xf32> to vector<288x8xbf16>
    %c0_66 = arith.constant 0 : index
    %c0_67 = arith.constant 0 : index
    %62 = vector.load %arg11[%c0_66, %c0_67] : memref<288x64xf32, #tpu.memory_space<vmem>>, vector<288x64xf32>
    %c6 = arith.constant 6 : index
    %c0_68 = arith.constant 0 : index
    %c0_69 = arith.constant 0 : index
    %63 = vector.load %arg3[%c6, %c0_68, %c0_69] : memref<9x8x64xbf16, #tpu.memory_space<vmem>>, vector<1x8x64xbf16>
    %64 = vector.shape_cast %63 : vector<1x8x64xbf16> to vector<8x64xbf16>
    %cst_70 = arith.constant dense<0.000000e+00> : vector<288x64xf32>
    %65 = tpu.matmul %61, %64, %cst_70 {dimension_numbers = #tpu.dot_dimension_numbers<[1], [0], [0], [1], [0, 0, 1, 1], [], []>} : vector<288x8xbf16>, vector<8x64xbf16>, vector<288x64xf32> -> vector<288x64xf32>
    %66 = arith.addf %62, %65 : vector<288x64xf32>
    %c0_71 = arith.constant 0 : index
    %c0_72 = arith.constant 0 : index
    %67 = vector.load %arg11[%c0_71, %c0_72] : memref<288x64xf32, #tpu.memory_space<vmem>>, vector<288x64xf32>
    tpu.vector_store %arg11[%c0_71, %c0_72], %66 {strides = array<i32>} : memref<288x64xf32, #tpu.memory_space<vmem>>, vector<288x64xf32>,
    %c0_73 = arith.constant 0 : index
    %c37 = arith.constant 37 : index
    %c0_74 = arith.constant 0 : index
    %68 = vector.load %arg2[%c0_73, %c37, %c0_74] : memref<1x328x8xf32, #tpu.memory_space<vmem>>, vector<1x288x8xf32>
    %69 = vector.shape_cast %68 : vector<1x288x8xf32> to vector<288x8xf32>
    %70 = arith.truncf %69 : vector<288x8xf32> to vector<288x8xbf16>
    %c0_75 = arith.constant 0 : index
    %c0_76 = arith.constant 0 : index
    %71 = vector.load %arg11[%c0_75, %c0_76] : memref<288x64xf32, #tpu.memory_space<vmem>>, vector<288x64xf32>
    %c7 = arith.constant 7 : index
    %c0_77 = arith.constant 0 : index
    %c0_78 = arith.constant 0 : index
    %72 = vector.load %arg3[%c7, %c0_77, %c0_78] : memref<9x8x64xbf16, #tpu.memory_space<vmem>>, vector<1x8x64xbf16>
    %73 = vector.shape_cast %72 : vector<1x8x64xbf16> to vector<8x64xbf16>
    %cst_79 = arith.constant dense<0.000000e+00> : vector<288x64xf32>
    %74 = tpu.matmul %70, %73, %cst_79 {dimension_numbers = #tpu.dot_dimension_numbers<[1], [0], [0], [1], [0, 0, 1, 1], [], []>} : vector<288x8xbf16>, vector<8x64xbf16>, vector<288x64xf32> -> vector<288x64xf32>
    %75 = arith.addf %71, %74 : vector<288x64xf32>
    %c0_80 = arith.constant 0 : index
    %c0_81 = arith.constant 0 : index
    %76 = vector.load %arg11[%c0_80, %c0_81] : memref<288x64xf32, #tpu.memory_space<vmem>>, vector<288x64xf32>
    tpu.vector_store %arg11[%c0_80, %c0_81], %75 {strides = array<i32>} : memref<288x64xf32, #tpu.memory_space<vmem>>, vector<288x64xf32>,
    %c0_82 = arith.constant 0 : index
    %c38 = arith.constant 38 : index
    %c0_83 = arith.constant 0 : index
    %77 = vector.load %arg2[%c0_82, %c38, %c0_83] : memref<1x328x8xf32, #tpu.memory_space<vmem>>, vector<1x288x8xf32>
    %78 = vector.shape_cast %77 : vector<1x288x8xf32> to vector<288x8xf32>
    %79 = arith.truncf %78 : vector<288x8xf32> to vector<288x8xbf16>
    %c0_84 = arith.constant 0 : index
    %c0_85 = arith.constant 0 : index
    %80 = vector.load %arg11[%c0_84, %c0_85] : memref<288x64xf32, #tpu.memory_space<vmem>>, vector<288x64xf32>
    %c8 = arith.constant 8 : index
    %c0_86 = arith.constant 0 : index
    %c0_87 = arith.constant 0 : index
    %81 = vector.load %arg3[%c8, %c0_86, %c0_87] : memref<9x8x64xbf16, #tpu.memory_space<vmem>>, vector<1x8x64xbf16>
    %82 = vector.shape_cast %81 : vector<1x8x64xbf16> to vector<8x64xbf16>
    %cst_88 = arith.constant dense<0.000000e+00> : vector<288x64xf32>
    %83 = tpu.matmul %79, %82, %cst_88 {dimension_numbers = #tpu.dot_dimension_numbers<[1], [0], [0], [1], [0, 0, 1, 1], [], []>} : vector<288x8xbf16>, vector<8x64xbf16>, vector<288x64xf32> -> vector<288x64xf32>
    %84 = arith.addf %80, %83 : vector<288x64xf32>
    %c0_89 = arith.constant 0 : index
    %c0_90 = arith.constant 0 : index
    %85 = vector.load %arg11[%c0_89, %c0_90] : memref<288x64xf32, #tpu.memory_space<vmem>>, vector<288x64xf32>
    tpu.vector_store %arg11[%c0_89, %c0_90], %84 {strides = array<i32>} : memref<288x64xf32, #tpu.memory_space<vmem>>, vector<288x64xf32>,
    %c0_91 = arith.constant 0 : index
    %c0_92 = arith.constant 0 : index
    %86 = vector.load %arg11[%c0_91, %c0_92] : memref<288x64xf32, #tpu.memory_space<vmem>>, vector<288x64xf32>
    %c0_93 = arith.constant 0 : index
    %c0_94 = arith.constant 0 : index
    %87 = vector.load %arg4[%c0_93, %c0_94] : memref<1x64xf32, #tpu.memory_space<vmem>>, vector<1x64xf32>
    %88 = vector.broadcast %87 : vector<1x64xf32> to vector<288x64xf32>
    %89 = arith.addf %86, %88 : vector<288x64xf32>
    %cst_95 = arith.constant 0.000000e+00 : f32
    %90 = vector.broadcast %cst_95 : f32 to vector<288x64xf32>
    %91 = arith.maximumf %89, %90 : vector<288x64xf32>
    %92 = vector.broadcast %0 : vector<288x1xf32> to vector<288x64xf32>
    %93 = arith.mulf %91, %92 : vector<288x64xf32>
    %c19_96 = arith.constant 19 : index
    %c0_97 = arith.constant 0 : index
    %94 = vector.load %arg12[%c19_96, %c0_97] : memref<328x64xf32, #tpu.memory_space<vmem>>, vector<288x64xf32>
    tpu.vector_store %arg12[%c19_96, %c0_97], %93 {strides = array<i32>} : memref<328x64xf32, #tpu.memory_space<vmem>>, vector<288x64xf32>,
    %c0_i32 = arith.constant 0 : i32
    %c15_i32 = arith.constant 15 : i32
    %95 = arith.addi %c0_i32, %c15_i32 : i32
    %c1_i32 = arith.constant 1 : i32
    scf.for %arg13 = %c0_i32 to %95 step %c1_i32  : i32 {
      %162 = arith.index_cast %arg13 : i32 to index
      %c0_166 = arith.constant 0 : index
      %c0_167 = arith.constant 0 : index
      %c0_168 = arith.constant 0 : index
      %163 = vector.load %arg5[%162, %c0_166, %c0_167, %c0_168] : memref<15x9x64x64xbf16, #tpu.memory_space<vmem>>, vector<1x9x64x64xbf16>
      %164 = vector.shape_cast %163 : vector<1x9x64x64xbf16> to vector<9x64x64xbf16>
      %165 = arith.index_cast %arg13 : i32 to index
      %c0_169 = arith.constant 0 : index
      %c0_170 = arith.constant 0 : index
      %166 = vector.load %arg6[%165, %c0_169, %c0_170] : memref<15x1x64xf32, #tpu.memory_space<vmem>>, vector<1x1x64xf32>
      %167 = vector.shape_cast %166 : vector<1x1x64xf32> to vector<1x64xf32>
      %168 = arith.index_cast %arg13 : i32 to index
      %c0_171 = arith.constant 0 : index
      %c0_172 = arith.constant 0 : index
      %169 = vector.load %arg7[%168, %c0_171, %c0_172] : memref<15x1x64xf32, #tpu.memory_space<vmem>>, vector<1x1x64xf32>
      %170 = vector.shape_cast %169 : vector<1x1x64xf32> to vector<1x64xf32>
      %cst_173 = arith.constant 0.000000e+00 : f32
      %171 = vector.broadcast %cst_173 : f32 to vector<288x64xf32>
      %c0_174 = arith.constant 0 : index
      %c0_175 = arith.constant 0 : index
      %172 = vector.load %arg11[%c0_174, %c0_175] : memref<288x64xf32, #tpu.memory_space<vmem>>, vector<288x64xf32>
      tpu.vector_store %arg11[%c0_174, %c0_175], %171 {strides = array<i32>} : memref<288x64xf32, #tpu.memory_space<vmem>>, vector<288x64xf32>,
      %c0_176 = arith.constant 0 : index
      %c0_177 = arith.constant 0 : index
      %173 = vector.load %arg12[%c0_176, %c0_177] : memref<328x64xf32, #tpu.memory_space<vmem>>, vector<288x64xf32>
      %174 = arith.truncf %173 : vector<288x64xf32> to vector<288x64xbf16>
      %c0_178 = arith.constant 0 : index
      %c0_179 = arith.constant 0 : index
      %175 = vector.load %arg11[%c0_178, %c0_179] : memref<288x64xf32, #tpu.memory_space<vmem>>, vector<288x64xf32>
      %176 = vector.extract_strided_slice %164 {offsets = [0, 0, 0], sizes = [1, 64, 64], strides = [1, 1, 1]} : vector<9x64x64xbf16> to vector<1x64x64xbf16>
      %177 = vector.shape_cast %176 : vector<1x64x64xbf16> to vector<64x64xbf16>
      %cst_180 = arith.constant dense<0.000000e+00> : vector<288x64xf32>
      %178 = tpu.matmul %174, %177, %cst_180 {dimension_numbers = #tpu.dot_dimension_numbers<[1], [0], [0], [1], [0, 0, 1, 1], [], []>} : vector<288x64xbf16>, vector<64x64xbf16>, vector<288x64xf32> -> vector<288x64xf32>
      %179 = arith.addf %175, %178 : vector<288x64xf32>
      %c0_181 = arith.constant 0 : index
      %c0_182 = arith.constant 0 : index
      %180 = vector.load %arg11[%c0_181, %c0_182] : memref<288x64xf32, #tpu.memory_space<vmem>>, vector<288x64xf32>
      tpu.vector_store %arg11[%c0_181, %c0_182], %179 {strides = array<i32>} : memref<288x64xf32, #tpu.memory_space<vmem>>, vector<288x64xf32>,
      %c1_183 = arith.constant 1 : index
      %c0_184 = arith.constant 0 : index
      %181 = vector.load %arg12[%c1_183, %c0_184] : memref<328x64xf32, #tpu.memory_space<vmem>>, vector<288x64xf32>
      %182 = arith.truncf %181 : vector<288x64xf32> to vector<288x64xbf16>
      %c0_185 = arith.constant 0 : index
      %c0_186 = arith.constant 0 : index
      %183 = vector.load %arg11[%c0_185, %c0_186] : memref<288x64xf32, #tpu.memory_space<vmem>>, vector<288x64xf32>
      %184 = vector.extract_strided_slice %164 {offsets = [1, 0, 0], sizes = [1, 64, 64], strides = [1, 1, 1]} : vector<9x64x64xbf16> to vector<1x64x64xbf16>
      %185 = vector.shape_cast %184 : vector<1x64x64xbf16> to vector<64x64xbf16>
      %cst_187 = arith.constant dense<0.000000e+00> : vector<288x64xf32>
      %186 = tpu.matmul %182, %185, %cst_187 {dimension_numbers = #tpu.dot_dimension_numbers<[1], [0], [0], [1], [0, 0, 1, 1], [], []>} : vector<288x64xbf16>, vector<64x64xbf16>, vector<288x64xf32> -> vector<288x64xf32>
      %187 = arith.addf %183, %186 : vector<288x64xf32>
      %c0_188 = arith.constant 0 : index
      %c0_189 = arith.constant 0 : index
      %188 = vector.load %arg11[%c0_188, %c0_189] : memref<288x64xf32, #tpu.memory_space<vmem>>, vector<288x64xf32>
      tpu.vector_store %arg11[%c0_188, %c0_189], %187 {strides = array<i32>} : memref<288x64xf32, #tpu.memory_space<vmem>>, vector<288x64xf32>,
      %c2_190 = arith.constant 2 : index
      %c0_191 = arith.constant 0 : index
      %189 = vector.load %arg12[%c2_190, %c0_191] : memref<328x64xf32, #tpu.memory_space<vmem>>, vector<288x64xf32>
      %190 = arith.truncf %189 : vector<288x64xf32> to vector<288x64xbf16>
      %c0_192 = arith.constant 0 : index
      %c0_193 = arith.constant 0 : index
      %191 = vector.load %arg11[%c0_192, %c0_193] : memref<288x64xf32, #tpu.memory_space<vmem>>, vector<288x64xf32>
      %192 = vector.extract_strided_slice %164 {offsets = [2, 0, 0], sizes = [1, 64, 64], strides = [1, 1, 1]} : vector<9x64x64xbf16> to vector<1x64x64xbf16>
      %193 = vector.shape_cast %192 : vector<1x64x64xbf16> to vector<64x64xbf16>
      %cst_194 = arith.constant dense<0.000000e+00> : vector<288x64xf32>
      %194 = tpu.matmul %190, %193, %cst_194 {dimension_numbers = #tpu.dot_dimension_numbers<[1], [0], [0], [1], [0, 0, 1, 1], [], []>} : vector<288x64xbf16>, vector<64x64xbf16>, vector<288x64xf32> -> vector<288x64xf32>
      %195 = arith.addf %191, %194 : vector<288x64xf32>
      %c0_195 = arith.constant 0 : index
      %c0_196 = arith.constant 0 : index
      %196 = vector.load %arg11[%c0_195, %c0_196] : memref<288x64xf32, #tpu.memory_space<vmem>>, vector<288x64xf32>
      tpu.vector_store %arg11[%c0_195, %c0_196], %195 {strides = array<i32>} : memref<288x64xf32, #tpu.memory_space<vmem>>, vector<288x64xf32>,
      %c18_197 = arith.constant 18 : index
      %c0_198 = arith.constant 0 : index
      %197 = vector.load %arg12[%c18_197, %c0_198] : memref<328x64xf32, #tpu.memory_space<vmem>>, vector<288x64xf32>
      %198 = arith.truncf %197 : vector<288x64xf32> to vector<288x64xbf16>
      %c0_199 = arith.constant 0 : index
      %c0_200 = arith.constant 0 : index
      %199 = vector.load %arg11[%c0_199, %c0_200] : memref<288x64xf32, #tpu.memory_space<vmem>>, vector<288x64xf32>
      %200 = vector.extract_strided_slice %164 {offsets = [3, 0, 0], sizes = [1, 64, 64], strides = [1, 1, 1]} : vector<9x64x64xbf16> to vector<1x64x64xbf16>
      %201 = vector.shape_cast %200 : vector<1x64x64xbf16> to vector<64x64xbf16>
      %cst_201 = arith.constant dense<0.000000e+00> : vector<288x64xf32>
      %202 = tpu.matmul %198, %201, %cst_201 {dimension_numbers = #tpu.dot_dimension_numbers<[1], [0], [0], [1], [0, 0, 1, 1], [], []>} : vector<288x64xbf16>, vector<64x64xbf16>, vector<288x64xf32> -> vector<288x64xf32>
      %203 = arith.addf %199, %202 : vector<288x64xf32>
      %c0_202 = arith.constant 0 : index
      %c0_203 = arith.constant 0 : index
      %204 = vector.load %arg11[%c0_202, %c0_203] : memref<288x64xf32, #tpu.memory_space<vmem>>, vector<288x64xf32>
      tpu.vector_store %arg11[%c0_202, %c0_203], %203 {strides = array<i32>} : memref<288x64xf32, #tpu.memory_space<vmem>>, vector<288x64xf32>,
      %c19_204 = arith.constant 19 : index
      %c0_205 = arith.constant 0 : index
      %205 = vector.load %arg12[%c19_204, %c0_205] : memref<328x64xf32, #tpu.memory_space<vmem>>, vector<288x64xf32>
      %206 = arith.truncf %205 : vector<288x64xf32> to vector<288x64xbf16>
      %c0_206 = arith.constant 0 : index
      %c0_207 = arith.constant 0 : index
      %207 = vector.load %arg11[%c0_206, %c0_207] : memref<288x64xf32, #tpu.memory_space<vmem>>, vector<288x64xf32>
      %208 = vector.extract_strided_slice %164 {offsets = [4, 0, 0], sizes = [1, 64, 64], strides = [1, 1, 1]} : vector<9x64x64xbf16> to vector<1x64x64xbf16>
      %209 = vector.shape_cast %208 : vector<1x64x64xbf16> to vector<64x64xbf16>
      %cst_208 = arith.constant dense<0.000000e+00> : vector<288x64xf32>
      %210 = tpu.matmul %206, %209, %cst_208 {dimension_numbers = #tpu.dot_dimension_numbers<[1], [0], [0], [1], [0, 0, 1, 1], [], []>} : vector<288x64xbf16>, vector<64x64xbf16>, vector<288x64xf32> -> vector<288x64xf32>
      %211 = arith.addf %207, %210 : vector<288x64xf32>
      %c0_209 = arith.constant 0 : index
      %c0_210 = arith.constant 0 : index
      %212 = vector.load %arg11[%c0_209, %c0_210] : memref<288x64xf32, #tpu.memory_space<vmem>>, vector<288x64xf32>
      tpu.vector_store %arg11[%c0_209, %c0_210], %211 {strides = array<i32>} : memref<288x64xf32, #tpu.memory_space<vmem>>, vector<288x64xf32>,
      %c20_211 = arith.constant 20 : index
      %c0_212 = arith.constant 0 : index
      %213 = vector.load %arg12[%c20_211, %c0_212] : memref<328x64xf32, #tpu.memory_space<vmem>>, vector<288x64xf32>
      %214 = arith.truncf %213 : vector<288x64xf32> to vector<288x64xbf16>
      %c0_213 = arith.constant 0 : index
      %c0_214 = arith.constant 0 : index
      %215 = vector.load %arg11[%c0_213, %c0_214] : memref<288x64xf32, #tpu.memory_space<vmem>>, vector<288x64xf32>
      %216 = vector.extract_strided_slice %164 {offsets = [5, 0, 0], sizes = [1, 64, 64], strides = [1, 1, 1]} : vector<9x64x64xbf16> to vector<1x64x64xbf16>
      %217 = vector.shape_cast %216 : vector<1x64x64xbf16> to vector<64x64xbf16>
      %cst_215 = arith.constant dense<0.000000e+00> : vector<288x64xf32>
      %218 = tpu.matmul %214, %217, %cst_215 {dimension_numbers = #tpu.dot_dimension_numbers<[1], [0], [0], [1], [0, 0, 1, 1], [], []>} : vector<288x64xbf16>, vector<64x64xbf16>, vector<288x64xf32> -> vector<288x64xf32>
      %219 = arith.addf %215, %218 : vector<288x64xf32>
      %c0_216 = arith.constant 0 : index
      %c0_217 = arith.constant 0 : index
      %220 = vector.load %arg11[%c0_216, %c0_217] : memref<288x64xf32, #tpu.memory_space<vmem>>, vector<288x64xf32>
      tpu.vector_store %arg11[%c0_216, %c0_217], %219 {strides = array<i32>} : memref<288x64xf32, #tpu.memory_space<vmem>>, vector<288x64xf32>,
      %c36_218 = arith.constant 36 : index
      %c0_219 = arith.constant 0 : index
      %221 = vector.load %arg12[%c36_218, %c0_219] : memref<328x64xf32, #tpu.memory_space<vmem>>, vector<288x64xf32>
      %222 = arith.truncf %221 : vector<288x64xf32> to vector<288x64xbf16>
      %c0_220 = arith.constant 0 : index
      %c0_221 = arith.constant 0 : index
      %223 = vector.load %arg11[%c0_220, %c0_221] : memref<288x64xf32, #tpu.memory_space<vmem>>, vector<288x64xf32>
      %224 = vector.extract_strided_slice %164 {offsets = [6, 0, 0], sizes = [1, 64, 64], strides = [1, 1, 1]} : vector<9x64x64xbf16> to vector<1x64x64xbf16>
      %225 = vector.shape_cast %224 : vector<1x64x64xbf16> to vector<64x64xbf16>
      %cst_222 = arith.constant dense<0.000000e+00> : vector<288x64xf32>
      %226 = tpu.matmul %222, %225, %cst_222 {dimension_numbers = #tpu.dot_dimension_numbers<[1], [0], [0], [1], [0, 0, 1, 1], [], []>} : vector<288x64xbf16>, vector<64x64xbf16>, vector<288x64xf32> -> vector<288x64xf32>
      %227 = arith.addf %223, %226 : vector<288x64xf32>
      %c0_223 = arith.constant 0 : index
      %c0_224 = arith.constant 0 : index
      %228 = vector.load %arg11[%c0_223, %c0_224] : memref<288x64xf32, #tpu.memory_space<vmem>>, vector<288x64xf32>
      tpu.vector_store %arg11[%c0_223, %c0_224], %227 {strides = array<i32>} : memref<288x64xf32, #tpu.memory_space<vmem>>, vector<288x64xf32>,
      %c37_225 = arith.constant 37 : index
      %c0_226 = arith.constant 0 : index
      %229 = vector.load %arg12[%c37_225, %c0_226] : memref<328x64xf32, #tpu.memory_space<vmem>>, vector<288x64xf32>
      %230 = arith.truncf %229 : vector<288x64xf32> to vector<288x64xbf16>
      %c0_227 = arith.constant 0 : index
      %c0_228 = arith.constant 0 : index
      %231 = vector.load %arg11[%c0_227, %c0_228] : memref<288x64xf32, #tpu.memory_space<vmem>>, vector<288x64xf32>
      %232 = vector.extract_strided_slice %164 {offsets = [7, 0, 0], sizes = [1, 64, 64], strides = [1, 1, 1]} : vector<9x64x64xbf16> to vector<1x64x64xbf16>
      %233 = vector.shape_cast %232 : vector<1x64x64xbf16> to vector<64x64xbf16>
      %cst_229 = arith.constant dense<0.000000e+00> : vector<288x64xf32>
      %234 = tpu.matmul %230, %233, %cst_229 {dimension_numbers = #tpu.dot_dimension_numbers<[1], [0], [0], [1], [0, 0, 1, 1], [], []>} : vector<288x64xbf16>, vector<64x64xbf16>, vector<288x64xf32> -> vector<288x64xf32>
      %235 = arith.addf %231, %234 : vector<288x64xf32>
      %c0_230 = arith.constant 0 : index
      %c0_231 = arith.constant 0 : index
      %236 = vector.load %arg11[%c0_230, %c0_231] : memref<288x64xf32, #tpu.memory_space<vmem>>, vector<288x64xf32>
      tpu.vector_store %arg11[%c0_230, %c0_231], %235 {strides = array<i32>} : memref<288x64xf32, #tpu.memory_space<vmem>>, vector<288x64xf32>,
      %c38_232 = arith.constant 38 : index
      %c0_233 = arith.constant 0 : index
      %237 = vector.load %arg12[%c38_232, %c0_233] : memref<328x64xf32, #tpu.memory_space<vmem>>, vector<288x64xf32>
      %238 = arith.truncf %237 : vector<288x64xf32> to vector<288x64xbf16>
      %c0_234 = arith.constant 0 : index
      %c0_235 = arith.constant 0 : index
      %239 = vector.load %arg11[%c0_234, %c0_235] : memref<288x64xf32, #tpu.memory_space<vmem>>, vector<288x64xf32>
      %240 = vector.extract_strided_slice %164 {offsets = [8, 0, 0], sizes = [1, 64, 64], strides = [1, 1, 1]} : vector<9x64x64xbf16> to vector<1x64x64xbf16>
      %241 = vector.shape_cast %240 : vector<1x64x64xbf16> to vector<64x64xbf16>
      %cst_236 = arith.constant dense<0.000000e+00> : vector<288x64xf32>
      %242 = tpu.matmul %238, %241, %cst_236 {dimension_numbers = #tpu.dot_dimension_numbers<[1], [0], [0], [1], [0, 0, 1, 1], [], []>} : vector<288x64xbf16>, vector<64x64xbf16>, vector<288x64xf32> -> vector<288x64xf32>
      %243 = arith.addf %239, %242 : vector<288x64xf32>
      %c0_237 = arith.constant 0 : index
      %c0_238 = arith.constant 0 : index
      %244 = vector.load %arg11[%c0_237, %c0_238] : memref<288x64xf32, #tpu.memory_space<vmem>>, vector<288x64xf32>
      tpu.vector_store %arg11[%c0_237, %c0_238], %243 {strides = array<i32>} : memref<288x64xf32, #tpu.memory_space<vmem>>, vector<288x64xf32>,
      %c0_239 = arith.constant 0 : index
      %c0_240 = arith.constant 0 : index
      %245 = vector.load %arg11[%c0_239, %c0_240] : memref<288x64xf32, #tpu.memory_space<vmem>>, vector<288x64xf32>
      %246 = vector.broadcast %167 : vector<1x64xf32> to vector<288x64xf32>
      %247 = arith.mulf %245, %246 : vector<288x64xf32>
      %248 = vector.broadcast %170 : vector<1x64xf32> to vector<288x64xf32>
      %249 = arith.addf %247, %248 : vector<288x64xf32>
      %cst_241 = arith.constant 0.000000e+00 : f32
      %250 = vector.broadcast %cst_241 : f32 to vector<288x64xf32>
      %251 = arith.maximumf %249, %250 : vector<288x64xf32>
      %252 = vector.broadcast %0 : vector<288x1xf32> to vector<288x64xf32>
      %253 = arith.mulf %251, %252 : vector<288x64xf32>
      %c19_242 = arith.constant 19 : index
      %c0_243 = arith.constant 0 : index
      %254 = vector.load %arg12[%c19_242, %c0_243] : memref<328x64xf32, #tpu.memory_space<vmem>>, vector<288x64xf32>
      tpu.vector_store %arg12[%c19_242, %c0_243], %253 {strides = array<i32>} : memref<328x64xf32, #tpu.memory_space<vmem>>, vector<288x64xf32>,
    }
    %c15_i32_98 = arith.constant 15 : i32
    %cst_99 = arith.constant 0.000000e+00 : f32
    %96 = vector.broadcast %cst_99 : f32 to vector<288x8xf32>
    %c0_100 = arith.constant 0 : index
    %c0_101 = arith.constant 0 : index
    %97 = vector.load %arg12[%c0_100, %c0_101] : memref<328x64xf32, #tpu.memory_space<vmem>>, vector<288x64xf32>
    %98 = arith.truncf %97 : vector<288x64xf32> to vector<288x64xbf16>
    %c0_102 = arith.constant 0 : index
    %c0_103 = arith.constant 0 : index
    %c0_104 = arith.constant 0 : index
    %99 = vector.load %arg8[%c0_102, %c0_103, %c0_104] : memref<9x64x8xbf16, #tpu.memory_space<vmem>>, vector<1x64x8xbf16>
    %100 = vector.shape_cast %99 : vector<1x64x8xbf16> to vector<64x8xbf16>
    %cst_105 = arith.constant dense<0.000000e+00> : vector<288x8xf32>
    %101 = tpu.matmul %98, %100, %cst_105 {dimension_numbers = #tpu.dot_dimension_numbers<[1], [0], [0], [1], [0, 0, 1, 1], [], []>} : vector<288x64xbf16>, vector<64x8xbf16>, vector<288x8xf32> -> vector<288x8xf32>
    %102 = arith.addf %96, %101 : vector<288x8xf32>
    %c1_106 = arith.constant 1 : index
    %c0_107 = arith.constant 0 : index
    %103 = vector.load %arg12[%c1_106, %c0_107] : memref<328x64xf32, #tpu.memory_space<vmem>>, vector<288x64xf32>
    %104 = arith.truncf %103 : vector<288x64xf32> to vector<288x64xbf16>
    %c1_108 = arith.constant 1 : index
    %c0_109 = arith.constant 0 : index
    %c0_110 = arith.constant 0 : index
    %105 = vector.load %arg8[%c1_108, %c0_109, %c0_110] : memref<9x64x8xbf16, #tpu.memory_space<vmem>>, vector<1x64x8xbf16>
    %106 = vector.shape_cast %105 : vector<1x64x8xbf16> to vector<64x8xbf16>
    %cst_111 = arith.constant dense<0.000000e+00> : vector<288x8xf32>
    %107 = tpu.matmul %104, %106, %cst_111 {dimension_numbers = #tpu.dot_dimension_numbers<[1], [0], [0], [1], [0, 0, 1, 1], [], []>} : vector<288x64xbf16>, vector<64x8xbf16>, vector<288x8xf32> -> vector<288x8xf32>
    %108 = arith.addf %102, %107 : vector<288x8xf32>
    %c2_112 = arith.constant 2 : index
    %c0_113 = arith.constant 0 : index
    %109 = vector.load %arg12[%c2_112, %c0_113] : memref<328x64xf32, #tpu.memory_space<vmem>>, vector<288x64xf32>
    %110 = arith.truncf %109 : vector<288x64xf32> to vector<288x64xbf16>
    %c2_114 = arith.constant 2 : index
    %c0_115 = arith.constant 0 : index
    %c0_116 = arith.constant 0 : index
    %111 = vector.load %arg8[%c2_114, %c0_115, %c0_116] : memref<9x64x8xbf16, #tpu.memory_space<vmem>>, vector<1x64x8xbf16>
    %112 = vector.shape_cast %111 : vector<1x64x8xbf16> to vector<64x8xbf16>
    %cst_117 = arith.constant dense<0.000000e+00> : vector<288x8xf32>
    %113 = tpu.matmul %110, %112, %cst_117 {dimension_numbers = #tpu.dot_dimension_numbers<[1], [0], [0], [1], [0, 0, 1, 1], [], []>} : vector<288x64xbf16>, vector<64x8xbf16>, vector<288x8xf32> -> vector<288x8xf32>
    %114 = arith.addf %108, %113 : vector<288x8xf32>
    %c18_118 = arith.constant 18 : index
    %c0_119 = arith.constant 0 : index
    %115 = vector.load %arg12[%c18_118, %c0_119] : memref<328x64xf32, #tpu.memory_space<vmem>>, vector<288x64xf32>
    %116 = arith.truncf %115 : vector<288x64xf32> to vector<288x64xbf16>
    %c3_120 = arith.constant 3 : index
    %c0_121 = arith.constant 0 : index
    %c0_122 = arith.constant 0 : index
    %117 = vector.load %arg8[%c3_120, %c0_121, %c0_122] : memref<9x64x8xbf16, #tpu.memory_space<vmem>>, vector<1x64x8xbf16>
    %118 = vector.shape_cast %117 : vector<1x64x8xbf16> to vector<64x8xbf16>
    %cst_123 = arith.constant dense<0.000000e+00> : vector<288x8xf32>
    %119 = tpu.matmul %116, %118, %cst_123 {dimension_numbers = #tpu.dot_dimension_numbers<[1], [0], [0], [1], [0, 0, 1, 1], [], []>} : vector<288x64xbf16>, vector<64x8xbf16>, vector<288x8xf32> -> vector<288x8xf32>
    %120 = arith.addf %114, %119 : vector<288x8xf32>
    %c19_124 = arith.constant 19 : index
    %c0_125 = arith.constant 0 : index
    %121 = vector.load %arg12[%c19_124, %c0_125] : memref<328x64xf32, #tpu.memory_space<vmem>>, vector<288x64xf32>
    %122 = arith.truncf %121 : vector<288x64xf32> to vector<288x64xbf16>
    %c4_126 = arith.constant 4 : index
    %c0_127 = arith.constant 0 : index
    %c0_128 = arith.constant 0 : index
    %123 = vector.load %arg8[%c4_126, %c0_127, %c0_128] : memref<9x64x8xbf16, #tpu.memory_space<vmem>>, vector<1x64x8xbf16>
    %124 = vector.shape_cast %123 : vector<1x64x8xbf16> to vector<64x8xbf16>
    %cst_129 = arith.constant dense<0.000000e+00> : vector<288x8xf32>
    %125 = tpu.matmul %122, %124, %cst_129 {dimension_numbers = #tpu.dot_dimension_numbers<[1], [0], [0], [1], [0, 0, 1, 1], [], []>} : vector<288x64xbf16>, vector<64x8xbf16>, vector<288x8xf32> -> vector<288x8xf32>
    %126 = arith.addf %120, %125 : vector<288x8xf32>
    %c20_130 = arith.constant 20 : index
    %c0_131 = arith.constant 0 : index
    %127 = vector.load %arg12[%c20_130, %c0_131] : memref<328x64xf32, #tpu.memory_space<vmem>>, vector<288x64xf32>
    %128 = arith.truncf %127 : vector<288x64xf32> to vector<288x64xbf16>
    %c5_132 = arith.constant 5 : index
    %c0_133 = arith.constant 0 : index
    %c0_134 = arith.constant 0 : index
    %129 = vector.load %arg8[%c5_132, %c0_133, %c0_134] : memref<9x64x8xbf16, #tpu.memory_space<vmem>>, vector<1x64x8xbf16>
    %130 = vector.shape_cast %129 : vector<1x64x8xbf16> to vector<64x8xbf16>
    %cst_135 = arith.constant dense<0.000000e+00> : vector<288x8xf32>
    %131 = tpu.matmul %128, %130, %cst_135 {dimension_numbers = #tpu.dot_dimension_numbers<[1], [0], [0], [1], [0, 0, 1, 1], [], []>} : vector<288x64xbf16>, vector<64x8xbf16>, vector<288x8xf32> -> vector<288x8xf32>
    %132 = arith.addf %126, %131 : vector<288x8xf32>
    %c36_136 = arith.constant 36 : index
    %c0_137 = arith.constant 0 : index
    %133 = vector.load %arg12[%c36_136, %c0_137] : memref<328x64xf32, #tpu.memory_space<vmem>>, vector<288x64xf32>
    %134 = arith.truncf %133 : vector<288x64xf32> to vector<288x64xbf16>
    %c6_138 = arith.constant 6 : index
    %c0_139 = arith.constant 0 : index
    %c0_140 = arith.constant 0 : index
    %135 = vector.load %arg8[%c6_138, %c0_139, %c0_140] : memref<9x64x8xbf16, #tpu.memory_space<vmem>>, vector<1x64x8xbf16>
    %136 = vector.shape_cast %135 : vector<1x64x8xbf16> to vector<64x8xbf16>
    %cst_141 = arith.constant dense<0.000000e+00> : vector<288x8xf32>
    %137 = tpu.matmul %134, %136, %cst_141 {dimension_numbers = #tpu.dot_dimension_numbers<[1], [0], [0], [1], [0, 0, 1, 1], [], []>} : vector<288x64xbf16>, vector<64x8xbf16>, vector<288x8xf32> -> vector<288x8xf32>
    %138 = arith.addf %132, %137 : vector<288x8xf32>
    %c37_142 = arith.constant 37 : index
    %c0_143 = arith.constant 0 : index
    %139 = vector.load %arg12[%c37_142, %c0_143] : memref<328x64xf32, #tpu.memory_space<vmem>>, vector<288x64xf32>
    %140 = arith.truncf %139 : vector<288x64xf32> to vector<288x64xbf16>
    %c7_144 = arith.constant 7 : index
    %c0_145 = arith.constant 0 : index
    %c0_146 = arith.constant 0 : index
    %141 = vector.load %arg8[%c7_144, %c0_145, %c0_146] : memref<9x64x8xbf16, #tpu.memory_space<vmem>>, vector<1x64x8xbf16>
    %142 = vector.shape_cast %141 : vector<1x64x8xbf16> to vector<64x8xbf16>
    %cst_147 = arith.constant dense<0.000000e+00> : vector<288x8xf32>
    %143 = tpu.matmul %140, %142, %cst_147 {dimension_numbers = #tpu.dot_dimension_numbers<[1], [0], [0], [1], [0, 0, 1, 1], [], []>} : vector<288x64xbf16>, vector<64x8xbf16>, vector<288x8xf32> -> vector<288x8xf32>
    %144 = arith.addf %138, %143 : vector<288x8xf32>
    %c38_148 = arith.constant 38 : index
    %c0_149 = arith.constant 0 : index
    %145 = vector.load %arg12[%c38_148, %c0_149] : memref<328x64xf32, #tpu.memory_space<vmem>>, vector<288x64xf32>
    %146 = arith.truncf %145 : vector<288x64xf32> to vector<288x64xbf16>
    %c8_150 = arith.constant 8 : index
    %c0_151 = arith.constant 0 : index
    %c0_152 = arith.constant 0 : index
    %147 = vector.load %arg8[%c8_150, %c0_151, %c0_152] : memref<9x64x8xbf16, #tpu.memory_space<vmem>>, vector<1x64x8xbf16>
    %148 = vector.shape_cast %147 : vector<1x64x8xbf16> to vector<64x8xbf16>
    %cst_153 = arith.constant dense<0.000000e+00> : vector<288x8xf32>
    %149 = tpu.matmul %146, %148, %cst_153 {dimension_numbers = #tpu.dot_dimension_numbers<[1], [0], [0], [1], [0, 0, 1, 1], [], []>} : vector<288x64xbf16>, vector<64x8xbf16>, vector<288x8xf32> -> vector<288x8xf32>
    %150 = arith.addf %144, %149 : vector<288x8xf32>
    %c0_154 = arith.constant 0 : index
    %c0_155 = arith.constant 0 : index
    %151 = vector.load %arg9[%c0_154, %c0_155] : memref<1x8xf32, #tpu.memory_space<vmem>>, vector<1x8xf32>
    %152 = vector.broadcast %151 : vector<1x8xf32> to vector<288x8xf32>
    %153 = arith.addf %150, %152 : vector<288x8xf32>
    %c0_156 = arith.constant 0 : index
    %c19_157 = arith.constant 19 : index
    %c0_158 = arith.constant 0 : index
    %154 = vector.load %arg2[%c0_156, %c19_157, %c0_158] : memref<1x328x8xf32, #tpu.memory_space<vmem>>, vector<1x288x8xf32>
    %155 = vector.shape_cast %154 : vector<1x288x8xf32> to vector<288x8xf32>
    %cst_159 = arith.constant 0.000000e+00 : f32
    %156 = vector.broadcast %cst_159 : f32 to vector<1x328x8xf32>
    %c0_160 = arith.constant 0 : index
    %c0_161 = arith.constant 0 : index
    %c0_162 = arith.constant 0 : index
    %157 = vector.load %arg10[%c0_160, %c0_161, %c0_162] : memref<1x328x8xf32, #tpu.memory_space<vmem>>, vector<1x328x8xf32>
    tpu.vector_store %arg10[%c0_160, %c0_161, %c0_162], %156 {strides = array<i32>} : memref<1x328x8xf32, #tpu.memory_space<vmem>>, vector<1x328x8xf32>,
    %158 = arith.subf %155, %153 : vector<288x8xf32>
    %c0_163 = arith.constant 0 : index
    %c19_164 = arith.constant 19 : index
    %c0_165 = arith.constant 0 : index
    %159 = vector.load %arg10[%c0_163, %c19_164, %c0_165] : memref<1x328x8xf32, #tpu.memory_space<vmem>>, vector<1x288x8xf32>
    %160 = vector.shape_cast %159 : vector<1x288x8xf32> to vector<288x8xf32>
    %161 = vector.shape_cast %158 : vector<288x8xf32> to vector<1x288x8xf32>
    tpu.vector_store %arg10[%c0_163, %c19_164, %c0_165], %161 {strides = array<i32>} : memref<1x328x8xf32, #tpu.memory_space<vmem>>, vector<1x288x8xf32>,
    return
  }
  func.func @transform_0(%arg0: i32) -> (i32, i32) {
    %c0_i32 = arith.constant 0 : i32
    %c0_i32_0 = arith.constant 0 : i32
    %c0_i32_1 = arith.constant 0 : i32
    return %c0_i32, %c0_i32_0 : i32, i32
  }
  func.func @transform_1(%arg0: i32) -> (i32, i32, i32) {
    %c0_i32 = arith.constant 0 : i32
    %c0_i32_0 = arith.constant 0 : i32
    %c0_i32_1 = arith.constant 0 : i32
    return %arg0, %c0_i32, %c0_i32_0 : i32, i32, i32
  }
  func.func @transform_2(%arg0: i32) -> (i32, i32, i32) {
    %c0_i32 = arith.constant 0 : i32
    %c0_i32_0 = arith.constant 0 : i32
    %c0_i32_1 = arith.constant 0 : i32
    %c0_i32_2 = arith.constant 0 : i32
    return %c0_i32, %c0_i32_0, %c0_i32_1 : i32, i32, i32
  }
  func.func @transform_3(%arg0: i32) -> (i32, i32) {
    %c0_i32 = arith.constant 0 : i32
    %c0_i32_0 = arith.constant 0 : i32
    %c0_i32_1 = arith.constant 0 : i32
    return %c0_i32, %c0_i32_0 : i32, i32
  }
  func.func @transform_4(%arg0: i32) -> (i32, i32, i32, i32) {
    %c0_i32 = arith.constant 0 : i32
    %c0_i32_0 = arith.constant 0 : i32
    %c0_i32_1 = arith.constant 0 : i32
    %c0_i32_2 = arith.constant 0 : i32
    %c0_i32_3 = arith.constant 0 : i32
    return %c0_i32, %c0_i32_0, %c0_i32_1, %c0_i32_2 : i32, i32, i32, i32
  }
  func.func @transform_5(%arg0: i32) -> (i32, i32, i32) {
    %c0_i32 = arith.constant 0 : i32
    %c0_i32_0 = arith.constant 0 : i32
    %c0_i32_1 = arith.constant 0 : i32
    %c0_i32_2 = arith.constant 0 : i32
    return %c0_i32, %c0_i32_0, %c0_i32_1 : i32, i32, i32
  }
  func.func @transform_6(%arg0: i32) -> (i32, i32, i32) {
    %c0_i32 = arith.constant 0 : i32
    %c0_i32_0 = arith.constant 0 : i32
    %c0_i32_1 = arith.constant 0 : i32
    %c0_i32_2 = arith.constant 0 : i32
    return %c0_i32, %c0_i32_0, %c0_i32_1 : i32, i32, i32
  }
  func.func @transform_7(%arg0: i32) -> (i32, i32, i32) {
    %c0_i32 = arith.constant 0 : i32
    %c0_i32_0 = arith.constant 0 : i32
    %c0_i32_1 = arith.constant 0 : i32
    %c0_i32_2 = arith.constant 0 : i32
    return %c0_i32, %c0_i32_0, %c0_i32_1 : i32, i32, i32
  }
  func.func @transform_8(%arg0: i32) -> (i32, i32) {
    %c0_i32 = arith.constant 0 : i32
    %c0_i32_0 = arith.constant 0 : i32
    %c0_i32_1 = arith.constant 0 : i32
    return %c0_i32, %c0_i32_0 : i32, i32
  }
  func.func @transform_9(%arg0: i32) -> (i32, i32, i32) {
    %c0_i32 = arith.constant 0 : i32
    %c0_i32_0 = arith.constant 0 : i32
    %c0_i32_1 = arith.constant 0 : i32
    return %arg0, %c0_i32, %c0_i32_0 : i32, i32, i32
  }
}

</mosaic_0001>

<llo_original>
// kernel: _lambda_.1
$region0: #{_lambda_.1}
  #allocation0 [shape = 'u32[]', space=smem, size = 0x4, offset = 0x4, fixed_abs, tag = 'smem constant byte address 0x4 - core index']
  #allocation1 [shape = 'u32[72,128]{1,0:T(1,128)}', space=vmem, size = 0x9000, scoped, tag = 'internal scratch']
  #allocation2 [shape = 'f32[288,64]{1,0:T(8,128)}', space=vmem, size = 0x24000, scoped, tag = 'scratch operand']
  #allocation3 [shape = 'f32[328,64]{1,0:T(8,128)}', space=vmem, size = 0x29000, scoped, tag = 'scratch operand']
  %s0 = inlined_call_operand.vmem [shape: f32[288,1], index: 0, kind: input, shape index: {}]
  %s1 = inlined_call_operand.vmem [shape: f32[2,328,8], index: 1, kind: input, shape index: {}]
  %s2 = inlined_call_operand.hbm [shape: bf16[9,8,64], index: 2, kind: input, shape index: {}]
  %s3 = inlined_call_operand.hbm [shape: f32[1,64], index: 3, kind: input, shape index: {}]
  %s4 = inlined_call_operand.hbm [shape: bf16[15,9,64,64], index: 4, kind: input, shape index: {}]
  %s5 = inlined_call_operand.hbm [shape: f32[15,1,64], index: 5, kind: input, shape index: {}]
  %s6 = inlined_call_operand.hbm [shape: f32[15,1,64], index: 6, kind: input, shape index: {}]
  %s7 = inlined_call_operand.hbm [shape: bf16[9,64,8], index: 7, kind: input, shape index: {}]
  %s8 = inlined_call_operand.vmem [shape: f32[1,8], index: 8, kind: input, shape index: {}]
  %s9 = inlined_call_operand.vmem [shape: f32[2,328,8], index: 9, kind: output, shape index: {}]
  %s10 = sld [smem:[#allocation0]]
  $region100: #{_lambda_.1} parent=0
    _
  %s12 = ssub.s32 1, %s10
  %s13 = scalar_select 0, %s12, %s10
  $region1: #{_lambda_.1} parent=0
    #allocation4 [shape = 'u8[18432]{0}', space=vmem, size = 0x4800, scoped, tag = 'input window, operand 2, single buffered']
    #allocation5 [shape = 's32[2]{0}', space=sflag, size = 0x8, scoped, tag = 'scoped memory for _lambda_.1']
    #allocation6 [shape = 'u8[512]{0}', space=vmem, size = 0x400, scoped, tag = 'input window, operand 3, single buffered']
    #allocation7 [shape = 's32[1]{0}', space=sflag, size = 0x4, scoped, tag = 'scoped memory for _lambda_.1']
    #allocation8 [shape = 'u8[2211840]{0}', space=vmem, size = 0x21c000, scoped, tag = 'input window, operand 4, single buffered']
    #allocation9 [shape = 'u8[7680]{0}', space=vmem, size = 0x2000, scoped, tag = 'input window, operand 5, single buffered']
    #allocation10 [shape = 's32[1]{0}', space=sflag, size = 0x4, scoped, tag = 'scoped memory for _lambda_.1']
    #allocation11 [shape = 'u8[7680]{0}', space=vmem, size = 0x2000, scoped, tag = 'input window, operand 6, single buffered']
    #allocation12 [shape = 'u8[147456]{0}', space=vmem, size = 0x24000, scoped, tag = 'input window, operand 7, single buffered']
    #allocation13 [shape = 's32[1]{0}', space=sflag, size = 0x4, scoped, tag = 'scoped memory for _lambda_.1']
    %14 = vsyncpa [#allocation5], 0
    %15 = vsyncpa [#allocation7], 0
    %16 = vsyncpa [#allocation10], 0
    %17 = vsyncpa [#allocation13], 0
    loop: start=0, step=1, limit=4
    $region2: #{_lambda_.1} parent=1 // loop_pre_header
      _
    $region3: #{_lambda_.1} parent=1 // loop_header
      %s19 = sphi 0, %s23
      %p20 = scmp.ge.s32.totalorder %s19, 4
      %s27 = sphi 0, %s27
      %s29 = sphi 0, %s27
      %s30 = sphi 0, %s29
      %s44 = sphi 0, %s30
      %s50 = sphi 0, %s52
      %s53 = sphi 0, %s50
      %s54 = sphi 0, %s53
      %s70 = sphi 0, %s54
      %s74 = sphi 0, %s74
      %s76 = sphi 0, %s74
      %s77 = sphi 0, %s76
      %s91 = sphi 0, %s77
      %s95 = sphi 0, %s95
      %s97 = sphi 0, %s95
      %s98 = sphi 0, %s97
      %s112 = sphi 0, %s98
      %s116 = sphi 0, %s116
      %s118 = sphi 0, %s116
      %s119 = sphi 0, %s118
      %s133 = sphi 0, %s119
      %s137 = sphi 0, %s137
      %s139 = sphi 0, %s137
      %s140 = sphi 0, %s139
      %s154 = sphi 0, %s140
      %s158 = sphi 0, %s158
      %s160 = sphi 0, %s158
      %s161 = sphi 0, %s160
      %s175 = sphi 0, %s161
      %s179 = sphi 0, %s179
      %s181 = sphi 0, %s179
      %s182 = sphi 0, %s181
      %s196 = sphi 0, %s182
      %s200 = sphi 0, %s200
      %s202 = sphi 0, %s200
      %s203 = sphi 0, %s202
      %s217 = sphi 0, %s203
      %s223 = sphi 0, %s225
      %s226 = sphi 0, %s223
      %s227 = sphi 0, %s226
      %s243 = sphi 0, %s227
    $region4: #{_lambda_.1} parent=1 // loop_header_branch
      %22 = sbr.rel (%p20) target = $region8
    $region5: #{_lambda_.1} parent=1 // loop_body
      %s24 = ssub.s32 %s19, 1
      %s25 = ssub.s32 %s19, 2
      %s26 = sadd.s32 %s19, 1
      %s28 = sadd.s32 %s27, 1
      %p31 = scmp.eq.s32.totalorder %s19, 1
      %p32 = scmp.ne.s32.totalorder %s27, %s29
      %p33 = scmp.eq.s32.totalorder %s19, 0
      %p34 = por %p32, %p33
      %p35 = scmp.ne.s32.totalorder %s27, %s29
      %p36 = scmp.eq.s32.totalorder %s24, 1
      %p37 = por %p35, %p36
      %p38 = scmp.ne.s32.totalorder %s29, %s30
      %p39 = scmp.eq.s32.totalorder %s24, 0
      %p40 = por %p38, %p39
      %p41 = scmp.ne.s32.totalorder %s29, %s30
      %p42 = scmp.eq.s32.totalorder %s25, 1
      %p43 = por %p41, %p42
      %p45 = scmp.ne.s32.totalorder %s30, %s44
      %p46 = scmp.eq.s32.totalorder %s25, 0
      %p47 = por %p45, %p46
      %s48 = ssub.s32 %s19, %s26
      %p49 = scmp.eq.s32.totalorder %s48, 0
      %s51 = sadd.s32 %s50, 1
      %s52 = scalar_select %p49, %s50, %s51
      %p55 = pneg %p49
      %p56 = scmp.eq.s32.totalorder %s19, 1
      %p57 = por %p55, %p56
      %p58 = scmp.ne.s32.totalorder %s50, %s53
      %p59 = scmp.eq.s32.totalorder %s19, 0
      %p60 = por %p58, %p59
      %p61 = scmp.ne.s32.totalorder %s50, %s53
      %p62 = scmp.eq.s32.totalorder %s24, 1
      %p63 = por %p61, %p62
      %p64 = scmp.ne.s32.totalorder %s53, %s54
      %p65 = scmp.eq.s32.totalorder %s24, 0
      %p66 = por %p64, %p65
      %p67 = scmp.ne.s32.totalorder %s53, %s54
      %p68 = scmp.eq.s32.totalorder %s25, 1
      %p69 = por %p67, %p68
      %p71 = scmp.ne.s32.totalorder %s54, %s70
      %p72 = scmp.eq.s32.totalorder %s25, 0
      %p73 = por %p71, %p72
      %s75 = sadd.s32 %s74, 1
      %p78 = scmp.eq.s32.totalorder %s19, 1
      %p79 = scmp.ne.s32.totalorder %s74, %s76
      %p80 = scmp.eq.s32.totalorder %s19, 0
      %p81 = por %p79, %p80
      %p82 = scmp.ne.s32.totalorder %s74, %s76
      %p83 = scmp.eq.s32.totalorder %s24, 1
      %p84 = por %p82, %p83
      %p85 = scmp.ne.s32.totalorder %s76, %s77
      %p86 = scmp.eq.s32.totalorder %s24, 0
      %p87 = por %p85, %p86
      %p88 = scmp.ne.s32.totalorder %s76, %s77
      %p89 = scmp.eq.s32.totalorder %s25, 1
      %p90 = por %p88, %p89
      %p92 = scmp.ne.s32.totalorder %s77, %s91
      %p93 = scmp.eq.s32.totalorder %s25, 0
      %p94 = por %p92, %p93
      %s96 = sadd.s32 %s95, 1
      %p99 = scmp.eq.s32.totalorder %s19, 1
      %p100 = scmp.ne.s32.totalorder %s95, %s97
      %p101 = scmp.eq.s32.totalorder %s19, 0
      %p102 = por %p100, %p101
      %p103 = scmp.ne.s32.totalorder %s95, %s97
      %p104 = scmp.eq.s32.totalorder %s24, 1
      %p105 = por %p103, %p104
      %p106 = scmp.ne.s32.totalorder %s97, %s98
      %p107 = scmp.eq.s32.totalorder %s24, 0
      %p108 = por %p106, %p107
      %p109 = scmp.ne.s32.totalorder %s97, %s98
      %p110 = scmp.eq.s32.totalorder %s25, 1
      %p111 = por %p109, %p110
      %p113 = scmp.ne.s32.totalorder %s98, %s112
      %p114 = scmp.eq.s32.totalorder %s25, 0
      %p115 = por %p113, %p114
      %s117 = sadd.s32 %s116, 1
      %p120 = scmp.eq.s32.totalorder %s19, 1
      %p121 = scmp.ne.s32.totalorder %s116, %s118
      %p122 = scmp.eq.s32.totalorder %s19, 0
      %p123 = por %p121, %p122
      %p124 = scmp.ne.s32.totalorder %s116, %s118
      %p125 = scmp.eq.s32.totalorder %s24, 1
      %p126 = por %p124, %p125
      %p127 = scmp.ne.s32.totalorder %s118, %s119
      %p128 = scmp.eq.s32.totalorder %s24, 0
      %p129 = por %p127, %p128
      %p130 = scmp.ne.s32.totalorder %s118, %s119
      %p131 = scmp.eq.s32.totalorder %s25, 1
      %p132 = por %p130, %p131
      %p134 = scmp.ne.s32.totalorder %s119, %s133
      %p135 = scmp.eq.s32.totalorder %s25, 0
      %p136 = por %p134, %p135
      %s138 = sadd.s32 %s137, 1
      %p141 = scmp.eq.s32.totalorder %s19, 1
      %p142 = scmp.ne.s32.totalorder %s137, %s139
      %p143 = scmp.eq.s32.totalorder %s19, 0
      %p144 = por %p142, %p143
      %p145 = scmp.ne.s32.totalorder %s137, %s139
      %p146 = scmp.eq.s32.totalorder %s24, 1
      %p147 = por %p145, %p146
      %p148 = scmp.ne.s32.totalorder %s139, %s140
      %p149 = scmp.eq.s32.totalorder %s24, 0
      %p150 = por %p148, %p149
      %p151 = scmp.ne.s32.totalorder %s139, %s140
      %p152 = scmp.eq.s32.totalorder %s25, 1
      %p153 = por %p151, %p152
      %p155 = scmp.ne.s32.totalorder %s140, %s154
      %p156 = scmp.eq.s32.totalorder %s25, 0
      %p157 = por %p155, %p156
      %s159 = sadd.s32 %s158, 1
      %p162 = scmp.eq.s32.totalorder %s19, 1
      %p163 = scmp.ne.s32.totalorder %s158, %s160
      %p164 = scmp.eq.s32.totalorder %s19, 0
      %p165 = por %p163, %p164
      %p166 = scmp.ne.s32.totalorder %s158, %s160
      %p167 = scmp.eq.s32.totalorder %s24, 1
      %p168 = por %p166, %p167
      %p169 = scmp.ne.s32.totalorder %s160, %s161
      %p170 = scmp.eq.s32.totalorder %s24, 0
      %p171 = por %p169, %p170
      %p172 = scmp.ne.s32.totalorder %s160, %s161
      %p173 = scmp.eq.s32.totalorder %s25, 1
      %p174 = por %p172, %p173
      %p176 = scmp.ne.s32.totalorder %s161, %s175
      %p177 = scmp.eq.s32.totalorder %s25, 0
      %p178 = por %p176, %p177
      %s180 = sadd.s32 %s179, 1
      %p183 = scmp.eq.s32.totalorder %s19, 1
      %p184 = scmp.ne.s32.totalorder %s179, %s181
      %p185 = scmp.eq.s32.totalorder %s19, 0
      %p186 = por %p184, %p185
      %p187 = scmp.ne.s32.totalorder %s179, %s181
      %p188 = scmp.eq.s32.totalorder %s24, 1
      %p189 = por %p187, %p188
      %p190 = scmp.ne.s32.totalorder %s181, %s182
      %p191 = scmp.eq.s32.totalorder %s24, 0
      %p192 = por %p190, %p191
      %p193 = scmp.ne.s32.totalorder %s181, %s182
      %p194 = scmp.eq.s32.totalorder %s25, 1
      %p195 = por %p193, %p194
      %p197 = scmp.ne.s32.totalorder %s182, %s196
      %p198 = scmp.eq.s32.totalorder %s25, 0
      %p199 = por %p197, %p198
      %s201 = sadd.s32 %s200, 1
      %p204 = scmp.eq.s32.totalorder %s19, 1
      %p205 = scmp.ne.s32.totalorder %s200, %s202
      %p206 = scmp.eq.s32.totalorder %s19, 0
      %p207 = por %p205, %p206
      %p208 = scmp.ne.s32.totalorder %s200, %s202
      %p209 = scmp.eq.s32.totalorder %s24, 1
      %p210 = por %p208, %p209
      %p211 = scmp.ne.s32.totalorder %s202, %s203
      %p212 = scmp.eq.s32.totalorder %s24, 0
      %p213 = por %p211, %p212
      %p214 = scmp.ne.s32.totalorder %s202, %s203
      %p215 = scmp.eq.s32.totalorder %s25, 1
      %p216 = por %p214, %p215
      %p218 = scmp.ne.s32.totalorder %s203, %s217
      %p219 = scmp.eq.s32.totalorder %s25, 0
      %p220 = por %p218, %p219
      %s221 = ssub.s32 %s19, %s26
      %p222 = scmp.eq.s32.totalorder %s221, 0
      %s224 = sadd.s32 %s223, 1
      %s225 = scalar_select %p222, %s223, %s224
      %p228 = pneg %p222
      %p229 = scmp.eq.s32.totalorder %s19, 1
      %p230 = por %p228, %p229
      %p231 = scmp.ne.s32.totalorder %s223, %s226
      %p232 = scmp.eq.s32.totalorder %s19, 0
      %p233 = por %p231, %p232
      %p234 = scmp.ne.s32.totalorder %s223, %s226
      %p235 = scmp.eq.s32.totalorder %s24, 1
      %p236 = por %p234, %p235
      %p237 = scmp.ne.s32.totalorder %s226, %s227
      %p238 = scmp.eq.s32.totalorder %s24, 0
      %p239 = por %p237, %p238
      %p240 = scmp.ne.s32.totalorder %s226, %s227
      %p241 = scmp.eq.s32.totalorder %s25, 1
      %p242 = por %p240, %p241
      %p244 = scmp.ne.s32.totalorder %s227, %s243
      %p245 = scmp.eq.s32.totalorder %s25, 0
      %p246 = por %p244, %p245
      %p247 = scmp.le.s32.totalorder 1, %s19
      %p248 = scmp.lt.s32.totalorder %s19, 3
      %p249 = pnand %p247, %p248
      %p250 = pneg %p249
      // Predicated region
      $region9: #{_lambda_.1} parent=5 // pred_check
        _
      $region10: #{_lambda_.1} parent=5 // pred_check_branch
        %252 = sbr.rel (%p249) target = $region12
      $region11: #{_lambda_.1} parent=5 // pred_region
        %s253 = ssub.s32 %s19, 1
        // Predicated region
        $region13: #{_lambda_.1} parent=11 // pred_check
          %p254 = pneg %p40
        $region14: #{_lambda_.1} parent=11 // pred_check_branch
          %256 = sbr.rel (%p254) target = $region16
        $region15: #{_lambda_.1} parent=11 // pred_region
          _
        $region16: #{_lambda_.1} parent=11 // pred_fallthru
          _
        // Predicated region
        $region17: #{_lambda_.1} parent=11 // pred_check
          %p257 = pneg %p87
        $region18: #{_lambda_.1} parent=11 // pred_check_branch
          %259 = sbr.rel (%p257) target = $region20
        $region19: #{_lambda_.1} parent=11 // pred_region
          %261 = vsyncadd [#allocation5], 0
          %s262 = sshll.u32 %s2, 4
          %s263 = int_to_ptr.hbm [resolvable:$true] %s262
          %s264 = sshll.u32 [#allocation4], 4
          %s265 = int_to_ptr.vmem [resolvable:$true] %s264
          %270 = dma.hbm_to_vmem [thread:$0]  %s263, 576, %s265, [#allocation5], 64, 64, 4
        $region20: #{_lambda_.1} parent=11 // pred_fallthru
          _
        // Predicated region
        $region21: #{_lambda_.1} parent=11 // pred_check
          %p271 = pneg %p108
        $region22: #{_lambda_.1} parent=11 // pred_check_branch
          %273 = sbr.rel (%p271) target = $region24
        $region23: #{_lambda_.1} parent=11 // pred_region
          %275 = vsyncadd [#allocation7], 0
          %s277 = sshll.u32 %s3, 4
          %s278 = int_to_ptr.hbm [resolvable:$true] %s277
          %s279 = sshll.u32 [#allocation6], 4
          %s280 = int_to_ptr.vmem [resolvable:$true] %s279
          %282 = dma.hbm_to_vmem [thread:$0]  %s278, 16, %s280, [#allocation7]
        $region24: #{_lambda_.1} parent=11 // pred_fallthru
          _
        // Predicated region
        $region25: #{_lambda_.1} parent=11 // pred_check
          %p283 = pneg %p129
        $region26: #{_lambda_.1} parent=11 // pred_check_branch
          %285 = sbr.rel (%p283) target = $region28
        $region27: #{_lambda_.1} parent=11 // pred_region
          %287 = vsyncadd [#allocation7], 0
          %s288 = sshll.u32 %s4, 4
          %s289 = int_to_ptr.hbm [resolvable:$true] %s288
          %s290 = sshll.u32 [#allocation8], 4
          %s291 = int_to_ptr.vmem [resolvable:$true] %s290
          %296 = dma.hbm_to_vmem [thread:$0]  %s289, 69120, %s291, [#allocation7], 64, 64, 4
        $region28: #{_lambda_.1} parent=11 // pred_fallthru
          _
        // Predicated region
        $region29: #{_lambda_.1} parent=11 // pred_check
          %p297 = pneg %p150
        $region30: #{_lambda_.1} parent=11 // pred_check_branch
          %299 = sbr.rel (%p297) target = $region32
        $region31: #{_lambda_.1} parent=11 // pred_region
          %301 = vsyncadd [#allocation10], 0
          %s302 = sshll.u32 %s5, 4
          %s303 = int_to_ptr.hbm [resolvable:$true] %s302
          %s304 = sshll.u32 [#allocation9], 4
          %s305 = int_to_ptr.vmem [resolvable:$true] %s304
          %310 = dma.hbm_to_vmem [thread:$0]  %s303, 240, %s305, [#allocation10], 16, 16, 1
        $region32: #{_lambda_.1} parent=11 // pred_fallthru
          _
        // Predicated region
        $region33: #{_lambda_.1} parent=11 // pred_check
          %p311 = pneg %p171
        $region34: #{_lambda_.1} parent=11 // pred_check_branch
          %313 = sbr.rel (%p311) target = $region36
        $region35: #{_lambda_.1} parent=11 // pred_region
          %315 = vsyncadd [#allocation10], 0
          %s316 = sshll.u32 %s6, 4
          %s317 = int_to_ptr.hbm [resolvable:$true] %s316
          %s318 = sshll.u32 [#allocation11], 4
          %s319 = int_to_ptr.vmem [resolvable:$true] %s318
          %324 = dma.hbm_to_vmem [thread:$0]  %s317, 240, %s319, [#allocation10], 16, 16, 1
        $region36: #{_lambda_.1} parent=11 // pred_fallthru
          _
        // Predicated region
        $region37: #{_lambda_.1} parent=11 // pred_check
          %p325 = pneg %p192
        $region38: #{_lambda_.1} parent=11 // pred_check_branch
          %327 = sbr.rel (%p325) target = $region40
        $region39: #{_lambda_.1} parent=11 // pred_region
          %329 = vsyncadd [#allocation13], 0
          %s330 = sshll.u32 %s7, 4
          %s331 = int_to_ptr.hbm [resolvable:$true] %s330
          %s332 = sshll.u32 [#allocation12], 4
          %s333 = int_to_ptr.vmem [resolvable:$true] %s332
          %338 = dma.hbm_to_vmem [thread:$0]  %s331, 4608, %s333, [#allocation13], 64, 64, 4
        $region40: #{_lambda_.1} parent=11 // pred_fallthru
          _
        // Predicated region
        $region41: #{_lambda_.1} parent=11 // pred_check
          %p339 = pneg %p213
        $region42: #{_lambda_.1} parent=11 // pred_check_branch
          %341 = sbr.rel (%p339) target = $region44
        $region43: #{_lambda_.1} parent=11 // pred_region
          _
        $region44: #{_lambda_.1} parent=11 // pred_fallthru
          _
      $region12: #{_lambda_.1} parent=5 // pred_fallthru
        _
      %p342 = scmp.lt.s32.totalorder %s19, 2
      // Predicated region
      $region45: #{_lambda_.1} parent=5 // pred_check
        %p343 = pneg %p342
      $region46: #{_lambda_.1} parent=5 // pred_check_branch
        %345 = sbr.rel (%p343) target = $region48
      $region47: #{_lambda_.1} parent=5 // pred_region
        // Predicated region
        $region49: #{_lambda_.1} parent=47 // pred_check
          %p346 = pneg %p60
        $region50: #{_lambda_.1} parent=47 // pred_check_branch
          %348 = sbr.rel (%p346) target = $region52
        $region51: #{_lambda_.1} parent=47 // pred_region
          %p349 = scmp.lt.s32.totalorder %s19, 1
          %s350 = scalar_select %p349, %s19, 1
          %s351 = smul.addr %s350, 41
          %s352 = smul.addr %s351, 8
          %s353 = scalar_lea.vmem %s1, %s352
        $region52: #{_lambda_.1} parent=47 // pred_fallthru
          _
      $region48: #{_lambda_.1} parent=5 // pred_fallthru
        _
      %p354 = scmp.le.s32.totalorder 1, %s19
      %p355 = scmp.lt.s32.totalorder %s19, 3
      %p356 = pnand %p354, %p355
      %p357 = pneg %p356
      // Predicated region
      $region53: #{_lambda_.1} parent=5 // pred_check
        _
      $region54: #{_lambda_.1} parent=5 // pred_check_branch
        %359 = sbr.rel (%p356) target = $region56
      $region55: #{_lambda_.1} parent=5 // pred_region
        %s360 = ssub.s32 %s19, 1
        // Predicated region
        $region57: #{_lambda_.1} parent=55 // pred_check
          %p361 = pneg %p87
        $region58: #{_lambda_.1} parent=55 // pred_check_branch
          %363 = sbr.rel (%p361) target = $region60
        $region59: #{_lambda_.1} parent=55 // pred_region
          %365 = dma.done [#allocation5], 576
        $region60: #{_lambda_.1} parent=55 // pred_fallthru
          _
        // Predicated region
        $region61: #{_lambda_.1} parent=55 // pred_check
          %p366 = pneg %p108
        $region62: #{_lambda_.1} parent=55 // pred_check_branch
          %368 = sbr.rel (%p366) target = $region64
        $region63: #{_lambda_.1} parent=55 // pred_region
          %370 = dma.done [#allocation7], 16
        $region64: #{_lambda_.1} parent=55 // pred_fallthru
          _
        // Predicated region
        $region65: #{_lambda_.1} parent=55 // pred_check
          %p371 = pneg %p129
        $region66: #{_lambda_.1} parent=55 // pred_check_branch
          %373 = sbr.rel (%p371) target = $region68
        $region67: #{_lambda_.1} parent=55 // pred_region
          %375 = dma.done [#allocation7], 69120
        $region68: #{_lambda_.1} parent=55 // pred_fallthru
          _
        // Predicated region
        $region69: #{_lambda_.1} parent=55 // pred_check
          %p376 = pneg %p150
        $region70: #{_lambda_.1} parent=55 // pred_check_branch
          %378 = sbr.rel (%p376) target = $region72
        $region71: #{_lambda_.1} parent=55 // pred_region
          %380 = dma.done [#allocation10], 240
        $region72: #{_lambda_.1} parent=55 // pred_fallthru
          _
        // Predicated region
        $region73: #{_lambda_.1} parent=55 // pred_check
          %p381 = pneg %p171
        $region74: #{_lambda_.1} parent=55 // pred_check_branch
          %383 = sbr.rel (%p381) target = $region76
        $region75: #{_lambda_.1} parent=55 // pred_region
          %385 = dma.done [#allocation10], 240
        $region76: #{_lambda_.1} parent=55 // pred_fallthru
          _
        // Predicated region
        $region77: #{_lambda_.1} parent=55 // pred_check
          %p386 = pneg %p192
        $region78: #{_lambda_.1} parent=55 // pred_check_branch
          %388 = sbr.rel (%p386) target = $region80
        $region79: #{_lambda_.1} parent=55 // pred_region
          %390 = dma.done [#allocation13], 4608
        $region80: #{_lambda_.1} parent=55 // pred_fallthru
          _
        %p391 = pneg %p40
        %p392 = pneg %p37
        %p393 = scmp.lt.s32.totalorder %s24, 1
        %s394 = scalar_select %p393, %s24, 1
        %s395 = smul.addr %s394, 41
        %s396 = smul.addr %s395, 8
        %s397 = scalar_lea.vmem %s1, %s396
        %p398 = pneg %p66
        %p399 = pneg %p63
        %p400 = pneg %p87
        %p401 = pneg %p84
        %p402 = pneg %p108
        %p403 = pneg %p105
        %p404 = pneg %p129
        %p405 = pneg %p126
        %p406 = pneg %p150
        %p407 = pneg %p147
        %p408 = pneg %p171
        %p409 = pneg %p168
        %p410 = pneg %p192
        %p411 = pneg %p189
        %p412 = pneg %p213
        %p413 = pneg %p210
        %p414 = pneg %p239
        %p415 = pneg %p236
        %p416 = scmp.lt.s32.totalorder %s24, 1
        %s417 = scalar_select %p416, %s24, 1
        %s418 = smul.addr %s417, 41
        %s419 = smul.addr %s418, 8
        %s420 = scalar_lea.vmem %s9, %s419
        %p421 = scmp.lt.s32.totalorder %s24, 1
        %s422 = scalar_select %p421, %s24, 1
        %s423 = smul.addr %s422, 41
        %s424 = smul.addr %s423, 8
        %s425 = scalar_lea.vmem %s1, %s424
        %p426 = scmp.lt.s32.totalorder %s24, 1
        %s427 = scalar_select %p426, %s24, 1
        %s428 = smul.addr %s427, 41
        %s429 = smul.addr %s428, 8
        %s430 = scalar_lea.vmem %s9, %s429
        %v432 = vld [vmem:[%s0] sm:$0xff]
        %v433 = vld [vmem:[%s0 + $0x8] sm:$0xff]
        %v434 = vld [vmem:[%s0 + $0x10] sm:$0xff]
        %v435 = vld [vmem:[%s0 + $0x18] sm:$0xff]
        %v436 = vld [vmem:[%s0 + $0x20] sm:$0xff]
        %v437 = vld [vmem:[%s0 + $0x28] sm:$0xff]
        %v438 = vld [vmem:[%s0 + $0x30] sm:$0xff]
        %v439 = vld [vmem:[%s0 + $0x38] sm:$0xff]
        %v440 = vld [vmem:[%s0 + $0x40] sm:$0xff]
        %v441 = vld [vmem:[%s0 + $0x48] sm:$0xff]
        %v442 = vld [vmem:[%s0 + $0x50] sm:$0xff]
        %v443 = vld [vmem:[%s0 + $0x58] sm:$0xff]
        %v444 = vld [vmem:[%s0 + $0x60] sm:$0xff]
        %v445 = vld [vmem:[%s0 + $0x68] sm:$0xff]
        %v446 = vld [vmem:[%s0 + $0x70] sm:$0xff]
        %v447 = vld [vmem:[%s0 + $0x78] sm:$0xff]
        %v448 = vld [vmem:[%s0 + $0x80] sm:$0xff]
        %v449 = vld [vmem:[%s0 + $0x88] sm:$0xff]
        %v450 = vld [vmem:[%s0 + $0x90] sm:$0xff]
        %v451 = vld [vmem:[%s0 + $0x98] sm:$0xff]
        %v452 = vld [vmem:[%s0 + $0xa0] sm:$0xff]
        %v453 = vld [vmem:[%s0 + $0xa8] sm:$0xff]
        %v454 = vld [vmem:[%s0 + $0xb0] sm:$0xff]
        %v455 = vld [vmem:[%s0 + $0xb8] sm:$0xff]
        %v456 = vld [vmem:[%s0 + $0xc0] sm:$0xff]
        %v457 = vld [vmem:[%s0 + $0xc8] sm:$0xff]
        %v458 = vld [vmem:[%s0 + $0xd0] sm:$0xff]
        %v459 = vld [vmem:[%s0 + $0xd8] sm:$0xff]
        %v460 = vld [vmem:[%s0 + $0xe0] sm:$0xff]
        %v461 = vld [vmem:[%s0 + $0xe8] sm:$0xff]
        %v462 = vld [vmem:[%s0 + $0xf0] sm:$0xff]
        %v463 = vld [vmem:[%s0 + $0xf8] sm:$0xff]
        %v464 = vld [vmem:[%s0 + $0x100] sm:$0xff]
        %v465 = vld [vmem:[%s0 + $0x108] sm:$0xff]
        %v466 = vld [vmem:[%s0 + $0x110] sm:$0xff]
        %v467 = vld [vmem:[%s0 + $0x118] sm:$0xff]
        %vm468 = vcmask 523264
        %469 = vst.msk [vmem:[#allocation3] sm:$0xff] %vm468, 0.0
        %470 = vst.msk [vmem:[#allocation3 + $0x8] sm:$0xff] %vm468, 0.0
        %471 = vst.msk [vmem:[#allocation3 + $0x10] sm:$0xff] %vm468, 0.0
        %472 = vst.msk [vmem:[#allocation3 + $0x18] sm:$0xff] %vm468, 0.0
        %473 = vst.msk [vmem:[#allocation3 + $0x20] sm:$0xff] %vm468, 0.0
        %474 = vst.msk [vmem:[#allocation3 + $0x28] sm:$0xff] %vm468, 0.0
        %475 = vst.msk [vmem:[#allocation3 + $0x30] sm:$0xff] %vm468, 0.0
        %476 = vst.msk [vmem:[#allocation3 + $0x38] sm:$0xff] %vm468, 0.0
        %477 = vst.msk [vmem:[#allocation3 + $0x40] sm:$0xff] %vm468, 0.0
        %478 = vst.msk [vmem:[#allocation3 + $0x48] sm:$0xff] %vm468, 0.0
        %479 = vst.msk [vmem:[#allocation3 + $0x50] sm:$0xff] %vm468, 0.0
        %480 = vst.msk [vmem:[#allocation3 + $0x58] sm:$0xff] %vm468, 0.0
        %481 = vst.msk [vmem:[#allocation3 + $0x60] sm:$0xff] %vm468, 0.0
        %482 = vst.msk [vmem:[#allocation3 + $0x68] sm:$0xff] %vm468, 0.0
        %483 = vst.msk [vmem:[#allocation3 + $0x70] sm:$0xff] %vm468, 0.0
        %484 = vst.msk [vmem:[#allocation3 + $0x78] sm:$0xff] %vm468, 0.0
        %485 = vst.msk [vmem:[#allocation3 + $0x80] sm:$0xff] %vm468, 0.0
        %486 = vst.msk [vmem:[#allocation3 + $0x88] sm:$0xff] %vm468, 0.0
        %487 = vst.msk [vmem:[#allocation3 + $0x90] sm:$0xff] %vm468, 0.0
        %488 = vst.msk [vmem:[#allocation3 + $0x98] sm:$0xff] %vm468, 0.0
        %489 = vst.msk [vmem:[#allocation3 + $0xa0] sm:$0xff] %vm468, 0.0
        %490 = vst.msk [vmem:[#allocation3 + $0xa8] sm:$0xff] %vm468, 0.0
        %491 = vst.msk [vmem:[#allocation3 + $0xb0] sm:$0xff] %vm468, 0.0
        %492 = vst.msk [vmem:[#allocation3 + $0xb8] sm:$0xff] %vm468, 0.0
        %493 = vst.msk [vmem:[#allocation3 + $0xc0] sm:$0xff] %vm468, 0.0
        %494 = vst.msk [vmem:[#allocation3 + $0xc8] sm:$0xff] %vm468, 0.0
        %495 = vst.msk [vmem:[#allocation3 + $0xd0] sm:$0xff] %vm468, 0.0
        %496 = vst.msk [vmem:[#allocation3 + $0xd8] sm:$0xff] %vm468, 0.0
        %497 = vst.msk [vmem:[#allocation3 + $0xe0] sm:$0xff] %vm468, 0.0
        %498 = vst.msk [vmem:[#allocation3 + $0xe8] sm:$0xff] %vm468, 0.0
        %499 = vst.msk [vmem:[#allocation3 + $0xf0] sm:$0xff] %vm468, 0.0
        %500 = vst.msk [vmem:[#allocation3 + $0xf8] sm:$0xff] %vm468, 0.0
        %501 = vst.msk [vmem:[#allocation3 + $0x100] sm:$0xff] %vm468, 0.0
        %502 = vst.msk [vmem:[#allocation3 + $0x108] sm:$0xff] %vm468, 0.0
        %503 = vst.msk [vmem:[#allocation3 + $0x110] sm:$0xff] %vm468, 0.0
        %504 = vst.msk [vmem:[#allocation3 + $0x118] sm:$0xff] %vm468, 0.0
        %505 = vst.msk [vmem:[#allocation3 + $0x120] sm:$0xff] %vm468, 0.0
        %506 = vst.msk [vmem:[#allocation3 + $0x128] sm:$0xff] %vm468, 0.0
        %507 = vst.msk [vmem:[#allocation3 + $0x130] sm:$0xff] %vm468, 0.0
        %508 = vst.msk [vmem:[#allocation3 + $0x138] sm:$0xff] %vm468, 0.0
        %509 = vst.msk [vmem:[#allocation3 + $0x140] sm:$0xff] %vm468, 0.0
        %510 = vst.msk [vmem:[#allocation2] sm:$0xff] %vm468, 0.0
        %511 = vst.msk [vmem:[#allocation2 + $0x8] sm:$0xff] %vm468, 0.0
        %512 = vst.msk [vmem:[#allocation2 + $0x10] sm:$0xff] %vm468, 0.0
        %513 = vst.msk [vmem:[#allocation2 + $0x18] sm:$0xff] %vm468, 0.0
        %514 = vst.msk [vmem:[#allocation2 + $0x20] sm:$0xff] %vm468, 0.0
        %515 = vst.msk [vmem:[#allocation2 + $0x28] sm:$0xff] %vm468, 0.0
        %516 = vst.msk [vmem:[#allocation2 + $0x30] sm:$0xff] %vm468, 0.0
        %517 = vst.msk [vmem:[#allocation2 + $0x38] sm:$0xff] %vm468, 0.0
        %518 = vst.msk [vmem:[#allocation2 + $0x40] sm:$0xff] %vm468, 0.0
        %519 = vst.msk [vmem:[#allocation2 + $0x48] sm:$0xff] %vm468, 0.0
        %520 = vst.msk [vmem:[#allocation2 + $0x50] sm:$0xff] %vm468, 0.0
        %521 = vst.msk [vmem:[#allocation2 + $0x58] sm:$0xff] %vm468, 0.0
        %522 = vst.msk [vmem:[#allocation2 + $0x60] sm:$0xff] %vm468, 0.0
        %523 = vst.msk [vmem:[#allocation2 + $0x68] sm:$0xff] %vm468, 0.0
        %524 = vst.msk [vmem:[#allocation2 + $0x70] sm:$0xff] %vm468, 0.0
        %525 = vst.msk [vmem:[#allocation2 + $0x78] sm:$0xff] %vm468, 0.0
        %526 = vst.msk [vmem:[#allocation2 + $0x80] sm:$0xff] %vm468, 0.0
        %527 = vst.msk [vmem:[#allocation2 + $0x88] sm:$0xff] %vm468, 0.0
        %528 = vst.msk [vmem:[#allocation2 + $0x90] sm:$0xff] %vm468, 0.0
        %529 = vst.msk [vmem:[#allocation2 + $0x98] sm:$0xff] %vm468, 0.0
        %530 = vst.msk [vmem:[#allocation2 + $0xa0] sm:$0xff] %vm468, 0.0
        %531 = vst.msk [vmem:[#allocation2 + $0xa8] sm:$0xff] %vm468, 0.0
        %532 = vst.msk [vmem:[#allocation2 + $0xb0] sm:$0xff] %vm468, 0.0
        %533 = vst.msk [vmem:[#allocation2 + $0xb8] sm:$0xff] %vm468, 0.0
        %534 = vst.msk [vmem:[#allocation2 + $0xc0] sm:$0xff] %vm468, 0.0
        %535 = vst.msk [vmem:[#allocation2 + $0xc8] sm:$0xff] %vm468, 0.0
        %536 = vst.msk [vmem:[#allocation2 + $0xd0] sm:$0xff] %vm468, 0.0
        %537 = vst.msk [vmem:[#allocation2 + $0xd8] sm:$0xff] %vm468, 0.0
        %538 = vst.msk [vmem:[#allocation2 + $0xe0] sm:$0xff] %vm468, 0.0
        %539 = vst.msk [vmem:[#allocation2 + $0xe8] sm:$0xff] %vm468, 0.0
        %540 = vst.msk [vmem:[#allocation2 + $0xf0] sm:$0xff] %vm468, 0.0
        %541 = vst.msk [vmem:[#allocation2 + $0xf8] sm:$0xff] %vm468, 0.0
        %542 = vst.msk [vmem:[#allocation2 + $0x100] sm:$0xff] %vm468, 0.0
        %543 = vst.msk [vmem:[#allocation2 + $0x108] sm:$0xff] %vm468, 0.0
        %544 = vst.msk [vmem:[#allocation2 + $0x110] sm:$0xff] %vm468, 0.0
        %545 = vst.msk [vmem:[#allocation2 + $0x118] sm:$0xff] %vm468, 0.0
        %v546 = vld [vmem:[%s425] sm:$0xff]
        %v547 = vld [vmem:[%s425 + $0x8] sm:$0xff]
        %v548 = vld [vmem:[%s425 + $0x10] sm:$0xff]
        %v549 = vld [vmem:[%s425 + $0x18] sm:$0xff]
        %v550 = vld [vmem:[%s425 + $0x20] sm:$0xff]
        %v551 = vld [vmem:[%s425 + $0x28] sm:$0xff]
        %v552 = vld [vmem:[%s425 + $0x30] sm:$0xff]
        %v553 = vld [vmem:[%s425 + $0x38] sm:$0xff]
        %v554 = vld [vmem:[%s425 + $0x40] sm:$0xff]
        %v555 = vld [vmem:[%s425 + $0x48] sm:$0xff]
        %v556 = vld [vmem:[%s425 + $0x50] sm:$0xff]
        %v557 = vld [vmem:[%s425 + $0x58] sm:$0xff]
        %v558 = vld [vmem:[%s425 + $0x60] sm:$0xff]
        %v559 = vld [vmem:[%s425 + $0x68] sm:$0xff]
        %v560 = vld [vmem:[%s425 + $0x70] sm:$0xff]
        %v561 = vld [vmem:[%s425 + $0x78] sm:$0xff]
        %v562 = vld [vmem:[%s425 + $0x80] sm:$0xff]
        %v563 = vld [vmem:[%s425 + $0x88] sm:$0xff]
        %v564 = vld [vmem:[%s425 + $0x90] sm:$0xff]
        %v565 = vld [vmem:[%s425 + $0x98] sm:$0xff]
        %v566 = vld [vmem:[%s425 + $0xa0] sm:$0xff]
        %v567 = vld [vmem:[%s425 + $0xa8] sm:$0xff]
        %v568 = vld [vmem:[%s425 + $0xb0] sm:$0xff]
        %v569 = vld [vmem:[%s425 + $0xb8] sm:$0xff]
        %v570 = vld [vmem:[%s425 + $0xc0] sm:$0xff]
        %v571 = vld [vmem:[%s425 + $0xc8] sm:$0xff]
        %v572 = vld [vmem:[%s425 + $0xd0] sm:$0xff]
        %v573 = vld [vmem:[%s425 + $0xd8] sm:$0xff]
        %v574 = vld [vmem:[%s425 + $0xe0] sm:$0xff]
        %v575 = vld [vmem:[%s425 + $0xe8] sm:$0xff]
        %v576 = vld [vmem:[%s425 + $0xf0] sm:$0xff]
        %v577 = vld [vmem:[%s425 + $0xf8] sm:$0xff]
        %v578 = vld [vmem:[%s425 + $0x100] sm:$0xff]
        %v579 = vld [vmem:[%s425 + $0x108] sm:$0xff]
        %v580 = vld [vmem:[%s425 + $0x110] sm:$0xff]
        %v581 = vld [vmem:[%s425 + $0x118] sm:$0xff]
        %v582 = vpack.c.bf16 %v547, %v546
        %v583 = vpack.c.bf16 %v549, %v548
        %v584 = vpack.c.bf16 %v551, %v550
        %v585 = vpack.c.bf16 %v553, %v552
        %v586 = vpack.c.bf16 %v555, %v554
        %v587 = vpack.c.bf16 %v557, %v556
        %v588 = vpack.c.bf16 %v559, %v558
        %v589 = vpack.c.bf16 %v561, %v560
        %v590 = vpack.c.bf16 %v563, %v562
        %v591 = vpack.c.bf16 %v565, %v564
        %v592 = vpack.c.bf16 %v567, %v566
        %v593 = vpack.c.bf16 %v569, %v568
        %v594 = vpack.c.bf16 %v571, %v570
        %v595 = vpack.c.bf16 %v573, %v572
        %v596 = vpack.c.bf16 %v575, %v574
        %v597 = vpack.c.bf16 %v577, %v576
        %v598 = vpack.c.bf16 %v579, %v578
        %v599 = vpack.c.bf16 %v581, %v580
        %v600 = vld [vmem:[#allocation2] sm:$0xff]
        %v601 = vld [vmem:[#allocation2 + $0x8] sm:$0xff]
        %v602 = vld [vmem:[#allocation2 + $0x10] sm:$0xff]
        %v603 = vld [vmem:[#allocation2 + $0x18] sm:$0xff]
        %v604 = vld [vmem:[#allocation2 + $0x20] sm:$0xff]
        %v605 = vld [vmem:[#allocation2 + $0x28] sm:$0xff]
        %v606 = vld [vmem:[#allocation2 + $0x30] sm:$0xff]
        %v607 = vld [vmem:[#allocation2 + $0x38] sm:$0xff]
        %v608 = vld [vmem:[#allocation2 + $0x40] sm:$0xff]
        %v609 = vld [vmem:[#allocation2 + $0x48] sm:$0xff]
        %v610 = vld [vmem:[#allocation2 + $0x50] sm:$0xff]
        %v611 = vld [vmem:[#allocation2 + $0x58] sm:$0xff]
        %v612 = vld [vmem:[#allocation2 + $0x60] sm:$0xff]
        %v613 = vld [vmem:[#allocation2 + $0x68] sm:$0xff]
        %v614 = vld [vmem:[#allocation2 + $0x70] sm:$0xff]
        %v615 = vld [vmem:[#allocation2 + $0x78] sm:$0xff]
        %v616 = vld [vmem:[#allocation2 + $0x80] sm:$0xff]
        %v617 = vld [vmem:[#allocation2 + $0x88] sm:$0xff]
        %v618 = vld [vmem:[#allocation2 + $0x90] sm:$0xff]
        %v619 = vld [vmem:[#allocation2 + $0x98] sm:$0xff]
        %v620 = vld [vmem:[#allocation2 + $0xa0] sm:$0xff]
        %v621 = vld [vmem:[#allocation2 + $0xa8] sm:$0xff]
        %v622 = vld [vmem:[#allocation2 + $0xb0] sm:$0xff]
        %v623 = vld [vmem:[#allocation2 + $0xb8] sm:$0xff]
        %v624 = vld [vmem:[#allocation2 + $0xc0] sm:$0xff]
        %v625 = vld [vmem:[#allocation2 + $0xc8] sm:$0xff]
        %v626 = vld [vmem:[#allocation2 + $0xd0] sm:$0xff]
        %v627 = vld [vmem:[#allocation2 + $0xd8] sm:$0xff]
        %v628 = vld [vmem:[#allocation2 + $0xe0] sm:$0xff]
        %v629 = vld [vmem:[#allocation2 + $0xe8] sm:$0xff]
        %v630 = vld [vmem:[#allocation2 + $0xf0] sm:$0xff]
        %v631 = vld [vmem:[#allocation2 + $0xf8] sm:$0xff]
        %v632 = vld [vmem:[#allocation2 + $0x100] sm:$0xff]
        %v633 = vld [vmem:[#allocation2 + $0x108] sm:$0xff]
        %v634 = vld [vmem:[#allocation2 + $0x110] sm:$0xff]
        %v635 = vld [vmem:[#allocation2 + $0x118] sm:$0xff]
        %v636 = vld [vmem:[#allocation4] sm:$0xf]
        %vm637 = vcmask 64512
        %v639 = vsel %vm637, %v582, 0
        %v642 = vsel %vm637, %v583, 0
        %v645 = vsel %vm637, %v584, 0
        %v648 = vsel %vm637, %v585, 0
        %v651 = vsel %vm637, %v586, 0
        %v654 = vsel %vm637, %v587, 0
        %v657 = vsel %vm637, %v588, 0
        %v660 = vsel %vm637, %v589, 0
        %v663 = vsel %vm637, %v590, 0
        %v666 = vsel %vm637, %v591, 0
        %v669 = vsel %vm637, %v592, 0
        %v672 = vsel %vm637, %v593, 0
        %v675 = vsel %vm637, %v594, 0
        %v678 = vsel %vm637, %v595, 0
        %v681 = vsel %vm637, %v596, 0
        %v684 = vsel %vm637, %v597, 0
        %v687 = vsel %vm637, %v598, 0
        %v690 = vsel %vm637, %v599, 0
        %vm692 = vcmask 1043456
        %v694 = vsel %vm692, %v636, 0
        %696 = vmatpush.bf16.msra.mxu0 0
        %697 = vmatpush.bf16.msra.mxu0 0
        %698 = vmatpush.bf16.msra.mxu0 0
        %699 = vmatpush.bf16.msra.mxu0 0
        %700 = vmatpush.bf16.msra.mxu0 0
        %701 = vmatpush.bf16.msra.mxu0 0
        %702 = vmatpush.bf16.msra.mxu0 0
        %703 = vmatpush.bf16.msra.mxu0 %v694
        %704 = vmatmul.bf16.gmra.mxu0 %v639
        %v705 = vpop.f32.mrf.mxu0
        %v706 = vadd.f32 0.0, %v705
        %v707 = vpop.f32.mrf.mxu0
        %v708 = vadd.f32 0.0, %v707
        %709 = vmatmul.bf16.gmra.mxu0 %v642
        %v710 = vpop.f32.mrf.mxu0
        %v711 = vadd.f32 0.0, %v710
        %v712 = vpop.f32.mrf.mxu0
        %v713 = vadd.f32 0.0, %v712
        %714 = vmatmul.bf16.gmra.mxu0 %v645
        %v715 = vpop.f32.mrf.mxu0
        %v716 = vadd.f32 0.0, %v715
        %v717 = vpop.f32.mrf.mxu0
        %v718 = vadd.f32 0.0, %v717
        %719 = vmatmul.bf16.gmra.mxu0 %v648
        %v720 = vpop.f32.mrf.mxu0
        %v721 = vadd.f32 0.0, %v720
        %v722 = vpop.f32.mrf.mxu0
        %v723 = vadd.f32 0.0, %v722
        %724 = vmatmul.bf16.gmra.mxu0 %v651
        %v725 = vpop.f32.mrf.mxu0
        %v726 = vadd.f32 0.0, %v725
        %v727 = vpop.f32.mrf.mxu0
        %v728 = vadd.f32 0.0, %v727
        %729 = vmatmul.bf16.gmra.mxu0 %v654
        %v730 = vpop.f32.mrf.mxu0
        %v731 = vadd.f32 0.0, %v730
        %v732 = vpop.f32.mrf.mxu0
        %v733 = vadd.f32 0.0, %v732
        %734 = vmatmul.bf16.gmra.mxu0 %v657
        %v735 = vpop.f32.mrf.mxu0
        %v736 = vadd.f32 0.0, %v735
        %v737 = vpop.f32.mrf.mxu0
        %v738 = vadd.f32 0.0, %v737
        %739 = vmatmul.bf16.gmra.mxu0 %v660
        %v740 = vpop.f32.mrf.mxu0
        %v741 = vadd.f32 0.0, %v740
        %v742 = vpop.f32.mrf.mxu0
        %v743 = vadd.f32 0.0, %v742
        %744 = vmatmul.bf16.gmra.mxu0 %v663
        %v745 = vpop.f32.mrf.mxu0
        %v746 = vadd.f32 0.0, %v745
        %v747 = vpop.f32.mrf.mxu0
        %v748 = vadd.f32 0.0, %v747
        %749 = vmatmul.bf16.gmra.mxu0 %v666
        %v750 = vpop.f32.mrf.mxu0
        %v751 = vadd.f32 0.0, %v750
        %v752 = vpop.f32.mrf.mxu0
        %v753 = vadd.f32 0.0, %v752
        %754 = vmatmul.bf16.gmra.mxu0 %v669
        %v755 = vpop.f32.mrf.mxu0
        %v756 = vadd.f32 0.0, %v755
        %v757 = vpop.f32.mrf.mxu0
        %v758 = vadd.f32 0.0, %v757
        %759 = vmatmul.bf16.gmra.mxu0 %v672
        %v760 = vpop.f32.mrf.mxu0
        %v761 = vadd.f32 0.0, %v760
        %v762 = vpop.f32.mrf.mxu0
        %v763 = vadd.f32 0.0, %v762
        %764 = vmatmul.bf16.gmra.mxu0 %v675
        %v765 = vpop.f32.mrf.mxu0
        %v766 = vadd.f32 0.0, %v765
        %v767 = vpop.f32.mrf.mxu0
        %v768 = vadd.f32 0.0, %v767
        %769 = vmatmul.bf16.gmra.mxu0 %v678
        %v770 = vpop.f32.mrf.mxu0
        %v771 = vadd.f32 0.0, %v770
        %v772 = vpop.f32.mrf.mxu0
        %v773 = vadd.f32 0.0, %v772
        %774 = vmatmul.bf16.gmra.mxu0 %v681
        %v775 = vpop.f32.mrf.mxu0
        %v776 = vadd.f32 0.0, %v775
        %v777 = vpop.f32.mrf.mxu0
        %v778 = vadd.f32 0.0, %v777
        %779 = vmatmul.bf16.gmra.mxu0 %v684
        %v780 = vpop.f32.mrf.mxu0
        %v781 = vadd.f32 0.0, %v780
        %v782 = vpop.f32.mrf.mxu0
        %v783 = vadd.f32 0.0, %v782
        %784 = vmatmul.bf16.gmra.mxu0 %v687
        %v785 = vpop.f32.mrf.mxu0
        %v786 = vadd.f32 0.0, %v785
        %v787 = vpop.f32.mrf.mxu0
        %v788 = vadd.f32 0.0, %v787
        %789 = vmatmul.bf16.gmra.mxu0 %v690
        %v790 = vpop.f32.mrf.mxu0
        %v791 = vadd.f32 0.0, %v790
        %v792 = vpop.f32.mrf.mxu0
        %v793 = vadd.f32 0.0, %v792
        %794 = vdwg.mxu0
        %v795 = vadd.f32 %v600, %v706
        %v796 = vadd.f32 %v601, %v708
        %v797 = vadd.f32 %v602, %v711
        %v798 = vadd.f32 %v603, %v713
        %v799 = vadd.f32 %v604, %v716
        %v800 = vadd.f32 %v605, %v718
        %v801 = vadd.f32 %v606, %v721
        %v802 = vadd.f32 %v607, %v723
        %v803 = vadd.f32 %v608, %v726
        %v804 = vadd.f32 %v609, %v728
        %v805 = vadd.f32 %v610, %v731
        %v806 = vadd.f32 %v611, %v733
        %v807 = vadd.f32 %v612, %v736
        %v808 = vadd.f32 %v613, %v738
        %v809 = vadd.f32 %v614, %v741
        %v810 = vadd.f32 %v615, %v743
        %v811 = vadd.f32 %v616, %v746
        %v812 = vadd.f32 %v617, %v748
        %v813 = vadd.f32 %v618, %v751
        %v814 = vadd.f32 %v619, %v753
        %v815 = vadd.f32 %v620, %v756
        %v816 = vadd.f32 %v621, %v758
        %v817 = vadd.f32 %v622, %v761
        %v818 = vadd.f32 %v623, %v763
        %v819 = vadd.f32 %v624, %v766
        %v820 = vadd.f32 %v625, %v768
        %v821 = vadd.f32 %v626, %v771
        %v822 = vadd.f32 %v627, %v773
        %v823 = vadd.f32 %v628, %v776
        %v824 = vadd.f32 %v629, %v778
        %v825 = vadd.f32 %v630, %v781
        %v826 = vadd.f32 %v631, %v783
        %v827 = vadd.f32 %v632, %v786
        %v828 = vadd.f32 %v633, %v788
        %v829 = vadd.f32 %v634, %v791
        %v830 = vadd.f32 %v635, %v793
        %831 = vst.msk [vmem:[#allocation2] sm:$0xff] %vm468, %v795
        %832 = vst.msk [vmem:[#allocation2 + $0x8] sm:$0xff] %vm468, %v796
        %833 = vst.msk [vmem:[#allocation2 + $0x10] sm:$0xff] %vm468, %v797
        %834 = vst.msk [vmem:[#allocation2 + $0x18] sm:$0xff] %vm468, %v798
        %835 = vst.msk [vmem:[#allocation2 + $0x20] sm:$0xff] %vm468, %v799
        %836 = vst.msk [vmem:[#allocation2 + $0x28] sm:$0xff] %vm468, %v800
        %837 = vst.msk [vmem:[#allocation2 + $0x30] sm:$0xff] %vm468, %v801
        %838 = vst.msk [vmem:[#allocation2 + $0x38] sm:$0xff] %vm468, %v802
        %839 = vst.msk [vmem:[#allocation2 + $0x40] sm:$0xff] %vm468, %v803
        %840 = vst.msk [vmem:[#allocation2 + $0x48] sm:$0xff] %vm468, %v804
        %841 = vst.msk [vmem:[#allocation2 + $0x50] sm:$0xff] %vm468, %v805
        %842 = vst.msk [vmem:[#allocation2 + $0x58] sm:$0xff] %vm468, %v806
        %843 = vst.msk [vmem:[#allocation2 + $0x60] sm:$0xff] %vm468, %v807
        %844 = vst.msk [vmem:[#allocation2 + $0x68] sm:$0xff] %vm468, %v808
        %845 = vst.msk [vmem:[#allocation2 + $0x70] sm:$0xff] %vm468, %v809
        %846 = vst.msk [vmem:[#allocation2 + $0x78] sm:$0xff] %vm468, %v810
        %847 = vst.msk [vmem:[#allocation2 + $0x80] sm:$0xff] %vm468, %v811
        %848 = vst.msk [vmem:[#allocation2 + $0x88] sm:$0xff] %vm468, %v812
        %849 = vst.msk [vmem:[#allocation2 + $0x90] sm:$0xff] %vm468, %v813
        %850 = vst.msk [vmem:[#allocation2 + $0x98] sm:$0xff] %vm468, %v814
        %851 = vst.msk [vmem:[#allocation2 + $0xa0] sm:$0xff] %vm468, %v815
        %852 = vst.msk [vmem:[#allocation2 + $0xa8] sm:$0xff] %vm468, %v816
        %853 = vst.msk [vmem:[#allocation2 + $0xb0] sm:$0xff] %vm468, %v817
        %854 = vst.msk [vmem:[#allocation2 + $0xb8] sm:$0xff] %vm468, %v818
        %855 = vst.msk [vmem:[#allocation2 + $0xc0] sm:$0xff] %vm468, %v819
        %856 = vst.msk [vmem:[#allocation2 + $0xc8] sm:$0xff] %vm468, %v820
        %857 = vst.msk [vmem:[#allocation2 + $0xd0] sm:$0xff] %vm468, %v821
        %858 = vst.msk [vmem:[#allocation2 + $0xd8] sm:$0xff] %vm468, %v822
        %859 = vst.msk [vmem:[#allocation2 + $0xe0] sm:$0xff] %vm468, %v823
        %860 = vst.msk [vmem:[#allocation2 + $0xe8] sm:$0xff] %vm468, %v824
        %861 = vst.msk [vmem:[#allocation2 + $0xf0] sm:$0xff] %vm468, %v825
        %862 = vst.msk [vmem:[#allocation2 + $0xf8] sm:$0xff] %vm468, %v826
        %863 = vst.msk [vmem:[#allocation2 + $0x100] sm:$0xff] %vm468, %v827
        %864 = vst.msk [vmem:[#allocation2 + $0x108] sm:$0xff] %vm468, %v828
        %865 = vst.msk [vmem:[#allocation2 + $0x110] sm:$0xff] %vm468, %v829
        %866 = vst.msk [vmem:[#allocation2 + $0x118] sm:$0xff] %vm468, %v830
        %v867 = vld [vmem:[%s425 + $0x1] sm:$0xff]
        %v868 = vld [vmem:[%s425 + $0x9] sm:$0xff]
        %v869 = vld [vmem:[%s425 + $0x11] sm:$0xff]
        %v870 = vld [vmem:[%s425 + $0x19] sm:$0xff]
        %v871 = vld [vmem:[%s425 + $0x21] sm:$0xff]
        %v872 = vld [vmem:[%s425 + $0x29] sm:$0xff]
        %v873 = vld [vmem:[%s425 + $0x31] sm:$0xff]
        %v874 = vld [vmem:[%s425 + $0x39] sm:$0xff]
        %v875 = vld [vmem:[%s425 + $0x41] sm:$0xff]
        %v876 = vld [vmem:[%s425 + $0x49] sm:$0xff]
        %v877 = vld [vmem:[%s425 + $0x51] sm:$0xff]
        %v878 = vld [vmem:[%s425 + $0x59] sm:$0xff]
        %v879 = vld [vmem:[%s425 + $0x61] sm:$0xff]
        %v880 = vld [vmem:[%s425 + $0x69] sm:$0xff]
        %v881 = vld [vmem:[%s425 + $0x71] sm:$0xff]
        %v882 = vld [vmem:[%s425 + $0x79] sm:$0xff]
        %v883 = vld [vmem:[%s425 + $0x81] sm:$0xff]
        %v884 = vld [vmem:[%s425 + $0x89] sm:$0xff]
        %v885 = vld [vmem:[%s425 + $0x91] sm:$0xff]
        %v886 = vld [vmem:[%s425 + $0x99] sm:$0xff]
        %v887 = vld [vmem:[%s425 + $0xa1] sm:$0xff]
        %v888 = vld [vmem:[%s425 + $0xa9] sm:$0xff]
        %v889 = vld [vmem:[%s425 + $0xb1] sm:$0xff]
        %v890 = vld [vmem:[%s425 + $0xb9] sm:$0xff]
        %v891 = vld [vmem:[%s425 + $0xc1] sm:$0xff]
        %v892 = vld [vmem:[%s425 + $0xc9] sm:$0xff]
        %v893 = vld [vmem:[%s425 + $0xd1] sm:$0xff]
        %v894 = vld [vmem:[%s425 + $0xd9] sm:$0xff]
        %v895 = vld [vmem:[%s425 + $0xe1] sm:$0xff]
        %v896 = vld [vmem:[%s425 + $0xe9] sm:$0xff]
        %v897 = vld [vmem:[%s425 + $0xf1] sm:$0xff]
        %v898 = vld [vmem:[%s425 + $0xf9] sm:$0xff]
        %v899 = vld [vmem:[%s425 + $0x101] sm:$0xff]
        %v900 = vld [vmem:[%s425 + $0x109] sm:$0xff]
        %v901 = vld [vmem:[%s425 + $0x111] sm:$0xff]
        %v902 = vld [vmem:[%s425 + $0x119] sm:$0xff]
        %v903 = vpack.c.bf16 %v868, %v867
        %v904 = vpack.c.bf16 %v870, %v869
        %v905 = vpack.c.bf16 %v872, %v871
        %v906 = vpack.c.bf16 %v874, %v873
        %v907 = vpack.c.bf16 %v876, %v875
        %v908 = vpack.c.bf16 %v878, %v877
        %v909 = vpack.c.bf16 %v880, %v879
        %v910 = vpack.c.bf16 %v882, %v881
        %v911 = vpack.c.bf16 %v884, %v883
        %v912 = vpack.c.bf16 %v886, %v885
        %v913 = vpack.c.bf16 %v888, %v887
        %v914 = vpack.c.bf16 %v890, %v889
        %v915 = vpack.c.bf16 %v892, %v891
        %v916 = vpack.c.bf16 %v894, %v893
        %v917 = vpack.c.bf16 %v896, %v895
        %v918 = vpack.c.bf16 %v898, %v897
        %v919 = vpack.c.bf16 %v900, %v899
        %v920 = vpack.c.bf16 %v902, %v901
        %v921 = vld [vmem:[#allocation2] sm:$0xff]
        %v922 = vld [vmem:[#allocation2 + $0x8] sm:$0xff]
        %v923 = vld [vmem:[#allocation2 + $0x10] sm:$0xff]
        %v924 = vld [vmem:[#allocation2 + $0x18] sm:$0xff]
        %v925 = vld [vmem:[#allocation2 + $0x20] sm:$0xff]
        %v926 = vld [vmem:[#allocation2 + $0x28] sm:$0xff]
        %v927 = vld [vmem:[#allocation2 + $0x30] sm:$0xff]
        %v928 = vld [vmem:[#allocation2 + $0x38] sm:$0xff]
        %v929 = vld [vmem:[#allocation2 + $0x40] sm:$0xff]
        %v930 = vld [vmem:[#allocation2 + $0x48] sm:$0xff]
        %v931 = vld [vmem:[#allocation2 + $0x50] sm:$0xff]
        %v932 = vld [vmem:[#allocation2 + $0x58] sm:$0xff]
        %v933 = vld [vmem:[#allocation2 + $0x60] sm:$0xff]
        %v934 = vld [vmem:[#allocation2 + $0x68] sm:$0xff]
        %v935 = vld [vmem:[#allocation2 + $0x70] sm:$0xff]
        %v936 = vld [vmem:[#allocation2 + $0x78] sm:$0xff]
        %v937 = vld [vmem:[#allocation2 + $0x80] sm:$0xff]
        %v938 = vld [vmem:[#allocation2 + $0x88] sm:$0xff]
        %v939 = vld [vmem:[#allocation2 + $0x90] sm:$0xff]
        %v940 = vld [vmem:[#allocation2 + $0x98] sm:$0xff]
        %v941 = vld [vmem:[#allocation2 + $0xa0] sm:$0xff]
        %v942 = vld [vmem:[#allocation2 + $0xa8] sm:$0xff]
        %v943 = vld [vmem:[#allocation2 + $0xb0] sm:$0xff]
        %v944 = vld [vmem:[#allocation2 + $0xb8] sm:$0xff]
        %v945 = vld [vmem:[#allocation2 + $0xc0] sm:$0xff]
        %v946 = vld [vmem:[#allocation2 + $0xc8] sm:$0xff]
        %v947 = vld [vmem:[#allocation2 + $0xd0] sm:$0xff]
        %v948 = vld [vmem:[#allocation2 + $0xd8] sm:$0xff]
        %v949 = vld [vmem:[#allocation2 + $0xe0] sm:$0xff]
        %v950 = vld [vmem:[#allocation2 + $0xe8] sm:$0xff]
        %v951 = vld [vmem:[#allocation2 + $0xf0] sm:$0xff]
        %v952 = vld [vmem:[#allocation2 + $0xf8] sm:$0xff]
        %v953 = vld [vmem:[#allocation2 + $0x100] sm:$0xff]
        %v954 = vld [vmem:[#allocation2 + $0x108] sm:$0xff]
        %v955 = vld [vmem:[#allocation2 + $0x110] sm:$0xff]
        %v956 = vld [vmem:[#allocation2 + $0x118] sm:$0xff]
        %s957 = scalar_lea.vmem [#allocation4], 4
        %v958 = vld [vmem:[%s957] sm:$0xf]
        %v960 = vsel %vm637, %v903, 0
        %v963 = vsel %vm637, %v904, 0
        %v966 = vsel %vm637, %v905, 0
        %v969 = vsel %vm637, %v906, 0
        %v972 = vsel %vm637, %v907, 0
        %v975 = vsel %vm637, %v908, 0
        %v978 = vsel %vm637, %v909, 0
        %v981 = vsel %vm637, %v910, 0
        %v984 = vsel %vm637, %v911, 0
        %v987 = vsel %vm637, %v912, 0
        %v990 = vsel %vm637, %v913, 0
        %v993 = vsel %vm637, %v914, 0
        %v996 = vsel %vm637, %v915, 0
        %v999 = vsel %vm637, %v916, 0
        %v1002 = vsel %vm637, %v917, 0
        %v1005 = vsel %vm637, %v918, 0
        %v1008 = vsel %vm637, %v919, 0
        %v1011 = vsel %vm637, %v920, 0
        %v1014 = vsel %vm692, %v958, 0
        %1016 = vmatpush.bf16.msra.mxu0 0
        %1017 = vmatpush.bf16.msra.mxu0 0
        %1018 = vmatpush.bf16.msra.mxu0 0
        %1019 = vmatpush.bf16.msra.mxu0 0
        %1020 = vmatpush.bf16.msra.mxu0 0
        %1021 = vmatpush.bf16.msra.mxu0 0
        %1022 = vmatpush.bf16.msra.mxu0 0
        %1023 = vmatpush.bf16.msra.mxu0 %v1014
        %1024 = vmatmul.bf16.gmra.mxu0 %v960
        %v1025 = vpop.f32.mrf.mxu0
        %v1026 = vadd.f32 0.0, %v1025
        %v1027 = vpop.f32.mrf.mxu0
        %v1028 = vadd.f32 0.0, %v1027
        %1029 = vmatmul.bf16.gmra.mxu0 %v963
        %v1030 = vpop.f32.mrf.mxu0
        %v1031 = vadd.f32 0.0, %v1030
        %v1032 = vpop.f32.mrf.mxu0
        %v1033 = vadd.f32 0.0, %v1032
        %1034 = vmatmul.bf16.gmra.mxu0 %v966
        %v1035 = vpop.f32.mrf.mxu0
        %v1036 = vadd.f32 0.0, %v1035
        %v1037 = vpop.f32.mrf.mxu0
        %v1038 = vadd.f32 0.0, %v1037
        %1039 = vmatmul.bf16.gmra.mxu0 %v969
        %v1040 = vpop.f32.mrf.mxu0
        %v1041 = vadd.f32 0.0, %v1040
        %v1042 = vpop.f32.mrf.mxu0
        %v1043 = vadd.f32 0.0, %v1042
        %1044 = vmatmul.bf16.gmra.mxu0 %v972
        %v1045 = vpop.f32.mrf.mxu0
        %v1046 = vadd.f32 0.0, %v1045
        %v1047 = vpop.f32.mrf.mxu0
        %v1048 = vadd.f32 0.0, %v1047
        %1049 = vmatmul.bf16.gmra.mxu0 %v975
        %v1050 = vpop.f32.mrf.mxu0
        %v1051 = vadd.f32 0.0, %v1050
        %v1052 = vpop.f32.mrf.mxu0
        %v1053 = vadd.f32 0.0, %v1052
        %1054 = vmatmul.bf16.gmra.mxu0 %v978
        %v1055 = vpop.f32.mrf.mxu0
        %v1056 = vadd.f32 0.0, %v1055
        %v1057 = vpop.f32.mrf.mxu0
        %v1058 = vadd.f32 0.0, %v1057
        %1059 = vmatmul.bf16.gmra.mxu0 %v981
        %v1060 = vpop.f32.mrf.mxu0
        %v1061 = vadd.f32 0.0, %v1060
        %v1062 = vpop.f32.mrf.mxu0
        %v1063 = vadd.f32 0.0, %v1062
        %1064 = vmatmul.bf16.gmra.mxu0 %v984
        %v1065 = vpop.f32.mrf.mxu0
        %v1066 = vadd.f32 0.0, %v1065
        %v1067 = vpop.f32.mrf.mxu0
        %v1068 = vadd.f32 0.0, %v1067
        %1069 = vmatmul.bf16.gmra.mxu0 %v987
        %v1070 = vpop.f32.mrf.mxu0
        %v1071 = vadd.f32 0.0, %v1070
        %v1072 = vpop.f32.mrf.mxu0
        %v1073 = vadd.f32 0.0, %v1072
        %1074 = vmatmul.bf16.gmra.mxu0 %v990
        %v1075 = vpop.f32.mrf.mxu0
        %v1076 = vadd.f32 0.0, %v1075
        %v1077 = vpop.f32.mrf.mxu0
        %v1078 = vadd.f32 0.0, %v1077
        %1079 = vmatmul.bf16.gmra.mxu0 %v993
        %v1080 = vpop.f32.mrf.mxu0
        %v1081 = vadd.f32 0.0, %v1080
        %v1082 = vpop.f32.mrf.mxu0
        %v1083 = vadd.f32 0.0, %v1082
        %1084 = vmatmul.bf16.gmra.mxu0 %v996
        %v1085 = vpop.f32.mrf.mxu0
        %v1086 = vadd.f32 0.0, %v1085
        %v1087 = vpop.f32.mrf.mxu0
        %v1088 = vadd.f32 0.0, %v1087
        %1089 = vmatmul.bf16.gmra.mxu0 %v999
        %v1090 = vpop.f32.mrf.mxu0
        %v1091 = vadd.f32 0.0, %v1090
        %v1092 = vpop.f32.mrf.mxu0
        %v1093 = vadd.f32 0.0, %v1092
        %1094 = vmatmul.bf16.gmra.mxu0 %v1002
        %v1095 = vpop.f32.mrf.mxu0
        %v1096 = vadd.f32 0.0, %v1095
        %v1097 = vpop.f32.mrf.mxu0
        %v1098 = vadd.f32 0.0, %v1097
        %1099 = vmatmul.bf16.gmra.mxu0 %v1005
        %v1100 = vpop.f32.mrf.mxu0
        %v1101 = vadd.f32 0.0, %v1100
        %v1102 = vpop.f32.mrf.mxu0
        %v1103 = vadd.f32 0.0, %v1102
        %1104 = vmatmul.bf16.gmra.mxu0 %v1008
        %v1105 = vpop.f32.mrf.mxu0
        %v1106 = vadd.f32 0.0, %v1105
        %v1107 = vpop.f32.mrf.mxu0
        %v1108 = vadd.f32 0.0, %v1107
        %1109 = vmatmul.bf16.gmra.mxu0 %v1011
        %v1110 = vpop.f32.mrf.mxu0
        %v1111 = vadd.f32 0.0, %v1110
        %v1112 = vpop.f32.mrf.mxu0
        %v1113 = vadd.f32 0.0, %v1112
        %1114 = vdwg.mxu0
        %v1115 = vadd.f32 %v921, %v1026
        %v1116 = vadd.f32 %v922, %v1028
        %v1117 = vadd.f32 %v923, %v1031
        %v1118 = vadd.f32 %v924, %v1033
        %v1119 = vadd.f32 %v925, %v1036
        %v1120 = vadd.f32 %v926, %v1038
        %v1121 = vadd.f32 %v927, %v1041
        %v1122 = vadd.f32 %v928, %v1043
        %v1123 = vadd.f32 %v929, %v1046
        %v1124 = vadd.f32 %v930, %v1048
        %v1125 = vadd.f32 %v931, %v1051
        %v1126 = vadd.f32 %v932, %v1053
        %v1127 = vadd.f32 %v933, %v1056
        %v1128 = vadd.f32 %v934, %v1058
        %v1129 = vadd.f32 %v935, %v1061
        %v1130 = vadd.f32 %v936, %v1063
        %v1131 = vadd.f32 %v937, %v1066
        %v1132 = vadd.f32 %v938, %v1068
        %v1133 = vadd.f32 %v939, %v1071
        %v1134 = vadd.f32 %v940, %v1073
        %v1135 = vadd.f32 %v941, %v1076
        %v1136 = vadd.f32 %v942, %v1078
        %v1137 = vadd.f32 %v943, %v1081
        %v1138 = vadd.f32 %v944, %v1083
        %v1139 = vadd.f32 %v945, %v1086
        %v1140 = vadd.f32 %v946, %v1088
        %v1141 = vadd.f32 %v947, %v1091
        %v1142 = vadd.f32 %v948, %v1093
        %v1143 = vadd.f32 %v949, %v1096
        %v1144 = vadd.f32 %v950, %v1098
        %v1145 = vadd.f32 %v951, %v1101
        %v1146 = vadd.f32 %v952, %v1103
        %v1147 = vadd.f32 %v953, %v1106
        %v1148 = vadd.f32 %v954, %v1108
        %v1149 = vadd.f32 %v955, %v1111
        %v1150 = vadd.f32 %v956, %v1113
        %1151 = vst.msk [vmem:[#allocation2] sm:$0xff] %vm468, %v1115
        %1152 = vst.msk [vmem:[#allocation2 + $0x8] sm:$0xff] %vm468, %v1116
        %1153 = vst.msk [vmem:[#allocation2 + $0x10] sm:$0xff] %vm468, %v1117
        %1154 = vst.msk [vmem:[#allocation2 + $0x18] sm:$0xff] %vm468, %v1118
        %1155 = vst.msk [vmem:[#allocation2 + $0x20] sm:$0xff] %vm468, %v1119
        %1156 = vst.msk [vmem:[#allocation2 + $0x28] sm:$0xff] %vm468, %v1120
        %1157 = vst.msk [vmem:[#allocation2 + $0x30] sm:$0xff] %vm468, %v1121
        %1158 = vst.msk [vmem:[#allocation2 + $0x38] sm:$0xff] %vm468, %v1122
        %1159 = vst.msk [vmem:[#allocation2 + $0x40] sm:$0xff] %vm468, %v1123
        %1160 = vst.msk [vmem:[#allocation2 + $0x48] sm:$0xff] %vm468, %v1124
        %1161 = vst.msk [vmem:[#allocation2 + $0x50] sm:$0xff] %vm468, %v1125
        %1162 = vst.msk [vmem:[#allocation2 + $0x58] sm:$0xff] %vm468, %v1126
        %1163 = vst.msk [vmem:[#allocation2 + $0x60] sm:$0xff] %vm468, %v1127
        %1164 = vst.msk [vmem:[#allocation2 + $0x68] sm:$0xff] %vm468, %v1128
        %1165 = vst.msk [vmem:[#allocation2 + $0x70] sm:$0xff] %vm468, %v1129
        %1166 = vst.msk [vmem:[#allocation2 + $0x78] sm:$0xff] %vm468, %v1130
        %1167 = vst.msk [vmem:[#allocation2 + $0x80] sm:$0xff] %vm468, %v1131
        %1168 = vst.msk [vmem:[#allocation2 + $0x88] sm:$0xff] %vm468, %v1132
        %1169 = vst.msk [vmem:[#allocation2 + $0x90] sm:$0xff] %vm468, %v1133
        %1170 = vst.msk [vmem:[#allocation2 + $0x98] sm:$0xff] %vm468, %v1134
        %1171 = vst.msk [vmem:[#allocation2 + $0xa0] sm:$0xff] %vm468, %v1135
        %1172 = vst.msk [vmem:[#allocation2 + $0xa8] sm:$0xff] %vm468, %v1136
        %1173 = vst.msk [vmem:[#allocation2 + $0xb0] sm:$0xff] %vm468, %v1137
        %1174 = vst.msk [vmem:[#allocation2 + $0xb8] sm:$0xff] %vm468, %v1138
        %1175 = vst.msk [vmem:[#allocation2 + $0xc0] sm:$0xff] %vm468, %v1139
        %1176 = vst.msk [vmem:[#allocation2 + $0xc8] sm:$0xff] %vm468, %v1140
        %1177 = vst.msk [vmem:[#allocation2 + $0xd0] sm:$0xff] %vm468, %v1141
        %1178 = vst.msk [vmem:[#allocation2 + $0xd8] sm:$0xff] %vm468, %v1142
        %1179 = vst.msk [vmem:[#allocation2 + $0xe0] sm:$0xff] %vm468, %v1143
        %1180 = vst.msk [vmem:[#allocation2 + $0xe8] sm:$0xff] %vm468, %v1144
        %1181 = vst.msk [vmem:[#allocation2 + $0xf0] sm:$0xff] %vm468, %v1145
        %1182 = vst.msk [vmem:[#allocation2 + $0xf8] sm:$0xff] %vm468, %v1146
        %1183 = vst.msk [vmem:[#allocation2 + $0x100] sm:$0xff] %vm468, %v1147
        %1184 = vst.msk [vmem:[#allocation2 + $0x108] sm:$0xff] %vm468, %v1148
        %1185 = vst.msk [vmem:[#allocation2 + $0x110] sm:$0xff] %vm468, %v1149
        %1186 = vst.msk [vmem:[#allocation2 + $0x118] sm:$0xff] %vm468, %v1150
        %v1187 = vld [vmem:[%s425 + $0x2] sm:$0xff]
        %v1188 = vld [vmem:[%s425 + $0xa] sm:$0xff]
        %v1189 = vld [vmem:[%s425 + $0x12] sm:$0xff]
        %v1190 = vld [vmem:[%s425 + $0x1a] sm:$0xff]
        %v1191 = vld [vmem:[%s425 + $0x22] sm:$0xff]
        %v1192 = vld [vmem:[%s425 + $0x2a] sm:$0xff]
        %v1193 = vld [vmem:[%s425 + $0x32] sm:$0xff]
        %v1194 = vld [vmem:[%s425 + $0x3a] sm:$0xff]
        %v1195 = vld [vmem:[%s425 + $0x42] sm:$0xff]
        %v1196 = vld [vmem:[%s425 + $0x4a] sm:$0xff]
        %v1197 = vld [vmem:[%s425 + $0x52] sm:$0xff]
        %v1198 = vld [vmem:[%s425 + $0x5a] sm:$0xff]
        %v1199 = vld [vmem:[%s425 + $0x62] sm:$0xff]
        %v1200 = vld [vmem:[%s425 + $0x6a] sm:$0xff]
        %v1201 = vld [vmem:[%s425 + $0x72] sm:$0xff]
        %v1202 = vld [vmem:[%s425 + $0x7a] sm:$0xff]
        %v1203 = vld [vmem:[%s425 + $0x82] sm:$0xff]
        %v1204 = vld [vmem:[%s425 + $0x8a] sm:$0xff]
        %v1205 = vld [vmem:[%s425 + $0x92] sm:$0xff]
        %v1206 = vld [vmem:[%s425 + $0x9a] sm:$0xff]
        %v1207 = vld [vmem:[%s425 + $0xa2] sm:$0xff]
        %v1208 = vld [vmem:[%s425 + $0xaa] sm:$0xff]
        %v1209 = vld [vmem:[%s425 + $0xb2] sm:$0xff]
        %v1210 = vld [vmem:[%s425 + $0xba] sm:$0xff]
        %v1211 = vld [vmem:[%s425 + $0xc2] sm:$0xff]
        %v1212 = vld [vmem:[%s425 + $0xca] sm:$0xff]
        %v1213 = vld [vmem:[%s425 + $0xd2] sm:$0xff]
        %v1214 = vld [vmem:[%s425 + $0xda] sm:$0xff]
        %v1215 = vld [vmem:[%s425 + $0xe2] sm:$0xff]
        %v1216 = vld [vmem:[%s425 + $0xea] sm:$0xff]
        %v1217 = vld [vmem:[%s425 + $0xf2] sm:$0xff]
        %v1218 = vld [vmem:[%s425 + $0xfa] sm:$0xff]
        %v1219 = vld [vmem:[%s425 + $0x102] sm:$0xff]
        %v1220 = vld [vmem:[%s425 + $0x10a] sm:$0xff]
        %v1221 = vld [vmem:[%s425 + $0x112] sm:$0xff]
        %v1222 = vld [vmem:[%s425 + $0x11a] sm:$0xff]
        %v1223 = vpack.c.bf16 %v1188, %v1187
        %v1224 = vpack.c.bf16 %v1190, %v1189
        %v1225 = vpack.c.bf16 %v1192, %v1191
        %v1226 = vpack.c.bf16 %v1194, %v1193
        %v1227 = vpack.c.bf16 %v1196, %v1195
        %v1228 = vpack.c.bf16 %v1198, %v1197
        %v1229 = vpack.c.bf16 %v1200, %v1199
        %v1230 = vpack.c.bf16 %v1202, %v1201
        %v1231 = vpack.c.bf16 %v1204, %v1203
        %v1232 = vpack.c.bf16 %v1206, %v1205
        %v1233 = vpack.c.bf16 %v1208, %v1207
        %v1234 = vpack.c.bf16 %v1210, %v1209
        %v1235 = vpack.c.bf16 %v1212, %v1211
        %v1236 = vpack.c.bf16 %v1214, %v1213
        %v1237 = vpack.c.bf16 %v1216, %v1215
        %v1238 = vpack.c.bf16 %v1218, %v1217
        %v1239 = vpack.c.bf16 %v1220, %v1219
        %v1240 = vpack.c.bf16 %v1222, %v1221
        %v1241 = vld [vmem:[#allocation2] sm:$0xff]
        %v1242 = vld [vmem:[#allocation2 + $0x8] sm:$0xff]
        %v1243 = vld [vmem:[#allocation2 + $0x10] sm:$0xff]
        %v1244 = vld [vmem:[#allocation2 + $0x18] sm:$0xff]
        %v1245 = vld [vmem:[#allocation2 + $0x20] sm:$0xff]
        %v1246 = vld [vmem:[#allocation2 + $0x28] sm:$0xff]
        %v1247 = vld [vmem:[#allocation2 + $0x30] sm:$0xff]
        %v1248 = vld [vmem:[#allocation2 + $0x38] sm:$0xff]
        %v1249 = vld [vmem:[#allocation2 + $0x40] sm:$0xff]
        %v1250 = vld [vmem:[#allocation2 + $0x48] sm:$0xff]
        %v1251 = vld [vmem:[#allocation2 + $0x50] sm:$0xff]
        %v1252 = vld [vmem:[#allocation2 + $0x58] sm:$0xff]
        %v1253 = vld [vmem:[#allocation2 + $0x60] sm:$0xff]
        %v1254 = vld [vmem:[#allocation2 + $0x68] sm:$0xff]
        %v1255 = vld [vmem:[#allocation2 + $0x70] sm:$0xff]
        %v1256 = vld [vmem:[#allocation2 + $0x78] sm:$0xff]
        %v1257 = vld [vmem:[#allocation2 + $0x80] sm:$0xff]
        %v1258 = vld [vmem:[#allocation2 + $0x88] sm:$0xff]
        %v1259 = vld [vmem:[#allocation2 + $0x90] sm:$0xff]
        %v1260 = vld [vmem:[#allocation2 + $0x98] sm:$0xff]
        %v1261 = vld [vmem:[#allocation2 + $0xa0] sm:$0xff]
        %v1262 = vld [vmem:[#allocation2 + $0xa8] sm:$0xff]
        %v1263 = vld [vmem:[#allocation2 + $0xb0] sm:$0xff]
        %v1264 = vld [vmem:[#allocation2 + $0xb8] sm:$0xff]
        %v1265 = vld [vmem:[#allocation2 + $0xc0] sm:$0xff]
        %v1266 = vld [vmem:[#allocation2 + $0xc8] sm:$0xff]
        %v1267 = vld [vmem:[#allocation2 + $0xd0] sm:$0xff]
        %v1268 = vld [vmem:[#allocation2 + $0xd8] sm:$0xff]
        %v1269 = vld [vmem:[#allocation2 + $0xe0] sm:$0xff]
        %v1270 = vld [vmem:[#allocation2 + $0xe8] sm:$0xff]
        %v1271 = vld [vmem:[#allocation2 + $0xf0] sm:$0xff]
        %v1272 = vld [vmem:[#allocation2 + $0xf8] sm:$0xff]
        %v1273 = vld [vmem:[#allocation2 + $0x100] sm:$0xff]
        %v1274 = vld [vmem:[#allocation2 + $0x108] sm:$0xff]
        %v1275 = vld [vmem:[#allocation2 + $0x110] sm:$0xff]
        %v1276 = vld [vmem:[#allocation2 + $0x118] sm:$0xff]
        %s1277 = scalar_lea.vmem [#allocation4], 8
        %v1278 = vld [vmem:[%s1277] sm:$0xf]
        %v1280 = vsel %vm637, %v1223, 0
        %v1283 = vsel %vm637, %v1224, 0
        %v1286 = vsel %vm637, %v1225, 0
        %v1289 = vsel %vm637, %v1226, 0
        %v1292 = vsel %vm637, %v1227, 0
        %v1295 = vsel %vm637, %v1228, 0
        %v1298 = vsel %vm637, %v1229, 0
        %v1301 = vsel %vm637, %v1230, 0
        %v1304 = vsel %vm637, %v1231, 0
        %v1307 = vsel %vm637, %v1232, 0
        %v1310 = vsel %vm637, %v1233, 0
        %v1313 = vsel %vm637, %v1234, 0
        %v1316 = vsel %vm637, %v1235, 0
        %v1319 = vsel %vm637, %v1236, 0
        %v1322 = vsel %vm637, %v1237, 0
        %v1325 = vsel %vm637, %v1238, 0
        %v1328 = vsel %vm637, %v1239, 0
        %v1331 = vsel %vm637, %v1240, 0
        %v1334 = vsel %vm692, %v1278, 0
        %1336 = vmatpush.bf16.msra.mxu0 0
        %1337 = vmatpush.bf16.msra.mxu0 0
        %1338 = vmatpush.bf16.msra.mxu0 0
        %1339 = vmatpush.bf16.msra.mxu0 0
        %1340 = vmatpush.bf16.msra.mxu0 0
        %1341 = vmatpush.bf16.msra.mxu0 0
        %1342 = vmatpush.bf16.msra.mxu0 0
        %1343 = vmatpush.bf16.msra.mxu0 %v1334
        %1344 = vmatmul.bf16.gmra.mxu0 %v1280
        %v1345 = vpop.f32.mrf.mxu0
        %v1346 = vadd.f32 0.0, %v1345
        %v1347 = vpop.f32.mrf.mxu0
        %v1348 = vadd.f32 0.0, %v1347
        %1349 = vmatmul.bf16.gmra.mxu0 %v1283
        %v1350 = vpop.f32.mrf.mxu0
        %v1351 = vadd.f32 0.0, %v1350
        %v1352 = vpop.f32.mrf.mxu0
        %v1353 = vadd.f32 0.0, %v1352
        %1354 = vmatmul.bf16.gmra.mxu0 %v1286
        %v1355 = vpop.f32.mrf.mxu0
        %v1356 = vadd.f32 0.0, %v1355
        %v1357 = vpop.f32.mrf.mxu0
        %v1358 = vadd.f32 0.0, %v1357
        %1359 = vmatmul.bf16.gmra.mxu0 %v1289
        %v1360 = vpop.f32.mrf.mxu0
        %v1361 = vadd.f32 0.0, %v1360
        %v1362 = vpop.f32.mrf.mxu0
        %v1363 = vadd.f32 0.0, %v1362
        %1364 = vmatmul.bf16.gmra.mxu0 %v1292
        %v1365 = vpop.f32.mrf.mxu0
        %v1366 = vadd.f32 0.0, %v1365
        %v1367 = vpop.f32.mrf.mxu0
        %v1368 = vadd.f32 0.0, %v1367
        %1369 = vmatmul.bf16.gmra.mxu0 %v1295
        %v1370 = vpop.f32.mrf.mxu0
        %v1371 = vadd.f32 0.0, %v1370
        %v1372 = vpop.f32.mrf.mxu0
        %v1373 = vadd.f32 0.0, %v1372
        %1374 = vmatmul.bf16.gmra.mxu0 %v1298
        %v1375 = vpop.f32.mrf.mxu0
        %v1376 = vadd.f32 0.0, %v1375
        %v1377 = vpop.f32.mrf.mxu0
        %v1378 = vadd.f32 0.0, %v1377
        %1379 = vmatmul.bf16.gmra.mxu0 %v1301
        %v1380 = vpop.f32.mrf.mxu0
        %v1381 = vadd.f32 0.0, %v1380
        %v1382 = vpop.f32.mrf.mxu0
        %v1383 = vadd.f32 0.0, %v1382
        %1384 = vmatmul.bf16.gmra.mxu0 %v1304
        %v1385 = vpop.f32.mrf.mxu0
        %v1386 = vadd.f32 0.0, %v1385
        %v1387 = vpop.f32.mrf.mxu0
        %v1388 = vadd.f32 0.0, %v1387
        %1389 = vmatmul.bf16.gmra.mxu0 %v1307
        %v1390 = vpop.f32.mrf.mxu0
        %v1391 = vadd.f32 0.0, %v1390
        %v1392 = vpop.f32.mrf.mxu0
        %v1393 = vadd.f32 0.0, %v1392
        %1394 = vmatmul.bf16.gmra.mxu0 %v1310
        %v1395 = vpop.f32.mrf.mxu0
        %v1396 = vadd.f32 0.0, %v1395
        %v1397 = vpop.f32.mrf.mxu0
        %v1398 = vadd.f32 0.0, %v1397
        %1399 = vmatmul.bf16.gmra.mxu0 %v1313
        %v1400 = vpop.f32.mrf.mxu0
        %v1401 = vadd.f32 0.0, %v1400
        %v1402 = vpop.f32.mrf.mxu0
        %v1403 = vadd.f32 0.0, %v1402
        %1404 = vmatmul.bf16.gmra.mxu0 %v1316
        %v1405 = vpop.f32.mrf.mxu0
        %v1406 = vadd.f32 0.0, %v1405
        %v1407 = vpop.f32.mrf.mxu0
        %v1408 = vadd.f32 0.0, %v1407
        %1409 = vmatmul.bf16.gmra.mxu0 %v1319
        %v1410 = vpop.f32.mrf.mxu0
        %v1411 = vadd.f32 0.0, %v1410
        %v1412 = vpop.f32.mrf.mxu0
        %v1413 = vadd.f32 0.0, %v1412
        %1414 = vmatmul.bf16.gmra.mxu0 %v1322
        %v1415 = vpop.f32.mrf.mxu0
        %v1416 = vadd.f32 0.0, %v1415
        %v1417 = vpop.f32.mrf.mxu0
        %v1418 = vadd.f32 0.0, %v1417
        %1419 = vmatmul.bf16.gmra.mxu0 %v1325
        %v1420 = vpop.f32.mrf.mxu0
        %v1421 = vadd.f32 0.0, %v1420
        %v1422 = vpop.f32.mrf.mxu0
        %v1423 = vadd.f32 0.0, %v1422
        %1424 = vmatmul.bf16.gmra.mxu0 %v1328
        %v1425 = vpop.f32.mrf.mxu0
        %v1426 = vadd.f32 0.0, %v1425
        %v1427 = vpop.f32.mrf.mxu0
        %v1428 = vadd.f32 0.0, %v1427
        %1429 = vmatmul.bf16.gmra.mxu0 %v1331
        %v1430 = vpop.f32.mrf.mxu0
        %v1431 = vadd.f32 0.0, %v1430
        %v1432 = vpop.f32.mrf.mxu0
        %v1433 = vadd.f32 0.0, %v1432
        %1434 = vdwg.mxu0
        %v1435 = vadd.f32 %v1241, %v1346
        %v1436 = vadd.f32 %v1242, %v1348
        %v1437 = vadd.f32 %v1243, %v1351
        %v1438 = vadd.f32 %v1244, %v1353
        %v1439 = vadd.f32 %v1245, %v1356
        %v1440 = vadd.f32 %v1246, %v1358
        %v1441 = vadd.f32 %v1247, %v1361
        %v1442 = vadd.f32 %v1248, %v1363
        %v1443 = vadd.f32 %v1249, %v1366
        %v1444 = vadd.f32 %v1250, %v1368
        %v1445 = vadd.f32 %v1251, %v1371
        %v1446 = vadd.f32 %v1252, %v1373
        %v1447 = vadd.f32 %v1253, %v1376
        %v1448 = vadd.f32 %v1254, %v1378
        %v1449 = vadd.f32 %v1255, %v1381
        %v1450 = vadd.f32 %v1256, %v1383
        %v1451 = vadd.f32 %v1257, %v1386
        %v1452 = vadd.f32 %v1258, %v1388
        %v1453 = vadd.f32 %v1259, %v1391
        %v1454 = vadd.f32 %v1260, %v1393
        %v1455 = vadd.f32 %v1261, %v1396
        %v1456 = vadd.f32 %v1262, %v1398
        %v1457 = vadd.f32 %v1263, %v1401
        %v1458 = vadd.f32 %v1264, %v1403
        %v1459 = vadd.f32 %v1265, %v1406
        %v1460 = vadd.f32 %v1266, %v1408
        %v1461 = vadd.f32 %v1267, %v1411
        %v1462 = vadd.f32 %v1268, %v1413
        %v1463 = vadd.f32 %v1269, %v1416
        %v1464 = vadd.f32 %v1270, %v1418
        %v1465 = vadd.f32 %v1271, %v1421
        %v1466 = vadd.f32 %v1272, %v1423
        %v1467 = vadd.f32 %v1273, %v1426
        %v1468 = vadd.f32 %v1274, %v1428
        %v1469 = vadd.f32 %v1275, %v1431
        %v1470 = vadd.f32 %v1276, %v1433
        %1471 = vst.msk [vmem:[#allocation2] sm:$0xff] %vm468, %v1435
        %1472 = vst.msk [vmem:[#allocation2 + $0x8] sm:$0xff] %vm468, %v1436
        %1473 = vst.msk [vmem:[#allocation2 + $0x10] sm:$0xff] %vm468, %v1437
        %1474 = vst.msk [vmem:[#allocation2 + $0x18] sm:$0xff] %vm468, %v1438
        %1475 = vst.msk [vmem:[#allocation2 + $0x20] sm:$0xff] %vm468, %v1439
        %1476 = vst.msk [vmem:[#allocation2 + $0x28] sm:$0xff] %vm468, %v1440
        %1477 = vst.msk [vmem:[#allocation2 + $0x30] sm:$0xff] %vm468, %v1441
        %1478 = vst.msk [vmem:[#allocation2 + $0x38] sm:$0xff] %vm468, %v1442
        %1479 = vst.msk [vmem:[#allocation2 + $0x40] sm:$0xff] %vm468, %v1443
        %1480 = vst.msk [vmem:[#allocation2 + $0x48] sm:$0xff] %vm468, %v1444
        %1481 = vst.msk [vmem:[#allocation2 + $0x50] sm:$0xff] %vm468, %v1445
        %1482 = vst.msk [vmem:[#allocation2 + $0x58] sm:$0xff] %vm468, %v1446
        %1483 = vst.msk [vmem:[#allocation2 + $0x60] sm:$0xff] %vm468, %v1447
        %1484 = vst.msk [vmem:[#allocation2 + $0x68] sm:$0xff] %vm468, %v1448
        %1485 = vst.msk [vmem:[#allocation2 + $0x70] sm:$0xff] %vm468, %v1449
        %1486 = vst.msk [vmem:[#allocation2 + $0x78] sm:$0xff] %vm468, %v1450
        %1487 = vst.msk [vmem:[#allocation2 + $0x80] sm:$0xff] %vm468, %v1451
        %1488 = vst.msk [vmem:[#allocation2 + $0x88] sm:$0xff] %vm468, %v1452
        %1489 = vst.msk [vmem:[#allocation2 + $0x90] sm:$0xff] %vm468, %v1453
        %1490 = vst.msk [vmem:[#allocation2 + $0x98] sm:$0xff] %vm468, %v1454
        %1491 = vst.msk [vmem:[#allocation2 + $0xa0] sm:$0xff] %vm468, %v1455
        %1492 = vst.msk [vmem:[#allocation2 + $0xa8] sm:$0xff] %vm468, %v1456
        %1493 = vst.msk [vmem:[#allocation2 + $0xb0] sm:$0xff] %vm468, %v1457
        %1494 = vst.msk [vmem:[#allocation2 + $0xb8] sm:$0xff] %vm468, %v1458
        %1495 = vst.msk [vmem:[#allocation2 + $0xc0] sm:$0xff] %vm468, %v1459
        %1496 = vst.msk [vmem:[#allocation2 + $0xc8] sm:$0xff] %vm468, %v1460
        %1497 = vst.msk [vmem:[#allocation2 + $0xd0] sm:$0xff] %vm468, %v1461
        %1498 = vst.msk [vmem:[#allocation2 + $0xd8] sm:$0xff] %vm468, %v1462
        %1499 = vst.msk [vmem:[#allocation2 + $0xe0] sm:$0xff] %vm468, %v1463
        %1500 = vst.msk [vmem:[#allocation2 + $0xe8] sm:$0xff] %vm468, %v1464
        %1501 = vst.msk [vmem:[#allocation2 + $0xf0] sm:$0xff] %vm468, %v1465
        %1502 = vst.msk [vmem:[#allocation2 + $0xf8] sm:$0xff] %vm468, %v1466
        %1503 = vst.msk [vmem:[#allocation2 + $0x100] sm:$0xff] %vm468, %v1467
        %1504 = vst.msk [vmem:[#allocation2 + $0x108] sm:$0xff] %vm468, %v1468
        %1505 = vst.msk [vmem:[#allocation2 + $0x110] sm:$0xff] %vm468, %v1469
        %1506 = vst.msk [vmem:[#allocation2 + $0x118] sm:$0xff] %vm468, %v1470
        %v1507 = vld [vmem:[%s425 + $0x12] sm:$0xff]
        %v1508 = vld [vmem:[%s425 + $0x1a] sm:$0xff]
        %v1509 = vld [vmem:[%s425 + $0x22] sm:$0xff]
        %v1510 = vld [vmem:[%s425 + $0x2a] sm:$0xff]
        %v1511 = vld [vmem:[%s425 + $0x32] sm:$0xff]
        %v1512 = vld [vmem:[%s425 + $0x3a] sm:$0xff]
        %v1513 = vld [vmem:[%s425 + $0x42] sm:$0xff]
        %v1514 = vld [vmem:[%s425 + $0x4a] sm:$0xff]
        %v1515 = vld [vmem:[%s425 + $0x52] sm:$0xff]
        %v1516 = vld [vmem:[%s425 + $0x5a] sm:$0xff]
        %v1517 = vld [vmem:[%s425 + $0x62] sm:$0xff]
        %v1518 = vld [vmem:[%s425 + $0x6a] sm:$0xff]
        %v1519 = vld [vmem:[%s425 + $0x72] sm:$0xff]
        %v1520 = vld [vmem:[%s425 + $0x7a] sm:$0xff]
        %v1521 = vld [vmem:[%s425 + $0x82] sm:$0xff]
        %v1522 = vld [vmem:[%s425 + $0x8a] sm:$0xff]
        %v1523 = vld [vmem:[%s425 + $0x92] sm:$0xff]
        %v1524 = vld [vmem:[%s425 + $0x9a] sm:$0xff]
        %v1525 = vld [vmem:[%s425 + $0xa2] sm:$0xff]
        %v1526 = vld [vmem:[%s425 + $0xaa] sm:$0xff]
        %v1527 = vld [vmem:[%s425 + $0xb2] sm:$0xff]
        %v1528 = vld [vmem:[%s425 + $0xba] sm:$0xff]
        %v1529 = vld [vmem:[%s425 + $0xc2] sm:$0xff]
        %v1530 = vld [vmem:[%s425 + $0xca] sm:$0xff]
        %v1531 = vld [vmem:[%s425 + $0xd2] sm:$0xff]
        %v1532 = vld [vmem:[%s425 + $0xda] sm:$0xff]
        %v1533 = vld [vmem:[%s425 + $0xe2] sm:$0xff]
        %v1534 = vld [vmem:[%s425 + $0xea] sm:$0xff]
        %v1535 = vld [vmem:[%s425 + $0xf2] sm:$0xff]
        %v1536 = vld [vmem:[%s425 + $0xfa] sm:$0xff]
        %v1537 = vld [vmem:[%s425 + $0x102] sm:$0xff]
        %v1538 = vld [vmem:[%s425 + $0x10a] sm:$0xff]
        %v1539 = vld [vmem:[%s425 + $0x112] sm:$0xff]
        %v1540 = vld [vmem:[%s425 + $0x11a] sm:$0xff]
        %v1541 = vld [vmem:[%s425 + $0x122] sm:$0xff]
        %v1542 = vld [vmem:[%s425 + $0x12a] sm:$0xff]
        %v1543 = vpack.c.bf16 %v1508, %v1507
        %v1544 = vpack.c.bf16 %v1510, %v1509
        %v1545 = vpack.c.bf16 %v1512, %v1511
        %v1546 = vpack.c.bf16 %v1514, %v1513
        %v1547 = vpack.c.bf16 %v1516, %v1515
        %v1548 = vpack.c.bf16 %v1518, %v1517
        %v1549 = vpack.c.bf16 %v1520, %v1519
        %v1550 = vpack.c.bf16 %v1522, %v1521
        %v1551 = vpack.c.bf16 %v1524, %v1523
        %v1552 = vpack.c.bf16 %v1526, %v1525
        %v1553 = vpack.c.bf16 %v1528, %v1527
        %v1554 = vpack.c.bf16 %v1530, %v1529
        %v1555 = vpack.c.bf16 %v1532, %v1531
        %v1556 = vpack.c.bf16 %v1534, %v1533
        %v1557 = vpack.c.bf16 %v1536, %v1535
        %v1558 = vpack.c.bf16 %v1538, %v1537
        %v1559 = vpack.c.bf16 %v1540, %v1539
        %v1560 = vpack.c.bf16 %v1542, %v1541
        %v1561 = vld [vmem:[#allocation2] sm:$0xff]
        %v1562 = vld [vmem:[#allocation2 + $0x8] sm:$0xff]
        %v1563 = vld [vmem:[#allocation2 + $0x10] sm:$0xff]
        %v1564 = vld [vmem:[#allocation2 + $0x18] sm:$0xff]
        %v1565 = vld [vmem:[#allocation2 + $0x20] sm:$0xff]
        %v1566 = vld [vmem:[#allocation2 + $0x28] sm:$0xff]
        %v1567 = vld [vmem:[#allocation2 + $0x30] sm:$0xff]
        %v1568 = vld [vmem:[#allocation2 + $0x38] sm:$0xff]
        %v1569 = vld [vmem:[#allocation2 + $0x40] sm:$0xff]
        %v1570 = vld [vmem:[#allocation2 + $0x48] sm:$0xff]
        %v1571 = vld [vmem:[#allocation2 + $0x50] sm:$0xff]
        %v1572 = vld [vmem:[#allocation2 + $0x58] sm:$0xff]
        %v1573 = vld [vmem:[#allocation2 + $0x60] sm:$0xff]
        %v1574 = vld [vmem:[#allocation2 + $0x68] sm:$0xff]
        %v1575 = vld [vmem:[#allocation2 + $0x70] sm:$0xff]
        %v1576 = vld [vmem:[#allocation2 + $0x78] sm:$0xff]
        %v1577 = vld [vmem:[#allocation2 + $0x80] sm:$0xff]
        %v1578 = vld [vmem:[#allocation2 + $0x88] sm:$0xff]
        %v1579 = vld [vmem:[#allocation2 + $0x90] sm:$0xff]
        %v1580 = vld [vmem:[#allocation2 + $0x98] sm:$0xff]
        %v1581 = vld [vmem:[#allocation2 + $0xa0] sm:$0xff]
        %v1582 = vld [vmem:[#allocation2 + $0xa8] sm:$0xff]
        %v1583 = vld [vmem:[#allocation2 + $0xb0] sm:$0xff]
        %v1584 = vld [vmem:[#allocation2 + $0xb8] sm:$0xff]
        %v1585 = vld [vmem:[#allocation2 + $0xc0] sm:$0xff]
        %v1586 = vld [vmem:[#allocation2 + $0xc8] sm:$0xff]
        %v1587 = vld [vmem:[#allocation2 + $0xd0] sm:$0xff]
        %v1588 = vld [vmem:[#allocation2 + $0xd8] sm:$0xff]
        %v1589 = vld [vmem:[#allocation2 + $0xe0] sm:$0xff]
        %v1590 = vld [vmem:[#allocation2 + $0xe8] sm:$0xff]
        %v1591 = vld [vmem:[#allocation2 + $0xf0] sm:$0xff]
        %v1592 = vld [vmem:[#allocation2 + $0xf8] sm:$0xff]
        %v1593 = vld [vmem:[#allocation2 + $0x100] sm:$0xff]
        %v1594 = vld [vmem:[#allocation2 + $0x108] sm:$0xff]
        %v1595 = vld [vmem:[#allocation2 + $0x110] sm:$0xff]
        %v1596 = vld [vmem:[#allocation2 + $0x118] sm:$0xff]
        %s1597 = scalar_lea.vmem [#allocation4], 12
        %v1598 = vld [vmem:[%s1597] sm:$0xf]
        %v1600 = vsel %vm637, %v1543, 0
        %v1603 = vsel %vm637, %v1544, 0
        %v1606 = vsel %vm637, %v1545, 0
        %v1609 = vsel %vm637, %v1546, 0
        %v1612 = vsel %vm637, %v1547, 0
        %v1615 = vsel %vm637, %v1548, 0
        %v1618 = vsel %vm637, %v1549, 0
        %v1621 = vsel %vm637, %v1550, 0
        %v1624 = vsel %vm637, %v1551, 0
        %v1627 = vsel %vm637, %v1552, 0
        %v1630 = vsel %vm637, %v1553, 0
        %v1633 = vsel %vm637, %v1554, 0
        %v1636 = vsel %vm637, %v1555, 0
        %v1639 = vsel %vm637, %v1556, 0
        %v1642 = vsel %vm637, %v1557, 0
        %v1645 = vsel %vm637, %v1558, 0
        %v1648 = vsel %vm637, %v1559, 0
        %v1651 = vsel %vm637, %v1560, 0
        %v1654 = vsel %vm692, %v1598, 0
        %1656 = vmatpush.bf16.msra.mxu0 0
        %1657 = vmatpush.bf16.msra.mxu0 0
        %1658 = vmatpush.bf16.msra.mxu0 0
        %1659 = vmatpush.bf16.msra.mxu0 0
        %1660 = vmatpush.bf16.msra.mxu0 0
        %1661 = vmatpush.bf16.msra.mxu0 0
        %1662 = vmatpush.bf16.msra.mxu0 0
        %1663 = vmatpush.bf16.msra.mxu0 %v1654
        %1664 = vmatmul.bf16.gmra.mxu0 %v1600
        %v1665 = vpop.f32.mrf.mxu0
        %v1666 = vadd.f32 0.0, %v1665
        %v1667 = vpop.f32.mrf.mxu0
        %v1668 = vadd.f32 0.0, %v1667
        %1669 = vmatmul.bf16.gmra.mxu0 %v1603
        %v1670 = vpop.f32.mrf.mxu0
        %v1671 = vadd.f32 0.0, %v1670
        %v1672 = vpop.f32.mrf.mxu0
        %v1673 = vadd.f32 0.0, %v1672
        %1674 = vmatmul.bf16.gmra.mxu0 %v1606
        %v1675 = vpop.f32.mrf.mxu0
        %v1676 = vadd.f32 0.0, %v1675
        %v1677 = vpop.f32.mrf.mxu0
        %v1678 = vadd.f32 0.0, %v1677
        %1679 = vmatmul.bf16.gmra.mxu0 %v1609
        %v1680 = vpop.f32.mrf.mxu0
        %v1681 = vadd.f32 0.0, %v1680
        %v1682 = vpop.f32.mrf.mxu0
        %v1683 = vadd.f32 0.0, %v1682
        %1684 = vmatmul.bf16.gmra.mxu0 %v1612
        %v1685 = vpop.f32.mrf.mxu0
        %v1686 = vadd.f32 0.0, %v1685
        %v1687 = vpop.f32.mrf.mxu0
        %v1688 = vadd.f32 0.0, %v1687
        %1689 = vmatmul.bf16.gmra.mxu0 %v1615
        %v1690 = vpop.f32.mrf.mxu0
        %v1691 = vadd.f32 0.0, %v1690
        %v1692 = vpop.f32.mrf.mxu0
        %v1693 = vadd.f32 0.0, %v1692
        %1694 = vmatmul.bf16.gmra.mxu0 %v1618
        %v1695 = vpop.f32.mrf.mxu0
        %v1696 = vadd.f32 0.0, %v1695
        %v1697 = vpop.f32.mrf.mxu0
        %v1698 = vadd.f32 0.0, %v1697
        %1699 = vmatmul.bf16.gmra.mxu0 %v1621
        %v1700 = vpop.f32.mrf.mxu0
        %v1701 = vadd.f32 0.0, %v1700
        %v1702 = vpop.f32.mrf.mxu0
        %v1703 = vadd.f32 0.0, %v1702
        %1704 = vmatmul.bf16.gmra.mxu0 %v1624
        %v1705 = vpop.f32.mrf.mxu0
        %v1706 = vadd.f32 0.0, %v1705
        %v1707 = vpop.f32.mrf.mxu0
        %v1708 = vadd.f32 0.0, %v1707
        %1709 = vmatmul.bf16.gmra.mxu0 %v1627
        %v1710 = vpop.f32.mrf.mxu0
        %v1711 = vadd.f32 0.0, %v1710
        %v1712 = vpop.f32.mrf.mxu0
        %v1713 = vadd.f32 0.0, %v1712
        %1714 = vmatmul.bf16.gmra.mxu0 %v1630
        %v1715 = vpop.f32.mrf.mxu0
        %v1716 = vadd.f32 0.0, %v1715
        %v1717 = vpop.f32.mrf.mxu0
        %v1718 = vadd.f32 0.0, %v1717
        %1719 = vmatmul.bf16.gmra.mxu0 %v1633
        %v1720 = vpop.f32.mrf.mxu0
        %v1721 = vadd.f32 0.0, %v1720
        %v1722 = vpop.f32.mrf.mxu0
        %v1723 = vadd.f32 0.0, %v1722
        %1724 = vmatmul.bf16.gmra.mxu0 %v1636
        %v1725 = vpop.f32.mrf.mxu0
        %v1726 = vadd.f32 0.0, %v1725
        %v1727 = vpop.f32.mrf.mxu0
        %v1728 = vadd.f32 0.0, %v1727
        %1729 = vmatmul.bf16.gmra.mxu0 %v1639
        %v1730 = vpop.f32.mrf.mxu0
        %v1731 = vadd.f32 0.0, %v1730
        %v1732 = vpop.f32.mrf.mxu0
        %v1733 = vadd.f32 0.0, %v1732
        %1734 = vmatmul.bf16.gmra.mxu0 %v1642
        %v1735 = vpop.f32.mrf.mxu0
        %v1736 = vadd.f32 0.0, %v1735
        %v1737 = vpop.f32.mrf.mxu0
        %v1738 = vadd.f32 0.0, %v1737
        %1739 = vmatmul.bf16.gmra.mxu0 %v1645
        %v1740 = vpop.f32.mrf.mxu0
        %v1741 = vadd.f32 0.0, %v1740
        %v1742 = vpop.f32.mrf.mxu0
        %v1743 = vadd.f32 0.0, %v1742
        %1744 = vmatmul.bf16.gmra.mxu0 %v1648
        %v1745 = vpop.f32.mrf.mxu0
        %v1746 = vadd.f32 0.0, %v1745
        %v1747 = vpop.f32.mrf.mxu0
        %v1748 = vadd.f32 0.0, %v1747
        %1749 = vmatmul.bf16.gmra.mxu0 %v1651
        %v1750 = vpop.f32.mrf.mxu0
        %v1751 = vadd.f32 0.0, %v1750
        %v1752 = vpop.f32.mrf.mxu0
        %v1753 = vadd.f32 0.0, %v1752
        %1754 = vdwg.mxu0
        %v1755 = vadd.f32 %v1561, %v1666
        %v1756 = vadd.f32 %v1562, %v1668
        %v1757 = vadd.f32 %v1563, %v1671
        %v1758 = vadd.f32 %v1564, %v1673
        %v1759 = vadd.f32 %v1565, %v1676
        %v1760 = vadd.f32 %v1566, %v1678
        %v1761 = vadd.f32 %v1567, %v1681
        %v1762 = vadd.f32 %v1568, %v1683
        %v1763 = vadd.f32 %v1569, %v1686
        %v1764 = vadd.f32 %v1570, %v1688
        %v1765 = vadd.f32 %v1571, %v1691
        %v1766 = vadd.f32 %v1572, %v1693
        %v1767 = vadd.f32 %v1573, %v1696
        %v1768 = vadd.f32 %v1574, %v1698
        %v1769 = vadd.f32 %v1575, %v1701
        %v1770 = vadd.f32 %v1576, %v1703
        %v1771 = vadd.f32 %v1577, %v1706
        %v1772 = vadd.f32 %v1578, %v1708
        %v1773 = vadd.f32 %v1579, %v1711
        %v1774 = vadd.f32 %v1580, %v1713
        %v1775 = vadd.f32 %v1581, %v1716
        %v1776 = vadd.f32 %v1582, %v1718
        %v1777 = vadd.f32 %v1583, %v1721
        %v1778 = vadd.f32 %v1584, %v1723
        %v1779 = vadd.f32 %v1585, %v1726
        %v1780 = vadd.f32 %v1586, %v1728
        %v1781 = vadd.f32 %v1587, %v1731
        %v1782 = vadd.f32 %v1588, %v1733
        %v1783 = vadd.f32 %v1589, %v1736
        %v1784 = vadd.f32 %v1590, %v1738
        %v1785 = vadd.f32 %v1591, %v1741
        %v1786 = vadd.f32 %v1592, %v1743
        %v1787 = vadd.f32 %v1593, %v1746
        %v1788 = vadd.f32 %v1594, %v1748
        %v1789 = vadd.f32 %v1595, %v1751
        %v1790 = vadd.f32 %v1596, %v1753
        %1791 = vst.msk [vmem:[#allocation2] sm:$0xff] %vm468, %v1755
        %1792 = vst.msk [vmem:[#allocation2 + $0x8] sm:$0xff] %vm468, %v1756
        %1793 = vst.msk [vmem:[#allocation2 + $0x10] sm:$0xff] %vm468, %v1757
        %1794 = vst.msk [vmem:[#allocation2 + $0x18] sm:$0xff] %vm468, %v1758
        %1795 = vst.msk [vmem:[#allocation2 + $0x20] sm:$0xff] %vm468, %v1759
        %1796 = vst.msk [vmem:[#allocation2 + $0x28] sm:$0xff] %vm468, %v1760
        %1797 = vst.msk [vmem:[#allocation2 + $0x30] sm:$0xff] %vm468, %v1761
        %1798 = vst.msk [vmem:[#allocation2 + $0x38] sm:$0xff] %vm468, %v1762
        %1799 = vst.msk [vmem:[#allocation2 + $0x40] sm:$0xff] %vm468, %v1763
        %1800 = vst.msk [vmem:[#allocation2 + $0x48] sm:$0xff] %vm468, %v1764
        %1801 = vst.msk [vmem:[#allocation2 + $0x50] sm:$0xff] %vm468, %v1765
        %1802 = vst.msk [vmem:[#allocation2 + $0x58] sm:$0xff] %vm468, %v1766
        %1803 = vst.msk [vmem:[#allocation2 + $0x60] sm:$0xff] %vm468, %v1767
        %1804 = vst.msk [vmem:[#allocation2 + $0x68] sm:$0xff] %vm468, %v1768
        %1805 = vst.msk [vmem:[#allocation2 + $0x70] sm:$0xff] %vm468, %v1769
        %1806 = vst.msk [vmem:[#allocation2 + $0x78] sm:$0xff] %vm468, %v1770
        %1807 = vst.msk [vmem:[#allocation2 + $0x80] sm:$0xff] %vm468, %v1771
        %1808 = vst.msk [vmem:[#allocation2 + $0x88] sm:$0xff] %vm468, %v1772
        %1809 = vst.msk [vmem:[#allocation2 + $0x90] sm:$0xff] %vm468, %v1773
        %1810 = vst.msk [vmem:[#allocation2 + $0x98] sm:$0xff] %vm468, %v1774
        %1811 = vst.msk [vmem:[#allocation2 + $0xa0] sm:$0xff] %vm468, %v1775
        %1812 = vst.msk [vmem:[#allocation2 + $0xa8] sm:$0xff] %vm468, %v1776
        %1813 = vst.msk [vmem:[#allocation2 + $0xb0] sm:$0xff] %vm468, %v1777
        %1814 = vst.msk [vmem:[#allocation2 + $0xb8] sm:$0xff] %vm468, %v1778
        %1815 = vst.msk [vmem:[#allocation2 + $0xc0] sm:$0xff] %vm468, %v1779
        %1816 = vst.msk [vmem:[#allocation2 + $0xc8] sm:$0xff] %vm468, %v1780
        %1817 = vst.msk [vmem:[#allocation2 + $0xd0] sm:$0xff] %vm468, %v1781
        %1818 = vst.msk [vmem:[#allocation2 + $0xd8] sm:$0xff] %vm468, %v1782
        %1819 = vst.msk [vmem:[#allocation2 + $0xe0] sm:$0xff] %vm468, %v1783
        %1820 = vst.msk [vmem:[#allocation2 + $0xe8] sm:$0xff] %vm468, %v1784
        %1821 = vst.msk [vmem:[#allocation2 + $0xf0] sm:$0xff] %vm468, %v1785
        %1822 = vst.msk [vmem:[#allocation2 + $0xf8] sm:$0xff] %vm468, %v1786
        %1823 = vst.msk [vmem:[#allocation2 + $0x100] sm:$0xff] %vm468, %v1787
        %1824 = vst.msk [vmem:[#allocation2 + $0x108] sm:$0xff] %vm468, %v1788
        %1825 = vst.msk [vmem:[#allocation2 + $0x110] sm:$0xff] %vm468, %v1789
        %1826 = vst.msk [vmem:[#allocation2 + $0x118] sm:$0xff] %vm468, %v1790
        %v1827 = vld [vmem:[%s425 + $0x13] sm:$0xff]
        %v1828 = vld [vmem:[%s425 + $0x1b] sm:$0xff]
        %v1829 = vld [vmem:[%s425 + $0x23] sm:$0xff]
        %v1830 = vld [vmem:[%s425 + $0x2b] sm:$0xff]
        %v1831 = vld [vmem:[%s425 + $0x33] sm:$0xff]
        %v1832 = vld [vmem:[%s425 + $0x3b] sm:$0xff]
        %v1833 = vld [vmem:[%s425 + $0x43] sm:$0xff]
        %v1834 = vld [vmem:[%s425 + $0x4b] sm:$0xff]
        %v1835 = vld [vmem:[%s425 + $0x53] sm:$0xff]
        %v1836 = vld [vmem:[%s425 + $0x5b] sm:$0xff]
        %v1837 = vld [vmem:[%s425 + $0x63] sm:$0xff]
        %v1838 = vld [vmem:[%s425 + $0x6b] sm:$0xff]
        %v1839 = vld [vmem:[%s425 + $0x73] sm:$0xff]
        %v1840 = vld [vmem:[%s425 + $0x7b] sm:$0xff]
        %v1841 = vld [vmem:[%s425 + $0x83] sm:$0xff]
        %v1842 = vld [vmem:[%s425 + $0x8b] sm:$0xff]
        %v1843 = vld [vmem:[%s425 + $0x93] sm:$0xff]
        %v1844 = vld [vmem:[%s425 + $0x9b] sm:$0xff]
        %v1845 = vld [vmem:[%s425 + $0xa3] sm:$0xff]
        %v1846 = vld [vmem:[%s425 + $0xab] sm:$0xff]
        %v1847 = vld [vmem:[%s425 + $0xb3] sm:$0xff]
        %v1848 = vld [vmem:[%s425 + $0xbb] sm:$0xff]
        %v1849 = vld [vmem:[%s425 + $0xc3] sm:$0xff]
        %v1850 = vld [vmem:[%s425 + $0xcb] sm:$0xff]
        %v1851 = vld [vmem:[%s425 + $0xd3] sm:$0xff]
        %v1852 = vld [vmem:[%s425 + $0xdb] sm:$0xff]
        %v1853 = vld [vmem:[%s425 + $0xe3] sm:$0xff]
        %v1854 = vld [vmem:[%s425 + $0xeb] sm:$0xff]
        %v1855 = vld [vmem:[%s425 + $0xf3] sm:$0xff]
        %v1856 = vld [vmem:[%s425 + $0xfb] sm:$0xff]
        %v1857 = vld [vmem:[%s425 + $0x103] sm:$0xff]
        %v1858 = vld [vmem:[%s425 + $0x10b] sm:$0xff]
        %v1859 = vld [vmem:[%s425 + $0x113] sm:$0xff]
        %v1860 = vld [vmem:[%s425 + $0x11b] sm:$0xff]
        %v1861 = vld [vmem:[%s425 + $0x123] sm:$0xff]
        %v1862 = vld [vmem:[%s425 + $0x12b] sm:$0xff]
        %v1863 = vpack.c.bf16 %v1828, %v1827
        %v1864 = vpack.c.bf16 %v1830, %v1829
        %v1865 = vpack.c.bf16 %v1832, %v1831
        %v1866 = vpack.c.bf16 %v1834, %v1833
        %v1867 = vpack.c.bf16 %v1836, %v1835
        %v1868 = vpack.c.bf16 %v1838, %v1837
        %v1869 = vpack.c.bf16 %v1840, %v1839
        %v1870 = vpack.c.bf16 %v1842, %v1841
        %v1871 = vpack.c.bf16 %v1844, %v1843
        %v1872 = vpack.c.bf16 %v1846, %v1845
        %v1873 = vpack.c.bf16 %v1848, %v1847
        %v1874 = vpack.c.bf16 %v1850, %v1849
        %v1875 = vpack.c.bf16 %v1852, %v1851
        %v1876 = vpack.c.bf16 %v1854, %v1853
        %v1877 = vpack.c.bf16 %v1856, %v1855
        %v1878 = vpack.c.bf16 %v1858, %v1857
        %v1879 = vpack.c.bf16 %v1860, %v1859
        %v1880 = vpack.c.bf16 %v1862, %v1861
        %v1881 = vld [vmem:[#allocation2] sm:$0xff]
        %v1882 = vld [vmem:[#allocation2 + $0x8] sm:$0xff]
        %v1883 = vld [vmem:[#allocation2 + $0x10] sm:$0xff]
        %v1884 = vld [vmem:[#allocation2 + $0x18] sm:$0xff]
        %v1885 = vld [vmem:[#allocation2 + $0x20] sm:$0xff]
        %v1886 = vld [vmem:[#allocation2 + $0x28] sm:$0xff]
        %v1887 = vld [vmem:[#allocation2 + $0x30] sm:$0xff]
        %v1888 = vld [vmem:[#allocation2 + $0x38] sm:$0xff]
        %v1889 = vld [vmem:[#allocation2 + $0x40] sm:$0xff]
        %v1890 = vld [vmem:[#allocation2 + $0x48] sm:$0xff]
        %v1891 = vld [vmem:[#allocation2 + $0x50] sm:$0xff]
        %v1892 = vld [vmem:[#allocation2 + $0x58] sm:$0xff]
        %v1893 = vld [vmem:[#allocation2 + $0x60] sm:$0xff]
        %v1894 = vld [vmem:[#allocation2 + $0x68] sm:$0xff]
        %v1895 = vld [vmem:[#allocation2 + $0x70] sm:$0xff]
        %v1896 = vld [vmem:[#allocation2 + $0x78] sm:$0xff]
        %v1897 = vld [vmem:[#allocation2 + $0x80] sm:$0xff]
        %v1898 = vld [vmem:[#allocation2 + $0x88] sm:$0xff]
        %v1899 = vld [vmem:[#allocation2 + $0x90] sm:$0xff]
        %v1900 = vld [vmem:[#allocation2 + $0x98] sm:$0xff]
        %v1901 = vld [vmem:[#allocation2 + $0xa0] sm:$0xff]
        %v1902 = vld [vmem:[#allocation2 + $0xa8] sm:$0xff]
        %v1903 = vld [vmem:[#allocation2 + $0xb0] sm:$0xff]
        %v1904 = vld [vmem:[#allocation2 + $0xb8] sm:$0xff]
        %v1905 = vld [vmem:[#allocation2 + $0xc0] sm:$0xff]
        %v1906 = vld [vmem:[#allocation2 + $0xc8] sm:$0xff]
        %v1907 = vld [vmem:[#allocation2 + $0xd0] sm:$0xff]
        %v1908 = vld [vmem:[#allocation2 + $0xd8] sm:$0xff]
        %v1909 = vld [vmem:[#allocation2 + $0xe0] sm:$0xff]
        %v1910 = vld [vmem:[#allocation2 + $0xe8] sm:$0xff]
        %v1911 = vld [vmem:[#allocation2 + $0xf0] sm:$0xff]
        %v1912 = vld [vmem:[#allocation2 + $0xf8] sm:$0xff]
        %v1913 = vld [vmem:[#allocation2 + $0x100] sm:$0xff]
        %v1914 = vld [vmem:[#allocation2 + $0x108] sm:$0xff]
        %v1915 = vld [vmem:[#allocation2 + $0x110] sm:$0xff]
        %v1916 = vld [vmem:[#allocation2 + $0x118] sm:$0xff]
        %s1917 = scalar_lea.vmem [#allocation4], 16
        %v1918 = vld [vmem:[%s1917] sm:$0xf]
        %v1920 = vsel %vm637, %v1863, 0
        %v1923 = vsel %vm637, %v1864, 0
        %v1926 = vsel %vm637, %v1865, 0
        %v1929 = vsel %vm637, %v1866, 0
        %v1932 = vsel %vm637, %v1867, 0
        %v1935 = vsel %vm637, %v1868, 0
        %v1938 = vsel %vm637, %v1869, 0
        %v1941 = vsel %vm637, %v1870, 0
        %v1944 = vsel %vm637, %v1871, 0
        %v1947 = vsel %vm637, %v1872, 0
        %v1950 = vsel %vm637, %v1873, 0
        %v1953 = vsel %vm637, %v1874, 0
        %v1956 = vsel %vm637, %v1875, 0
        %v1959 = vsel %vm637, %v1876, 0
        %v1962 = vsel %vm637, %v1877, 0
        %v1965 = vsel %vm637, %v1878, 0
        %v1968 = vsel %vm637, %v1879, 0
        %v1971 = vsel %vm637, %v1880, 0
        %v1974 = vsel %vm692, %v1918, 0
        %1976 = vmatpush.bf16.msra.mxu0 0
        %1977 = vmatpush.bf16.msra.mxu0 0
        %1978 = vmatpush.bf16.msra.mxu0 0
        %1979 = vmatpush.bf16.msra.mxu0 0
        %1980 = vmatpush.bf16.msra.mxu0 0
        %1981 = vmatpush.bf16.msra.mxu0 0
        %1982 = vmatpush.bf16.msra.mxu0 0
        %1983 = vmatpush.bf16.msra.mxu0 %v1974
        %1984 = vmatmul.bf16.gmra.mxu0 %v1920
        %v1985 = vpop.f32.mrf.mxu0
        %v1986 = vadd.f32 0.0, %v1985
        %v1987 = vpop.f32.mrf.mxu0
        %v1988 = vadd.f32 0.0, %v1987
        %1989 = vmatmul.bf16.gmra.mxu0 %v1923
        %v1990 = vpop.f32.mrf.mxu0
        %v1991 = vadd.f32 0.0, %v1990
        %v1992 = vpop.f32.mrf.mxu0
        %v1993 = vadd.f32 0.0, %v1992
        %1994 = vmatmul.bf16.gmra.mxu0 %v1926
        %v1995 = vpop.f32.mrf.mxu0
        %v1996 = vadd.f32 0.0, %v1995
        %v1997 = vpop.f32.mrf.mxu0
        %v1998 = vadd.f32 0.0, %v1997
        %1999 = vmatmul.bf16.gmra.mxu0 %v1929
        %v2000 = vpop.f32.mrf.mxu0
        %v2001 = vadd.f32 0.0, %v2000
        %v2002 = vpop.f32.mrf.mxu0
        %v2003 = vadd.f32 0.0, %v2002
        %2004 = vmatmul.bf16.gmra.mxu0 %v1932
        %v2005 = vpop.f32.mrf.mxu0
        %v2006 = vadd.f32 0.0, %v2005
        %v2007 = vpop.f32.mrf.mxu0
        %v2008 = vadd.f32 0.0, %v2007
        %2009 = vmatmul.bf16.gmra.mxu0 %v1935
        %v2010 = vpop.f32.mrf.mxu0
        %v2011 = vadd.f32 0.0, %v2010
        %v2012 = vpop.f32.mrf.mxu0
        %v2013 = vadd.f32 0.0, %v2012
        %2014 = vmatmul.bf16.gmra.mxu0 %v1938
        %v2015 = vpop.f32.mrf.mxu0
        %v2016 = vadd.f32 0.0, %v2015
        %v2017 = vpop.f32.mrf.mxu0
        %v2018 = vadd.f32 0.0, %v2017
        %2019 = vmatmul.bf16.gmra.mxu0 %v1941
        %v2020 = vpop.f32.mrf.mxu0
        %v2021 = vadd.f32 0.0, %v2020
        %v2022 = vpop.f32.mrf.mxu0
        %v2023 = vadd.f32 0.0, %v2022
        %2024 = vmatmul.bf16.gmra.mxu0 %v1944
        %v2025 = vpop.f32.mrf.mxu0
        %v2026 = vadd.f32 0.0, %v2025
        %v2027 = vpop.f32.mrf.mxu0
        %v2028 = vadd.f32 0.0, %v2027
        %2029 = vmatmul.bf16.gmra.mxu0 %v1947
        %v2030 = vpop.f32.mrf.mxu0
        %v2031 = vadd.f32 0.0, %v2030
        %v2032 = vpop.f32.mrf.mxu0
        %v2033 = vadd.f32 0.0, %v2032
        %2034 = vmatmul.bf16.gmra.mxu0 %v1950
        %v2035 = vpop.f32.mrf.mxu0
        %v2036 = vadd.f32 0.0, %v2035
        %v2037 = vpop.f32.mrf.mxu0
        %v2038 = vadd.f32 0.0, %v2037
        %2039 = vmatmul.bf16.gmra.mxu0 %v1953
        %v2040 = vpop.f32.mrf.mxu0
        %v2041 = vadd.f32 0.0, %v2040
        %v2042 = vpop.f32.mrf.mxu0
        %v2043 = vadd.f32 0.0, %v2042
        %2044 = vmatmul.bf16.gmra.mxu0 %v1956
        %v2045 = vpop.f32.mrf.mxu0
        %v2046 = vadd.f32 0.0, %v2045
        %v2047 = vpop.f32.mrf.mxu0
        %v2048 = vadd.f32 0.0, %v2047
        %2049 = vmatmul.bf16.gmra.mxu0 %v1959
        %v2050 = vpop.f32.mrf.mxu0
        %v2051 = vadd.f32 0.0, %v2050
        %v2052 = vpop.f32.mrf.mxu0
        %v2053 = vadd.f32 0.0, %v2052
        %2054 = vmatmul.bf16.gmra.mxu0 %v1962
        %v2055 = vpop.f32.mrf.mxu0
        %v2056 = vadd.f32 0.0, %v2055
        %v2057 = vpop.f32.mrf.mxu0
        %v2058 = vadd.f32 0.0, %v2057
        %2059 = vmatmul.bf16.gmra.mxu0 %v1965
        %v2060 = vpop.f32.mrf.mxu0
        %v2061 = vadd.f32 0.0, %v2060
        %v2062 = vpop.f32.mrf.mxu0
        %v2063 = vadd.f32 0.0, %v2062
        %2064 = vmatmul.bf16.gmra.mxu0 %v1968
        %v2065 = vpop.f32.mrf.mxu0
        %v2066 = vadd.f32 0.0, %v2065
        %v2067 = vpop.f32.mrf.mxu0
        %v2068 = vadd.f32 0.0, %v2067
        %2069 = vmatmul.bf16.gmra.mxu0 %v1971
        %v2070 = vpop.f32.mrf.mxu0
        %v2071 = vadd.f32 0.0, %v2070
        %v2072 = vpop.f32.mrf.mxu0
        %v2073 = vadd.f32 0.0, %v2072
        %2074 = vdwg.mxu0
        %v2075 = vadd.f32 %v1881, %v1986
        %v2076 = vadd.f32 %v1882, %v1988
        %v2077 = vadd.f32 %v1883, %v1991
        %v2078 = vadd.f32 %v1884, %v1993
        %v2079 = vadd.f32 %v1885, %v1996
        %v2080 = vadd.f32 %v1886, %v1998
        %v2081 = vadd.f32 %v1887, %v2001
        %v2082 = vadd.f32 %v1888, %v2003
        %v2083 = vadd.f32 %v1889, %v2006
        %v2084 = vadd.f32 %v1890, %v2008
        %v2085 = vadd.f32 %v1891, %v2011
        %v2086 = vadd.f32 %v1892, %v2013
        %v2087 = vadd.f32 %v1893, %v2016
        %v2088 = vadd.f32 %v1894, %v2018
        %v2089 = vadd.f32 %v1895, %v2021
        %v2090 = vadd.f32 %v1896, %v2023
        %v2091 = vadd.f32 %v1897, %v2026
        %v2092 = vadd.f32 %v1898, %v2028
        %v2093 = vadd.f32 %v1899, %v2031
        %v2094 = vadd.f32 %v1900, %v2033
        %v2095 = vadd.f32 %v1901, %v2036
        %v2096 = vadd.f32 %v1902, %v2038
        %v2097 = vadd.f32 %v1903, %v2041
        %v2098 = vadd.f32 %v1904, %v2043
        %v2099 = vadd.f32 %v1905, %v2046
        %v2100 = vadd.f32 %v1906, %v2048
        %v2101 = vadd.f32 %v1907, %v2051
        %v2102 = vadd.f32 %v1908, %v2053
        %v2103 = vadd.f32 %v1909, %v2056
        %v2104 = vadd.f32 %v1910, %v2058
        %v2105 = vadd.f32 %v1911, %v2061
        %v2106 = vadd.f32 %v1912, %v2063
        %v2107 = vadd.f32 %v1913, %v2066
        %v2108 = vadd.f32 %v1914, %v2068
        %v2109 = vadd.f32 %v1915, %v2071
        %v2110 = vadd.f32 %v1916, %v2073
        %2111 = vst.msk [vmem:[#allocation2] sm:$0xff] %vm468, %v2075
        %2112 = vst.msk [vmem:[#allocation2 + $0x8] sm:$0xff] %vm468, %v2076
        %2113 = vst.msk [vmem:[#allocation2 + $0x10] sm:$0xff] %vm468, %v2077
        %2114 = vst.msk [vmem:[#allocation2 + $0x18] sm:$0xff] %vm468, %v2078
        %2115 = vst.msk [vmem:[#allocation2 + $0x20] sm:$0xff] %vm468, %v2079
        %2116 = vst.msk [vmem:[#allocation2 + $0x28] sm:$0xff] %vm468, %v2080
        %2117 = vst.msk [vmem:[#allocation2 + $0x30] sm:$0xff] %vm468, %v2081
        %2118 = vst.msk [vmem:[#allocation2 + $0x38] sm:$0xff] %vm468, %v2082
        %2119 = vst.msk [vmem:[#allocation2 + $0x40] sm:$0xff] %vm468, %v2083
        %2120 = vst.msk [vmem:[#allocation2 + $0x48] sm:$0xff] %vm468, %v2084
        %2121 = vst.msk [vmem:[#allocation2 + $0x50] sm:$0xff] %vm468, %v2085
        %2122 = vst.msk [vmem:[#allocation2 + $0x58] sm:$0xff] %vm468, %v2086
        %2123 = vst.msk [vmem:[#allocation2 + $0x60] sm:$0xff] %vm468, %v2087
        %2124 = vst.msk [vmem:[#allocation2 + $0x68] sm:$0xff] %vm468, %v2088
        %2125 = vst.msk [vmem:[#allocation2 + $0x70] sm:$0xff] %vm468, %v2089
        %2126 = vst.msk [vmem:[#allocation2 + $0x78] sm:$0xff] %vm468, %v2090
        %2127 = vst.msk [vmem:[#allocation2 + $0x80] sm:$0xff] %vm468, %v2091
        %2128 = vst.msk [vmem:[#allocation2 + $0x88] sm:$0xff] %vm468, %v2092
        %2129 = vst.msk [vmem:[#allocation2 + $0x90] sm:$0xff] %vm468, %v2093
        %2130 = vst.msk [vmem:[#allocation2 + $0x98] sm:$0xff] %vm468, %v2094
        %2131 = vst.msk [vmem:[#allocation2 + $0xa0] sm:$0xff] %vm468, %v2095
        %2132 = vst.msk [vmem:[#allocation2 + $0xa8] sm:$0xff] %vm468, %v2096
        %2133 = vst.msk [vmem:[#allocation2 + $0xb0] sm:$0xff] %vm468, %v2097
        %2134 = vst.msk [vmem:[#allocation2 + $0xb8] sm:$0xff] %vm468, %v2098
        %2135 = vst.msk [vmem:[#allocation2 + $0xc0] sm:$0xff] %vm468, %v2099
        %2136 = vst.msk [vmem:[#allocation2 + $0xc8] sm:$0xff] %vm468, %v2100
        %2137 = vst.msk [vmem:[#allocation2 + $0xd0] sm:$0xff] %vm468, %v2101
        %2138 = vst.msk [vmem:[#allocation2 + $0xd8] sm:$0xff] %vm468, %v2102
        %2139 = vst.msk [vmem:[#allocation2 + $0xe0] sm:$0xff] %vm468, %v2103
        %2140 = vst.msk [vmem:[#allocation2 + $0xe8] sm:$0xff] %vm468, %v2104
        %2141 = vst.msk [vmem:[#allocation2 + $0xf0] sm:$0xff] %vm468, %v2105
        %2142 = vst.msk [vmem:[#allocation2 + $0xf8] sm:$0xff] %vm468, %v2106
        %2143 = vst.msk [vmem:[#allocation2 + $0x100] sm:$0xff] %vm468, %v2107
        %2144 = vst.msk [vmem:[#allocation2 + $0x108] sm:$0xff] %vm468, %v2108
        %2145 = vst.msk [vmem:[#allocation2 + $0x110] sm:$0xff] %vm468, %v2109
        %2146 = vst.msk [vmem:[#allocation2 + $0x118] sm:$0xff] %vm468, %v2110
        %v2147 = vld [vmem:[%s425 + $0x14] sm:$0xff]
        %v2148 = vld [vmem:[%s425 + $0x1c] sm:$0xff]
        %v2149 = vld [vmem:[%s425 + $0x24] sm:$0xff]
        %v2150 = vld [vmem:[%s425 + $0x2c] sm:$0xff]
        %v2151 = vld [vmem:[%s425 + $0x34] sm:$0xff]
        %v2152 = vld [vmem:[%s425 + $0x3c] sm:$0xff]
        %v2153 = vld [vmem:[%s425 + $0x44] sm:$0xff]
        %v2154 = vld [vmem:[%s425 + $0x4c] sm:$0xff]
        %v2155 = vld [vmem:[%s425 + $0x54] sm:$0xff]
        %v2156 = vld [vmem:[%s425 + $0x5c] sm:$0xff]
        %v2157 = vld [vmem:[%s425 + $0x64] sm:$0xff]
        %v2158 = vld [vmem:[%s425 + $0x6c] sm:$0xff]
        %v2159 = vld [vmem:[%s425 + $0x74] sm:$0xff]
        %v2160 = vld [vmem:[%s425 + $0x7c] sm:$0xff]
        %v2161 = vld [vmem:[%s425 + $0x84] sm:$0xff]
        %v2162 = vld [vmem:[%s425 + $0x8c] sm:$0xff]
        %v2163 = vld [vmem:[%s425 + $0x94] sm:$0xff]
        %v2164 = vld [vmem:[%s425 + $0x9c] sm:$0xff]
        %v2165 = vld [vmem:[%s425 + $0xa4] sm:$0xff]
        %v2166 = vld [vmem:[%s425 + $0xac] sm:$0xff]
        %v2167 = vld [vmem:[%s425 + $0xb4] sm:$0xff]
        %v2168 = vld [vmem:[%s425 + $0xbc] sm:$0xff]
        %v2169 = vld [vmem:[%s425 + $0xc4] sm:$0xff]
        %v2170 = vld [vmem:[%s425 + $0xcc] sm:$0xff]
        %v2171 = vld [vmem:[%s425 + $0xd4] sm:$0xff]
        %v2172 = vld [vmem:[%s425 + $0xdc] sm:$0xff]
        %v2173 = vld [vmem:[%s425 + $0xe4] sm:$0xff]
        %v2174 = vld [vmem:[%s425 + $0xec] sm:$0xff]
        %v2175 = vld [vmem:[%s425 + $0xf4] sm:$0xff]
        %v2176 = vld [vmem:[%s425 + $0xfc] sm:$0xff]
        %v2177 = vld [vmem:[%s425 + $0x104] sm:$0xff]
        %v2178 = vld [vmem:[%s425 + $0x10c] sm:$0xff]
        %v2179 = vld [vmem:[%s425 + $0x114] sm:$0xff]
        %v2180 = vld [vmem:[%s425 + $0x11c] sm:$0xff]
        %v2181 = vld [vmem:[%s425 + $0x124] sm:$0xff]
        %v2182 = vld [vmem:[%s425 + $0x12c] sm:$0xff]
        %v2183 = vpack.c.bf16 %v2148, %v2147
        %v2184 = vpack.c.bf16 %v2150, %v2149
        %v2185 = vpack.c.bf16 %v2152, %v2151
        %v2186 = vpack.c.bf16 %v2154, %v2153
        %v2187 = vpack.c.bf16 %v2156, %v2155
        %v2188 = vpack.c.bf16 %v2158, %v2157
        %v2189 = vpack.c.bf16 %v2160, %v2159
        %v2190 = vpack.c.bf16 %v2162, %v2161
        %v2191 = vpack.c.bf16 %v2164, %v2163
        %v2192 = vpack.c.bf16 %v2166, %v2165
        %v2193 = vpack.c.bf16 %v2168, %v2167
        %v2194 = vpack.c.bf16 %v2170, %v2169
        %v2195 = vpack.c.bf16 %v2172, %v2171
        %v2196 = vpack.c.bf16 %v2174, %v2173
        %v2197 = vpack.c.bf16 %v2176, %v2175
        %v2198 = vpack.c.bf16 %v2178, %v2177
        %v2199 = vpack.c.bf16 %v2180, %v2179
        %v2200 = vpack.c.bf16 %v2182, %v2181
        %v2201 = vld [vmem:[#allocation2] sm:$0xff]
        %v2202 = vld [vmem:[#allocation2 + $0x8] sm:$0xff]
        %v2203 = vld [vmem:[#allocation2 + $0x10] sm:$0xff]
        %v2204 = vld [vmem:[#allocation2 + $0x18] sm:$0xff]
        %v2205 = vld [vmem:[#allocation2 + $0x20] sm:$0xff]
        %v2206 = vld [vmem:[#allocation2 + $0x28] sm:$0xff]
        %v2207 = vld [vmem:[#allocation2 + $0x30] sm:$0xff]
        %v2208 = vld [vmem:[#allocation2 + $0x38] sm:$0xff]
        %v2209 = vld [vmem:[#allocation2 + $0x40] sm:$0xff]
        %v2210 = vld [vmem:[#allocation2 + $0x48] sm:$0xff]
        %v2211 = vld [vmem:[#allocation2 + $0x50] sm:$0xff]
        %v2212 = vld [vmem:[#allocation2 + $0x58] sm:$0xff]
        %v2213 = vld [vmem:[#allocation2 + $0x60] sm:$0xff]
        %v2214 = vld [vmem:[#allocation2 + $0x68] sm:$0xff]
        %v2215 = vld [vmem:[#allocation2 + $0x70] sm:$0xff]
        %v2216 = vld [vmem:[#allocation2 + $0x78] sm:$0xff]
        %v2217 = vld [vmem:[#allocation2 + $0x80] sm:$0xff]
        %v2218 = vld [vmem:[#allocation2 + $0x88] sm:$0xff]
        %v2219 = vld [vmem:[#allocation2 + $0x90] sm:$0xff]
        %v2220 = vld [vmem:[#allocation2 + $0x98] sm:$0xff]
        %v2221 = vld [vmem:[#allocation2 + $0xa0] sm:$0xff]
        %v2222 = vld [vmem:[#allocation2 + $0xa8] sm:$0xff]
        %v2223 = vld [vmem:[#allocation2 + $0xb0] sm:$0xff]
        %v2224 = vld [vmem:[#allocation2 + $0xb8] sm:$0xff]
        %v2225 = vld [vmem:[#allocation2 + $0xc0] sm:$0xff]
        %v2226 = vld [vmem:[#allocation2 + $0xc8] sm:$0xff]
        %v2227 = vld [vmem:[#allocation2 + $0xd0] sm:$0xff]
        %v2228 = vld [vmem:[#allocation2 + $0xd8] sm:$0xff]
        %v2229 = vld [vmem:[#allocation2 + $0xe0] sm:$0xff]
        %v2230 = vld [vmem:[#allocation2 + $0xe8] sm:$0xff]
        %v2231 = vld [vmem:[#allocation2 + $0xf0] sm:$0xff]
        %v2232 = vld [vmem:[#allocation2 + $0xf8] sm:$0xff]
        %v2233 = vld [vmem:[#allocation2 + $0x100] sm:$0xff]
        %v2234 = vld [vmem:[#allocation2 + $0x108] sm:$0xff]
        %v2235 = vld [vmem:[#allocation2 + $0x110] sm:$0xff]
        %v2236 = vld [vmem:[#allocation2 + $0x118] sm:$0xff]
        %s2237 = scalar_lea.vmem [#allocation4], 20
        %v2238 = vld [vmem:[%s2237] sm:$0xf]
        %v2240 = vsel %vm637, %v2183, 0
        %v2243 = vsel %vm637, %v2184, 0
        %v2246 = vsel %vm637, %v2185, 0
        %v2249 = vsel %vm637, %v2186, 0
        %v2252 = vsel %vm637, %v2187, 0
        %v2255 = vsel %vm637, %v2188, 0
        %v2258 = vsel %vm637, %v2189, 0
        %v2261 = vsel %vm637, %v2190, 0
        %v2264 = vsel %vm637, %v2191, 0
        %v2267 = vsel %vm637, %v2192, 0
        %v2270 = vsel %vm637, %v2193, 0
        %v2273 = vsel %vm637, %v2194, 0
        %v2276 = vsel %vm637, %v2195, 0
        %v2279 = vsel %vm637, %v2196, 0
        %v2282 = vsel %vm637, %v2197, 0
        %v2285 = vsel %vm637, %v2198, 0
        %v2288 = vsel %vm637, %v2199, 0
        %v2291 = vsel %vm637, %v2200, 0
        %v2294 = vsel %vm692, %v2238, 0
        %2296 = vmatpush.bf16.msra.mxu0 0
        %2297 = vmatpush.bf16.msra.mxu0 0
        %2298 = vmatpush.bf16.msra.mxu0 0
        %2299 = vmatpush.bf16.msra.mxu0 0
        %2300 = vmatpush.bf16.msra.mxu0 0
        %2301 = vmatpush.bf16.msra.mxu0 0
        %2302 = vmatpush.bf16.msra.mxu0 0
        %2303 = vmatpush.bf16.msra.mxu0 %v2294
        %2304 = vmatmul.bf16.gmra.mxu0 %v2240
        %v2305 = vpop.f32.mrf.mxu0
        %v2306 = vadd.f32 0.0, %v2305
        %v2307 = vpop.f32.mrf.mxu0
        %v2308 = vadd.f32 0.0, %v2307
        %2309 = vmatmul.bf16.gmra.mxu0 %v2243
        %v2310 = vpop.f32.mrf.mxu0
        %v2311 = vadd.f32 0.0, %v2310
        %v2312 = vpop.f32.mrf.mxu0
        %v2313 = vadd.f32 0.0, %v2312
        %2314 = vmatmul.bf16.gmra.mxu0 %v2246
        %v2315 = vpop.f32.mrf.mxu0
        %v2316 = vadd.f32 0.0, %v2315
        %v2317 = vpop.f32.mrf.mxu0
        %v2318 = vadd.f32 0.0, %v2317
        %2319 = vmatmul.bf16.gmra.mxu0 %v2249
        %v2320 = vpop.f32.mrf.mxu0
        %v2321 = vadd.f32 0.0, %v2320
        %v2322 = vpop.f32.mrf.mxu0
        %v2323 = vadd.f32 0.0, %v2322
        %2324 = vmatmul.bf16.gmra.mxu0 %v2252
        %v2325 = vpop.f32.mrf.mxu0
        %v2326 = vadd.f32 0.0, %v2325
        %v2327 = vpop.f32.mrf.mxu0
        %v2328 = vadd.f32 0.0, %v2327
        %2329 = vmatmul.bf16.gmra.mxu0 %v2255
        %v2330 = vpop.f32.mrf.mxu0
        %v2331 = vadd.f32 0.0, %v2330
        %v2332 = vpop.f32.mrf.mxu0
        %v2333 = vadd.f32 0.0, %v2332
        %2334 = vmatmul.bf16.gmra.mxu0 %v2258
        %v2335 = vpop.f32.mrf.mxu0
        %v2336 = vadd.f32 0.0, %v2335
        %v2337 = vpop.f32.mrf.mxu0
        %v2338 = vadd.f32 0.0, %v2337
        %2339 = vmatmul.bf16.gmra.mxu0 %v2261
        %v2340 = vpop.f32.mrf.mxu0
        %v2341 = vadd.f32 0.0, %v2340
        %v2342 = vpop.f32.mrf.mxu0
        %v2343 = vadd.f32 0.0, %v2342
        %2344 = vmatmul.bf16.gmra.mxu0 %v2264
        %v2345 = vpop.f32.mrf.mxu0
        %v2346 = vadd.f32 0.0, %v2345
        %v2347 = vpop.f32.mrf.mxu0
        %v2348 = vadd.f32 0.0, %v2347
        %2349 = vmatmul.bf16.gmra.mxu0 %v2267
        %v2350 = vpop.f32.mrf.mxu0
        %v2351 = vadd.f32 0.0, %v2350
        %v2352 = vpop.f32.mrf.mxu0
        %v2353 = vadd.f32 0.0, %v2352
        %2354 = vmatmul.bf16.gmra.mxu0 %v2270
        %v2355 = vpop.f32.mrf.mxu0
        %v2356 = vadd.f32 0.0, %v2355
        %v2357 = vpop.f32.mrf.mxu0
        %v2358 = vadd.f32 0.0, %v2357
        %2359 = vmatmul.bf16.gmra.mxu0 %v2273
        %v2360 = vpop.f32.mrf.mxu0
        %v2361 = vadd.f32 0.0, %v2360
        %v2362 = vpop.f32.mrf.mxu0
        %v2363 = vadd.f32 0.0, %v2362
        %2364 = vmatmul.bf16.gmra.mxu0 %v2276
        %v2365 = vpop.f32.mrf.mxu0
        %v2366 = vadd.f32 0.0, %v2365
        %v2367 = vpop.f32.mrf.mxu0
        %v2368 = vadd.f32 0.0, %v2367
        %2369 = vmatmul.bf16.gmra.mxu0 %v2279
        %v2370 = vpop.f32.mrf.mxu0
        %v2371 = vadd.f32 0.0, %v2370
        %v2372 = vpop.f32.mrf.mxu0
        %v2373 = vadd.f32 0.0, %v2372
        %2374 = vmatmul.bf16.gmra.mxu0 %v2282
        %v2375 = vpop.f32.mrf.mxu0
        %v2376 = vadd.f32 0.0, %v2375
        %v2377 = vpop.f32.mrf.mxu0
        %v2378 = vadd.f32 0.0, %v2377
        %2379 = vmatmul.bf16.gmra.mxu0 %v2285
        %v2380 = vpop.f32.mrf.mxu0
        %v2381 = vadd.f32 0.0, %v2380
        %v2382 = vpop.f32.mrf.mxu0
        %v2383 = vadd.f32 0.0, %v2382
        %2384 = vmatmul.bf16.gmra.mxu0 %v2288
        %v2385 = vpop.f32.mrf.mxu0
        %v2386 = vadd.f32 0.0, %v2385
        %v2387 = vpop.f32.mrf.mxu0
        %v2388 = vadd.f32 0.0, %v2387
        %2389 = vmatmul.bf16.gmra.mxu0 %v2291
        %v2390 = vpop.f32.mrf.mxu0
        %v2391 = vadd.f32 0.0, %v2390
        %v2392 = vpop.f32.mrf.mxu0
        %v2393 = vadd.f32 0.0, %v2392
        %2394 = vdwg.mxu0
        %v2395 = vadd.f32 %v2201, %v2306
        %v2396 = vadd.f32 %v2202, %v2308
        %v2397 = vadd.f32 %v2203, %v2311
        %v2398 = vadd.f32 %v2204, %v2313
        %v2399 = vadd.f32 %v2205, %v2316
        %v2400 = vadd.f32 %v2206, %v2318
        %v2401 = vadd.f32 %v2207, %v2321
        %v2402 = vadd.f32 %v2208, %v2323
        %v2403 = vadd.f32 %v2209, %v2326
        %v2404 = vadd.f32 %v2210, %v2328
        %v2405 = vadd.f32 %v2211, %v2331
        %v2406 = vadd.f32 %v2212, %v2333
        %v2407 = vadd.f32 %v2213, %v2336
        %v2408 = vadd.f32 %v2214, %v2338
        %v2409 = vadd.f32 %v2215, %v2341
        %v2410 = vadd.f32 %v2216, %v2343
        %v2411 = vadd.f32 %v2217, %v2346
        %v2412 = vadd.f32 %v2218, %v2348
        %v2413 = vadd.f32 %v2219, %v2351
        %v2414 = vadd.f32 %v2220, %v2353
        %v2415 = vadd.f32 %v2221, %v2356
        %v2416 = vadd.f32 %v2222, %v2358
        %v2417 = vadd.f32 %v2223, %v2361
        %v2418 = vadd.f32 %v2224, %v2363
        %v2419 = vadd.f32 %v2225, %v2366
        %v2420 = vadd.f32 %v2226, %v2368
        %v2421 = vadd.f32 %v2227, %v2371
        %v2422 = vadd.f32 %v2228, %v2373
        %v2423 = vadd.f32 %v2229, %v2376
        %v2424 = vadd.f32 %v2230, %v2378
        %v2425 = vadd.f32 %v2231, %v2381
        %v2426 = vadd.f32 %v2232, %v2383
        %v2427 = vadd.f32 %v2233, %v2386
        %v2428 = vadd.f32 %v2234, %v2388
        %v2429 = vadd.f32 %v2235, %v2391
        %v2430 = vadd.f32 %v2236, %v2393
        %2431 = vst.msk [vmem:[#allocation2] sm:$0xff] %vm468, %v2395
        %2432 = vst.msk [vmem:[#allocation2 + $0x8] sm:$0xff] %vm468, %v2396
        %2433 = vst.msk [vmem:[#allocation2 + $0x10] sm:$0xff] %vm468, %v2397
        %2434 = vst.msk [vmem:[#allocation2 + $0x18] sm:$0xff] %vm468, %v2398
        %2435 = vst.msk [vmem:[#allocation2 + $0x20] sm:$0xff] %vm468, %v2399
        %2436 = vst.msk [vmem:[#allocation2 + $0x28] sm:$0xff] %vm468, %v2400
        %2437 = vst.msk [vmem:[#allocation2 + $0x30] sm:$0xff] %vm468, %v2401
        %2438 = vst.msk [vmem:[#allocation2 + $0x38] sm:$0xff] %vm468, %v2402
        %2439 = vst.msk [vmem:[#allocation2 + $0x40] sm:$0xff] %vm468, %v2403
        %2440 = vst.msk [vmem:[#allocation2 + $0x48] sm:$0xff] %vm468, %v2404
        %2441 = vst.msk [vmem:[#allocation2 + $0x50] sm:$0xff] %vm468, %v2405
        %2442 = vst.msk [vmem:[#allocation2 + $0x58] sm:$0xff] %vm468, %v2406
        %2443 = vst.msk [vmem:[#allocation2 + $0x60] sm:$0xff] %vm468, %v2407
        %2444 = vst.msk [vmem:[#allocation2 + $0x68] sm:$0xff] %vm468, %v2408
        %2445 = vst.msk [vmem:[#allocation2 + $0x70] sm:$0xff] %vm468, %v2409
        %2446 = vst.msk [vmem:[#allocation2 + $0x78] sm:$0xff] %vm468, %v2410
        %2447 = vst.msk [vmem:[#allocation2 + $0x80] sm:$0xff] %vm468, %v2411
        %2448 = vst.msk [vmem:[#allocation2 + $0x88] sm:$0xff] %vm468, %v2412
        %2449 = vst.msk [vmem:[#allocation2 + $0x90] sm:$0xff] %vm468, %v2413
        %2450 = vst.msk [vmem:[#allocation2 + $0x98] sm:$0xff] %vm468, %v2414
        %2451 = vst.msk [vmem:[#allocation2 + $0xa0] sm:$0xff] %vm468, %v2415
        %2452 = vst.msk [vmem:[#allocation2 + $0xa8] sm:$0xff] %vm468, %v2416
        %2453 = vst.msk [vmem:[#allocation2 + $0xb0] sm:$0xff] %vm468, %v2417
        %2454 = vst.msk [vmem:[#allocation2 + $0xb8] sm:$0xff] %vm468, %v2418
        %2455 = vst.msk [vmem:[#allocation2 + $0xc0] sm:$0xff] %vm468, %v2419
        %2456 = vst.msk [vmem:[#allocation2 + $0xc8] sm:$0xff] %vm468, %v2420
        %2457 = vst.msk [vmem:[#allocation2 + $0xd0] sm:$0xff] %vm468, %v2421
        %2458 = vst.msk [vmem:[#allocation2 + $0xd8] sm:$0xff] %vm468, %v2422
        %2459 = vst.msk [vmem:[#allocation2 + $0xe0] sm:$0xff] %vm468, %v2423
        %2460 = vst.msk [vmem:[#allocation2 + $0xe8] sm:$0xff] %vm468, %v2424
        %2461 = vst.msk [vmem:[#allocation2 + $0xf0] sm:$0xff] %vm468, %v2425
        %2462 = vst.msk [vmem:[#allocation2 + $0xf8] sm:$0xff] %vm468, %v2426
        %2463 = vst.msk [vmem:[#allocation2 + $0x100] sm:$0xff] %vm468, %v2427
        %2464 = vst.msk [vmem:[#allocation2 + $0x108] sm:$0xff] %vm468, %v2428
        %2465 = vst.msk [vmem:[#allocation2 + $0x110] sm:$0xff] %vm468, %v2429
        %2466 = vst.msk [vmem:[#allocation2 + $0x118] sm:$0xff] %vm468, %v2430
        %v2467 = vld [vmem:[%s425 + $0x24] sm:$0xff]
        %v2468 = vld [vmem:[%s425 + $0x2c] sm:$0xff]
        %v2469 = vld [vmem:[%s425 + $0x34] sm:$0xff]
        %v2470 = vld [vmem:[%s425 + $0x3c] sm:$0xff]
        %v2471 = vld [vmem:[%s425 + $0x44] sm:$0xff]
        %v2472 = vld [vmem:[%s425 + $0x4c] sm:$0xff]
        %v2473 = vld [vmem:[%s425 + $0x54] sm:$0xff]
        %v2474 = vld [vmem:[%s425 + $0x5c] sm:$0xff]
        %v2475 = vld [vmem:[%s425 + $0x64] sm:$0xff]
        %v2476 = vld [vmem:[%s425 + $0x6c] sm:$0xff]
        %v2477 = vld [vmem:[%s425 + $0x74] sm:$0xff]
        %v2478 = vld [vmem:[%s425 + $0x7c] sm:$0xff]
        %v2479 = vld [vmem:[%s425 + $0x84] sm:$0xff]
        %v2480 = vld [vmem:[%s425 + $0x8c] sm:$0xff]
        %v2481 = vld [vmem:[%s425 + $0x94] sm:$0xff]
        %v2482 = vld [vmem:[%s425 + $0x9c] sm:$0xff]
        %v2483 = vld [vmem:[%s425 + $0xa4] sm:$0xff]
        %v2484 = vld [vmem:[%s425 + $0xac] sm:$0xff]
        %v2485 = vld [vmem:[%s425 + $0xb4] sm:$0xff]
        %v2486 = vld [vmem:[%s425 + $0xbc] sm:$0xff]
        %v2487 = vld [vmem:[%s425 + $0xc4] sm:$0xff]
        %v2488 = vld [vmem:[%s425 + $0xcc] sm:$0xff]
        %v2489 = vld [vmem:[%s425 + $0xd4] sm:$0xff]
        %v2490 = vld [vmem:[%s425 + $0xdc] sm:$0xff]
        %v2491 = vld [vmem:[%s425 + $0xe4] sm:$0xff]
        %v2492 = vld [vmem:[%s425 + $0xec] sm:$0xff]
        %v2493 = vld [vmem:[%s425 + $0xf4] sm:$0xff]
        %v2494 = vld [vmem:[%s425 + $0xfc] sm:$0xff]
        %v2495 = vld [vmem:[%s425 + $0x104] sm:$0xff]
        %v2496 = vld [vmem:[%s425 + $0x10c] sm:$0xff]
        %v2497 = vld [vmem:[%s425 + $0x114] sm:$0xff]
        %v2498 = vld [vmem:[%s425 + $0x11c] sm:$0xff]
        %v2499 = vld [vmem:[%s425 + $0x124] sm:$0xff]
        %v2500 = vld [vmem:[%s425 + $0x12c] sm:$0xff]
        %v2501 = vld [vmem:[%s425 + $0x134] sm:$0xff]
        %v2502 = vld [vmem:[%s425 + $0x13c] sm:$0xff]
        %v2503 = vpack.c.bf16 %v2468, %v2467
        %v2504 = vpack.c.bf16 %v2470, %v2469
        %v2505 = vpack.c.bf16 %v2472, %v2471
        %v2506 = vpack.c.bf16 %v2474, %v2473
        %v2507 = vpack.c.bf16 %v2476, %v2475
        %v2508 = vpack.c.bf16 %v2478, %v2477
        %v2509 = vpack.c.bf16 %v2480, %v2479
        %v2510 = vpack.c.bf16 %v2482, %v2481
        %v2511 = vpack.c.bf16 %v2484, %v2483
        %v2512 = vpack.c.bf16 %v2486, %v2485
        %v2513 = vpack.c.bf16 %v2488, %v2487
        %v2514 = vpack.c.bf16 %v2490, %v2489
        %v2515 = vpack.c.bf16 %v2492, %v2491
        %v2516 = vpack.c.bf16 %v2494, %v2493
        %v2517 = vpack.c.bf16 %v2496, %v2495
        %v2518 = vpack.c.bf16 %v2498, %v2497
        %v2519 = vpack.c.bf16 %v2500, %v2499
        %v2520 = vpack.c.bf16 %v2502, %v2501
        %v2521 = vld [vmem:[#allocation2] sm:$0xff]
        %v2522 = vld [vmem:[#allocation2 + $0x8] sm:$0xff]
        %v2523 = vld [vmem:[#allocation2 + $0x10] sm:$0xff]
        %v2524 = vld [vmem:[#allocation2 + $0x18] sm:$0xff]
        %v2525 = vld [vmem:[#allocation2 + $0x20] sm:$0xff]
        %v2526 = vld [vmem:[#allocation2 + $0x28] sm:$0xff]
        %v2527 = vld [vmem:[#allocation2 + $0x30] sm:$0xff]
        %v2528 = vld [vmem:[#allocation2 + $0x38] sm:$0xff]
        %v2529 = vld [vmem:[#allocation2 + $0x40] sm:$0xff]
        %v2530 = vld [vmem:[#allocation2 + $0x48] sm:$0xff]
        %v2531 = vld [vmem:[#allocation2 + $0x50] sm:$0xff]
        %v2532 = vld [vmem:[#allocation2 + $0x58] sm:$0xff]
        %v2533 = vld [vmem:[#allocation2 + $0x60] sm:$0xff]
        %v2534 = vld [vmem:[#allocation2 + $0x68] sm:$0xff]
        %v2535 = vld [vmem:[#allocation2 + $0x70] sm:$0xff]
        %v2536 = vld [vmem:[#allocation2 + $0x78] sm:$0xff]
        %v2537 = vld [vmem:[#allocation2 + $0x80] sm:$0xff]
        %v2538 = vld [vmem:[#allocation2 + $0x88] sm:$0xff]
        %v2539 = vld [vmem:[#allocation2 + $0x90] sm:$0xff]
        %v2540 = vld [vmem:[#allocation2 + $0x98] sm:$0xff]
        %v2541 = vld [vmem:[#allocation2 + $0xa0] sm:$0xff]
        %v2542 = vld [vmem:[#allocation2 + $0xa8] sm:$0xff]
        %v2543 = vld [vmem:[#allocation2 + $0xb0] sm:$0xff]
        %v2544 = vld [vmem:[#allocation2 + $0xb8] sm:$0xff]
        %v2545 = vld [vmem:[#allocation2 + $0xc0] sm:$0xff]
        %v2546 = vld [vmem:[#allocation2 + $0xc8] sm:$0xff]
        %v2547 = vld [vmem:[#allocation2 + $0xd0] sm:$0xff]
        %v2548 = vld [vmem:[#allocation2 + $0xd8] sm:$0xff]
        %v2549 = vld [vmem:[#allocation2 + $0xe0] sm:$0xff]
        %v2550 = vld [vmem:[#allocation2 + $0xe8] sm:$0xff]
        %v2551 = vld [vmem:[#allocation2 + $0xf0] sm:$0xff]
        %v2552 = vld [vmem:[#allocation2 + $0xf8] sm:$0xff]
        %v2553 = vld [vmem:[#allocation2 + $0x100] sm:$0xff]
        %v2554 = vld [vmem:[#allocation2 + $0x108] sm:$0xff]
        %v2555 = vld [vmem:[#allocation2 + $0x110] sm:$0xff]
        %v2556 = vld [vmem:[#allocation2 + $0x118] sm:$0xff]
        %s2557 = scalar_lea.vmem [#allocation4], 24
        %v2558 = vld [vmem:[%s2557] sm:$0xf]
        %v2560 = vsel %vm637, %v2503, 0
        %v2563 = vsel %vm637, %v2504, 0
        %v2566 = vsel %vm637, %v2505, 0
        %v2569 = vsel %vm637, %v2506, 0
        %v2572 = vsel %vm637, %v2507, 0
        %v2575 = vsel %vm637, %v2508, 0
        %v2578 = vsel %vm637, %v2509, 0
        %v2581 = vsel %vm637, %v2510, 0
        %v2584 = vsel %vm637, %v2511, 0
        %v2587 = vsel %vm637, %v2512, 0
        %v2590 = vsel %vm637, %v2513, 0
        %v2593 = vsel %vm637, %v2514, 0
        %v2596 = vsel %vm637, %v2515, 0
        %v2599 = vsel %vm637, %v2516, 0
        %v2602 = vsel %vm637, %v2517, 0
        %v2605 = vsel %vm637, %v2518, 0
        %v2608 = vsel %vm637, %v2519, 0
        %v2611 = vsel %vm637, %v2520, 0
        %v2614 = vsel %vm692, %v2558, 0
        %2616 = vmatpush.bf16.msra.mxu0 0
        %2617 = vmatpush.bf16.msra.mxu0 0
        %2618 = vmatpush.bf16.msra.mxu0 0
        %2619 = vmatpush.bf16.msra.mxu0 0
        %2620 = vmatpush.bf16.msra.mxu0 0
        %2621 = vmatpush.bf16.msra.mxu0 0
        %2622 = vmatpush.bf16.msra.mxu0 0
        %2623 = vmatpush.bf16.msra.mxu0 %v2614
        %2624 = vmatmul.bf16.gmra.mxu0 %v2560
        %v2625 = vpop.f32.mrf.mxu0
        %v2626 = vadd.f32 0.0, %v2625
        %v2627 = vpop.f32.mrf.mxu0
        %v2628 = vadd.f32 0.0, %v2627
        %2629 = vmatmul.bf16.gmra.mxu0 %v2563
        %v2630 = vpop.f32.mrf.mxu0
        %v2631 = vadd.f32 0.0, %v2630
        %v2632 = vpop.f32.mrf.mxu0
        %v2633 = vadd.f32 0.0, %v2632
        %2634 = vmatmul.bf16.gmra.mxu0 %v2566
        %v2635 = vpop.f32.mrf.mxu0
        %v2636 = vadd.f32 0.0, %v2635
        %v2637 = vpop.f32.mrf.mxu0
        %v2638 = vadd.f32 0.0, %v2637
        %2639 = vmatmul.bf16.gmra.mxu0 %v2569
        %v2640 = vpop.f32.mrf.mxu0
        %v2641 = vadd.f32 0.0, %v2640
        %v2642 = vpop.f32.mrf.mxu0
        %v2643 = vadd.f32 0.0, %v2642
        %2644 = vmatmul.bf16.gmra.mxu0 %v2572
        %v2645 = vpop.f32.mrf.mxu0
        %v2646 = vadd.f32 0.0, %v2645
        %v2647 = vpop.f32.mrf.mxu0
        %v2648 = vadd.f32 0.0, %v2647
        %2649 = vmatmul.bf16.gmra.mxu0 %v2575
        %v2650 = vpop.f32.mrf.mxu0
        %v2651 = vadd.f32 0.0, %v2650
        %v2652 = vpop.f32.mrf.mxu0
        %v2653 = vadd.f32 0.0, %v2652
        %2654 = vmatmul.bf16.gmra.mxu0 %v2578
        %v2655 = vpop.f32.mrf.mxu0
        %v2656 = vadd.f32 0.0, %v2655
        %v2657 = vpop.f32.mrf.mxu0
        %v2658 = vadd.f32 0.0, %v2657
        %2659 = vmatmul.bf16.gmra.mxu0 %v2581
        %v2660 = vpop.f32.mrf.mxu0
        %v2661 = vadd.f32 0.0, %v2660
        %v2662 = vpop.f32.mrf.mxu0
        %v2663 = vadd.f32 0.0, %v2662
        %2664 = vmatmul.bf16.gmra.mxu0 %v2584
        %v2665 = vpop.f32.mrf.mxu0
        %v2666 = vadd.f32 0.0, %v2665
        %v2667 = vpop.f32.mrf.mxu0
        %v2668 = vadd.f32 0.0, %v2667
        %2669 = vmatmul.bf16.gmra.mxu0 %v2587
        %v2670 = vpop.f32.mrf.mxu0
        %v2671 = vadd.f32 0.0, %v2670
        %v2672 = vpop.f32.mrf.mxu0
        %v2673 = vadd.f32 0.0, %v2672
        %2674 = vmatmul.bf16.gmra.mxu0 %v2590
        %v2675 = vpop.f32.mrf.mxu0
        %v2676 = vadd.f32 0.0, %v2675
        %v2677 = vpop.f32.mrf.mxu0
        %v2678 = vadd.f32 0.0, %v2677
        %2679 = vmatmul.bf16.gmra.mxu0 %v2593
        %v2680 = vpop.f32.mrf.mxu0
        %v2681 = vadd.f32 0.0, %v2680
        %v2682 = vpop.f32.mrf.mxu0
        %v2683 = vadd.f32 0.0, %v2682
        %2684 = vmatmul.bf16.gmra.mxu0 %v2596
        %v2685 = vpop.f32.mrf.mxu0
        %v2686 = vadd.f32 0.0, %v2685
        %v2687 = vpop.f32.mrf.mxu0
        %v2688 = vadd.f32 0.0, %v2687
        %2689 = vmatmul.bf16.gmra.mxu0 %v2599
        %v2690 = vpop.f32.mrf.mxu0
        %v2691 = vadd.f32 0.0, %v2690
        %v2692 = vpop.f32.mrf.mxu0
        %v2693 = vadd.f32 0.0, %v2692
        %2694 = vmatmul.bf16.gmra.mxu0 %v2602
        %v2695 = vpop.f32.mrf.mxu0
        %v2696 = vadd.f32 0.0, %v2695
        %v2697 = vpop.f32.mrf.mxu0
        %v2698 = vadd.f32 0.0, %v2697
        %2699 = vmatmul.bf16.gmra.mxu0 %v2605
        %v2700 = vpop.f32.mrf.mxu0
        %v2701 = vadd.f32 0.0, %v2700
        %v2702 = vpop.f32.mrf.mxu0
        %v2703 = vadd.f32 0.0, %v2702
        %2704 = vmatmul.bf16.gmra.mxu0 %v2608
        %v2705 = vpop.f32.mrf.mxu0
        %v2706 = vadd.f32 0.0, %v2705
        %v2707 = vpop.f32.mrf.mxu0
        %v2708 = vadd.f32 0.0, %v2707
        %2709 = vmatmul.bf16.gmra.mxu0 %v2611
        %v2710 = vpop.f32.mrf.mxu0
        %v2711 = vadd.f32 0.0, %v2710
        %v2712 = vpop.f32.mrf.mxu0
        %v2713 = vadd.f32 0.0, %v2712
        %2714 = vdwg.mxu0
        %v2715 = vadd.f32 %v2521, %v2626
        %v2716 = vadd.f32 %v2522, %v2628
        %v2717 = vadd.f32 %v2523, %v2631
        %v2718 = vadd.f32 %v2524, %v2633
        %v2719 = vadd.f32 %v2525, %v2636
        %v2720 = vadd.f32 %v2526, %v2638
        %v2721 = vadd.f32 %v2527, %v2641
        %v2722 = vadd.f32 %v2528, %v2643
        %v2723 = vadd.f32 %v2529, %v2646
        %v2724 = vadd.f32 %v2530, %v2648
        %v2725 = vadd.f32 %v2531, %v2651
        %v2726 = vadd.f32 %v2532, %v2653
        %v2727 = vadd.f32 %v2533, %v2656
        %v2728 = vadd.f32 %v2534, %v2658
        %v2729 = vadd.f32 %v2535, %v2661
        %v2730 = vadd.f32 %v2536, %v2663
        %v2731 = vadd.f32 %v2537, %v2666
        %v2732 = vadd.f32 %v2538, %v2668
        %v2733 = vadd.f32 %v2539, %v2671
        %v2734 = vadd.f32 %v2540, %v2673
        %v2735 = vadd.f32 %v2541, %v2676
        %v2736 = vadd.f32 %v2542, %v2678
        %v2737 = vadd.f32 %v2543, %v2681
        %v2738 = vadd.f32 %v2544, %v2683
        %v2739 = vadd.f32 %v2545, %v2686
        %v2740 = vadd.f32 %v2546, %v2688
        %v2741 = vadd.f32 %v2547, %v2691
        %v2742 = vadd.f32 %v2548, %v2693
        %v2743 = vadd.f32 %v2549, %v2696
        %v2744 = vadd.f32 %v2550, %v2698
        %v2745 = vadd.f32 %v2551, %v2701
        %v2746 = vadd.f32 %v2552, %v2703
        %v2747 = vadd.f32 %v2553, %v2706
        %v2748 = vadd.f32 %v2554, %v2708
        %v2749 = vadd.f32 %v2555, %v2711
        %v2750 = vadd.f32 %v2556, %v2713
        %2751 = vst.msk [vmem:[#allocation2] sm:$0xff] %vm468, %v2715
        %2752 = vst.msk [vmem:[#allocation2 + $0x8] sm:$0xff] %vm468, %v2716
        %2753 = vst.msk [vmem:[#allocation2 + $0x10] sm:$0xff] %vm468, %v2717
        %2754 = vst.msk [vmem:[#allocation2 + $0x18] sm:$0xff] %vm468, %v2718
        %2755 = vst.msk [vmem:[#allocation2 + $0x20] sm:$0xff] %vm468, %v2719
        %2756 = vst.msk [vmem:[#allocation2 + $0x28] sm:$0xff] %vm468, %v2720
        %2757 = vst.msk [vmem:[#allocation2 + $0x30] sm:$0xff] %vm468, %v2721
        %2758 = vst.msk [vmem:[#allocation2 + $0x38] sm:$0xff] %vm468, %v2722
        %2759 = vst.msk [vmem:[#allocation2 + $0x40] sm:$0xff] %vm468, %v2723
        %2760 = vst.msk [vmem:[#allocation2 + $0x48] sm:$0xff] %vm468, %v2724
        %2761 = vst.msk [vmem:[#allocation2 + $0x50] sm:$0xff] %vm468, %v2725
        %2762 = vst.msk [vmem:[#allocation2 + $0x58] sm:$0xff] %vm468, %v2726
        %2763 = vst.msk [vmem:[#allocation2 + $0x60] sm:$0xff] %vm468, %v2727
        %2764 = vst.msk [vmem:[#allocation2 + $0x68] sm:$0xff] %vm468, %v2728
        %2765 = vst.msk [vmem:[#allocation2 + $0x70] sm:$0xff] %vm468, %v2729
        %2766 = vst.msk [vmem:[#allocation2 + $0x78] sm:$0xff] %vm468, %v2730
        %2767 = vst.msk [vmem:[#allocation2 + $0x80] sm:$0xff] %vm468, %v2731
        %2768 = vst.msk [vmem:[#allocation2 + $0x88] sm:$0xff] %vm468, %v2732
        %2769 = vst.msk [vmem:[#allocation2 + $0x90] sm:$0xff] %vm468, %v2733
        %2770 = vst.msk [vmem:[#allocation2 + $0x98] sm:$0xff] %vm468, %v2734
        %2771 = vst.msk [vmem:[#allocation2 + $0xa0] sm:$0xff] %vm468, %v2735
        %2772 = vst.msk [vmem:[#allocation2 + $0xa8] sm:$0xff] %vm468, %v2736
        %2773 = vst.msk [vmem:[#allocation2 + $0xb0] sm:$0xff] %vm468, %v2737
        %2774 = vst.msk [vmem:[#allocation2 + $0xb8] sm:$0xff] %vm468, %v2738
        %2775 = vst.msk [vmem:[#allocation2 + $0xc0] sm:$0xff] %vm468, %v2739
        %2776 = vst.msk [vmem:[#allocation2 + $0xc8] sm:$0xff] %vm468, %v2740
        %2777 = vst.msk [vmem:[#allocation2 + $0xd0] sm:$0xff] %vm468, %v2741
        %2778 = vst.msk [vmem:[#allocation2 + $0xd8] sm:$0xff] %vm468, %v2742
        %2779 = vst.msk [vmem:[#allocation2 + $0xe0] sm:$0xff] %vm468, %v2743
        %2780 = vst.msk [vmem:[#allocation2 + $0xe8] sm:$0xff] %vm468, %v2744
        %2781 = vst.msk [vmem:[#allocation2 + $0xf0] sm:$0xff] %vm468, %v2745
        %2782 = vst.msk [vmem:[#allocation2 + $0xf8] sm:$0xff] %vm468, %v2746
        %2783 = vst.msk [vmem:[#allocation2 + $0x100] sm:$0xff] %vm468, %v2747
        %2784 = vst.msk [vmem:[#allocation2 + $0x108] sm:$0xff] %vm468, %v2748
        %2785 = vst.msk [vmem:[#allocation2 + $0x110] sm:$0xff] %vm468, %v2749
        %2786 = vst.msk [vmem:[#allocation2 + $0x118] sm:$0xff] %vm468, %v2750
        %v2787 = vld [vmem:[%s425 + $0x25] sm:$0xff]
        %v2788 = vld [vmem:[%s425 + $0x2d] sm:$0xff]
        %v2789 = vld [vmem:[%s425 + $0x35] sm:$0xff]
        %v2790 = vld [vmem:[%s425 + $0x3d] sm:$0xff]
        %v2791 = vld [vmem:[%s425 + $0x45] sm:$0xff]
        %v2792 = vld [vmem:[%s425 + $0x4d] sm:$0xff]
        %v2793 = vld [vmem:[%s425 + $0x55] sm:$0xff]
        %v2794 = vld [vmem:[%s425 + $0x5d] sm:$0xff]
        %v2795 = vld [vmem:[%s425 + $0x65] sm:$0xff]
        %v2796 = vld [vmem:[%s425 + $0x6d] sm:$0xff]
        %v2797 = vld [vmem:[%s425 + $0x75] sm:$0xff]
        %v2798 = vld [vmem:[%s425 + $0x7d] sm:$0xff]
        %v2799 = vld [vmem:[%s425 + $0x85] sm:$0xff]
        %v2800 = vld [vmem:[%s425 + $0x8d] sm:$0xff]
        %v2801 = vld [vmem:[%s425 + $0x95] sm:$0xff]
        %v2802 = vld [vmem:[%s425 + $0x9d] sm:$0xff]
        %v2803 = vld [vmem:[%s425 + $0xa5] sm:$0xff]
        %v2804 = vld [vmem:[%s425 + $0xad] sm:$0xff]
        %v2805 = vld [vmem:[%s425 + $0xb5] sm:$0xff]
        %v2806 = vld [vmem:[%s425 + $0xbd] sm:$0xff]
        %v2807 = vld [vmem:[%s425 + $0xc5] sm:$0xff]
        %v2808 = vld [vmem:[%s425 + $0xcd] sm:$0xff]
        %v2809 = vld [vmem:[%s425 + $0xd5] sm:$0xff]
        %v2810 = vld [vmem:[%s425 + $0xdd] sm:$0xff]
        %v2811 = vld [vmem:[%s425 + $0xe5] sm:$0xff]
        %v2812 = vld [vmem:[%s425 + $0xed] sm:$0xff]
        %v2813 = vld [vmem:[%s425 + $0xf5] sm:$0xff]
        %v2814 = vld [vmem:[%s425 + $0xfd] sm:$0xff]
        %v2815 = vld [vmem:[%s425 + $0x105] sm:$0xff]
        %v2816 = vld [vmem:[%s425 + $0x10d] sm:$0xff]
        %v2817 = vld [vmem:[%s425 + $0x115] sm:$0xff]
        %v2818 = vld [vmem:[%s425 + $0x11d] sm:$0xff]
        %v2819 = vld [vmem:[%s425 + $0x125] sm:$0xff]
        %v2820 = vld [vmem:[%s425 + $0x12d] sm:$0xff]
        %v2821 = vld [vmem:[%s425 + $0x135] sm:$0xff]
        %v2822 = vld [vmem:[%s425 + $0x13d] sm:$0xff]
        %v2823 = vpack.c.bf16 %v2788, %v2787
        %v2824 = vpack.c.bf16 %v2790, %v2789
        %v2825 = vpack.c.bf16 %v2792, %v2791
        %v2826 = vpack.c.bf16 %v2794, %v2793
        %v2827 = vpack.c.bf16 %v2796, %v2795
        %v2828 = vpack.c.bf16 %v2798, %v2797
        %v2829 = vpack.c.bf16 %v2800, %v2799
        %v2830 = vpack.c.bf16 %v2802, %v2801
        %v2831 = vpack.c.bf16 %v2804, %v2803
        %v2832 = vpack.c.bf16 %v2806, %v2805
        %v2833 = vpack.c.bf16 %v2808, %v2807
        %v2834 = vpack.c.bf16 %v2810, %v2809
        %v2835 = vpack.c.bf16 %v2812, %v2811
        %v2836 = vpack.c.bf16 %v2814, %v2813
        %v2837 = vpack.c.bf16 %v2816, %v2815
        %v2838 = vpack.c.bf16 %v2818, %v2817
        %v2839 = vpack.c.bf16 %v2820, %v2819
        %v2840 = vpack.c.bf16 %v2822, %v2821
        %v2841 = vld [vmem:[#allocation2] sm:$0xff]
        %v2842 = vld [vmem:[#allocation2 + $0x8] sm:$0xff]
        %v2843 = vld [vmem:[#allocation2 + $0x10] sm:$0xff]
        %v2844 = vld [vmem:[#allocation2 + $0x18] sm:$0xff]
        %v2845 = vld [vmem:[#allocation2 + $0x20] sm:$0xff]
        %v2846 = vld [vmem:[#allocation2 + $0x28] sm:$0xff]
        %v2847 = vld [vmem:[#allocation2 + $0x30] sm:$0xff]
        %v2848 = vld [vmem:[#allocation2 + $0x38] sm:$0xff]
        %v2849 = vld [vmem:[#allocation2 + $0x40] sm:$0xff]
        %v2850 = vld [vmem:[#allocation2 + $0x48] sm:$0xff]
        %v2851 = vld [vmem:[#allocation2 + $0x50] sm:$0xff]
        %v2852 = vld [vmem:[#allocation2 + $0x58] sm:$0xff]
        %v2853 = vld [vmem:[#allocation2 + $0x60] sm:$0xff]
        %v2854 = vld [vmem:[#allocation2 + $0x68] sm:$0xff]
        %v2855 = vld [vmem:[#allocation2 + $0x70] sm:$0xff]
        %v2856 = vld [vmem:[#allocation2 + $0x78] sm:$0xff]
        %v2857 = vld [vmem:[#allocation2 + $0x80] sm:$0xff]
        %v2858 = vld [vmem:[#allocation2 + $0x88] sm:$0xff]
        %v2859 = vld [vmem:[#allocation2 + $0x90] sm:$0xff]
        %v2860 = vld [vmem:[#allocation2 + $0x98] sm:$0xff]
        %v2861 = vld [vmem:[#allocation2 + $0xa0] sm:$0xff]
        %v2862 = vld [vmem:[#allocation2 + $0xa8] sm:$0xff]
        %v2863 = vld [vmem:[#allocation2 + $0xb0] sm:$0xff]
        %v2864 = vld [vmem:[#allocation2 + $0xb8] sm:$0xff]
        %v2865 = vld [vmem:[#allocation2 + $0xc0] sm:$0xff]
        %v2866 = vld [vmem:[#allocation2 + $0xc8] sm:$0xff]
        %v2867 = vld [vmem:[#allocation2 + $0xd0] sm:$0xff]
        %v2868 = vld [vmem:[#allocation2 + $0xd8] sm:$0xff]
        %v2869 = vld [vmem:[#allocation2 + $0xe0] sm:$0xff]
        %v2870 = vld [vmem:[#allocation2 + $0xe8] sm:$0xff]
        %v2871 = vld [vmem:[#allocation2 + $0xf0] sm:$0xff]
        %v2872 = vld [vmem:[#allocation2 + $0xf8] sm:$0xff]
        %v2873 = vld [vmem:[#allocation2 + $0x100] sm:$0xff]
        %v2874 = vld [vmem:[#allocation2 + $0x108] sm:$0xff]
        %v2875 = vld [vmem:[#allocation2 + $0x110] sm:$0xff]
        %v2876 = vld [vmem:[#allocation2 + $0x118] sm:$0xff]
        %s2877 = scalar_lea.vmem [#allocation4], 28
        %v2878 = vld [vmem:[%s2877] sm:$0xf]
        %v2880 = vsel %vm637, %v2823, 0
        %v2883 = vsel %vm637, %v2824, 0
        %v2886 = vsel %vm637, %v2825, 0
        %v2889 = vsel %vm637, %v2826, 0
        %v2892 = vsel %vm637, %v2827, 0
        %v2895 = vsel %vm637, %v2828, 0
        %v2898 = vsel %vm637, %v2829, 0
        %v2901 = vsel %vm637, %v2830, 0
        %v2904 = vsel %vm637, %v2831, 0
        %v2907 = vsel %vm637, %v2832, 0
        %v2910 = vsel %vm637, %v2833, 0
        %v2913 = vsel %vm637, %v2834, 0
        %v2916 = vsel %vm637, %v2835, 0
        %v2919 = vsel %vm637, %v2836, 0
        %v2922 = vsel %vm637, %v2837, 0
        %v2925 = vsel %vm637, %v2838, 0
        %v2928 = vsel %vm637, %v2839, 0
        %v2931 = vsel %vm637, %v2840, 0
        %v2934 = vsel %vm692, %v2878, 0
        %2936 = vmatpush.bf16.msra.mxu0 0
        %2937 = vmatpush.bf16.msra.mxu0 0
        %2938 = vmatpush.bf16.msra.mxu0 0
        %2939 = vmatpush.bf16.msra.mxu0 0
        %2940 = vmatpush.bf16.msra.mxu0 0
        %2941 = vmatpush.bf16.msra.mxu0 0
        %2942 = vmatpush.bf16.msra.mxu0 0
        %2943 = vmatpush.bf16.msra.mxu0 %v2934
        %2944 = vmatmul.bf16.gmra.mxu0 %v2880
        %v2945 = vpop.f32.mrf.mxu0
        %v2946 = vadd.f32 0.0, %v2945
        %v2947 = vpop.f32.mrf.mxu0
        %v2948 = vadd.f32 0.0, %v2947
        %2949 = vmatmul.bf16.gmra.mxu0 %v2883
        %v2950 = vpop.f32.mrf.mxu0
        %v2951 = vadd.f32 0.0, %v2950
        %v2952 = vpop.f32.mrf.mxu0
        %v2953 = vadd.f32 0.0, %v2952
        %2954 = vmatmul.bf16.gmra.mxu0 %v2886
        %v2955 = vpop.f32.mrf.mxu0
        %v2956 = vadd.f32 0.0, %v2955
        %v2957 = vpop.f32.mrf.mxu0
        %v2958 = vadd.f32 0.0, %v2957
        %2959 = vmatmul.bf16.gmra.mxu0 %v2889
        %v2960 = vpop.f32.mrf.mxu0
        %v2961 = vadd.f32 0.0, %v2960
        %v2962 = vpop.f32.mrf.mxu0
        %v2963 = vadd.f32 0.0, %v2962
        %2964 = vmatmul.bf16.gmra.mxu0 %v2892
        %v2965 = vpop.f32.mrf.mxu0
        %v2966 = vadd.f32 0.0, %v2965
        %v2967 = vpop.f32.mrf.mxu0
        %v2968 = vadd.f32 0.0, %v2967
        %2969 = vmatmul.bf16.gmra.mxu0 %v2895
        %v2970 = vpop.f32.mrf.mxu0
        %v2971 = vadd.f32 0.0, %v2970
        %v2972 = vpop.f32.mrf.mxu0
        %v2973 = vadd.f32 0.0, %v2972
        %2974 = vmatmul.bf16.gmra.mxu0 %v2898
        %v2975 = vpop.f32.mrf.mxu0
        %v2976 = vadd.f32 0.0, %v2975
        %v2977 = vpop.f32.mrf.mxu0
        %v2978 = vadd.f32 0.0, %v2977
        %2979 = vmatmul.bf16.gmra.mxu0 %v2901
        %v2980 = vpop.f32.mrf.mxu0
        %v2981 = vadd.f32 0.0, %v2980
        %v2982 = vpop.f32.mrf.mxu0
        %v2983 = vadd.f32 0.0, %v2982
        %2984 = vmatmul.bf16.gmra.mxu0 %v2904
        %v2985 = vpop.f32.mrf.mxu0
        %v2986 = vadd.f32 0.0, %v2985
        %v2987 = vpop.f32.mrf.mxu0
        %v2988 = vadd.f32 0.0, %v2987
        %2989 = vmatmul.bf16.gmra.mxu0 %v2907
        %v2990 = vpop.f32.mrf.mxu0
        %v2991 = vadd.f32 0.0, %v2990
        %v2992 = vpop.f32.mrf.mxu0
        %v2993 = vadd.f32 0.0, %v2992
        %2994 = vmatmul.bf16.gmra.mxu0 %v2910
        %v2995 = vpop.f32.mrf.mxu0
        %v2996 = vadd.f32 0.0, %v2995
        %v2997 = vpop.f32.mrf.mxu0
        %v2998 = vadd.f32 0.0, %v2997
        %2999 = vmatmul.bf16.gmra.mxu0 %v2913
        %v3000 = vpop.f32.mrf.mxu0
        %v3001 = vadd.f32 0.0, %v3000
        %v3002 = vpop.f32.mrf.mxu0
        %v3003 = vadd.f32 0.0, %v3002
        %3004 = vmatmul.bf16.gmra.mxu0 %v2916
        %v3005 = vpop.f32.mrf.mxu0
        %v3006 = vadd.f32 0.0, %v3005
        %v3007 = vpop.f32.mrf.mxu0
        %v3008 = vadd.f32 0.0, %v3007
        %3009 = vmatmul.bf16.gmra.mxu0 %v2919
        %v3010 = vpop.f32.mrf.mxu0
        %v3011 = vadd.f32 0.0, %v3010
        %v3012 = vpop.f32.mrf.mxu0
        %v3013 = vadd.f32 0.0, %v3012
        %3014 = vmatmul.bf16.gmra.mxu0 %v2922
        %v3015 = vpop.f32.mrf.mxu0
        %v3016 = vadd.f32 0.0, %v3015
        %v3017 = vpop.f32.mrf.mxu0
        %v3018 = vadd.f32 0.0, %v3017
        %3019 = vmatmul.bf16.gmra.mxu0 %v2925
        %v3020 = vpop.f32.mrf.mxu0
        %v3021 = vadd.f32 0.0, %v3020
        %v3022 = vpop.f32.mrf.mxu0
        %v3023 = vadd.f32 0.0, %v3022
        %3024 = vmatmul.bf16.gmra.mxu0 %v2928
        %v3025 = vpop.f32.mrf.mxu0
        %v3026 = vadd.f32 0.0, %v3025
        %v3027 = vpop.f32.mrf.mxu0
        %v3028 = vadd.f32 0.0, %v3027
        %3029 = vmatmul.bf16.gmra.mxu0 %v2931
        %v3030 = vpop.f32.mrf.mxu0
        %v3031 = vadd.f32 0.0, %v3030
        %v3032 = vpop.f32.mrf.mxu0
        %v3033 = vadd.f32 0.0, %v3032
        %3034 = vdwg.mxu0
        %v3035 = vadd.f32 %v2841, %v2946
        %v3036 = vadd.f32 %v2842, %v2948
        %v3037 = vadd.f32 %v2843, %v2951
        %v3038 = vadd.f32 %v2844, %v2953
        %v3039 = vadd.f32 %v2845, %v2956
        %v3040 = vadd.f32 %v2846, %v2958
        %v3041 = vadd.f32 %v2847, %v2961
        %v3042 = vadd.f32 %v2848, %v2963
        %v3043 = vadd.f32 %v2849, %v2966
        %v3044 = vadd.f32 %v2850, %v2968
        %v3045 = vadd.f32 %v2851, %v2971
        %v3046 = vadd.f32 %v2852, %v2973
        %v3047 = vadd.f32 %v2853, %v2976
        %v3048 = vadd.f32 %v2854, %v2978
        %v3049 = vadd.f32 %v2855, %v2981
        %v3050 = vadd.f32 %v2856, %v2983
        %v3051 = vadd.f32 %v2857, %v2986
        %v3052 = vadd.f32 %v2858, %v2988
        %v3053 = vadd.f32 %v2859, %v2991
        %v3054 = vadd.f32 %v2860, %v2993
        %v3055 = vadd.f32 %v2861, %v2996
        %v3056 = vadd.f32 %v2862, %v2998
        %v3057 = vadd.f32 %v2863, %v3001
        %v3058 = vadd.f32 %v2864, %v3003
        %v3059 = vadd.f32 %v2865, %v3006
        %v3060 = vadd.f32 %v2866, %v3008
        %v3061 = vadd.f32 %v2867, %v3011
        %v3062 = vadd.f32 %v2868, %v3013
        %v3063 = vadd.f32 %v2869, %v3016
        %v3064 = vadd.f32 %v2870, %v3018
        %v3065 = vadd.f32 %v2871, %v3021
        %v3066 = vadd.f32 %v2872, %v3023
        %v3067 = vadd.f32 %v2873, %v3026
        %v3068 = vadd.f32 %v2874, %v3028
        %v3069 = vadd.f32 %v2875, %v3031
        %v3070 = vadd.f32 %v2876, %v3033
        %3071 = vst.msk [vmem:[#allocation2] sm:$0xff] %vm468, %v3035
        %3072 = vst.msk [vmem:[#allocation2 + $0x8] sm:$0xff] %vm468, %v3036
        %3073 = vst.msk [vmem:[#allocation2 + $0x10] sm:$0xff] %vm468, %v3037
        %3074 = vst.msk [vmem:[#allocation2 + $0x18] sm:$0xff] %vm468, %v3038
        %3075 = vst.msk [vmem:[#allocation2 + $0x20] sm:$0xff] %vm468, %v3039
        %3076 = vst.msk [vmem:[#allocation2 + $0x28] sm:$0xff] %vm468, %v3040
        %3077 = vst.msk [vmem:[#allocation2 + $0x30] sm:$0xff] %vm468, %v3041
        %3078 = vst.msk [vmem:[#allocation2 + $0x38] sm:$0xff] %vm468, %v3042
        %3079 = vst.msk [vmem:[#allocation2 + $0x40] sm:$0xff] %vm468, %v3043
        %3080 = vst.msk [vmem:[#allocation2 + $0x48] sm:$0xff] %vm468, %v3044
        %3081 = vst.msk [vmem:[#allocation2 + $0x50] sm:$0xff] %vm468, %v3045
        %3082 = vst.msk [vmem:[#allocation2 + $0x58] sm:$0xff] %vm468, %v3046
        %3083 = vst.msk [vmem:[#allocation2 + $0x60] sm:$0xff] %vm468, %v3047
        %3084 = vst.msk [vmem:[#allocation2 + $0x68] sm:$0xff] %vm468, %v3048
        %3085 = vst.msk [vmem:[#allocation2 + $0x70] sm:$0xff] %vm468, %v3049
        %3086 = vst.msk [vmem:[#allocation2 + $0x78] sm:$0xff] %vm468, %v3050
        %3087 = vst.msk [vmem:[#allocation2 + $0x80] sm:$0xff] %vm468, %v3051
        %3088 = vst.msk [vmem:[#allocation2 + $0x88] sm:$0xff] %vm468, %v3052
        %3089 = vst.msk [vmem:[#allocation2 + $0x90] sm:$0xff] %vm468, %v3053
        %3090 = vst.msk [vmem:[#allocation2 + $0x98] sm:$0xff] %vm468, %v3054
        %3091 = vst.msk [vmem:[#allocation2 + $0xa0] sm:$0xff] %vm468, %v3055
        %3092 = vst.msk [vmem:[#allocation2 + $0xa8] sm:$0xff] %vm468, %v3056
        %3093 = vst.msk [vmem:[#allocation2 + $0xb0] sm:$0xff] %vm468, %v3057
        %3094 = vst.msk [vmem:[#allocation2 + $0xb8] sm:$0xff] %vm468, %v3058
        %3095 = vst.msk [vmem:[#allocation2 + $0xc0] sm:$0xff] %vm468, %v3059
        %3096 = vst.msk [vmem:[#allocation2 + $0xc8] sm:$0xff] %vm468, %v3060
        %3097 = vst.msk [vmem:[#allocation2 + $0xd0] sm:$0xff] %vm468, %v3061
        %3098 = vst.msk [vmem:[#allocation2 + $0xd8] sm:$0xff] %vm468, %v3062
        %3099 = vst.msk [vmem:[#allocation2 + $0xe0] sm:$0xff] %vm468, %v3063
        %3100 = vst.msk [vmem:[#allocation2 + $0xe8] sm:$0xff] %vm468, %v3064
        %3101 = vst.msk [vmem:[#allocation2 + $0xf0] sm:$0xff] %vm468, %v3065
        %3102 = vst.msk [vmem:[#allocation2 + $0xf8] sm:$0xff] %vm468, %v3066
        %3103 = vst.msk [vmem:[#allocation2 + $0x100] sm:$0xff] %vm468, %v3067
        %3104 = vst.msk [vmem:[#allocation2 + $0x108] sm:$0xff] %vm468, %v3068
        %3105 = vst.msk [vmem:[#allocation2 + $0x110] sm:$0xff] %vm468, %v3069
        %3106 = vst.msk [vmem:[#allocation2 + $0x118] sm:$0xff] %vm468, %v3070
        %v3107 = vld [vmem:[%s425 + $0x26] sm:$0xff]
        %v3108 = vld [vmem:[%s425 + $0x2e] sm:$0xff]
        %v3109 = vld [vmem:[%s425 + $0x36] sm:$0xff]
        %v3110 = vld [vmem:[%s425 + $0x3e] sm:$0xff]
        %v3111 = vld [vmem:[%s425 + $0x46] sm:$0xff]
        %v3112 = vld [vmem:[%s425 + $0x4e] sm:$0xff]
        %v3113 = vld [vmem:[%s425 + $0x56] sm:$0xff]
        %v3114 = vld [vmem:[%s425 + $0x5e] sm:$0xff]
        %v3115 = vld [vmem:[%s425 + $0x66] sm:$0xff]
        %v3116 = vld [vmem:[%s425 + $0x6e] sm:$0xff]
        %v3117 = vld [vmem:[%s425 + $0x76] sm:$0xff]
        %v3118 = vld [vmem:[%s425 + $0x7e] sm:$0xff]
        %v3119 = vld [vmem:[%s425 + $0x86] sm:$0xff]
        %v3120 = vld [vmem:[%s425 + $0x8e] sm:$0xff]
        %v3121 = vld [vmem:[%s425 + $0x96] sm:$0xff]
        %v3122 = vld [vmem:[%s425 + $0x9e] sm:$0xff]
        %v3123 = vld [vmem:[%s425 + $0xa6] sm:$0xff]
        %v3124 = vld [vmem:[%s425 + $0xae] sm:$0xff]
        %v3125 = vld [vmem:[%s425 + $0xb6] sm:$0xff]
        %v3126 = vld [vmem:[%s425 + $0xbe] sm:$0xff]
        %v3127 = vld [vmem:[%s425 + $0xc6] sm:$0xff]
        %v3128 = vld [vmem:[%s425 + $0xce] sm:$0xff]
        %v3129 = vld [vmem:[%s425 + $0xd6] sm:$0xff]
        %v3130 = vld [vmem:[%s425 + $0xde] sm:$0xff]
        %v3131 = vld [vmem:[%s425 + $0xe6] sm:$0xff]
        %v3132 = vld [vmem:[%s425 + $0xee] sm:$0xff]
        %v3133 = vld [vmem:[%s425 + $0xf6] sm:$0xff]
        %v3134 = vld [vmem:[%s425 + $0xfe] sm:$0xff]
        %v3135 = vld [vmem:[%s425 + $0x106] sm:$0xff]
        %v3136 = vld [vmem:[%s425 + $0x10e] sm:$0xff]
        %v3137 = vld [vmem:[%s425 + $0x116] sm:$0xff]
        %v3138 = vld [vmem:[%s425 + $0x11e] sm:$0xff]
        %v3139 = vld [vmem:[%s425 + $0x126] sm:$0xff]
        %v3140 = vld [vmem:[%s425 + $0x12e] sm:$0xff]
        %v3141 = vld [vmem:[%s425 + $0x136] sm:$0xff]
        %v3142 = vld [vmem:[%s425 + $0x13e] sm:$0xff]
        %v3143 = vpack.c.bf16 %v3108, %v3107
        %v3144 = vpack.c.bf16 %v3110, %v3109
        %v3145 = vpack.c.bf16 %v3112, %v3111
        %v3146 = vpack.c.bf16 %v3114, %v3113
        %v3147 = vpack.c.bf16 %v3116, %v3115
        %v3148 = vpack.c.bf16 %v3118, %v3117
        %v3149 = vpack.c.bf16 %v3120, %v3119
        %v3150 = vpack.c.bf16 %v3122, %v3121
        %v3151 = vpack.c.bf16 %v3124, %v3123
        %v3152 = vpack.c.bf16 %v3126, %v3125
        %v3153 = vpack.c.bf16 %v3128, %v3127
        %v3154 = vpack.c.bf16 %v3130, %v3129
        %v3155 = vpack.c.bf16 %v3132, %v3131
        %v3156 = vpack.c.bf16 %v3134, %v3133
        %v3157 = vpack.c.bf16 %v3136, %v3135
        %v3158 = vpack.c.bf16 %v3138, %v3137
        %v3159 = vpack.c.bf16 %v3140, %v3139
        %v3160 = vpack.c.bf16 %v3142, %v3141
        %v3161 = vld [vmem:[#allocation2] sm:$0xff]
        %v3162 = vld [vmem:[#allocation2 + $0x8] sm:$0xff]
        %v3163 = vld [vmem:[#allocation2 + $0x10] sm:$0xff]
        %v3164 = vld [vmem:[#allocation2 + $0x18] sm:$0xff]
        %v3165 = vld [vmem:[#allocation2 + $0x20] sm:$0xff]
        %v3166 = vld [vmem:[#allocation2 + $0x28] sm:$0xff]
        %v3167 = vld [vmem:[#allocation2 + $0x30] sm:$0xff]
        %v3168 = vld [vmem:[#allocation2 + $0x38] sm:$0xff]
        %v3169 = vld [vmem:[#allocation2 + $0x40] sm:$0xff]
        %v3170 = vld [vmem:[#allocation2 + $0x48] sm:$0xff]
        %v3171 = vld [vmem:[#allocation2 + $0x50] sm:$0xff]
        %v3172 = vld [vmem:[#allocation2 + $0x58] sm:$0xff]
        %v3173 = vld [vmem:[#allocation2 + $0x60] sm:$0xff]
        %v3174 = vld [vmem:[#allocation2 + $0x68] sm:$0xff]
        %v3175 = vld [vmem:[#allocation2 + $0x70] sm:$0xff]
        %v3176 = vld [vmem:[#allocation2 + $0x78] sm:$0xff]
        %v3177 = vld [vmem:[#allocation2 + $0x80] sm:$0xff]
        %v3178 = vld [vmem:[#allocation2 + $0x88] sm:$0xff]
        %v3179 = vld [vmem:[#allocation2 + $0x90] sm:$0xff]
        %v3180 = vld [vmem:[#allocation2 + $0x98] sm:$0xff]
        %v3181 = vld [vmem:[#allocation2 + $0xa0] sm:$0xff]
        %v3182 = vld [vmem:[#allocation2 + $0xa8] sm:$0xff]
        %v3183 = vld [vmem:[#allocation2 + $0xb0] sm:$0xff]
        %v3184 = vld [vmem:[#allocation2 + $0xb8] sm:$0xff]
        %v3185 = vld [vmem:[#allocation2 + $0xc0] sm:$0xff]
        %v3186 = vld [vmem:[#allocation2 + $0xc8] sm:$0xff]
        %v3187 = vld [vmem:[#allocation2 + $0xd0] sm:$0xff]
        %v3188 = vld [vmem:[#allocation2 + $0xd8] sm:$0xff]
        %v3189 = vld [vmem:[#allocation2 + $0xe0] sm:$0xff]
        %v3190 = vld [vmem:[#allocation2 + $0xe8] sm:$0xff]
        %v3191 = vld [vmem:[#allocation2 + $0xf0] sm:$0xff]
        %v3192 = vld [vmem:[#allocation2 + $0xf8] sm:$0xff]
        %v3193 = vld [vmem:[#allocation2 + $0x100] sm:$0xff]
        %v3194 = vld [vmem:[#allocation2 + $0x108] sm:$0xff]
        %v3195 = vld [vmem:[#allocation2 + $0x110] sm:$0xff]
        %v3196 = vld [vmem:[#allocation2 + $0x118] sm:$0xff]
        %s3197 = scalar_lea.vmem [#allocation4], 32
        %v3198 = vld [vmem:[%s3197] sm:$0xf]
        %v3200 = vsel %vm637, %v3143, 0
        %v3203 = vsel %vm637, %v3144, 0
        %v3206 = vsel %vm637, %v3145, 0
        %v3209 = vsel %vm637, %v3146, 0
        %v3212 = vsel %vm637, %v3147, 0
        %v3215 = vsel %vm637, %v3148, 0
        %v3218 = vsel %vm637, %v3149, 0
        %v3221 = vsel %vm637, %v3150, 0
        %v3224 = vsel %vm637, %v3151, 0
        %v3227 = vsel %vm637, %v3152, 0
        %v3230 = vsel %vm637, %v3153, 0
        %v3233 = vsel %vm637, %v3154, 0
        %v3236 = vsel %vm637, %v3155, 0
        %v3239 = vsel %vm637, %v3156, 0
        %v3242 = vsel %vm637, %v3157, 0
        %v3245 = vsel %vm637, %v3158, 0
        %v3248 = vsel %vm637, %v3159, 0
        %v3251 = vsel %vm637, %v3160, 0
        %v3254 = vsel %vm692, %v3198, 0
        %3256 = vmatpush.bf16.msra.mxu0 0
        %3257 = vmatpush.bf16.msra.mxu0 0
        %3258 = vmatpush.bf16.msra.mxu0 0
        %3259 = vmatpush.bf16.msra.mxu0 0
        %3260 = vmatpush.bf16.msra.mxu0 0
        %3261 = vmatpush.bf16.msra.mxu0 0
        %3262 = vmatpush.bf16.msra.mxu0 0
        %3263 = vmatpush.bf16.msra.mxu0 %v3254
        %3264 = vmatmul.bf16.gmra.mxu0 %v3200
        %v3265 = vpop.f32.mrf.mxu0
        %v3266 = vadd.f32 0.0, %v3265
        %v3267 = vpop.f32.mrf.mxu0
        %v3268 = vadd.f32 0.0, %v3267
        %3269 = vmatmul.bf16.gmra.mxu0 %v3203
        %v3270 = vpop.f32.mrf.mxu0
        %v3271 = vadd.f32 0.0, %v3270
        %v3272 = vpop.f32.mrf.mxu0
        %v3273 = vadd.f32 0.0, %v3272
        %3274 = vmatmul.bf16.gmra.mxu0 %v3206
        %v3275 = vpop.f32.mrf.mxu0
        %v3276 = vadd.f32 0.0, %v3275
        %v3277 = vpop.f32.mrf.mxu0
        %v3278 = vadd.f32 0.0, %v3277
        %3279 = vmatmul.bf16.gmra.mxu0 %v3209
        %v3280 = vpop.f32.mrf.mxu0
        %v3281 = vadd.f32 0.0, %v3280
        %v3282 = vpop.f32.mrf.mxu0
        %v3283 = vadd.f32 0.0, %v3282
        %3284 = vmatmul.bf16.gmra.mxu0 %v3212
        %v3285 = vpop.f32.mrf.mxu0
        %v3286 = vadd.f32 0.0, %v3285
        %v3287 = vpop.f32.mrf.mxu0
        %v3288 = vadd.f32 0.0, %v3287
        %3289 = vmatmul.bf16.gmra.mxu0 %v3215
        %v3290 = vpop.f32.mrf.mxu0
        %v3291 = vadd.f32 0.0, %v3290
        %v3292 = vpop.f32.mrf.mxu0
        %v3293 = vadd.f32 0.0, %v3292
        %3294 = vmatmul.bf16.gmra.mxu0 %v3218
        %v3295 = vpop.f32.mrf.mxu0
        %v3296 = vadd.f32 0.0, %v3295
        %v3297 = vpop.f32.mrf.mxu0
        %v3298 = vadd.f32 0.0, %v3297
        %3299 = vmatmul.bf16.gmra.mxu0 %v3221
        %v3300 = vpop.f32.mrf.mxu0
        %v3301 = vadd.f32 0.0, %v3300
        %v3302 = vpop.f32.mrf.mxu0
        %v3303 = vadd.f32 0.0, %v3302
        %3304 = vmatmul.bf16.gmra.mxu0 %v3224
        %v3305 = vpop.f32.mrf.mxu0
        %v3306 = vadd.f32 0.0, %v3305
        %v3307 = vpop.f32.mrf.mxu0
        %v3308 = vadd.f32 0.0, %v3307
        %3309 = vmatmul.bf16.gmra.mxu0 %v3227
        %v3310 = vpop.f32.mrf.mxu0
        %v3311 = vadd.f32 0.0, %v3310
        %v3312 = vpop.f32.mrf.mxu0
        %v3313 = vadd.f32 0.0, %v3312
        %3314 = vmatmul.bf16.gmra.mxu0 %v3230
        %v3315 = vpop.f32.mrf.mxu0
        %v3316 = vadd.f32 0.0, %v3315
        %v3317 = vpop.f32.mrf.mxu0
        %v3318 = vadd.f32 0.0, %v3317
        %3319 = vmatmul.bf16.gmra.mxu0 %v3233
        %v3320 = vpop.f32.mrf.mxu0
        %v3321 = vadd.f32 0.0, %v3320
        %v3322 = vpop.f32.mrf.mxu0
        %v3323 = vadd.f32 0.0, %v3322
        %3324 = vmatmul.bf16.gmra.mxu0 %v3236
        %v3325 = vpop.f32.mrf.mxu0
        %v3326 = vadd.f32 0.0, %v3325
        %v3327 = vpop.f32.mrf.mxu0
        %v3328 = vadd.f32 0.0, %v3327
        %3329 = vmatmul.bf16.gmra.mxu0 %v3239
        %v3330 = vpop.f32.mrf.mxu0
        %v3331 = vadd.f32 0.0, %v3330
        %v3332 = vpop.f32.mrf.mxu0
        %v3333 = vadd.f32 0.0, %v3332
        %3334 = vmatmul.bf16.gmra.mxu0 %v3242
        %v3335 = vpop.f32.mrf.mxu0
        %v3336 = vadd.f32 0.0, %v3335
        %v3337 = vpop.f32.mrf.mxu0
        %v3338 = vadd.f32 0.0, %v3337
        %3339 = vmatmul.bf16.gmra.mxu0 %v3245
        %v3340 = vpop.f32.mrf.mxu0
        %v3341 = vadd.f32 0.0, %v3340
        %v3342 = vpop.f32.mrf.mxu0
        %v3343 = vadd.f32 0.0, %v3342
        %3344 = vmatmul.bf16.gmra.mxu0 %v3248
        %v3345 = vpop.f32.mrf.mxu0
        %v3346 = vadd.f32 0.0, %v3345
        %v3347 = vpop.f32.mrf.mxu0
        %v3348 = vadd.f32 0.0, %v3347
        %3349 = vmatmul.bf16.gmra.mxu0 %v3251
        %v3350 = vpop.f32.mrf.mxu0
        %v3351 = vadd.f32 0.0, %v3350
        %v3352 = vpop.f32.mrf.mxu0
        %v3353 = vadd.f32 0.0, %v3352
        %3354 = vdwg.mxu0
        %v3355 = vadd.f32 %v3161, %v3266
        %v3356 = vadd.f32 %v3162, %v3268
        %v3357 = vadd.f32 %v3163, %v3271
        %v3358 = vadd.f32 %v3164, %v3273
        %v3359 = vadd.f32 %v3165, %v3276
        %v3360 = vadd.f32 %v3166, %v3278
        %v3361 = vadd.f32 %v3167, %v3281
        %v3362 = vadd.f32 %v3168, %v3283
        %v3363 = vadd.f32 %v3169, %v3286
        %v3364 = vadd.f32 %v3170, %v3288
        %v3365 = vadd.f32 %v3171, %v3291
        %v3366 = vadd.f32 %v3172, %v3293
        %v3367 = vadd.f32 %v3173, %v3296
        %v3368 = vadd.f32 %v3174, %v3298
        %v3369 = vadd.f32 %v3175, %v3301
        %v3370 = vadd.f32 %v3176, %v3303
        %v3371 = vadd.f32 %v3177, %v3306
        %v3372 = vadd.f32 %v3178, %v3308
        %v3373 = vadd.f32 %v3179, %v3311
        %v3374 = vadd.f32 %v3180, %v3313
        %v3375 = vadd.f32 %v3181, %v3316
        %v3376 = vadd.f32 %v3182, %v3318
        %v3377 = vadd.f32 %v3183, %v3321
        %v3378 = vadd.f32 %v3184, %v3323
        %v3379 = vadd.f32 %v3185, %v3326
        %v3380 = vadd.f32 %v3186, %v3328
        %v3381 = vadd.f32 %v3187, %v3331
        %v3382 = vadd.f32 %v3188, %v3333
        %v3383 = vadd.f32 %v3189, %v3336
        %v3384 = vadd.f32 %v3190, %v3338
        %v3385 = vadd.f32 %v3191, %v3341
        %v3386 = vadd.f32 %v3192, %v3343
        %v3387 = vadd.f32 %v3193, %v3346
        %v3388 = vadd.f32 %v3194, %v3348
        %v3389 = vadd.f32 %v3195, %v3351
        %v3390 = vadd.f32 %v3196, %v3353
        %3391 = vst.msk [vmem:[#allocation2] sm:$0xff] %vm468, %v3355
        %3392 = vst.msk [vmem:[#allocation2 + $0x8] sm:$0xff] %vm468, %v3356
        %3393 = vst.msk [vmem:[#allocation2 + $0x10] sm:$0xff] %vm468, %v3357
        %3394 = vst.msk [vmem:[#allocation2 + $0x18] sm:$0xff] %vm468, %v3358
        %3395 = vst.msk [vmem:[#allocation2 + $0x20] sm:$0xff] %vm468, %v3359
        %3396 = vst.msk [vmem:[#allocation2 + $0x28] sm:$0xff] %vm468, %v3360
        %3397 = vst.msk [vmem:[#allocation2 + $0x30] sm:$0xff] %vm468, %v3361
        %3398 = vst.msk [vmem:[#allocation2 + $0x38] sm:$0xff] %vm468, %v3362
        %3399 = vst.msk [vmem:[#allocation2 + $0x40] sm:$0xff] %vm468, %v3363
        %3400 = vst.msk [vmem:[#allocation2 + $0x48] sm:$0xff] %vm468, %v3364
        %3401 = vst.msk [vmem:[#allocation2 + $0x50] sm:$0xff] %vm468, %v3365
        %3402 = vst.msk [vmem:[#allocation2 + $0x58] sm:$0xff] %vm468, %v3366
        %3403 = vst.msk [vmem:[#allocation2 + $0x60] sm:$0xff] %vm468, %v3367
        %3404 = vst.msk [vmem:[#allocation2 + $0x68] sm:$0xff] %vm468, %v3368
        %3405 = vst.msk [vmem:[#allocation2 + $0x70] sm:$0xff] %vm468, %v3369
        %3406 = vst.msk [vmem:[#allocation2 + $0x78] sm:$0xff] %vm468, %v3370
        %3407 = vst.msk [vmem:[#allocation2 + $0x80] sm:$0xff] %vm468, %v3371
        %3408 = vst.msk [vmem:[#allocation2 + $0x88] sm:$0xff] %vm468, %v3372
        %3409 = vst.msk [vmem:[#allocation2 + $0x90] sm:$0xff] %vm468, %v3373
        %3410 = vst.msk [vmem:[#allocation2 + $0x98] sm:$0xff] %vm468, %v3374
        %3411 = vst.msk [vmem:[#allocation2 + $0xa0] sm:$0xff] %vm468, %v3375
        %3412 = vst.msk [vmem:[#allocation2 + $0xa8] sm:$0xff] %vm468, %v3376
        %3413 = vst.msk [vmem:[#allocation2 + $0xb0] sm:$0xff] %vm468, %v3377
        %3414 = vst.msk [vmem:[#allocation2 + $0xb8] sm:$0xff] %vm468, %v3378
        %3415 = vst.msk [vmem:[#allocation2 + $0xc0] sm:$0xff] %vm468, %v3379
        %3416 = vst.msk [vmem:[#allocation2 + $0xc8] sm:$0xff] %vm468, %v3380
        %3417 = vst.msk [vmem:[#allocation2 + $0xd0] sm:$0xff] %vm468, %v3381
        %3418 = vst.msk [vmem:[#allocation2 + $0xd8] sm:$0xff] %vm468, %v3382
        %3419 = vst.msk [vmem:[#allocation2 + $0xe0] sm:$0xff] %vm468, %v3383
        %3420 = vst.msk [vmem:[#allocation2 + $0xe8] sm:$0xff] %vm468, %v3384
        %3421 = vst.msk [vmem:[#allocation2 + $0xf0] sm:$0xff] %vm468, %v3385
        %3422 = vst.msk [vmem:[#allocation2 + $0xf8] sm:$0xff] %vm468, %v3386
        %3423 = vst.msk [vmem:[#allocation2 + $0x100] sm:$0xff] %vm468, %v3387
        %3424 = vst.msk [vmem:[#allocation2 + $0x108] sm:$0xff] %vm468, %v3388
        %3425 = vst.msk [vmem:[#allocation2 + $0x110] sm:$0xff] %vm468, %v3389
        %3426 = vst.msk [vmem:[#allocation2 + $0x118] sm:$0xff] %vm468, %v3390
        %v3427 = vld [vmem:[#allocation2] sm:$0xff]
        %v3428 = vld [vmem:[#allocation2 + $0x8] sm:$0xff]
        %v3429 = vld [vmem:[#allocation2 + $0x10] sm:$0xff]
        %v3430 = vld [vmem:[#allocation2 + $0x18] sm:$0xff]
        %v3431 = vld [vmem:[#allocation2 + $0x20] sm:$0xff]
        %v3432 = vld [vmem:[#allocation2 + $0x28] sm:$0xff]
        %v3433 = vld [vmem:[#allocation2 + $0x30] sm:$0xff]
        %v3434 = vld [vmem:[#allocation2 + $0x38] sm:$0xff]
        %v3435 = vld [vmem:[#allocation2 + $0x40] sm:$0xff]
        %v3436 = vld [vmem:[#allocation2 + $0x48] sm:$0xff]
        %v3437 = vld [vmem:[#allocation2 + $0x50] sm:$0xff]
        %v3438 = vld [vmem:[#allocation2 + $0x58] sm:$0xff]
        %v3439 = vld [vmem:[#allocation2 + $0x60] sm:$0xff]
        %v3440 = vld [vmem:[#allocation2 + $0x68] sm:$0xff]
        %v3441 = vld [vmem:[#allocation2 + $0x70] sm:$0xff]
        %v3442 = vld [vmem:[#allocation2 + $0x78] sm:$0xff]
        %v3443 = vld [vmem:[#allocation2 + $0x80] sm:$0xff]
        %v3444 = vld [vmem:[#allocation2 + $0x88] sm:$0xff]
        %v3445 = vld [vmem:[#allocation2 + $0x90] sm:$0xff]
        %v3446 = vld [vmem:[#allocation2 + $0x98] sm:$0xff]
        %v3447 = vld [vmem:[#allocation2 + $0xa0] sm:$0xff]
        %v3448 = vld [vmem:[#allocation2 + $0xa8] sm:$0xff]
        %v3449 = vld [vmem:[#allocation2 + $0xb0] sm:$0xff]
        %v3450 = vld [vmem:[#allocation2 + $0xb8] sm:$0xff]
        %v3451 = vld [vmem:[#allocation2 + $0xc0] sm:$0xff]
        %v3452 = vld [vmem:[#allocation2 + $0xc8] sm:$0xff]
        %v3453 = vld [vmem:[#allocation2 + $0xd0] sm:$0xff]
        %v3454 = vld [vmem:[#allocation2 + $0xd8] sm:$0xff]
        %v3455 = vld [vmem:[#allocation2 + $0xe0] sm:$0xff]
        %v3456 = vld [vmem:[#allocation2 + $0xe8] sm:$0xff]
        %v3457 = vld [vmem:[#allocation2 + $0xf0] sm:$0xff]
        %v3458 = vld [vmem:[#allocation2 + $0xf8] sm:$0xff]
        %v3459 = vld [vmem:[#allocation2 + $0x100] sm:$0xff]
        %v3460 = vld [vmem:[#allocation2 + $0x108] sm:$0xff]
        %v3461 = vld [vmem:[#allocation2 + $0x110] sm:$0xff]
        %v3462 = vld [vmem:[#allocation2 + $0x118] sm:$0xff]
        %v3463 = vld [vmem:[#allocation6] sm:$0x1]
        %v3465 = vperm.slane %v3463, 0
        %v3467 = vadd.f32 %v3427, %v3465
        %v3468 = vadd.f32 %v3428, %v3465
        %v3469 = vadd.f32 %v3429, %v3465
        %v3470 = vadd.f32 %v3430, %v3465
        %v3471 = vadd.f32 %v3431, %v3465
        %v3472 = vadd.f32 %v3432, %v3465
        %v3473 = vadd.f32 %v3433, %v3465
        %v3474 = vadd.f32 %v3434, %v3465
        %v3475 = vadd.f32 %v3435, %v3465
        %v3476 = vadd.f32 %v3436, %v3465
        %v3477 = vadd.f32 %v3437, %v3465
        %v3478 = vadd.f32 %v3438, %v3465
        %v3479 = vadd.f32 %v3439, %v3465
        %v3480 = vadd.f32 %v3440, %v3465
        %v3481 = vadd.f32 %v3441, %v3465
        %v3482 = vadd.f32 %v3442, %v3465
        %v3483 = vadd.f32 %v3443, %v3465
        %v3484 = vadd.f32 %v3444, %v3465
        %v3485 = vadd.f32 %v3445, %v3465
        %v3486 = vadd.f32 %v3446, %v3465
        %v3487 = vadd.f32 %v3447, %v3465
        %v3488 = vadd.f32 %v3448, %v3465
        %v3489 = vadd.f32 %v3449, %v3465
        %v3490 = vadd.f32 %v3450, %v3465
        %v3491 = vadd.f32 %v3451, %v3465
        %v3492 = vadd.f32 %v3452, %v3465
        %v3493 = vadd.f32 %v3453, %v3465
        %v3494 = vadd.f32 %v3454, %v3465
        %v3495 = vadd.f32 %v3455, %v3465
        %v3496 = vadd.f32 %v3456, %v3465
        %v3497 = vadd.f32 %v3457, %v3465
        %v3498 = vadd.f32 %v3458, %v3465
        %v3499 = vadd.f32 %v3459, %v3465
        %v3500 = vadd.f32 %v3460, %v3465
        %v3501 = vadd.f32 %v3461, %v3465
        %v3502 = vadd.f32 %v3462, %v3465
        %v3503 = vmax.f32 %v3467, 0.0
        %v3504 = vmax.f32 %v3468, 0.0
        %v3505 = vmax.f32 %v3469, 0.0
        %v3506 = vmax.f32 %v3470, 0.0
        %v3507 = vmax.f32 %v3471, 0.0
        %v3508 = vmax.f32 %v3472, 0.0
        %v3509 = vmax.f32 %v3473, 0.0
        %v3510 = vmax.f32 %v3474, 0.0
        %v3511 = vmax.f32 %v3475, 0.0
        %v3512 = vmax.f32 %v3476, 0.0
        %v3513 = vmax.f32 %v3477, 0.0
        %v3514 = vmax.f32 %v3478, 0.0
        %v3515 = vmax.f32 %v3479, 0.0
        %v3516 = vmax.f32 %v3480, 0.0
        %v3517 = vmax.f32 %v3481, 0.0
        %v3518 = vmax.f32 %v3482, 0.0
        %v3519 = vmax.f32 %v3483, 0.0
        %v3520 = vmax.f32 %v3484, 0.0
        %v3521 = vmax.f32 %v3485, 0.0
        %v3522 = vmax.f32 %v3486, 0.0
        %v3523 = vmax.f32 %v3487, 0.0
        %v3524 = vmax.f32 %v3488, 0.0
        %v3525 = vmax.f32 %v3489, 0.0
        %v3526 = vmax.f32 %v3490, 0.0
        %v3527 = vmax.f32 %v3491, 0.0
        %v3528 = vmax.f32 %v3492, 0.0
        %v3529 = vmax.f32 %v3493, 0.0
        %v3530 = vmax.f32 %v3494, 0.0
        %v3531 = vmax.f32 %v3495, 0.0
        %v3532 = vmax.f32 %v3496, 0.0
        %v3533 = vmax.f32 %v3497, 0.0
        %v3534 = vmax.f32 %v3498, 0.0
        %v3535 = vmax.f32 %v3499, 0.0
        %v3536 = vmax.f32 %v3500, 0.0
        %v3537 = vmax.f32 %v3501, 0.0
        %v3538 = vmax.f32 %v3502, 0.0
        %3540 = vset.pattern.permute.xlu0 0
        %3541 = vperm.xlu0 %3540, %v432
        %v3542 = vpop.permute.xlu0 %3541
        %3545 = vset.pattern.permute.xlu0 0
        %3546 = vperm.xlu0 %3545, %v433
        %v3547 = vpop.permute.xlu0 %3546
        %3550 = vset.pattern.permute.xlu0 0
        %3551 = vperm.xlu0 %3550, %v434
        %v3552 = vpop.permute.xlu0 %3551
        %3555 = vset.pattern.permute.xlu0 0
        %3556 = vperm.xlu0 %3555, %v435
        %v3557 = vpop.permute.xlu0 %3556
        %3560 = vset.pattern.permute.xlu0 0
        %3561 = vperm.xlu0 %3560, %v436
        %v3562 = vpop.permute.xlu0 %3561
        %3565 = vset.pattern.permute.xlu0 0
        %3566 = vperm.xlu0 %3565, %v437
        %v3567 = vpop.permute.xlu0 %3566
        %3570 = vset.pattern.permute.xlu0 0
        %3571 = vperm.xlu0 %3570, %v438
        %v3572 = vpop.permute.xlu0 %3571
        %3575 = vset.pattern.permute.xlu0 0
        %3576 = vperm.xlu0 %3575, %v439
        %v3577 = vpop.permute.xlu0 %3576
        %3580 = vset.pattern.permute.xlu0 0
        %3581 = vperm.xlu0 %3580, %v440
        %v3582 = vpop.permute.xlu0 %3581
        %3585 = vset.pattern.permute.xlu0 0
        %3586 = vperm.xlu0 %3585, %v441
        %v3587 = vpop.permute.xlu0 %3586
        %3590 = vset.pattern.permute.xlu0 0
        %3591 = vperm.xlu0 %3590, %v442
        %v3592 = vpop.permute.xlu0 %3591
        %3595 = vset.pattern.permute.xlu0 0
        %3596 = vperm.xlu0 %3595, %v443
        %v3597 = vpop.permute.xlu0 %3596
        %3600 = vset.pattern.permute.xlu0 0
        %3601 = vperm.xlu0 %3600, %v444
        %v3602 = vpop.permute.xlu0 %3601
        %3605 = vset.pattern.permute.xlu0 0
        %3606 = vperm.xlu0 %3605, %v445
        %v3607 = vpop.permute.xlu0 %3606
        %3610 = vset.pattern.permute.xlu0 0
        %3611 = vperm.xlu0 %3610, %v446
        %v3612 = vpop.permute.xlu0 %3611
        %3615 = vset.pattern.permute.xlu0 0
        %3616 = vperm.xlu0 %3615, %v447
        %v3617 = vpop.permute.xlu0 %3616
        %3620 = vset.pattern.permute.xlu0 0
        %3621 = vperm.xlu0 %3620, %v448
        %v3622 = vpop.permute.xlu0 %3621
        %3625 = vset.pattern.permute.xlu0 0
        %3626 = vperm.xlu0 %3625, %v449
        %v3627 = vpop.permute.xlu0 %3626
        %3630 = vset.pattern.permute.xlu0 0
        %3631 = vperm.xlu0 %3630, %v450
        %v3632 = vpop.permute.xlu0 %3631
        %3635 = vset.pattern.permute.xlu0 0
        %3636 = vperm.xlu0 %3635, %v451
        %v3637 = vpop.permute.xlu0 %3636
        %3640 = vset.pattern.permute.xlu0 0
        %3641 = vperm.xlu0 %3640, %v452
        %v3642 = vpop.permute.xlu0 %3641
        %3645 = vset.pattern.permute.xlu0 0
        %3646 = vperm.xlu0 %3645, %v453
        %v3647 = vpop.permute.xlu0 %3646
        %3650 = vset.pattern.permute.xlu0 0
        %3651 = vperm.xlu0 %3650, %v454
        %v3652 = vpop.permute.xlu0 %3651
        %3655 = vset.pattern.permute.xlu0 0
        %3656 = vperm.xlu0 %3655, %v455
        %v3657 = vpop.permute.xlu0 %3656
        %3660 = vset.pattern.permute.xlu0 0
        %3661 = vperm.xlu0 %3660, %v456
        %v3662 = vpop.permute.xlu0 %3661
        %3665 = vset.pattern.permute.xlu0 0
        %3666 = vperm.xlu0 %3665, %v457
        %v3667 = vpop.permute.xlu0 %3666
        %3670 = vset.pattern.permute.xlu0 0
        %3671 = vperm.xlu0 %3670, %v458
        %v3672 = vpop.permute.xlu0 %3671
        %3675 = vset.pattern.permute.xlu0 0
        %3676 = vperm.xlu0 %3675, %v459
        %v3677 = vpop.permute.xlu0 %3676
        %3680 = vset.pattern.permute.xlu0 0
        %3681 = vperm.xlu0 %3680, %v460
        %v3682 = vpop.permute.xlu0 %3681
        %3685 = vset.pattern.permute.xlu0 0
        %3686 = vperm.xlu0 %3685, %v461
        %v3687 = vpop.permute.xlu0 %3686
        %3690 = vset.pattern.permute.xlu0 0
        %3691 = vperm.xlu0 %3690, %v462
        %v3692 = vpop.permute.xlu0 %3691
        %3695 = vset.pattern.permute.xlu0 0
        %3696 = vperm.xlu0 %3695, %v463
        %v3697 = vpop.permute.xlu0 %3696
        %3700 = vset.pattern.permute.xlu0 0
        %3701 = vperm.xlu0 %3700, %v464
        %v3702 = vpop.permute.xlu0 %3701
        %3705 = vset.pattern.permute.xlu0 0
        %3706 = vperm.xlu0 %3705, %v465
        %v3707 = vpop.permute.xlu0 %3706
        %3710 = vset.pattern.permute.xlu0 0
        %3711 = vperm.xlu0 %3710, %v466
        %v3712 = vpop.permute.xlu0 %3711
        %3715 = vset.pattern.permute.xlu0 0
        %3716 = vperm.xlu0 %3715, %v467
        %v3717 = vpop.permute.xlu0 %3716
        %v3719 = vmul.f32 %v3503, %v3542
        %v3720 = vmul.f32 %v3504, %v3547
        %v3721 = vmul.f32 %v3505, %v3552
        %v3722 = vmul.f32 %v3506, %v3557
        %v3723 = vmul.f32 %v3507, %v3562
        %v3724 = vmul.f32 %v3508, %v3567
        %v3725 = vmul.f32 %v3509, %v3572
        %v3726 = vmul.f32 %v3510, %v3577
        %v3727 = vmul.f32 %v3511, %v3582
        %v3728 = vmul.f32 %v3512, %v3587
        %v3729 = vmul.f32 %v3513, %v3592
        %v3730 = vmul.f32 %v3514, %v3597
        %v3731 = vmul.f32 %v3515, %v3602
        %v3732 = vmul.f32 %v3516, %v3607
        %v3733 = vmul.f32 %v3517, %v3612
        %v3734 = vmul.f32 %v3518, %v3617
        %v3735 = vmul.f32 %v3519, %v3622
        %v3736 = vmul.f32 %v3520, %v3627
        %v3737 = vmul.f32 %v3521, %v3632
        %v3738 = vmul.f32 %v3522, %v3637
        %v3739 = vmul.f32 %v3523, %v3642
        %v3740 = vmul.f32 %v3524, %v3647
        %v3741 = vmul.f32 %v3525, %v3652
        %v3742 = vmul.f32 %v3526, %v3657
        %v3743 = vmul.f32 %v3527, %v3662
        %v3744 = vmul.f32 %v3528, %v3667
        %v3745 = vmul.f32 %v3529, %v3672
        %v3746 = vmul.f32 %v3530, %v3677
        %v3747 = vmul.f32 %v3531, %v3682
        %v3748 = vmul.f32 %v3532, %v3687
        %v3749 = vmul.f32 %v3533, %v3692
        %v3750 = vmul.f32 %v3534, %v3697
        %v3751 = vmul.f32 %v3535, %v3702
        %v3752 = vmul.f32 %v3536, %v3707
        %v3753 = vmul.f32 %v3537, %v3712
        %v3754 = vmul.f32 %v3538, %v3717
        %3755 = vst.msk [vmem:[#allocation3 + $0x13] sm:$0xff] %vm468, %v3719
        %3756 = vst.msk [vmem:[#allocation3 + $0x1b] sm:$0xff] %vm468, %v3720
        %3757 = vst.msk [vmem:[#allocation3 + $0x23] sm:$0xff] %vm468, %v3721
        %3758 = vst.msk [vmem:[#allocation3 + $0x2b] sm:$0xff] %vm468, %v3722
        %3759 = vst.msk [vmem:[#allocation3 + $0x33] sm:$0xff] %vm468, %v3723
        %3760 = vst.msk [vmem:[#allocation3 + $0x3b] sm:$0xff] %vm468, %v3724
        %3761 = vst.msk [vmem:[#allocation3 + $0x43] sm:$0xff] %vm468, %v3725
        %3762 = vst.msk [vmem:[#allocation3 + $0x4b] sm:$0xff] %vm468, %v3726
        %3763 = vst.msk [vmem:[#allocation3 + $0x53] sm:$0xff] %vm468, %v3727
        %3764 = vst.msk [vmem:[#allocation3 + $0x5b] sm:$0xff] %vm468, %v3728
        %3765 = vst.msk [vmem:[#allocation3 + $0x63] sm:$0xff] %vm468, %v3729
        %3766 = vst.msk [vmem:[#allocation3 + $0x6b] sm:$0xff] %vm468, %v3730
        %3767 = vst.msk [vmem:[#allocation3 + $0x73] sm:$0xff] %vm468, %v3731
        %3768 = vst.msk [vmem:[#allocation3 + $0x7b] sm:$0xff] %vm468, %v3732
        %3769 = vst.msk [vmem:[#allocation3 + $0x83] sm:$0xff] %vm468, %v3733
        %3770 = vst.msk [vmem:[#allocation3 + $0x8b] sm:$0xff] %vm468, %v3734
        %3771 = vst.msk [vmem:[#allocation3 + $0x93] sm:$0xff] %vm468, %v3735
        %3772 = vst.msk [vmem:[#allocation3 + $0x9b] sm:$0xff] %vm468, %v3736
        %3773 = vst.msk [vmem:[#allocation3 + $0xa3] sm:$0xff] %vm468, %v3737
        %3774 = vst.msk [vmem:[#allocation3 + $0xab] sm:$0xff] %vm468, %v3738
        %3775 = vst.msk [vmem:[#allocation3 + $0xb3] sm:$0xff] %vm468, %v3739
        %3776 = vst.msk [vmem:[#allocation3 + $0xbb] sm:$0xff] %vm468, %v3740
        %3777 = vst.msk [vmem:[#allocation3 + $0xc3] sm:$0xff] %vm468, %v3741
        %3778 = vst.msk [vmem:[#allocation3 + $0xcb] sm:$0xff] %vm468, %v3742
        %3779 = vst.msk [vmem:[#allocation3 + $0xd3] sm:$0xff] %vm468, %v3743
        %3780 = vst.msk [vmem:[#allocation3 + $0xdb] sm:$0xff] %vm468, %v3744
        %3781 = vst.msk [vmem:[#allocation3 + $0xe3] sm:$0xff] %vm468, %v3745
        %3782 = vst.msk [vmem:[#allocation3 + $0xeb] sm:$0xff] %vm468, %v3746
        %3783 = vst.msk [vmem:[#allocation3 + $0xf3] sm:$0xff] %vm468, %v3747
        %3784 = vst.msk [vmem:[#allocation3 + $0xfb] sm:$0xff] %vm468, %v3748
        %3785 = vst.msk [vmem:[#allocation3 + $0x103] sm:$0xff] %vm468, %v3749
        %3786 = vst.msk [vmem:[#allocation3 + $0x10b] sm:$0xff] %vm468, %v3750
        %3787 = vst.msk [vmem:[#allocation3 + $0x113] sm:$0xff] %vm468, %v3751
        %3788 = vst.msk [vmem:[#allocation3 + $0x11b] sm:$0xff] %vm468, %v3752
        %3789 = vst.msk [vmem:[#allocation3 + $0x123] sm:$0xff] %vm468, %v3753
        %3790 = vst.msk [vmem:[#allocation3 + $0x12b] sm:$0xff] %vm468, %v3754
        loop: start=0, step=1, limit=15
        $region81: #{_lambda_.1} parent=55 // loop_pre_header
          _
        $region82: #{_lambda_.1} parent=55 // loop_header
          %s3792 = sphi 0, %s3796
          %p3793 = scmp.ge.s32.totalorder %s3792, 15
        $region83: #{_lambda_.1} parent=55 // loop_header_branch
          %3795 = sbr.rel (%p3793) target = $region87
        $region84: #{_lambda_.1} parent=55 // loop_body
          %s3797 = smul.u32 %s3792, 72
          %s3798 = smul.addr %s3797, 4
          %s3799 = scalar_lea.vmem [#allocation8], %s3798
          %v3800 = vld [vmem:[%s3799] sm:$0xf]
          %v3801 = vld [vmem:[%s3799 + $0x4] sm:$0xf]
          %v3802 = vld [vmem:[%s3799 + $0x8] sm:$0xf]
          %v3803 = vld [vmem:[%s3799 + $0xc] sm:$0xf]
          %v3804 = vld [vmem:[%s3799 + $0x10] sm:$0xf]
          %v3805 = vld [vmem:[%s3799 + $0x14] sm:$0xf]
          %v3806 = vld [vmem:[%s3799 + $0x18] sm:$0xf]
          %v3807 = vld [vmem:[%s3799 + $0x1c] sm:$0xf]
          %v3808 = vld [vmem:[%s3799 + $0x20] sm:$0xf]
          %v3809 = vld [vmem:[%s3799 + $0x24] sm:$0xf]
          %v3810 = vld [vmem:[%s3799 + $0x28] sm:$0xf]
          %v3811 = vld [vmem:[%s3799 + $0x2c] sm:$0xf]
          %v3812 = vld [vmem:[%s3799 + $0x30] sm:$0xf]
          %v3813 = vld [vmem:[%s3799 + $0x34] sm:$0xf]
          %v3814 = vld [vmem:[%s3799 + $0x38] sm:$0xf]
          %v3815 = vld [vmem:[%s3799 + $0x3c] sm:$0xf]
          %v3816 = vld [vmem:[%s3799 + $0x40] sm:$0xf]
          %v3817 = vld [vmem:[%s3799 + $0x44] sm:$0xf]
          %v3818 = vld [vmem:[%s3799 + $0x48] sm:$0xf]
          %v3819 = vld [vmem:[%s3799 + $0x4c] sm:$0xf]
          %v3820 = vld [vmem:[%s3799 + $0x50] sm:$0xf]
          %v3821 = vld [vmem:[%s3799 + $0x54] sm:$0xf]
          %v3822 = vld [vmem:[%s3799 + $0x58] sm:$0xf]
          %v3823 = vld [vmem:[%s3799 + $0x5c] sm:$0xf]
          %v3824 = vld [vmem:[%s3799 + $0x60] sm:$0xf]
          %v3825 = vld [vmem:[%s3799 + $0x64] sm:$0xf]
          %v3826 = vld [vmem:[%s3799 + $0x68] sm:$0xf]
          %v3827 = vld [vmem:[%s3799 + $0x6c] sm:$0xf]
          %v3828 = vld [vmem:[%s3799 + $0x70] sm:$0xf]
          %v3829 = vld [vmem:[%s3799 + $0x74] sm:$0xf]
          %v3830 = vld [vmem:[%s3799 + $0x78] sm:$0xf]
          %v3831 = vld [vmem:[%s3799 + $0x7c] sm:$0xf]
          %v3832 = vld [vmem:[%s3799 + $0x80] sm:$0xf]
          %v3833 = vld [vmem:[%s3799 + $0x84] sm:$0xf]
          %v3834 = vld [vmem:[%s3799 + $0x88] sm:$0xf]
          %v3835 = vld [vmem:[%s3799 + $0x8c] sm:$0xf]
          %v3836 = vld [vmem:[%s3799 + $0x90] sm:$0xf]
          %v3837 = vld [vmem:[%s3799 + $0x94] sm:$0xf]
          %v3838 = vld [vmem:[%s3799 + $0x98] sm:$0xf]
          %v3839 = vld [vmem:[%s3799 + $0x9c] sm:$0xf]
          %v3840 = vld [vmem:[%s3799 + $0xa0] sm:$0xf]
          %v3841 = vld [vmem:[%s3799 + $0xa4] sm:$0xf]
          %v3842 = vld [vmem:[%s3799 + $0xa8] sm:$0xf]
          %v3843 = vld [vmem:[%s3799 + $0xac] sm:$0xf]
          %v3844 = vld [vmem:[%s3799 + $0xb0] sm:$0xf]
          %v3845 = vld [vmem:[%s3799 + $0xb4] sm:$0xf]
          %v3846 = vld [vmem:[%s3799 + $0xb8] sm:$0xf]
          %v3847 = vld [vmem:[%s3799 + $0xbc] sm:$0xf]
          %v3848 = vld [vmem:[%s3799 + $0xc0] sm:$0xf]
          %v3849 = vld [vmem:[%s3799 + $0xc4] sm:$0xf]
          %v3850 = vld [vmem:[%s3799 + $0xc8] sm:$0xf]
          %v3851 = vld [vmem:[%s3799 + $0xcc] sm:$0xf]
          %v3852 = vld [vmem:[%s3799 + $0xd0] sm:$0xf]
          %v3853 = vld [vmem:[%s3799 + $0xd4] sm:$0xf]
          %v3854 = vld [vmem:[%s3799 + $0xd8] sm:$0xf]
          %v3855 = vld [vmem:[%s3799 + $0xdc] sm:$0xf]
          %v3856 = vld [vmem:[%s3799 + $0xe0] sm:$0xf]
          %v3857 = vld [vmem:[%s3799 + $0xe4] sm:$0xf]
          %v3858 = vld [vmem:[%s3799 + $0xe8] sm:$0xf]
          %v3859 = vld [vmem:[%s3799 + $0xec] sm:$0xf]
          %v3860 = vld [vmem:[%s3799 + $0xf0] sm:$0xf]
          %v3861 = vld [vmem:[%s3799 + $0xf4] sm:$0xf]
          %v3862 = vld [vmem:[%s3799 + $0xf8] sm:$0xf]
          %v3863 = vld [vmem:[%s3799 + $0xfc] sm:$0xf]
          %v3864 = vld [vmem:[%s3799 + $0x100] sm:$0xf]
          %v3865 = vld [vmem:[%s3799 + $0x104] sm:$0xf]
          %v3866 = vld [vmem:[%s3799 + $0x108] sm:$0xf]
          %v3867 = vld [vmem:[%s3799 + $0x10c] sm:$0xf]
          %v3868 = vld [vmem:[%s3799 + $0x110] sm:$0xf]
          %v3869 = vld [vmem:[%s3799 + $0x114] sm:$0xf]
          %v3870 = vld [vmem:[%s3799 + $0x118] sm:$0xf]
          %v3871 = vld [vmem:[%s3799 + $0x11c] sm:$0xf]
          %s3872 = scalar_lea.vmem [#allocation9], %s3792
          %v3873 = vld [vmem:[%s3872] sm:$0x1]
          %s3874 = scalar_lea.vmem [#allocation11], %s3792
          %v3875 = vld [vmem:[%s3874] sm:$0x1]
          %3876 = vst.msk [vmem:[#allocation2] sm:$0xff] %vm468, 0.0
          %3877 = vst.msk [vmem:[#allocation2 + $0x8] sm:$0xff] %vm468, 0.0
          %3878 = vst.msk [vmem:[#allocation2 + $0x10] sm:$0xff] %vm468, 0.0
          %3879 = vst.msk [vmem:[#allocation2 + $0x18] sm:$0xff] %vm468, 0.0
          %3880 = vst.msk [vmem:[#allocation2 + $0x20] sm:$0xff] %vm468, 0.0
          %3881 = vst.msk [vmem:[#allocation2 + $0x28] sm:$0xff] %vm468, 0.0
          %3882 = vst.msk [vmem:[#allocation2 + $0x30] sm:$0xff] %vm468, 0.0
          %3883 = vst.msk [vmem:[#allocation2 + $0x38] sm:$0xff] %vm468, 0.0
          %3884 = vst.msk [vmem:[#allocation2 + $0x40] sm:$0xff] %vm468, 0.0
          %3885 = vst.msk [vmem:[#allocation2 + $0x48] sm:$0xff] %vm468, 0.0
          %3886 = vst.msk [vmem:[#allocation2 + $0x50] sm:$0xff] %vm468, 0.0
          %3887 = vst.msk [vmem:[#allocation2 + $0x58] sm:$0xff] %vm468, 0.0
          %3888 = vst.msk [vmem:[#allocation2 + $0x60] sm:$0xff] %vm468, 0.0
          %3889 = vst.msk [vmem:[#allocation2 + $0x68] sm:$0xff] %vm468, 0.0
          %3890 = vst.msk [vmem:[#allocation2 + $0x70] sm:$0xff] %vm468, 0.0
          %3891 = vst.msk [vmem:[#allocation2 + $0x78] sm:$0xff] %vm468, 0.0
          %3892 = vst.msk [vmem:[#allocation2 + $0x80] sm:$0xff] %vm468, 0.0
          %3893 = vst.msk [vmem:[#allocation2 + $0x88] sm:$0xff] %vm468, 0.0
          %3894 = vst.msk [vmem:[#allocation2 + $0x90] sm:$0xff] %vm468, 0.0
          %3895 = vst.msk [vmem:[#allocation2 + $0x98] sm:$0xff] %vm468, 0.0
          %3896 = vst.msk [vmem:[#allocation2 + $0xa0] sm:$0xff] %vm468, 0.0
          %3897 = vst.msk [vmem:[#allocation2 + $0xa8] sm:$0xff] %vm468, 0.0
          %3898 = vst.msk [vmem:[#allocation2 + $0xb0] sm:$0xff] %vm468, 0.0
          %3899 = vst.msk [vmem:[#allocation2 + $0xb8] sm:$0xff] %vm468, 0.0
          %3900 = vst.msk [vmem:[#allocation2 + $0xc0] sm:$0xff] %vm468, 0.0
          %3901 = vst.msk [vmem:[#allocation2 + $0xc8] sm:$0xff] %vm468, 0.0
          %3902 = vst.msk [vmem:[#allocation2 + $0xd0] sm:$0xff] %vm468, 0.0
          %3903 = vst.msk [vmem:[#allocation2 + $0xd8] sm:$0xff] %vm468, 0.0
          %3904 = vst.msk [vmem:[#allocation2 + $0xe0] sm:$0xff] %vm468, 0.0
          %3905 = vst.msk [vmem:[#allocation2 + $0xe8] sm:$0xff] %vm468, 0.0
          %3906 = vst.msk [vmem:[#allocation2 + $0xf0] sm:$0xff] %vm468, 0.0
          %3907 = vst.msk [vmem:[#allocation2 + $0xf8] sm:$0xff] %vm468, 0.0
          %3908 = vst.msk [vmem:[#allocation2 + $0x100] sm:$0xff] %vm468, 0.0
          %3909 = vst.msk [vmem:[#allocation2 + $0x108] sm:$0xff] %vm468, 0.0
          %3910 = vst.msk [vmem:[#allocation2 + $0x110] sm:$0xff] %vm468, 0.0
          %3911 = vst.msk [vmem:[#allocation2 + $0x118] sm:$0xff] %vm468, 0.0
          %v3912 = vld [vmem:[#allocation3] sm:$0xff]
          %v3913 = vld [vmem:[#allocation3 + $0x8] sm:$0xff]
          %v3914 = vld [vmem:[#allocation3 + $0x10] sm:$0xff]
          %v3915 = vld [vmem:[#allocation3 + $0x18] sm:$0xff]
          %v3916 = vld [vmem:[#allocation3 + $0x20] sm:$0xff]
          %v3917 = vld [vmem:[#allocation3 + $0x28] sm:$0xff]
          %v3918 = vld [vmem:[#allocation3 + $0x30] sm:$0xff]
          %v3919 = vld [vmem:[#allocation3 + $0x38] sm:$0xff]
          %v3920 = vld [vmem:[#allocation3 + $0x40] sm:$0xff]
          %v3921 = vld [vmem:[#allocation3 + $0x48] sm:$0xff]
          %v3922 = vld [vmem:[#allocation3 + $0x50] sm:$0xff]
          %v3923 = vld [vmem:[#allocation3 + $0x58] sm:$0xff]
          %v3924 = vld [vmem:[#allocation3 + $0x60] sm:$0xff]
          %v3925 = vld [vmem:[#allocation3 + $0x68] sm:$0xff]
          %v3926 = vld [vmem:[#allocation3 + $0x70] sm:$0xff]
          %v3927 = vld [vmem:[#allocation3 + $0x78] sm:$0xff]
          %v3928 = vld [vmem:[#allocation3 + $0x80] sm:$0xff]
          %v3929 = vld [vmem:[#allocation3 + $0x88] sm:$0xff]
          %v3930 = vld [vmem:[#allocation3 + $0x90] sm:$0xff]
          %v3931 = vld [vmem:[#allocation3 + $0x98] sm:$0xff]
          %v3932 = vld [vmem:[#allocation3 + $0xa0] sm:$0xff]
          %v3933 = vld [vmem:[#allocation3 + $0xa8] sm:$0xff]
          %v3934 = vld [vmem:[#allocation3 + $0xb0] sm:$0xff]
          %v3935 = vld [vmem:[#allocation3 + $0xb8] sm:$0xff]
          %v3936 = vld [vmem:[#allocation3 + $0xc0] sm:$0xff]
          %v3937 = vld [vmem:[#allocation3 + $0xc8] sm:$0xff]
          %v3938 = vld [vmem:[#allocation3 + $0xd0] sm:$0xff]
          %v3939 = vld [vmem:[#allocation3 + $0xd8] sm:$0xff]
          %v3940 = vld [vmem:[#allocation3 + $0xe0] sm:$0xff]
          %v3941 = vld [vmem:[#allocation3 + $0xe8] sm:$0xff]
          %v3942 = vld [vmem:[#allocation3 + $0xf0] sm:$0xff]
          %v3943 = vld [vmem:[#allocation3 + $0xf8] sm:$0xff]
          %v3944 = vld [vmem:[#allocation3 + $0x100] sm:$0xff]
          %v3945 = vld [vmem:[#allocation3 + $0x108] sm:$0xff]
          %v3946 = vld [vmem:[#allocation3 + $0x110] sm:$0xff]
          %v3947 = vld [vmem:[#allocation3 + $0x118] sm:$0xff]
          %v3948 = vpack.c.bf16 %v3913, %v3912
          %v3949 = vpack.c.bf16 %v3915, %v3914
          %v3950 = vpack.c.bf16 %v3917, %v3916
          %v3951 = vpack.c.bf16 %v3919, %v3918
          %v3952 = vpack.c.bf16 %v3921, %v3920
          %v3953 = vpack.c.bf16 %v3923, %v3922
          %v3954 = vpack.c.bf16 %v3925, %v3924
          %v3955 = vpack.c.bf16 %v3927, %v3926
          %v3956 = vpack.c.bf16 %v3929, %v3928
          %v3957 = vpack.c.bf16 %v3931, %v3930
          %v3958 = vpack.c.bf16 %v3933, %v3932
          %v3959 = vpack.c.bf16 %v3935, %v3934
          %v3960 = vpack.c.bf16 %v3937, %v3936
          %v3961 = vpack.c.bf16 %v3939, %v3938
          %v3962 = vpack.c.bf16 %v3941, %v3940
          %v3963 = vpack.c.bf16 %v3943, %v3942
          %v3964 = vpack.c.bf16 %v3945, %v3944
          %v3965 = vpack.c.bf16 %v3947, %v3946
          %v3966 = vld [vmem:[#allocation2] sm:$0xff]
          %v3967 = vld [vmem:[#allocation2 + $0x8] sm:$0xff]
          %v3968 = vld [vmem:[#allocation2 + $0x10] sm:$0xff]
          %v3969 = vld [vmem:[#allocation2 + $0x18] sm:$0xff]
          %v3970 = vld [vmem:[#allocation2 + $0x20] sm:$0xff]
          %v3971 = vld [vmem:[#allocation2 + $0x28] sm:$0xff]
          %v3972 = vld [vmem:[#allocation2 + $0x30] sm:$0xff]
          %v3973 = vld [vmem:[#allocation2 + $0x38] sm:$0xff]
          %v3974 = vld [vmem:[#allocation2 + $0x40] sm:$0xff]
          %v3975 = vld [vmem:[#allocation2 + $0x48] sm:$0xff]
          %v3976 = vld [vmem:[#allocation2 + $0x50] sm:$0xff]
          %v3977 = vld [vmem:[#allocation2 + $0x58] sm:$0xff]
          %v3978 = vld [vmem:[#allocation2 + $0x60] sm:$0xff]
          %v3979 = vld [vmem:[#allocation2 + $0x68] sm:$0xff]
          %v3980 = vld [vmem:[#allocation2 + $0x70] sm:$0xff]
          %v3981 = vld [vmem:[#allocation2 + $0x78] sm:$0xff]
          %v3982 = vld [vmem:[#allocation2 + $0x80] sm:$0xff]
          %v3983 = vld [vmem:[#allocation2 + $0x88] sm:$0xff]
          %v3984 = vld [vmem:[#allocation2 + $0x90] sm:$0xff]
          %v3985 = vld [vmem:[#allocation2 + $0x98] sm:$0xff]
          %v3986 = vld [vmem:[#allocation2 + $0xa0] sm:$0xff]
          %v3987 = vld [vmem:[#allocation2 + $0xa8] sm:$0xff]
          %v3988 = vld [vmem:[#allocation2 + $0xb0] sm:$0xff]
          %v3989 = vld [vmem:[#allocation2 + $0xb8] sm:$0xff]
          %v3990 = vld [vmem:[#allocation2 + $0xc0] sm:$0xff]
          %v3991 = vld [vmem:[#allocation2 + $0xc8] sm:$0xff]
          %v3992 = vld [vmem:[#allocation2 + $0xd0] sm:$0xff]
          %v3993 = vld [vmem:[#allocation2 + $0xd8] sm:$0xff]
          %v3994 = vld [vmem:[#allocation2 + $0xe0] sm:$0xff]
          %v3995 = vld [vmem:[#allocation2 + $0xe8] sm:$0xff]
          %v3996 = vld [vmem:[#allocation2 + $0xf0] sm:$0xff]
          %v3997 = vld [vmem:[#allocation2 + $0xf8] sm:$0xff]
          %v3998 = vld [vmem:[#allocation2 + $0x100] sm:$0xff]
          %v3999 = vld [vmem:[#allocation2 + $0x108] sm:$0xff]
          %v4000 = vld [vmem:[#allocation2 + $0x110] sm:$0xff]
          %v4001 = vld [vmem:[#allocation2 + $0x118] sm:$0xff]
          %v4010 = vunpack.c.l.b16 %v3800
          %v4011 = vunpack.c.l.b16 %v3801
          %v4012 = vunpack.c.l.b16 %v3802
          %v4013 = vunpack.c.l.b16 %v3803
          %v4014 = vunpack.c.l.b16 %v3804
          %v4015 = vunpack.c.l.b16 %v3805
          %v4016 = vunpack.c.l.b16 %v3806
          %v4017 = vunpack.c.l.b16 %v3807
          %v4018 = vpack.c.b16 %v4011, %v4010
          %v4019 = vpack.c.b16 %v4013, %v4012
          %v4020 = vpack.c.b16 %v4015, %v4014
          %v4021 = vpack.c.b16 %v4017, %v4016
          %v4027 = vsel %vm468, %v3948, 0
          %v4030 = vsel %vm468, %v3949, 0
          %v4033 = vsel %vm468, %v3950, 0
          %v4036 = vsel %vm468, %v3951, 0
          %v4039 = vsel %vm468, %v3952, 0
          %v4042 = vsel %vm468, %v3953, 0
          %v4045 = vsel %vm468, %v3954, 0
          %v4048 = vsel %vm468, %v3955, 0
          %v4051 = vsel %vm468, %v3956, 0
          %v4054 = vsel %vm468, %v3957, 0
          %v4057 = vsel %vm468, %v3958, 0
          %v4060 = vsel %vm468, %v3959, 0
          %v4063 = vsel %vm468, %v3960, 0
          %v4066 = vsel %vm468, %v3961, 0
          %v4069 = vsel %vm468, %v3962, 0
          %v4072 = vsel %vm468, %v3963, 0
          %v4075 = vsel %vm468, %v3964, 0
          %v4078 = vsel %vm468, %v3965, 0
          %4080 = vmatpush.bf16.msra.mxu0 0
          %4081 = vmatpush.bf16.msra.mxu0 0
          %4082 = vmatpush.bf16.msra.mxu0 0
          %4083 = vmatpush.bf16.msra.mxu0 0
          %4084 = vmatpush.bf16.msra.mxu0 %v4021
          %4085 = vmatpush.bf16.msra.mxu0 %v4020
          %4086 = vmatpush.bf16.msra.mxu0 %v4019
          %4087 = vmatpush.bf16.msra.mxu0 %v4018
          %4088 = vmatmul.bf16.gmra.mxu0 %v4027
          %v4089 = vpop.f32.mrf.mxu0
          %v4090 = vadd.f32 0.0, %v4089
          %v4091 = vpop.f32.mrf.mxu0
          %v4092 = vadd.f32 0.0, %v4091
          %4093 = vmatmul.bf16.gmra.mxu0 %v4030
          %v4094 = vpop.f32.mrf.mxu0
          %v4095 = vadd.f32 0.0, %v4094
          %v4096 = vpop.f32.mrf.mxu0
          %v4097 = vadd.f32 0.0, %v4096
          %4098 = vmatmul.bf16.gmra.mxu0 %v4033
          %v4099 = vpop.f32.mrf.mxu0
          %v4100 = vadd.f32 0.0, %v4099
          %v4101 = vpop.f32.mrf.mxu0
          %v4102 = vadd.f32 0.0, %v4101
          %4103 = vmatmul.bf16.gmra.mxu0 %v4036
          %v4104 = vpop.f32.mrf.mxu0
          %v4105 = vadd.f32 0.0, %v4104
          %v4106 = vpop.f32.mrf.mxu0
          %v4107 = vadd.f32 0.0, %v4106
          %4108 = vmatmul.bf16.gmra.mxu0 %v4039
          %v4109 = vpop.f32.mrf.mxu0
          %v4110 = vadd.f32 0.0, %v4109
          %v4111 = vpop.f32.mrf.mxu0
          %v4112 = vadd.f32 0.0, %v4111
          %4113 = vmatmul.bf16.gmra.mxu0 %v4042
          %v4114 = vpop.f32.mrf.mxu0
          %v4115 = vadd.f32 0.0, %v4114
          %v4116 = vpop.f32.mrf.mxu0
          %v4117 = vadd.f32 0.0, %v4116
          %4118 = vmatmul.bf16.gmra.mxu0 %v4045
          %v4119 = vpop.f32.mrf.mxu0
          %v4120 = vadd.f32 0.0, %v4119
          %v4121 = vpop.f32.mrf.mxu0
          %v4122 = vadd.f32 0.0, %v4121
          %4123 = vmatmul.bf16.gmra.mxu0 %v4048
          %v4124 = vpop.f32.mrf.mxu0
          %v4125 = vadd.f32 0.0, %v4124
          %v4126 = vpop.f32.mrf.mxu0
          %v4127 = vadd.f32 0.0, %v4126
          %4128 = vmatmul.bf16.gmra.mxu0 %v4051
          %v4129 = vpop.f32.mrf.mxu0
          %v4130 = vadd.f32 0.0, %v4129
          %v4131 = vpop.f32.mrf.mxu0
          %v4132 = vadd.f32 0.0, %v4131
          %4133 = vmatmul.bf16.gmra.mxu0 %v4054
          %v4134 = vpop.f32.mrf.mxu0
          %v4135 = vadd.f32 0.0, %v4134
          %v4136 = vpop.f32.mrf.mxu0
          %v4137 = vadd.f32 0.0, %v4136
          %4138 = vmatmul.bf16.gmra.mxu0 %v4057
          %v4139 = vpop.f32.mrf.mxu0
          %v4140 = vadd.f32 0.0, %v4139
          %v4141 = vpop.f32.mrf.mxu0
          %v4142 = vadd.f32 0.0, %v4141
          %4143 = vmatmul.bf16.gmra.mxu0 %v4060
          %v4144 = vpop.f32.mrf.mxu0
          %v4145 = vadd.f32 0.0, %v4144
          %v4146 = vpop.f32.mrf.mxu0
          %v4147 = vadd.f32 0.0, %v4146
          %4148 = vmatmul.bf16.gmra.mxu0 %v4063
          %v4149 = vpop.f32.mrf.mxu0
          %v4150 = vadd.f32 0.0, %v4149
          %v4151 = vpop.f32.mrf.mxu0
          %v4152 = vadd.f32 0.0, %v4151
          %4153 = vmatmul.bf16.gmra.mxu0 %v4066
          %v4154 = vpop.f32.mrf.mxu0
          %v4155 = vadd.f32 0.0, %v4154
          %v4156 = vpop.f32.mrf.mxu0
          %v4157 = vadd.f32 0.0, %v4156
          %4158 = vmatmul.bf16.gmra.mxu0 %v4069
          %v4159 = vpop.f32.mrf.mxu0
          %v4160 = vadd.f32 0.0, %v4159
          %v4161 = vpop.f32.mrf.mxu0
          %v4162 = vadd.f32 0.0, %v4161
          %4163 = vmatmul.bf16.gmra.mxu0 %v4072
          %v4164 = vpop.f32.mrf.mxu0
          %v4165 = vadd.f32 0.0, %v4164
          %v4166 = vpop.f32.mrf.mxu0
          %v4167 = vadd.f32 0.0, %v4166
          %4168 = vmatmul.bf16.gmra.mxu0 %v4075
          %v4169 = vpop.f32.mrf.mxu0
          %v4170 = vadd.f32 0.0, %v4169
          %v4171 = vpop.f32.mrf.mxu0
          %v4172 = vadd.f32 0.0, %v4171
          %4173 = vmatmul.bf16.gmra.mxu0 %v4078
          %v4174 = vpop.f32.mrf.mxu0
          %v4175 = vadd.f32 0.0, %v4174
          %v4176 = vpop.f32.mrf.mxu0
          %v4177 = vadd.f32 0.0, %v4176
          %4178 = vdwg.mxu0
          %v4179 = vadd.f32 %v3966, %v4090
          %v4180 = vadd.f32 %v3967, %v4092
          %v4181 = vadd.f32 %v3968, %v4095
          %v4182 = vadd.f32 %v3969, %v4097
          %v4183 = vadd.f32 %v3970, %v4100
          %v4184 = vadd.f32 %v3971, %v4102
          %v4185 = vadd.f32 %v3972, %v4105
          %v4186 = vadd.f32 %v3973, %v4107
          %v4187 = vadd.f32 %v3974, %v4110
          %v4188 = vadd.f32 %v3975, %v4112
          %v4189 = vadd.f32 %v3976, %v4115
          %v4190 = vadd.f32 %v3977, %v4117
          %v4191 = vadd.f32 %v3978, %v4120
          %v4192 = vadd.f32 %v3979, %v4122
          %v4193 = vadd.f32 %v3980, %v4125
          %v4194 = vadd.f32 %v3981, %v4127
          %v4195 = vadd.f32 %v3982, %v4130
          %v4196 = vadd.f32 %v3983, %v4132
          %v4197 = vadd.f32 %v3984, %v4135
          %v4198 = vadd.f32 %v3985, %v4137
          %v4199 = vadd.f32 %v3986, %v4140
          %v4200 = vadd.f32 %v3987, %v4142
          %v4201 = vadd.f32 %v3988, %v4145
          %v4202 = vadd.f32 %v3989, %v4147
          %v4203 = vadd.f32 %v3990, %v4150
          %v4204 = vadd.f32 %v3991, %v4152
          %v4205 = vadd.f32 %v3992, %v4155
          %v4206 = vadd.f32 %v3993, %v4157
          %v4207 = vadd.f32 %v3994, %v4160
          %v4208 = vadd.f32 %v3995, %v4162
          %v4209 = vadd.f32 %v3996, %v4165
          %v4210 = vadd.f32 %v3997, %v4167
          %v4211 = vadd.f32 %v3998, %v4170
          %v4212 = vadd.f32 %v3999, %v4172
          %v4213 = vadd.f32 %v4000, %v4175
          %v4214 = vadd.f32 %v4001, %v4177
          %4215 = vst.msk [vmem:[#allocation2] sm:$0xff] %vm468, %v4179
          %4216 = vst.msk [vmem:[#allocation2 + $0x8] sm:$0xff] %vm468, %v4180
          %4217 = vst.msk [vmem:[#allocation2 + $0x10] sm:$0xff] %vm468, %v4181
          %4218 = vst.msk [vmem:[#allocation2 + $0x18] sm:$0xff] %vm468, %v4182
          %4219 = vst.msk [vmem:[#allocation2 + $0x20] sm:$0xff] %vm468, %v4183
          %4220 = vst.msk [vmem:[#allocation2 + $0x28] sm:$0xff] %vm468, %v4184
          %4221 = vst.msk [vmem:[#allocation2 + $0x30] sm:$0xff] %vm468, %v4185
          %4222 = vst.msk [vmem:[#allocation2 + $0x38] sm:$0xff] %vm468, %v4186
          %4223 = vst.msk [vmem:[#allocation2 + $0x40] sm:$0xff] %vm468, %v4187
          %4224 = vst.msk [vmem:[#allocation2 + $0x48] sm:$0xff] %vm468, %v4188
          %4225 = vst.msk [vmem:[#allocation2 + $0x50] sm:$0xff] %vm468, %v4189
          %4226 = vst.msk [vmem:[#allocation2 + $0x58] sm:$0xff] %vm468, %v4190
          %4227 = vst.msk [vmem:[#allocation2 + $0x60] sm:$0xff] %vm468, %v4191
          %4228 = vst.msk [vmem:[#allocation2 + $0x68] sm:$0xff] %vm468, %v4192
          %4229 = vst.msk [vmem:[#allocation2 + $0x70] sm:$0xff] %vm468, %v4193
          %4230 = vst.msk [vmem:[#allocation2 + $0x78] sm:$0xff] %vm468, %v4194
          %4231 = vst.msk [vmem:[#allocation2 + $0x80] sm:$0xff] %vm468, %v4195
          %4232 = vst.msk [vmem:[#allocation2 + $0x88] sm:$0xff] %vm468, %v4196
          %4233 = vst.msk [vmem:[#allocation2 + $0x90] sm:$0xff] %vm468, %v4197
          %4234 = vst.msk [vmem:[#allocation2 + $0x98] sm:$0xff] %vm468, %v4198
          %4235 = vst.msk [vmem:[#allocation2 + $0xa0] sm:$0xff] %vm468, %v4199
          %4236 = vst.msk [vmem:[#allocation2 + $0xa8] sm:$0xff] %vm468, %v4200
          %4237 = vst.msk [vmem:[#allocation2 + $0xb0] sm:$0xff] %vm468, %v4201
          %4238 = vst.msk [vmem:[#allocation2 + $0xb8] sm:$0xff] %vm468, %v4202
          %4239 = vst.msk [vmem:[#allocation2 + $0xc0] sm:$0xff] %vm468, %v4203
          %4240 = vst.msk [vmem:[#allocation2 + $0xc8] sm:$0xff] %vm468, %v4204
          %4241 = vst.msk [vmem:[#allocation2 + $0xd0] sm:$0xff] %vm468, %v4205
          %4242 = vst.msk [vmem:[#allocation2 + $0xd8] sm:$0xff] %vm468, %v4206
          %4243 = vst.msk [vmem:[#allocation2 + $0xe0] sm:$0xff] %vm468, %v4207
          %4244 = vst.msk [vmem:[#allocation2 + $0xe8] sm:$0xff] %vm468, %v4208
          %4245 = vst.msk [vmem:[#allocation2 + $0xf0] sm:$0xff] %vm468, %v4209
          %4246 = vst.msk [vmem:[#allocation2 + $0xf8] sm:$0xff] %vm468, %v4210
          %4247 = vst.msk [vmem:[#allocation2 + $0x100] sm:$0xff] %vm468, %v4211
          %4248 = vst.msk [vmem:[#allocation2 + $0x108] sm:$0xff] %vm468, %v4212
          %4249 = vst.msk [vmem:[#allocation2 + $0x110] sm:$0xff] %vm468, %v4213
          %4250 = vst.msk [vmem:[#allocation2 + $0x118] sm:$0xff] %vm468, %v4214
          %v4251 = vld [vmem:[#allocation3 + $0x1] sm:$0xff]
          %v4252 = vld [vmem:[#allocation3 + $0x9] sm:$0xff]
          %v4253 = vld [vmem:[#allocation3 + $0x11] sm:$0xff]
          %v4254 = vld [vmem:[#allocation3 + $0x19] sm:$0xff]
          %v4255 = vld [vmem:[#allocation3 + $0x21] sm:$0xff]
          %v4256 = vld [vmem:[#allocation3 + $0x29] sm:$0xff]
          %v4257 = vld [vmem:[#allocation3 + $0x31] sm:$0xff]
          %v4258 = vld [vmem:[#allocation3 + $0x39] sm:$0xff]
          %v4259 = vld [vmem:[#allocation3 + $0x41] sm:$0xff]
          %v4260 = vld [vmem:[#allocation3 + $0x49] sm:$0xff]
          %v4261 = vld [vmem:[#allocation3 + $0x51] sm:$0xff]
          %v4262 = vld [vmem:[#allocation3 + $0x59] sm:$0xff]
          %v4263 = vld [vmem:[#allocation3 + $0x61] sm:$0xff]
          %v4264 = vld [vmem:[#allocation3 + $0x69] sm:$0xff]
          %v4265 = vld [vmem:[#allocation3 + $0x71] sm:$0xff]
          %v4266 = vld [vmem:[#allocation3 + $0x79] sm:$0xff]
          %v4267 = vld [vmem:[#allocation3 + $0x81] sm:$0xff]
          %v4268 = vld [vmem:[#allocation3 + $0x89] sm:$0xff]
          %v4269 = vld [vmem:[#allocation3 + $0x91] sm:$0xff]
          %v4270 = vld [vmem:[#allocation3 + $0x99] sm:$0xff]
          %v4271 = vld [vmem:[#allocation3 + $0xa1] sm:$0xff]
          %v4272 = vld [vmem:[#allocation3 + $0xa9] sm:$0xff]
          %v4273 = vld [vmem:[#allocation3 + $0xb1] sm:$0xff]
          %v4274 = vld [vmem:[#allocation3 + $0xb9] sm:$0xff]
          %v4275 = vld [vmem:[#allocation3 + $0xc1] sm:$0xff]
          %v4276 = vld [vmem:[#allocation3 + $0xc9] sm:$0xff]
          %v4277 = vld [vmem:[#allocation3 + $0xd1] sm:$0xff]
          %v4278 = vld [vmem:[#allocation3 + $0xd9] sm:$0xff]
          %v4279 = vld [vmem:[#allocation3 + $0xe1] sm:$0xff]
          %v4280 = vld [vmem:[#allocation3 + $0xe9] sm:$0xff]
          %v4281 = vld [vmem:[#allocation3 + $0xf1] sm:$0xff]
          %v4282 = vld [vmem:[#allocation3 + $0xf9] sm:$0xff]
          %v4283 = vld [vmem:[#allocation3 + $0x101] sm:$0xff]
          %v4284 = vld [vmem:[#allocation3 + $0x109] sm:$0xff]
          %v4285 = vld [vmem:[#allocation3 + $0x111] sm:$0xff]
          %v4286 = vld [vmem:[#allocation3 + $0x119] sm:$0xff]
          %v4287 = vpack.c.bf16 %v4252, %v4251
          %v4288 = vpack.c.bf16 %v4254, %v4253
          %v4289 = vpack.c.bf16 %v4256, %v4255
          %v4290 = vpack.c.bf16 %v4258, %v4257
          %v4291 = vpack.c.bf16 %v4260, %v4259
          %v4292 = vpack.c.bf16 %v4262, %v4261
          %v4293 = vpack.c.bf16 %v4264, %v4263
          %v4294 = vpack.c.bf16 %v4266, %v4265
          %v4295 = vpack.c.bf16 %v4268, %v4267
          %v4296 = vpack.c.bf16 %v4270, %v4269
          %v4297 = vpack.c.bf16 %v4272, %v4271
          %v4298 = vpack.c.bf16 %v4274, %v4273
          %v4299 = vpack.c.bf16 %v4276, %v4275
          %v4300 = vpack.c.bf16 %v4278, %v4277
          %v4301 = vpack.c.bf16 %v4280, %v4279
          %v4302 = vpack.c.bf16 %v4282, %v4281
          %v4303 = vpack.c.bf16 %v4284, %v4283
          %v4304 = vpack.c.bf16 %v4286, %v4285
          %v4305 = vld [vmem:[#allocation2] sm:$0xff]
          %v4306 = vld [vmem:[#allocation2 + $0x8] sm:$0xff]
          %v4307 = vld [vmem:[#allocation2 + $0x10] sm:$0xff]
          %v4308 = vld [vmem:[#allocation2 + $0x18] sm:$0xff]
          %v4309 = vld [vmem:[#allocation2 + $0x20] sm:$0xff]
          %v4310 = vld [vmem:[#allocation2 + $0x28] sm:$0xff]
          %v4311 = vld [vmem:[#allocation2 + $0x30] sm:$0xff]
          %v4312 = vld [vmem:[#allocation2 + $0x38] sm:$0xff]
          %v4313 = vld [vmem:[#allocation2 + $0x40] sm:$0xff]
          %v4314 = vld [vmem:[#allocation2 + $0x48] sm:$0xff]
          %v4315 = vld [vmem:[#allocation2 + $0x50] sm:$0xff]
          %v4316 = vld [vmem:[#allocation2 + $0x58] sm:$0xff]
          %v4317 = vld [vmem:[#allocation2 + $0x60] sm:$0xff]
          %v4318 = vld [vmem:[#allocation2 + $0x68] sm:$0xff]
          %v4319 = vld [vmem:[#allocation2 + $0x70] sm:$0xff]
          %v4320 = vld [vmem:[#allocation2 + $0x78] sm:$0xff]
          %v4321 = vld [vmem:[#allocation2 + $0x80] sm:$0xff]
          %v4322 = vld [vmem:[#allocation2 + $0x88] sm:$0xff]
          %v4323 = vld [vmem:[#allocation2 + $0x90] sm:$0xff]
          %v4324 = vld [vmem:[#allocation2 + $0x98] sm:$0xff]
          %v4325 = vld [vmem:[#allocation2 + $0xa0] sm:$0xff]
          %v4326 = vld [vmem:[#allocation2 + $0xa8] sm:$0xff]
          %v4327 = vld [vmem:[#allocation2 + $0xb0] sm:$0xff]
          %v4328 = vld [vmem:[#allocation2 + $0xb8] sm:$0xff]
          %v4329 = vld [vmem:[#allocation2 + $0xc0] sm:$0xff]
          %v4330 = vld [vmem:[#allocation2 + $0xc8] sm:$0xff]
          %v4331 = vld [vmem:[#allocation2 + $0xd0] sm:$0xff]
          %v4332 = vld [vmem:[#allocation2 + $0xd8] sm:$0xff]
          %v4333 = vld [vmem:[#allocation2 + $0xe0] sm:$0xff]
          %v4334 = vld [vmem:[#allocation2 + $0xe8] sm:$0xff]
          %v4335 = vld [vmem:[#allocation2 + $0xf0] sm:$0xff]
          %v4336 = vld [vmem:[#allocation2 + $0xf8] sm:$0xff]
          %v4337 = vld [vmem:[#allocation2 + $0x100] sm:$0xff]
          %v4338 = vld [vmem:[#allocation2 + $0x108] sm:$0xff]
          %v4339 = vld [vmem:[#allocation2 + $0x110] sm:$0xff]
          %v4340 = vld [vmem:[#allocation2 + $0x118] sm:$0xff]
          %v4349 = vunpack.c.l.b16 %v3808
          %v4350 = vunpack.c.l.b16 %v3809
          %v4351 = vunpack.c.l.b16 %v3810
          %v4352 = vunpack.c.l.b16 %v3811
          %v4353 = vunpack.c.l.b16 %v3812
          %v4354 = vunpack.c.l.b16 %v3813
          %v4355 = vunpack.c.l.b16 %v3814
          %v4356 = vunpack.c.l.b16 %v3815
          %v4357 = vpack.c.b16 %v4350, %v4349
          %v4358 = vpack.c.b16 %v4352, %v4351
          %v4359 = vpack.c.b16 %v4354, %v4353
          %v4360 = vpack.c.b16 %v4356, %v4355
          %v4366 = vsel %vm468, %v4287, 0
          %v4369 = vsel %vm468, %v4288, 0
          %v4372 = vsel %vm468, %v4289, 0
          %v4375 = vsel %vm468, %v4290, 0
          %v4378 = vsel %vm468, %v4291, 0
          %v4381 = vsel %vm468, %v4292, 0
          %v4384 = vsel %vm468, %v4293, 0
          %v4387 = vsel %vm468, %v4294, 0
          %v4390 = vsel %vm468, %v4295, 0
          %v4393 = vsel %vm468, %v4296, 0
          %v4396 = vsel %vm468, %v4297, 0
          %v4399 = vsel %vm468, %v4298, 0
          %v4402 = vsel %vm468, %v4299, 0
          %v4405 = vsel %vm468, %v4300, 0
          %v4408 = vsel %vm468, %v4301, 0
          %v4411 = vsel %vm468, %v4302, 0
          %v4414 = vsel %vm468, %v4303, 0
          %v4417 = vsel %vm468, %v4304, 0
          %4419 = vmatpush.bf16.msra.mxu0 0
          %4420 = vmatpush.bf16.msra.mxu0 0
          %4421 = vmatpush.bf16.msra.mxu0 0
          %4422 = vmatpush.bf16.msra.mxu0 0
          %4423 = vmatpush.bf16.msra.mxu0 %v4360
          %4424 = vmatpush.bf16.msra.mxu0 %v4359
          %4425 = vmatpush.bf16.msra.mxu0 %v4358
          %4426 = vmatpush.bf16.msra.mxu0 %v4357
          %4427 = vmatmul.bf16.gmra.mxu0 %v4366
          %v4428 = vpop.f32.mrf.mxu0
          %v4429 = vadd.f32 0.0, %v4428
          %v4430 = vpop.f32.mrf.mxu0
          %v4431 = vadd.f32 0.0, %v4430
          %4432 = vmatmul.bf16.gmra.mxu0 %v4369
          %v4433 = vpop.f32.mrf.mxu0
          %v4434 = vadd.f32 0.0, %v4433
          %v4435 = vpop.f32.mrf.mxu0
          %v4436 = vadd.f32 0.0, %v4435
          %4437 = vmatmul.bf16.gmra.mxu0 %v4372
          %v4438 = vpop.f32.mrf.mxu0
          %v4439 = vadd.f32 0.0, %v4438
          %v4440 = vpop.f32.mrf.mxu0
          %v4441 = vadd.f32 0.0, %v4440
          %4442 = vmatmul.bf16.gmra.mxu0 %v4375
          %v4443 = vpop.f32.mrf.mxu0
          %v4444 = vadd.f32 0.0, %v4443
          %v4445 = vpop.f32.mrf.mxu0
          %v4446 = vadd.f32 0.0, %v4445
          %4447 = vmatmul.bf16.gmra.mxu0 %v4378
          %v4448 = vpop.f32.mrf.mxu0
          %v4449 = vadd.f32 0.0, %v4448
          %v4450 = vpop.f32.mrf.mxu0
          %v4451 = vadd.f32 0.0, %v4450
          %4452 = vmatmul.bf16.gmra.mxu0 %v4381
          %v4453 = vpop.f32.mrf.mxu0
          %v4454 = vadd.f32 0.0, %v4453
          %v4455 = vpop.f32.mrf.mxu0
          %v4456 = vadd.f32 0.0, %v4455
          %4457 = vmatmul.bf16.gmra.mxu0 %v4384
          %v4458 = vpop.f32.mrf.mxu0
          %v4459 = vadd.f32 0.0, %v4458
          %v4460 = vpop.f32.mrf.mxu0
          %v4461 = vadd.f32 0.0, %v4460
          %4462 = vmatmul.bf16.gmra.mxu0 %v4387
          %v4463 = vpop.f32.mrf.mxu0
          %v4464 = vadd.f32 0.0, %v4463
          %v4465 = vpop.f32.mrf.mxu0
          %v4466 = vadd.f32 0.0, %v4465
          %4467 = vmatmul.bf16.gmra.mxu0 %v4390
          %v4468 = vpop.f32.mrf.mxu0
          %v4469 = vadd.f32 0.0, %v4468
          %v4470 = vpop.f32.mrf.mxu0
          %v4471 = vadd.f32 0.0, %v4470
          %4472 = vmatmul.bf16.gmra.mxu0 %v4393
          %v4473 = vpop.f32.mrf.mxu0
          %v4474 = vadd.f32 0.0, %v4473
          %v4475 = vpop.f32.mrf.mxu0
          %v4476 = vadd.f32 0.0, %v4475
          %4477 = vmatmul.bf16.gmra.mxu0 %v4396
          %v4478 = vpop.f32.mrf.mxu0
          %v4479 = vadd.f32 0.0, %v4478
          %v4480 = vpop.f32.mrf.mxu0
          %v4481 = vadd.f32 0.0, %v4480
          %4482 = vmatmul.bf16.gmra.mxu0 %v4399
          %v4483 = vpop.f32.mrf.mxu0
          %v4484 = vadd.f32 0.0, %v4483
          %v4485 = vpop.f32.mrf.mxu0
          %v4486 = vadd.f32 0.0, %v4485
          %4487 = vmatmul.bf16.gmra.mxu0 %v4402
          %v4488 = vpop.f32.mrf.mxu0
          %v4489 = vadd.f32 0.0, %v4488
          %v4490 = vpop.f32.mrf.mxu0
          %v4491 = vadd.f32 0.0, %v4490
          %4492 = vmatmul.bf16.gmra.mxu0 %v4405
          %v4493 = vpop.f32.mrf.mxu0
          %v4494 = vadd.f32 0.0, %v4493
          %v4495 = vpop.f32.mrf.mxu0
          %v4496 = vadd.f32 0.0, %v4495
          %4497 = vmatmul.bf16.gmra.mxu0 %v4408
          %v4498 = vpop.f32.mrf.mxu0
          %v4499 = vadd.f32 0.0, %v4498
          %v4500 = vpop.f32.mrf.mxu0
          %v4501 = vadd.f32 0.0, %v4500
          %4502 = vmatmul.bf16.gmra.mxu0 %v4411
          %v4503 = vpop.f32.mrf.mxu0
          %v4504 = vadd.f32 0.0, %v4503
          %v4505 = vpop.f32.mrf.mxu0
          %v4506 = vadd.f32 0.0, %v4505
          %4507 = vmatmul.bf16.gmra.mxu0 %v4414
          %v4508 = vpop.f32.mrf.mxu0
          %v4509 = vadd.f32 0.0, %v4508
          %v4510 = vpop.f32.mrf.mxu0
          %v4511 = vadd.f32 0.0, %v4510
          %4512 = vmatmul.bf16.gmra.mxu0 %v4417
          %v4513 = vpop.f32.mrf.mxu0
          %v4514 = vadd.f32 0.0, %v4513
          %v4515 = vpop.f32.mrf.mxu0
          %v4516 = vadd.f32 0.0, %v4515
          %4517 = vdwg.mxu0
          %v4518 = vadd.f32 %v4305, %v4429
          %v4519 = vadd.f32 %v4306, %v4431
          %v4520 = vadd.f32 %v4307, %v4434
          %v4521 = vadd.f32 %v4308, %v4436
          %v4522 = vadd.f32 %v4309, %v4439
          %v4523 = vadd.f32 %v4310, %v4441
          %v4524 = vadd.f32 %v4311, %v4444
          %v4525 = vadd.f32 %v4312, %v4446
          %v4526 = vadd.f32 %v4313, %v4449
          %v4527 = vadd.f32 %v4314, %v4451
          %v4528 = vadd.f32 %v4315, %v4454
          %v4529 = vadd.f32 %v4316, %v4456
          %v4530 = vadd.f32 %v4317, %v4459
          %v4531 = vadd.f32 %v4318, %v4461
          %v4532 = vadd.f32 %v4319, %v4464
          %v4533 = vadd.f32 %v4320, %v4466
          %v4534 = vadd.f32 %v4321, %v4469
          %v4535 = vadd.f32 %v4322, %v4471
          %v4536 = vadd.f32 %v4323, %v4474
          %v4537 = vadd.f32 %v4324, %v4476
          %v4538 = vadd.f32 %v4325, %v4479
          %v4539 = vadd.f32 %v4326, %v4481
          %v4540 = vadd.f32 %v4327, %v4484
          %v4541 = vadd.f32 %v4328, %v4486
          %v4542 = vadd.f32 %v4329, %v4489
          %v4543 = vadd.f32 %v4330, %v4491
          %v4544 = vadd.f32 %v4331, %v4494
          %v4545 = vadd.f32 %v4332, %v4496
          %v4546 = vadd.f32 %v4333, %v4499
          %v4547 = vadd.f32 %v4334, %v4501
          %v4548 = vadd.f32 %v4335, %v4504
          %v4549 = vadd.f32 %v4336, %v4506
          %v4550 = vadd.f32 %v4337, %v4509
          %v4551 = vadd.f32 %v4338, %v4511
          %v4552 = vadd.f32 %v4339, %v4514
          %v4553 = vadd.f32 %v4340, %v4516
          %4554 = vst.msk [vmem:[#allocation2] sm:$0xff] %vm468, %v4518
          %4555 = vst.msk [vmem:[#allocation2 + $0x8] sm:$0xff] %vm468, %v4519
          %4556 = vst.msk [vmem:[#allocation2 + $0x10] sm:$0xff] %vm468, %v4520
          %4557 = vst.msk [vmem:[#allocation2 + $0x18] sm:$0xff] %vm468, %v4521
          %4558 = vst.msk [vmem:[#allocation2 + $0x20] sm:$0xff] %vm468, %v4522
          %4559 = vst.msk [vmem:[#allocation2 + $0x28] sm:$0xff] %vm468, %v4523
          %4560 = vst.msk [vmem:[#allocation2 + $0x30] sm:$0xff] %vm468, %v4524
          %4561 = vst.msk [vmem:[#allocation2 + $0x38] sm:$0xff] %vm468, %v4525
          %4562 = vst.msk [vmem:[#allocation2 + $0x40] sm:$0xff] %vm468, %v4526
          %4563 = vst.msk [vmem:[#allocation2 + $0x48] sm:$0xff] %vm468, %v4527
          %4564 = vst.msk [vmem:[#allocation2 + $0x50] sm:$0xff] %vm468, %v4528
          %4565 = vst.msk [vmem:[#allocation2 + $0x58] sm:$0xff] %vm468, %v4529
          %4566 = vst.msk [vmem:[#allocation2 + $0x60] sm:$0xff] %vm468, %v4530
          %4567 = vst.msk [vmem:[#allocation2 + $0x68] sm:$0xff] %vm468, %v4531
          %4568 = vst.msk [vmem:[#allocation2 + $0x70] sm:$0xff] %vm468, %v4532
          %4569 = vst.msk [vmem:[#allocation2 + $0x78] sm:$0xff] %vm468, %v4533
          %4570 = vst.msk [vmem:[#allocation2 + $0x80] sm:$0xff] %vm468, %v4534
          %4571 = vst.msk [vmem:[#allocation2 + $0x88] sm:$0xff] %vm468, %v4535
          %4572 = vst.msk [vmem:[#allocation2 + $0x90] sm:$0xff] %vm468, %v4536
          %4573 = vst.msk [vmem:[#allocation2 + $0x98] sm:$0xff] %vm468, %v4537
          %4574 = vst.msk [vmem:[#allocation2 + $0xa0] sm:$0xff] %vm468, %v4538
          %4575 = vst.msk [vmem:[#allocation2 + $0xa8] sm:$0xff] %vm468, %v4539
          %4576 = vst.msk [vmem:[#allocation2 + $0xb0] sm:$0xff] %vm468, %v4540
          %4577 = vst.msk [vmem:[#allocation2 + $0xb8] sm:$0xff] %vm468, %v4541
          %4578 = vst.msk [vmem:[#allocation2 + $0xc0] sm:$0xff] %vm468, %v4542
          %4579 = vst.msk [vmem:[#allocation2 + $0xc8] sm:$0xff] %vm468, %v4543
          %4580 = vst.msk [vmem:[#allocation2 + $0xd0] sm:$0xff] %vm468, %v4544
          %4581 = vst.msk [vmem:[#allocation2 + $0xd8] sm:$0xff] %vm468, %v4545
          %4582 = vst.msk [vmem:[#allocation2 + $0xe0] sm:$0xff] %vm468, %v4546
          %4583 = vst.msk [vmem:[#allocation2 + $0xe8] sm:$0xff] %vm468, %v4547
          %4584 = vst.msk [vmem:[#allocation2 + $0xf0] sm:$0xff] %vm468, %v4548
          %4585 = vst.msk [vmem:[#allocation2 + $0xf8] sm:$0xff] %vm468, %v4549
          %4586 = vst.msk [vmem:[#allocation2 + $0x100] sm:$0xff] %vm468, %v4550
          %4587 = vst.msk [vmem:[#allocation2 + $0x108] sm:$0xff] %vm468, %v4551
          %4588 = vst.msk [vmem:[#allocation2 + $0x110] sm:$0xff] %vm468, %v4552
          %4589 = vst.msk [vmem:[#allocation2 + $0x118] sm:$0xff] %vm468, %v4553
          %v4590 = vld [vmem:[#allocation3 + $0x2] sm:$0xff]
          %v4591 = vld [vmem:[#allocation3 + $0xa] sm:$0xff]
          %v4592 = vld [vmem:[#allocation3 + $0x12] sm:$0xff]
          %v4593 = vld [vmem:[#allocation3 + $0x1a] sm:$0xff]
          %v4594 = vld [vmem:[#allocation3 + $0x22] sm:$0xff]
          %v4595 = vld [vmem:[#allocation3 + $0x2a] sm:$0xff]
          %v4596 = vld [vmem:[#allocation3 + $0x32] sm:$0xff]
          %v4597 = vld [vmem:[#allocation3 + $0x3a] sm:$0xff]
          %v4598 = vld [vmem:[#allocation3 + $0x42] sm:$0xff]
          %v4599 = vld [vmem:[#allocation3 + $0x4a] sm:$0xff]
          %v4600 = vld [vmem:[#allocation3 + $0x52] sm:$0xff]
          %v4601 = vld [vmem:[#allocation3 + $0x5a] sm:$0xff]
          %v4602 = vld [vmem:[#allocation3 + $0x62] sm:$0xff]
          %v4603 = vld [vmem:[#allocation3 + $0x6a] sm:$0xff]
          %v4604 = vld [vmem:[#allocation3 + $0x72] sm:$0xff]
          %v4605 = vld [vmem:[#allocation3 + $0x7a] sm:$0xff]
          %v4606 = vld [vmem:[#allocation3 + $0x82] sm:$0xff]
          %v4607 = vld [vmem:[#allocation3 + $0x8a] sm:$0xff]
          %v4608 = vld [vmem:[#allocation3 + $0x92] sm:$0xff]
          %v4609 = vld [vmem:[#allocation3 + $0x9a] sm:$0xff]
          %v4610 = vld [vmem:[#allocation3 + $0xa2] sm:$0xff]
          %v4611 = vld [vmem:[#allocation3 + $0xaa] sm:$0xff]
          %v4612 = vld [vmem:[#allocation3 + $0xb2] sm:$0xff]
          %v4613 = vld [vmem:[#allocation3 + $0xba] sm:$0xff]
          %v4614 = vld [vmem:[#allocation3 + $0xc2] sm:$0xff]
          %v4615 = vld [vmem:[#allocation3 + $0xca] sm:$0xff]
          %v4616 = vld [vmem:[#allocation3 + $0xd2] sm:$0xff]
          %v4617 = vld [vmem:[#allocation3 + $0xda] sm:$0xff]
          %v4618 = vld [vmem:[#allocation3 + $0xe2] sm:$0xff]
          %v4619 = vld [vmem:[#allocation3 + $0xea] sm:$0xff]
          %v4620 = vld [vmem:[#allocation3 + $0xf2] sm:$0xff]
          %v4621 = vld [vmem:[#allocation3 + $0xfa] sm:$0xff]
          %v4622 = vld [vmem:[#allocation3 + $0x102] sm:$0xff]
          %v4623 = vld [vmem:[#allocation3 + $0x10a] sm:$0xff]
          %v4624 = vld [vmem:[#allocation3 + $0x112] sm:$0xff]
          %v4625 = vld [vmem:[#allocation3 + $0x11a] sm:$0xff]
          %v4626 = vpack.c.bf16 %v4591, %v4590
          %v4627 = vpack.c.bf16 %v4593, %v4592
          %v4628 = vpack.c.bf16 %v4595, %v4594
          %v4629 = vpack.c.bf16 %v4597, %v4596
          %v4630 = vpack.c.bf16 %v4599, %v4598
          %v4631 = vpack.c.bf16 %v4601, %v4600
          %v4632 = vpack.c.bf16 %v4603, %v4602
          %v4633 = vpack.c.bf16 %v4605, %v4604
          %v4634 = vpack.c.bf16 %v4607, %v4606
          %v4635 = vpack.c.bf16 %v4609, %v4608
          %v4636 = vpack.c.bf16 %v4611, %v4610
          %v4637 = vpack.c.bf16 %v4613, %v4612
          %v4638 = vpack.c.bf16 %v4615, %v4614
          %v4639 = vpack.c.bf16 %v4617, %v4616
          %v4640 = vpack.c.bf16 %v4619, %v4618
          %v4641 = vpack.c.bf16 %v4621, %v4620
          %v4642 = vpack.c.bf16 %v4623, %v4622
          %v4643 = vpack.c.bf16 %v4625, %v4624
          %v4644 = vld [vmem:[#allocation2] sm:$0xff]
          %v4645 = vld [vmem:[#allocation2 + $0x8] sm:$0xff]
          %v4646 = vld [vmem:[#allocation2 + $0x10] sm:$0xff]
          %v4647 = vld [vmem:[#allocation2 + $0x18] sm:$0xff]
          %v4648 = vld [vmem:[#allocation2 + $0x20] sm:$0xff]
          %v4649 = vld [vmem:[#allocation2 + $0x28] sm:$0xff]
          %v4650 = vld [vmem:[#allocation2 + $0x30] sm:$0xff]
          %v4651 = vld [vmem:[#allocation2 + $0x38] sm:$0xff]
          %v4652 = vld [vmem:[#allocation2 + $0x40] sm:$0xff]
          %v4653 = vld [vmem:[#allocation2 + $0x48] sm:$0xff]
          %v4654 = vld [vmem:[#allocation2 + $0x50] sm:$0xff]
          %v4655 = vld [vmem:[#allocation2 + $0x58] sm:$0xff]
          %v4656 = vld [vmem:[#allocation2 + $0x60] sm:$0xff]
          %v4657 = vld [vmem:[#allocation2 + $0x68] sm:$0xff]
          %v4658 = vld [vmem:[#allocation2 + $0x70] sm:$0xff]
          %v4659 = vld [vmem:[#allocation2 + $0x78] sm:$0xff]
          %v4660 = vld [vmem:[#allocation2 + $0x80] sm:$0xff]
          %v4661 = vld [vmem:[#allocation2 + $0x88] sm:$0xff]
          %v4662 = vld [vmem:[#allocation2 + $0x90] sm:$0xff]
          %v4663 = vld [vmem:[#allocation2 + $0x98] sm:$0xff]
          %v4664 = vld [vmem:[#allocation2 + $0xa0] sm:$0xff]
          %v4665 = vld [vmem:[#allocation2 + $0xa8] sm:$0xff]
          %v4666 = vld [vmem:[#allocation2 + $0xb0] sm:$0xff]
          %v4667 = vld [vmem:[#allocation2 + $0xb8] sm:$0xff]
          %v4668 = vld [vmem:[#allocation2 + $0xc0] sm:$0xff]
          %v4669 = vld [vmem:[#allocation2 + $0xc8] sm:$0xff]
          %v4670 = vld [vmem:[#allocation2 + $0xd0] sm:$0xff]
          %v4671 = vld [vmem:[#allocation2 + $0xd8] sm:$0xff]
          %v4672 = vld [vmem:[#allocation2 + $0xe0] sm:$0xff]
          %v4673 = vld [vmem:[#allocation2 + $0xe8] sm:$0xff]
          %v4674 = vld [vmem:[#allocation2 + $0xf0] sm:$0xff]
          %v4675 = vld [vmem:[#allocation2 + $0xf8] sm:$0xff]
          %v4676 = vld [vmem:[#allocation2 + $0x100] sm:$0xff]
          %v4677 = vld [vmem:[#allocation2 + $0x108] sm:$0xff]
          %v4678 = vld [vmem:[#allocation2 + $0x110] sm:$0xff]
          %v4679 = vld [vmem:[#allocation2 + $0x118] sm:$0xff]
          %v4688 = vunpack.c.l.b16 %v3816
          %v4689 = vunpack.c.l.b16 %v3817
          %v4690 = vunpack.c.l.b16 %v3818
          %v4691 = vunpack.c.l.b16 %v3819
          %v4692 = vunpack.c.l.b16 %v3820
          %v4693 = vunpack.c.l.b16 %v3821
          %v4694 = vunpack.c.l.b16 %v3822
          %v4695 = vunpack.c.l.b16 %v3823
          %v4696 = vpack.c.b16 %v4689, %v4688
          %v4697 = vpack.c.b16 %v4691, %v4690
          %v4698 = vpack.c.b16 %v4693, %v4692
          %v4699 = vpack.c.b16 %v4695, %v4694
          %v4705 = vsel %vm468, %v4626, 0
          %v4708 = vsel %vm468, %v4627, 0
          %v4711 = vsel %vm468, %v4628, 0
          %v4714 = vsel %vm468, %v4629, 0
          %v4717 = vsel %vm468, %v4630, 0
          %v4720 = vsel %vm468, %v4631, 0
          %v4723 = vsel %vm468, %v4632, 0
          %v4726 = vsel %vm468, %v4633, 0
          %v4729 = vsel %vm468, %v4634, 0
          %v4732 = vsel %vm468, %v4635, 0
          %v4735 = vsel %vm468, %v4636, 0
          %v4738 = vsel %vm468, %v4637, 0
          %v4741 = vsel %vm468, %v4638, 0
          %v4744 = vsel %vm468, %v4639, 0
          %v4747 = vsel %vm468, %v4640, 0
          %v4750 = vsel %vm468, %v4641, 0
          %v4753 = vsel %vm468, %v4642, 0
          %v4756 = vsel %vm468, %v4643, 0
          %4758 = vmatpush.bf16.msra.mxu0 0
          %4759 = vmatpush.bf16.msra.mxu0 0
          %4760 = vmatpush.bf16.msra.mxu0 0
          %4761 = vmatpush.bf16.msra.mxu0 0
          %4762 = vmatpush.bf16.msra.mxu0 %v4699
          %4763 = vmatpush.bf16.msra.mxu0 %v4698
          %4764 = vmatpush.bf16.msra.mxu0 %v4697
          %4765 = vmatpush.bf16.msra.mxu0 %v4696
          %4766 = vmatmul.bf16.gmra.mxu0 %v4705
          %v4767 = vpop.f32.mrf.mxu0
          %v4768 = vadd.f32 0.0, %v4767
          %v4769 = vpop.f32.mrf.mxu0
          %v4770 = vadd.f32 0.0, %v4769
          %4771 = vmatmul.bf16.gmra.mxu0 %v4708
          %v4772 = vpop.f32.mrf.mxu0
          %v4773 = vadd.f32 0.0, %v4772
          %v4774 = vpop.f32.mrf.mxu0
          %v4775 = vadd.f32 0.0, %v4774
          %4776 = vmatmul.bf16.gmra.mxu0 %v4711
          %v4777 = vpop.f32.mrf.mxu0
          %v4778 = vadd.f32 0.0, %v4777
          %v4779 = vpop.f32.mrf.mxu0
          %v4780 = vadd.f32 0.0, %v4779
          %4781 = vmatmul.bf16.gmra.mxu0 %v4714
          %v4782 = vpop.f32.mrf.mxu0
          %v4783 = vadd.f32 0.0, %v4782
          %v4784 = vpop.f32.mrf.mxu0
          %v4785 = vadd.f32 0.0, %v4784
          %4786 = vmatmul.bf16.gmra.mxu0 %v4717
          %v4787 = vpop.f32.mrf.mxu0
          %v4788 = vadd.f32 0.0, %v4787
          %v4789 = vpop.f32.mrf.mxu0
          %v4790 = vadd.f32 0.0, %v4789
          %4791 = vmatmul.bf16.gmra.mxu0 %v4720
          %v4792 = vpop.f32.mrf.mxu0
          %v4793 = vadd.f32 0.0, %v4792
          %v4794 = vpop.f32.mrf.mxu0
          %v4795 = vadd.f32 0.0, %v4794
          %4796 = vmatmul.bf16.gmra.mxu0 %v4723
          %v4797 = vpop.f32.mrf.mxu0
          %v4798 = vadd.f32 0.0, %v4797
          %v4799 = vpop.f32.mrf.mxu0
          %v4800 = vadd.f32 0.0, %v4799
          %4801 = vmatmul.bf16.gmra.mxu0 %v4726
          %v4802 = vpop.f32.mrf.mxu0
          %v4803 = vadd.f32 0.0, %v4802
          %v4804 = vpop.f32.mrf.mxu0
          %v4805 = vadd.f32 0.0, %v4804
          %4806 = vmatmul.bf16.gmra.mxu0 %v4729
          %v4807 = vpop.f32.mrf.mxu0
          %v4808 = vadd.f32 0.0, %v4807
          %v4809 = vpop.f32.mrf.mxu0
          %v4810 = vadd.f32 0.0, %v4809
          %4811 = vmatmul.bf16.gmra.mxu0 %v4732
          %v4812 = vpop.f32.mrf.mxu0
          %v4813 = vadd.f32 0.0, %v4812
          %v4814 = vpop.f32.mrf.mxu0
          %v4815 = vadd.f32 0.0, %v4814
          %4816 = vmatmul.bf16.gmra.mxu0 %v4735
          %v4817 = vpop.f32.mrf.mxu0
          %v4818 = vadd.f32 0.0, %v4817
          %v4819 = vpop.f32.mrf.mxu0
          %v4820 = vadd.f32 0.0, %v4819
          %4821 = vmatmul.bf16.gmra.mxu0 %v4738
          %v4822 = vpop.f32.mrf.mxu0
          %v4823 = vadd.f32 0.0, %v4822
          %v4824 = vpop.f32.mrf.mxu0
          %v4825 = vadd.f32 0.0, %v4824
          %4826 = vmatmul.bf16.gmra.mxu0 %v4741
          %v4827 = vpop.f32.mrf.mxu0
          %v4828 = vadd.f32 0.0, %v4827
          %v4829 = vpop.f32.mrf.mxu0
          %v4830 = vadd.f32 0.0, %v4829
          %4831 = vmatmul.bf16.gmra.mxu0 %v4744
          %v4832 = vpop.f32.mrf.mxu0
          %v4833 = vadd.f32 0.0, %v4832
          %v4834 = vpop.f32.mrf.mxu0
          %v4835 = vadd.f32 0.0, %v4834
          %4836 = vmatmul.bf16.gmra.mxu0 %v4747
          %v4837 = vpop.f32.mrf.mxu0
          %v4838 = vadd.f32 0.0, %v4837
          %v4839 = vpop.f32.mrf.mxu0
          %v4840 = vadd.f32 0.0, %v4839
          %4841 = vmatmul.bf16.gmra.mxu0 %v4750
          %v4842 = vpop.f32.mrf.mxu0
          %v4843 = vadd.f32 0.0, %v4842
          %v4844 = vpop.f32.mrf.mxu0
          %v4845 = vadd.f32 0.0, %v4844
          %4846 = vmatmul.bf16.gmra.mxu0 %v4753
          %v4847 = vpop.f32.mrf.mxu0
          %v4848 = vadd.f32 0.0, %v4847
          %v4849 = vpop.f32.mrf.mxu0
          %v4850 = vadd.f32 0.0, %v4849
          %4851 = vmatmul.bf16.gmra.mxu0 %v4756
          %v4852 = vpop.f32.mrf.mxu0
          %v4853 = vadd.f32 0.0, %v4852
          %v4854 = vpop.f32.mrf.mxu0
          %v4855 = vadd.f32 0.0, %v4854
          %4856 = vdwg.mxu0
          %v4857 = vadd.f32 %v4644, %v4768
          %v4858 = vadd.f32 %v4645, %v4770
          %v4859 = vadd.f32 %v4646, %v4773
          %v4860 = vadd.f32 %v4647, %v4775
          %v4861 = vadd.f32 %v4648, %v4778
          %v4862 = vadd.f32 %v4649, %v4780
          %v4863 = vadd.f32 %v4650, %v4783
          %v4864 = vadd.f32 %v4651, %v4785
          %v4865 = vadd.f32 %v4652, %v4788
          %v4866 = vadd.f32 %v4653, %v4790
          %v4867 = vadd.f32 %v4654, %v4793
          %v4868 = vadd.f32 %v4655, %v4795
          %v4869 = vadd.f32 %v4656, %v4798
          %v4870 = vadd.f32 %v4657, %v4800
          %v4871 = vadd.f32 %v4658, %v4803
          %v4872 = vadd.f32 %v4659, %v4805
          %v4873 = vadd.f32 %v4660, %v4808
          %v4874 = vadd.f32 %v4661, %v4810
          %v4875 = vadd.f32 %v4662, %v4813
          %v4876 = vadd.f32 %v4663, %v4815
          %v4877 = vadd.f32 %v4664, %v4818
          %v4878 = vadd.f32 %v4665, %v4820
          %v4879 = vadd.f32 %v4666, %v4823
          %v4880 = vadd.f32 %v4667, %v4825
          %v4881 = vadd.f32 %v4668, %v4828
          %v4882 = vadd.f32 %v4669, %v4830
          %v4883 = vadd.f32 %v4670, %v4833
          %v4884 = vadd.f32 %v4671, %v4835
          %v4885 = vadd.f32 %v4672, %v4838
          %v4886 = vadd.f32 %v4673, %v4840
          %v4887 = vadd.f32 %v4674, %v4843
          %v4888 = vadd.f32 %v4675, %v4845
          %v4889 = vadd.f32 %v4676, %v4848
          %v4890 = vadd.f32 %v4677, %v4850
          %v4891 = vadd.f32 %v4678, %v4853
          %v4892 = vadd.f32 %v4679, %v4855
          %4893 = vst.msk [vmem:[#allocation2] sm:$0xff] %vm468, %v4857
          %4894 = vst.msk [vmem:[#allocation2 + $0x8] sm:$0xff] %vm468, %v4858
          %4895 = vst.msk [vmem:[#allocation2 + $0x10] sm:$0xff] %vm468, %v4859
          %4896 = vst.msk [vmem:[#allocation2 + $0x18] sm:$0xff] %vm468, %v4860
          %4897 = vst.msk [vmem:[#allocation2 + $0x20] sm:$0xff] %vm468, %v4861
          %4898 = vst.msk [vmem:[#allocation2 + $0x28] sm:$0xff] %vm468, %v4862
          %4899 = vst.msk [vmem:[#allocation2 + $0x30] sm:$0xff] %vm468, %v4863
          %4900 = vst.msk [vmem:[#allocation2 + $0x38] sm:$0xff] %vm468, %v4864
          %4901 = vst.msk [vmem:[#allocation2 + $0x40] sm:$0xff] %vm468, %v4865
          %4902 = vst.msk [vmem:[#allocation2 + $0x48] sm:$0xff] %vm468, %v4866
          %4903 = vst.msk [vmem:[#allocation2 + $0x50] sm:$0xff] %vm468, %v4867
          %4904 = vst.msk [vmem:[#allocation2 + $0x58] sm:$0xff] %vm468, %v4868
          %4905 = vst.msk [vmem:[#allocation2 + $0x60] sm:$0xff] %vm468, %v4869
          %4906 = vst.msk [vmem:[#allocation2 + $0x68] sm:$0xff] %vm468, %v4870
          %4907 = vst.msk [vmem:[#allocation2 + $0x70] sm:$0xff] %vm468, %v4871
          %4908 = vst.msk [vmem:[#allocation2 + $0x78] sm:$0xff] %vm468, %v4872
          %4909 = vst.msk [vmem:[#allocation2 + $0x80] sm:$0xff] %vm468, %v4873
          %4910 = vst.msk [vmem:[#allocation2 + $0x88] sm:$0xff] %vm468, %v4874
          %4911 = vst.msk [vmem:[#allocation2 + $0x90] sm:$0xff] %vm468, %v4875
          %4912 = vst.msk [vmem:[#allocation2 + $0x98] sm:$0xff] %vm468, %v4876
          %4913 = vst.msk [vmem:[#allocation2 + $0xa0] sm:$0xff] %vm468, %v4877
          %4914 = vst.msk [vmem:[#allocation2 + $0xa8] sm:$0xff] %vm468, %v4878
          %4915 = vst.msk [vmem:[#allocation2 + $0xb0] sm:$0xff] %vm468, %v4879
          %4916 = vst.msk [vmem:[#allocation2 + $0xb8] sm:$0xff] %vm468, %v4880
          %4917 = vst.msk [vmem:[#allocation2 + $0xc0] sm:$0xff] %vm468, %v4881
          %4918 = vst.msk [vmem:[#allocation2 + $0xc8] sm:$0xff] %vm468, %v4882
          %4919 = vst.msk [vmem:[#allocation2 + $0xd0] sm:$0xff] %vm468, %v4883
          %4920 = vst.msk [vmem:[#allocation2 + $0xd8] sm:$0xff] %vm468, %v4884
          %4921 = vst.msk [vmem:[#allocation2 + $0xe0] sm:$0xff] %vm468, %v4885
          %4922 = vst.msk [vmem:[#allocation2 + $0xe8] sm:$0xff] %vm468, %v4886
          %4923 = vst.msk [vmem:[#allocation2 + $0xf0] sm:$0xff] %vm468, %v4887
          %4924 = vst.msk [vmem:[#allocation2 + $0xf8] sm:$0xff] %vm468, %v4888
          %4925 = vst.msk [vmem:[#allocation2 + $0x100] sm:$0xff] %vm468, %v4889
          %4926 = vst.msk [vmem:[#allocation2 + $0x108] sm:$0xff] %vm468, %v4890
          %4927 = vst.msk [vmem:[#allocation2 + $0x110] sm:$0xff] %vm468, %v4891
          %4928 = vst.msk [vmem:[#allocation2 + $0x118] sm:$0xff] %vm468, %v4892
          %v4929 = vld [vmem:[#allocation3 + $0x12] sm:$0xff]
          %v4930 = vld [vmem:[#allocation3 + $0x1a] sm:$0xff]
          %v4931 = vld [vmem:[#allocation3 + $0x22] sm:$0xff]
          %v4932 = vld [vmem:[#allocation3 + $0x2a] sm:$0xff]
          %v4933 = vld [vmem:[#allocation3 + $0x32] sm:$0xff]
          %v4934 = vld [vmem:[#allocation3 + $0x3a] sm:$0xff]
          %v4935 = vld [vmem:[#allocation3 + $0x42] sm:$0xff]
          %v4936 = vld [vmem:[#allocation3 + $0x4a] sm:$0xff]
          %v4937 = vld [vmem:[#allocation3 + $0x52] sm:$0xff]
          %v4938 = vld [vmem:[#allocation3 + $0x5a] sm:$0xff]
          %v4939 = vld [vmem:[#allocation3 + $0x62] sm:$0xff]
          %v4940 = vld [vmem:[#allocation3 + $0x6a] sm:$0xff]
          %v4941 = vld [vmem:[#allocation3 + $0x72] sm:$0xff]
          %v4942 = vld [vmem:[#allocation3 + $0x7a] sm:$0xff]
          %v4943 = vld [vmem:[#allocation3 + $0x82] sm:$0xff]
          %v4944 = vld [vmem:[#allocation3 + $0x8a] sm:$0xff]
          %v4945 = vld [vmem:[#allocation3 + $0x92] sm:$0xff]
          %v4946 = vld [vmem:[#allocation3 + $0x9a] sm:$0xff]
          %v4947 = vld [vmem:[#allocation3 + $0xa2] sm:$0xff]
          %v4948 = vld [vmem:[#allocation3 + $0xaa] sm:$0xff]
          %v4949 = vld [vmem:[#allocation3 + $0xb2] sm:$0xff]
          %v4950 = vld [vmem:[#allocation3 + $0xba] sm:$0xff]
          %v4951 = vld [vmem:[#allocation3 + $0xc2] sm:$0xff]
          %v4952 = vld [vmem:[#allocation3 + $0xca] sm:$0xff]
          %v4953 = vld [vmem:[#allocation3 + $0xd2] sm:$0xff]
          %v4954 = vld [vmem:[#allocation3 + $0xda] sm:$0xff]
          %v4955 = vld [vmem:[#allocation3 + $0xe2] sm:$0xff]
          %v4956 = vld [vmem:[#allocation3 + $0xea] sm:$0xff]
          %v4957 = vld [vmem:[#allocation3 + $0xf2] sm:$0xff]
          %v4958 = vld [vmem:[#allocation3 + $0xfa] sm:$0xff]
          %v4959 = vld [vmem:[#allocation3 + $0x102] sm:$0xff]
          %v4960 = vld [vmem:[#allocation3 + $0x10a] sm:$0xff]
          %v4961 = vld [vmem:[#allocation3 + $0x112] sm:$0xff]
          %v4962 = vld [vmem:[#allocation3 + $0x11a] sm:$0xff]
          %v4963 = vld [vmem:[#allocation3 + $0x122] sm:$0xff]
          %v4964 = vld [vmem:[#allocation3 + $0x12a] sm:$0xff]
          %v4965 = vpack.c.bf16 %v4930, %v4929
          %v4966 = vpack.c.bf16 %v4932, %v4931
          %v4967 = vpack.c.bf16 %v4934, %v4933
          %v4968 = vpack.c.bf16 %v4936, %v4935
          %v4969 = vpack.c.bf16 %v4938, %v4937
          %v4970 = vpack.c.bf16 %v4940, %v4939
          %v4971 = vpack.c.bf16 %v4942, %v4941
          %v4972 = vpack.c.bf16 %v4944, %v4943
          %v4973 = vpack.c.bf16 %v4946, %v4945
          %v4974 = vpack.c.bf16 %v4948, %v4947
          %v4975 = vpack.c.bf16 %v4950, %v4949
          %v4976 = vpack.c.bf16 %v4952, %v4951
          %v4977 = vpack.c.bf16 %v4954, %v4953
          %v4978 = vpack.c.bf16 %v4956, %v4955
          %v4979 = vpack.c.bf16 %v4958, %v4957
          %v4980 = vpack.c.bf16 %v4960, %v4959
          %v4981 = vpack.c.bf16 %v4962, %v4961
          %v4982 = vpack.c.bf16 %v4964, %v4963
          %v4983 = vld [vmem:[#allocation2] sm:$0xff]
          %v4984 = vld [vmem:[#allocation2 + $0x8] sm:$0xff]
          %v4985 = vld [vmem:[#allocation2 + $0x10] sm:$0xff]
          %v4986 = vld [vmem:[#allocation2 + $0x18] sm:$0xff]
          %v4987 = vld [vmem:[#allocation2 + $0x20] sm:$0xff]
          %v4988 = vld [vmem:[#allocation2 + $0x28] sm:$0xff]
          %v4989 = vld [vmem:[#allocation2 + $0x30] sm:$0xff]
          %v4990 = vld [vmem:[#allocation2 + $0x38] sm:$0xff]
          %v4991 = vld [vmem:[#allocation2 + $0x40] sm:$0xff]
          %v4992 = vld [vmem:[#allocation2 + $0x48] sm:$0xff]
          %v4993 = vld [vmem:[#allocation2 + $0x50] sm:$0xff]
          %v4994 = vld [vmem:[#allocation2 + $0x58] sm:$0xff]
          %v4995 = vld [vmem:[#allocation2 + $0x60] sm:$0xff]
          %v4996 = vld [vmem:[#allocation2 + $0x68] sm:$0xff]
          %v4997 = vld [vmem:[#allocation2 + $0x70] sm:$0xff]
          %v4998 = vld [vmem:[#allocation2 + $0x78] sm:$0xff]
          %v4999 = vld [vmem:[#allocation2 + $0x80] sm:$0xff]
          %v5000 = vld [vmem:[#allocation2 + $0x88] sm:$0xff]
          %v5001 = vld [vmem:[#allocation2 + $0x90] sm:$0xff]
          %v5002 = vld [vmem:[#allocation2 + $0x98] sm:$0xff]
          %v5003 = vld [vmem:[#allocation2 + $0xa0] sm:$0xff]
          %v5004 = vld [vmem:[#allocation2 + $0xa8] sm:$0xff]
          %v5005 = vld [vmem:[#allocation2 + $0xb0] sm:$0xff]
          %v5006 = vld [vmem:[#allocation2 + $0xb8] sm:$0xff]
          %v5007 = vld [vmem:[#allocation2 + $0xc0] sm:$0xff]
          %v5008 = vld [vmem:[#allocation2 + $0xc8] sm:$0xff]
          %v5009 = vld [vmem:[#allocation2 + $0xd0] sm:$0xff]
          %v5010 = vld [vmem:[#allocation2 + $0xd8] sm:$0xff]
          %v5011 = vld [vmem:[#allocation2 + $0xe0] sm:$0xff]
          %v5012 = vld [vmem:[#allocation2 + $0xe8] sm:$0xff]
          %v5013 = vld [vmem:[#allocation2 + $0xf0] sm:$0xff]
          %v5014 = vld [vmem:[#allocation2 + $0xf8] sm:$0xff]
          %v5015 = vld [vmem:[#allocation2 + $0x100] sm:$0xff]
          %v5016 = vld [vmem:[#allocation2 + $0x108] sm:$0xff]
          %v5017 = vld [vmem:[#allocation2 + $0x110] sm:$0xff]
          %v5018 = vld [vmem:[#allocation2 + $0x118] sm:$0xff]
          %v5027 = vunpack.c.l.b16 %v3824
          %v5028 = vunpack.c.l.b16 %v3825
          %v5029 = vunpack.c.l.b16 %v3826
          %v5030 = vunpack.c.l.b16 %v3827
          %v5031 = vunpack.c.l.b16 %v3828
          %v5032 = vunpack.c.l.b16 %v3829
          %v5033 = vunpack.c.l.b16 %v3830
          %v5034 = vunpack.c.l.b16 %v3831
          %v5035 = vpack.c.b16 %v5028, %v5027
          %v5036 = vpack.c.b16 %v5030, %v5029
          %v5037 = vpack.c.b16 %v5032, %v5031
          %v5038 = vpack.c.b16 %v5034, %v5033
          %v5044 = vsel %vm468, %v4965, 0
          %v5047 = vsel %vm468, %v4966, 0
          %v5050 = vsel %vm468, %v4967, 0
          %v5053 = vsel %vm468, %v4968, 0
          %v5056 = vsel %vm468, %v4969, 0
          %v5059 = vsel %vm468, %v4970, 0
          %v5062 = vsel %vm468, %v4971, 0
          %v5065 = vsel %vm468, %v4972, 0
          %v5068 = vsel %vm468, %v4973, 0
          %v5071 = vsel %vm468, %v4974, 0
          %v5074 = vsel %vm468, %v4975, 0
          %v5077 = vsel %vm468, %v4976, 0
          %v5080 = vsel %vm468, %v4977, 0
          %v5083 = vsel %vm468, %v4978, 0
          %v5086 = vsel %vm468, %v4979, 0
          %v5089 = vsel %vm468, %v4980, 0
          %v5092 = vsel %vm468, %v4981, 0
          %v5095 = vsel %vm468, %v4982, 0
          %5097 = vmatpush.bf16.msra.mxu0 0
          %5098 = vmatpush.bf16.msra.mxu0 0
          %5099 = vmatpush.bf16.msra.mxu0 0
          %5100 = vmatpush.bf16.msra.mxu0 0
          %5101 = vmatpush.bf16.msra.mxu0 %v5038
          %5102 = vmatpush.bf16.msra.mxu0 %v5037
          %5103 = vmatpush.bf16.msra.mxu0 %v5036
          %5104 = vmatpush.bf16.msra.mxu0 %v5035
          %5105 = vmatmul.bf16.gmra.mxu0 %v5044
          %v5106 = vpop.f32.mrf.mxu0
          %v5107 = vadd.f32 0.0, %v5106
          %v5108 = vpop.f32.mrf.mxu0
          %v5109 = vadd.f32 0.0, %v5108
          %5110 = vmatmul.bf16.gmra.mxu0 %v5047
          %v5111 = vpop.f32.mrf.mxu0
          %v5112 = vadd.f32 0.0, %v5111
          %v5113 = vpop.f32.mrf.mxu0
          %v5114 = vadd.f32 0.0, %v5113
          %5115 = vmatmul.bf16.gmra.mxu0 %v5050
          %v5116 = vpop.f32.mrf.mxu0
          %v5117 = vadd.f32 0.0, %v5116
          %v5118 = vpop.f32.mrf.mxu0
          %v5119 = vadd.f32 0.0, %v5118
          %5120 = vmatmul.bf16.gmra.mxu0 %v5053
          %v5121 = vpop.f32.mrf.mxu0
          %v5122 = vadd.f32 0.0, %v5121
          %v5123 = vpop.f32.mrf.mxu0
          %v5124 = vadd.f32 0.0, %v5123
          %5125 = vmatmul.bf16.gmra.mxu0 %v5056
          %v5126 = vpop.f32.mrf.mxu0
          %v5127 = vadd.f32 0.0, %v5126
          %v5128 = vpop.f32.mrf.mxu0
          %v5129 = vadd.f32 0.0, %v5128
          %5130 = vmatmul.bf16.gmra.mxu0 %v5059
          %v5131 = vpop.f32.mrf.mxu0
          %v5132 = vadd.f32 0.0, %v5131
          %v5133 = vpop.f32.mrf.mxu0
          %v5134 = vadd.f32 0.0, %v5133
          %5135 = vmatmul.bf16.gmra.mxu0 %v5062
          %v5136 = vpop.f32.mrf.mxu0
          %v5137 = vadd.f32 0.0, %v5136
          %v5138 = vpop.f32.mrf.mxu0
          %v5139 = vadd.f32 0.0, %v5138
          %5140 = vmatmul.bf16.gmra.mxu0 %v5065
          %v5141 = vpop.f32.mrf.mxu0
          %v5142 = vadd.f32 0.0, %v5141
          %v5143 = vpop.f32.mrf.mxu0
          %v5144 = vadd.f32 0.0, %v5143
          %5145 = vmatmul.bf16.gmra.mxu0 %v5068
          %v5146 = vpop.f32.mrf.mxu0
          %v5147 = vadd.f32 0.0, %v5146
          %v5148 = vpop.f32.mrf.mxu0
          %v5149 = vadd.f32 0.0, %v5148
          %5150 = vmatmul.bf16.gmra.mxu0 %v5071
          %v5151 = vpop.f32.mrf.mxu0
          %v5152 = vadd.f32 0.0, %v5151
          %v5153 = vpop.f32.mrf.mxu0
          %v5154 = vadd.f32 0.0, %v5153
          %5155 = vmatmul.bf16.gmra.mxu0 %v5074
          %v5156 = vpop.f32.mrf.mxu0
          %v5157 = vadd.f32 0.0, %v5156
          %v5158 = vpop.f32.mrf.mxu0
          %v5159 = vadd.f32 0.0, %v5158
          %5160 = vmatmul.bf16.gmra.mxu0 %v5077
          %v5161 = vpop.f32.mrf.mxu0
          %v5162 = vadd.f32 0.0, %v5161
          %v5163 = vpop.f32.mrf.mxu0
          %v5164 = vadd.f32 0.0, %v5163
          %5165 = vmatmul.bf16.gmra.mxu0 %v5080
          %v5166 = vpop.f32.mrf.mxu0
          %v5167 = vadd.f32 0.0, %v5166
          %v5168 = vpop.f32.mrf.mxu0
          %v5169 = vadd.f32 0.0, %v5168
          %5170 = vmatmul.bf16.gmra.mxu0 %v5083
          %v5171 = vpop.f32.mrf.mxu0
          %v5172 = vadd.f32 0.0, %v5171
          %v5173 = vpop.f32.mrf.mxu0
          %v5174 = vadd.f32 0.0, %v5173
          %5175 = vmatmul.bf16.gmra.mxu0 %v5086
          %v5176 = vpop.f32.mrf.mxu0
          %v5177 = vadd.f32 0.0, %v5176
          %v5178 = vpop.f32.mrf.mxu0
          %v5179 = vadd.f32 0.0, %v5178
          %5180 = vmatmul.bf16.gmra.mxu0 %v5089
          %v5181 = vpop.f32.mrf.mxu0
          %v5182 = vadd.f32 0.0, %v5181
          %v5183 = vpop.f32.mrf.mxu0
          %v5184 = vadd.f32 0.0, %v5183
          %5185 = vmatmul.bf16.gmra.mxu0 %v5092
          %v5186 = vpop.f32.mrf.mxu0
          %v5187 = vadd.f32 0.0, %v5186
          %v5188 = vpop.f32.mrf.mxu0
          %v5189 = vadd.f32 0.0, %v5188
          %5190 = vmatmul.bf16.gmra.mxu0 %v5095
          %v5191 = vpop.f32.mrf.mxu0
          %v5192 = vadd.f32 0.0, %v5191
          %v5193 = vpop.f32.mrf.mxu0
          %v5194 = vadd.f32 0.0, %v5193
          %5195 = vdwg.mxu0
          %v5196 = vadd.f32 %v4983, %v5107
          %v5197 = vadd.f32 %v4984, %v5109
          %v5198 = vadd.f32 %v4985, %v5112
          %v5199 = vadd.f32 %v4986, %v5114
          %v5200 = vadd.f32 %v4987, %v5117
          %v5201 = vadd.f32 %v4988, %v5119
          %v5202 = vadd.f32 %v4989, %v5122
          %v5203 = vadd.f32 %v4990, %v5124
          %v5204 = vadd.f32 %v4991, %v5127
          %v5205 = vadd.f32 %v4992, %v5129
          %v5206 = vadd.f32 %v4993, %v5132
          %v5207 = vadd.f32 %v4994, %v5134
          %v5208 = vadd.f32 %v4995, %v5137
          %v5209 = vadd.f32 %v4996, %v5139
          %v5210 = vadd.f32 %v4997, %v5142
          %v5211 = vadd.f32 %v4998, %v5144
          %v5212 = vadd.f32 %v4999, %v5147
          %v5213 = vadd.f32 %v5000, %v5149
          %v5214 = vadd.f32 %v5001, %v5152
          %v5215 = vadd.f32 %v5002, %v5154
          %v5216 = vadd.f32 %v5003, %v5157
          %v5217 = vadd.f32 %v5004, %v5159
          %v5218 = vadd.f32 %v5005, %v5162
          %v5219 = vadd.f32 %v5006, %v5164
          %v5220 = vadd.f32 %v5007, %v5167
          %v5221 = vadd.f32 %v5008, %v5169
          %v5222 = vadd.f32 %v5009, %v5172
          %v5223 = vadd.f32 %v5010, %v5174
          %v5224 = vadd.f32 %v5011, %v5177
          %v5225 = vadd.f32 %v5012, %v5179
          %v5226 = vadd.f32 %v5013, %v5182
          %v5227 = vadd.f32 %v5014, %v5184
          %v5228 = vadd.f32 %v5015, %v5187
          %v5229 = vadd.f32 %v5016, %v5189
          %v5230 = vadd.f32 %v5017, %v5192
          %v5231 = vadd.f32 %v5018, %v5194
          %5232 = vst.msk [vmem:[#allocation2] sm:$0xff] %vm468, %v5196
          %5233 = vst.msk [vmem:[#allocation2 + $0x8] sm:$0xff] %vm468, %v5197
          %5234 = vst.msk [vmem:[#allocation2 + $0x10] sm:$0xff] %vm468, %v5198
          %5235 = vst.msk [vmem:[#allocation2 + $0x18] sm:$0xff] %vm468, %v5199
          %5236 = vst.msk [vmem:[#allocation2 + $0x20] sm:$0xff] %vm468, %v5200
          %5237 = vst.msk [vmem:[#allocation2 + $0x28] sm:$0xff] %vm468, %v5201
          %5238 = vst.msk [vmem:[#allocation2 + $0x30] sm:$0xff] %vm468, %v5202
          %5239 = vst.msk [vmem:[#allocation2 + $0x38] sm:$0xff] %vm468, %v5203
          %5240 = vst.msk [vmem:[#allocation2 + $0x40] sm:$0xff] %vm468, %v5204
          %5241 = vst.msk [vmem:[#allocation2 + $0x48] sm:$0xff] %vm468, %v5205
          %5242 = vst.msk [vmem:[#allocation2 + $0x50] sm:$0xff] %vm468, %v5206
          %5243 = vst.msk [vmem:[#allocation2 + $0x58] sm:$0xff] %vm468, %v5207
          %5244 = vst.msk [vmem:[#allocation2 + $0x60] sm:$0xff] %vm468, %v5208
          %5245 = vst.msk [vmem:[#allocation2 + $0x68] sm:$0xff] %vm468, %v5209
          %5246 = vst.msk [vmem:[#allocation2 + $0x70] sm:$0xff] %vm468, %v5210
          %5247 = vst.msk [vmem:[#allocation2 + $0x78] sm:$0xff] %vm468, %v5211
          %5248 = vst.msk [vmem:[#allocation2 + $0x80] sm:$0xff] %vm468, %v5212
          %5249 = vst.msk [vmem:[#allocation2 + $0x88] sm:$0xff] %vm468, %v5213
          %5250 = vst.msk [vmem:[#allocation2 + $0x90] sm:$0xff] %vm468, %v5214
          %5251 = vst.msk [vmem:[#allocation2 + $0x98] sm:$0xff] %vm468, %v5215
          %5252 = vst.msk [vmem:[#allocation2 + $0xa0] sm:$0xff] %vm468, %v5216
          %5253 = vst.msk [vmem:[#allocation2 + $0xa8] sm:$0xff] %vm468, %v5217
          %5254 = vst.msk [vmem:[#allocation2 + $0xb0] sm:$0xff] %vm468, %v5218
          %5255 = vst.msk [vmem:[#allocation2 + $0xb8] sm:$0xff] %vm468, %v5219
          %5256 = vst.msk [vmem:[#allocation2 + $0xc0] sm:$0xff] %vm468, %v5220
          %5257 = vst.msk [vmem:[#allocation2 + $0xc8] sm:$0xff] %vm468, %v5221
          %5258 = vst.msk [vmem:[#allocation2 + $0xd0] sm:$0xff] %vm468, %v5222
          %5259 = vst.msk [vmem:[#allocation2 + $0xd8] sm:$0xff] %vm468, %v5223
          %5260 = vst.msk [vmem:[#allocation2 + $0xe0] sm:$0xff] %vm468, %v5224
          %5261 = vst.msk [vmem:[#allocation2 + $0xe8] sm:$0xff] %vm468, %v5225
          %5262 = vst.msk [vmem:[#allocation2 + $0xf0] sm:$0xff] %vm468, %v5226
          %5263 = vst.msk [vmem:[#allocation2 + $0xf8] sm:$0xff] %vm468, %v5227
          %5264 = vst.msk [vmem:[#allocation2 + $0x100] sm:$0xff] %vm468, %v5228
          %5265 = vst.msk [vmem:[#allocation2 + $0x108] sm:$0xff] %vm468, %v5229
          %5266 = vst.msk [vmem:[#allocation2 + $0x110] sm:$0xff] %vm468, %v5230
          %5267 = vst.msk [vmem:[#allocation2 + $0x118] sm:$0xff] %vm468, %v5231
          %v5268 = vld [vmem:[#allocation3 + $0x13] sm:$0xff]
          %v5269 = vld [vmem:[#allocation3 + $0x1b] sm:$0xff]
          %v5270 = vld [vmem:[#allocation3 + $0x23] sm:$0xff]
          %v5271 = vld [vmem:[#allocation3 + $0x2b] sm:$0xff]
          %v5272 = vld [vmem:[#allocation3 + $0x33] sm:$0xff]
          %v5273 = vld [vmem:[#allocation3 + $0x3b] sm:$0xff]
          %v5274 = vld [vmem:[#allocation3 + $0x43] sm:$0xff]
          %v5275 = vld [vmem:[#allocation3 + $0x4b] sm:$0xff]
          %v5276 = vld [vmem:[#allocation3 + $0x53] sm:$0xff]
          %v5277 = vld [vmem:[#allocation3 + $0x5b] sm:$0xff]
          %v5278 = vld [vmem:[#allocation3 + $0x63] sm:$0xff]
          %v5279 = vld [vmem:[#allocation3 + $0x6b] sm:$0xff]
          %v5280 = vld [vmem:[#allocation3 + $0x73] sm:$0xff]
          %v5281 = vld [vmem:[#allocation3 + $0x7b] sm:$0xff]
          %v5282 = vld [vmem:[#allocation3 + $0x83] sm:$0xff]
          %v5283 = vld [vmem:[#allocation3 + $0x8b] sm:$0xff]
          %v5284 = vld [vmem:[#allocation3 + $0x93] sm:$0xff]
          %v5285 = vld [vmem:[#allocation3 + $0x9b] sm:$0xff]
          %v5286 = vld [vmem:[#allocation3 + $0xa3] sm:$0xff]
          %v5287 = vld [vmem:[#allocation3 + $0xab] sm:$0xff]
          %v5288 = vld [vmem:[#allocation3 + $0xb3] sm:$0xff]
          %v5289 = vld [vmem:[#allocation3 + $0xbb] sm:$0xff]
          %v5290 = vld [vmem:[#allocation3 + $0xc3] sm:$0xff]
          %v5291 = vld [vmem:[#allocation3 + $0xcb] sm:$0xff]
          %v5292 = vld [vmem:[#allocation3 + $0xd3] sm:$0xff]
          %v5293 = vld [vmem:[#allocation3 + $0xdb] sm:$0xff]
          %v5294 = vld [vmem:[#allocation3 + $0xe3] sm:$0xff]
          %v5295 = vld [vmem:[#allocation3 + $0xeb] sm:$0xff]
          %v5296 = vld [vmem:[#allocation3 + $0xf3] sm:$0xff]
          %v5297 = vld [vmem:[#allocation3 + $0xfb] sm:$0xff]
          %v5298 = vld [vmem:[#allocation3 + $0x103] sm:$0xff]
          %v5299 = vld [vmem:[#allocation3 + $0x10b] sm:$0xff]
          %v5300 = vld [vmem:[#allocation3 + $0x113] sm:$0xff]
          %v5301 = vld [vmem:[#allocation3 + $0x11b] sm:$0xff]
          %v5302 = vld [vmem:[#allocation3 + $0x123] sm:$0xff]
          %v5303 = vld [vmem:[#allocation3 + $0x12b] sm:$0xff]
          %v5304 = vpack.c.bf16 %v5269, %v5268
          %v5305 = vpack.c.bf16 %v5271, %v5270
          %v5306 = vpack.c.bf16 %v5273, %v5272
          %v5307 = vpack.c.bf16 %v5275, %v5274
          %v5308 = vpack.c.bf16 %v5277, %v5276
          %v5309 = vpack.c.bf16 %v5279, %v5278
          %v5310 = vpack.c.bf16 %v5281, %v5280
          %v5311 = vpack.c.bf16 %v5283, %v5282
          %v5312 = vpack.c.bf16 %v5285, %v5284
          %v5313 = vpack.c.bf16 %v5287, %v5286
          %v5314 = vpack.c.bf16 %v5289, %v5288
          %v5315 = vpack.c.bf16 %v5291, %v5290
          %v5316 = vpack.c.bf16 %v5293, %v5292
          %v5317 = vpack.c.bf16 %v5295, %v5294
          %v5318 = vpack.c.bf16 %v5297, %v5296
          %v5319 = vpack.c.bf16 %v5299, %v5298
          %v5320 = vpack.c.bf16 %v5301, %v5300
          %v5321 = vpack.c.bf16 %v5303, %v5302
          %v5322 = vld [vmem:[#allocation2] sm:$0xff]
          %v5323 = vld [vmem:[#allocation2 + $0x8] sm:$0xff]
          %v5324 = vld [vmem:[#allocation2 + $0x10] sm:$0xff]
          %v5325 = vld [vmem:[#allocation2 + $0x18] sm:$0xff]
          %v5326 = vld [vmem:[#allocation2 + $0x20] sm:$0xff]
          %v5327 = vld [vmem:[#allocation2 + $0x28] sm:$0xff]
          %v5328 = vld [vmem:[#allocation2 + $0x30] sm:$0xff]
          %v5329 = vld [vmem:[#allocation2 + $0x38] sm:$0xff]
          %v5330 = vld [vmem:[#allocation2 + $0x40] sm:$0xff]
          %v5331 = vld [vmem:[#allocation2 + $0x48] sm:$0xff]
          %v5332 = vld [vmem:[#allocation2 + $0x50] sm:$0xff]
          %v5333 = vld [vmem:[#allocation2 + $0x58] sm:$0xff]
          %v5334 = vld [vmem:[#allocation2 + $0x60] sm:$0xff]
          %v5335 = vld [vmem:[#allocation2 + $0x68] sm:$0xff]
          %v5336 = vld [vmem:[#allocation2 + $0x70] sm:$0xff]
          %v5337 = vld [vmem:[#allocation2 + $0x78] sm:$0xff]
          %v5338 = vld [vmem:[#allocation2 + $0x80] sm:$0xff]
          %v5339 = vld [vmem:[#allocation2 + $0x88] sm:$0xff]
          %v5340 = vld [vmem:[#allocation2 + $0x90] sm:$0xff]
          %v5341 = vld [vmem:[#allocation2 + $0x98] sm:$0xff]
          %v5342 = vld [vmem:[#allocation2 + $0xa0] sm:$0xff]
          %v5343 = vld [vmem:[#allocation2 + $0xa8] sm:$0xff]
          %v5344 = vld [vmem:[#allocation2 + $0xb0] sm:$0xff]
          %v5345 = vld [vmem:[#allocation2 + $0xb8] sm:$0xff]
          %v5346 = vld [vmem:[#allocation2 + $0xc0] sm:$0xff]
          %v5347 = vld [vmem:[#allocation2 + $0xc8] sm:$0xff]
          %v5348 = vld [vmem:[#allocation2 + $0xd0] sm:$0xff]
          %v5349 = vld [vmem:[#allocation2 + $0xd8] sm:$0xff]
          %v5350 = vld [vmem:[#allocation2 + $0xe0] sm:$0xff]
          %v5351 = vld [vmem:[#allocation2 + $0xe8] sm:$0xff]
          %v5352 = vld [vmem:[#allocation2 + $0xf0] sm:$0xff]
          %v5353 = vld [vmem:[#allocation2 + $0xf8] sm:$0xff]
          %v5354 = vld [vmem:[#allocation2 + $0x100] sm:$0xff]
          %v5355 = vld [vmem:[#allocation2 + $0x108] sm:$0xff]
          %v5356 = vld [vmem:[#allocation2 + $0x110] sm:$0xff]
          %v5357 = vld [vmem:[#allocation2 + $0x118] sm:$0xff]
          %v5366 = vunpack.c.l.b16 %v3832
          %v5367 = vunpack.c.l.b16 %v3833
          %v5368 = vunpack.c.l.b16 %v3834
          %v5369 = vunpack.c.l.b16 %v3835
          %v5370 = vunpack.c.l.b16 %v3836
          %v5371 = vunpack.c.l.b16 %v3837
          %v5372 = vunpack.c.l.b16 %v3838
          %v5373 = vunpack.c.l.b16 %v3839
          %v5374 = vpack.c.b16 %v5367, %v5366
          %v5375 = vpack.c.b16 %v5369, %v5368
          %v5376 = vpack.c.b16 %v5371, %v5370
          %v5377 = vpack.c.b16 %v5373, %v5372
          %v5383 = vsel %vm468, %v5304, 0
          %v5386 = vsel %vm468, %v5305, 0
          %v5389 = vsel %vm468, %v5306, 0
          %v5392 = vsel %vm468, %v5307, 0
          %v5395 = vsel %vm468, %v5308, 0
          %v5398 = vsel %vm468, %v5309, 0
          %v5401 = vsel %vm468, %v5310, 0
          %v5404 = vsel %vm468, %v5311, 0
          %v5407 = vsel %vm468, %v5312, 0
          %v5410 = vsel %vm468, %v5313, 0
          %v5413 = vsel %vm468, %v5314, 0
          %v5416 = vsel %vm468, %v5315, 0
          %v5419 = vsel %vm468, %v5316, 0
          %v5422 = vsel %vm468, %v5317, 0
          %v5425 = vsel %vm468, %v5318, 0
          %v5428 = vsel %vm468, %v5319, 0
          %v5431 = vsel %vm468, %v5320, 0
          %v5434 = vsel %vm468, %v5321, 0
          %5436 = vmatpush.bf16.msra.mxu0 0
          %5437 = vmatpush.bf16.msra.mxu0 0
          %5438 = vmatpush.bf16.msra.mxu0 0
          %5439 = vmatpush.bf16.msra.mxu0 0
          %5440 = vmatpush.bf16.msra.mxu0 %v5377
          %5441 = vmatpush.bf16.msra.mxu0 %v5376
          %5442 = vmatpush.bf16.msra.mxu0 %v5375
          %5443 = vmatpush.bf16.msra.mxu0 %v5374
          %5444 = vmatmul.bf16.gmra.mxu0 %v5383
          %v5445 = vpop.f32.mrf.mxu0
          %v5446 = vadd.f32 0.0, %v5445
          %v5447 = vpop.f32.mrf.mxu0
          %v5448 = vadd.f32 0.0, %v5447
          %5449 = vmatmul.bf16.gmra.mxu0 %v5386
          %v5450 = vpop.f32.mrf.mxu0
          %v5451 = vadd.f32 0.0, %v5450
          %v5452 = vpop.f32.mrf.mxu0
          %v5453 = vadd.f32 0.0, %v5452
          %5454 = vmatmul.bf16.gmra.mxu0 %v5389
          %v5455 = vpop.f32.mrf.mxu0
          %v5456 = vadd.f32 0.0, %v5455
          %v5457 = vpop.f32.mrf.mxu0
          %v5458 = vadd.f32 0.0, %v5457
          %5459 = vmatmul.bf16.gmra.mxu0 %v5392
          %v5460 = vpop.f32.mrf.mxu0
          %v5461 = vadd.f32 0.0, %v5460
          %v5462 = vpop.f32.mrf.mxu0
          %v5463 = vadd.f32 0.0, %v5462
          %5464 = vmatmul.bf16.gmra.mxu0 %v5395
          %v5465 = vpop.f32.mrf.mxu0
          %v5466 = vadd.f32 0.0, %v5465
          %v5467 = vpop.f32.mrf.mxu0
          %v5468 = vadd.f32 0.0, %v5467
          %5469 = vmatmul.bf16.gmra.mxu0 %v5398
          %v5470 = vpop.f32.mrf.mxu0
          %v5471 = vadd.f32 0.0, %v5470
          %v5472 = vpop.f32.mrf.mxu0
          %v5473 = vadd.f32 0.0, %v5472
          %5474 = vmatmul.bf16.gmra.mxu0 %v5401
          %v5475 = vpop.f32.mrf.mxu0
          %v5476 = vadd.f32 0.0, %v5475
          %v5477 = vpop.f32.mrf.mxu0
          %v5478 = vadd.f32 0.0, %v5477
          %5479 = vmatmul.bf16.gmra.mxu0 %v5404
          %v5480 = vpop.f32.mrf.mxu0
          %v5481 = vadd.f32 0.0, %v5480
          %v5482 = vpop.f32.mrf.mxu0
          %v5483 = vadd.f32 0.0, %v5482
          %5484 = vmatmul.bf16.gmra.mxu0 %v5407
          %v5485 = vpop.f32.mrf.mxu0
          %v5486 = vadd.f32 0.0, %v5485
          %v5487 = vpop.f32.mrf.mxu0
          %v5488 = vadd.f32 0.0, %v5487
          %5489 = vmatmul.bf16.gmra.mxu0 %v5410
          %v5490 = vpop.f32.mrf.mxu0
          %v5491 = vadd.f32 0.0, %v5490
          %v5492 = vpop.f32.mrf.mxu0
          %v5493 = vadd.f32 0.0, %v5492
          %5494 = vmatmul.bf16.gmra.mxu0 %v5413
          %v5495 = vpop.f32.mrf.mxu0
          %v5496 = vadd.f32 0.0, %v5495
          %v5497 = vpop.f32.mrf.mxu0
          %v5498 = vadd.f32 0.0, %v5497
          %5499 = vmatmul.bf16.gmra.mxu0 %v5416
          %v5500 = vpop.f32.mrf.mxu0
          %v5501 = vadd.f32 0.0, %v5500
          %v5502 = vpop.f32.mrf.mxu0
          %v5503 = vadd.f32 0.0, %v5502
          %5504 = vmatmul.bf16.gmra.mxu0 %v5419
          %v5505 = vpop.f32.mrf.mxu0
          %v5506 = vadd.f32 0.0, %v5505
          %v5507 = vpop.f32.mrf.mxu0
          %v5508 = vadd.f32 0.0, %v5507
          %5509 = vmatmul.bf16.gmra.mxu0 %v5422
          %v5510 = vpop.f32.mrf.mxu0
          %v5511 = vadd.f32 0.0, %v5510
          %v5512 = vpop.f32.mrf.mxu0
          %v5513 = vadd.f32 0.0, %v5512
          %5514 = vmatmul.bf16.gmra.mxu0 %v5425
          %v5515 = vpop.f32.mrf.mxu0
          %v5516 = vadd.f32 0.0, %v5515
          %v5517 = vpop.f32.mrf.mxu0
          %v5518 = vadd.f32 0.0, %v5517
          %5519 = vmatmul.bf16.gmra.mxu0 %v5428
          %v5520 = vpop.f32.mrf.mxu0
          %v5521 = vadd.f32 0.0, %v5520
          %v5522 = vpop.f32.mrf.mxu0
          %v5523 = vadd.f32 0.0, %v5522
          %5524 = vmatmul.bf16.gmra.mxu0 %v5431
          %v5525 = vpop.f32.mrf.mxu0
          %v5526 = vadd.f32 0.0, %v5525
          %v5527 = vpop.f32.mrf.mxu0
          %v5528 = vadd.f32 0.0, %v5527
          %5529 = vmatmul.bf16.gmra.mxu0 %v5434
          %v5530 = vpop.f32.mrf.mxu0
          %v5531 = vadd.f32 0.0, %v5530
          %v5532 = vpop.f32.mrf.mxu0
          %v5533 = vadd.f32 0.0, %v5532
          %5534 = vdwg.mxu0
          %v5535 = vadd.f32 %v5322, %v5446
          %v5536 = vadd.f32 %v5323, %v5448
          %v5537 = vadd.f32 %v5324, %v5451
          %v5538 = vadd.f32 %v5325, %v5453
          %v5539 = vadd.f32 %v5326, %v5456
          %v5540 = vadd.f32 %v5327, %v5458
          %v5541 = vadd.f32 %v5328, %v5461
          %v5542 = vadd.f32 %v5329, %v5463
          %v5543 = vadd.f32 %v5330, %v5466
          %v5544 = vadd.f32 %v5331, %v5468
          %v5545 = vadd.f32 %v5332, %v5471
          %v5546 = vadd.f32 %v5333, %v5473
          %v5547 = vadd.f32 %v5334, %v5476
          %v5548 = vadd.f32 %v5335, %v5478
          %v5549 = vadd.f32 %v5336, %v5481
          %v5550 = vadd.f32 %v5337, %v5483
          %v5551 = vadd.f32 %v5338, %v5486
          %v5552 = vadd.f32 %v5339, %v5488
          %v5553 = vadd.f32 %v5340, %v5491
          %v5554 = vadd.f32 %v5341, %v5493
          %v5555 = vadd.f32 %v5342, %v5496
          %v5556 = vadd.f32 %v5343, %v5498
          %v5557 = vadd.f32 %v5344, %v5501
          %v5558 = vadd.f32 %v5345, %v5503
          %v5559 = vadd.f32 %v5346, %v5506
          %v5560 = vadd.f32 %v5347, %v5508
          %v5561 = vadd.f32 %v5348, %v5511
          %v5562 = vadd.f32 %v5349, %v5513
          %v5563 = vadd.f32 %v5350, %v5516
          %v5564 = vadd.f32 %v5351, %v5518
          %v5565 = vadd.f32 %v5352, %v5521
          %v5566 = vadd.f32 %v5353, %v5523
          %v5567 = vadd.f32 %v5354, %v5526
          %v5568 = vadd.f32 %v5355, %v5528
          %v5569 = vadd.f32 %v5356, %v5531
          %v5570 = vadd.f32 %v5357, %v5533
          %5571 = vst.msk [vmem:[#allocation2] sm:$0xff] %vm468, %v5535
          %5572 = vst.msk [vmem:[#allocation2 + $0x8] sm:$0xff] %vm468, %v5536
          %5573 = vst.msk [vmem:[#allocation2 + $0x10] sm:$0xff] %vm468, %v5537
          %5574 = vst.msk [vmem:[#allocation2 + $0x18] sm:$0xff] %vm468, %v5538
          %5575 = vst.msk [vmem:[#allocation2 + $0x20] sm:$0xff] %vm468, %v5539
          %5576 = vst.msk [vmem:[#allocation2 + $0x28] sm:$0xff] %vm468, %v5540
          %5577 = vst.msk [vmem:[#allocation2 + $0x30] sm:$0xff] %vm468, %v5541
          %5578 = vst.msk [vmem:[#allocation2 + $0x38] sm:$0xff] %vm468, %v5542
          %5579 = vst.msk [vmem:[#allocation2 + $0x40] sm:$0xff] %vm468, %v5543
          %5580 = vst.msk [vmem:[#allocation2 + $0x48] sm:$0xff] %vm468, %v5544
          %5581 = vst.msk [vmem:[#allocation2 + $0x50] sm:$0xff] %vm468, %v5545
          %5582 = vst.msk [vmem:[#allocation2 + $0x58] sm:$0xff] %vm468, %v5546
          %5583 = vst.msk [vmem:[#allocation2 + $0x60] sm:$0xff] %vm468, %v5547
          %5584 = vst.msk [vmem:[#allocation2 + $0x68] sm:$0xff] %vm468, %v5548
          %5585 = vst.msk [vmem:[#allocation2 + $0x70] sm:$0xff] %vm468, %v5549
          %5586 = vst.msk [vmem:[#allocation2 + $0x78] sm:$0xff] %vm468, %v5550
          %5587 = vst.msk [vmem:[#allocation2 + $0x80] sm:$0xff] %vm468, %v5551
          %5588 = vst.msk [vmem:[#allocation2 + $0x88] sm:$0xff] %vm468, %v5552
          %5589 = vst.msk [vmem:[#allocation2 + $0x90] sm:$0xff] %vm468, %v5553
          %5590 = vst.msk [vmem:[#allocation2 + $0x98] sm:$0xff] %vm468, %v5554
          %5591 = vst.msk [vmem:[#allocation2 + $0xa0] sm:$0xff] %vm468, %v5555
          %5592 = vst.msk [vmem:[#allocation2 + $0xa8] sm:$0xff] %vm468, %v5556
          %5593 = vst.msk [vmem:[#allocation2 + $0xb0] sm:$0xff] %vm468, %v5557
          %5594 = vst.msk [vmem:[#allocation2 + $0xb8] sm:$0xff] %vm468, %v5558
          %5595 = vst.msk [vmem:[#allocation2 + $0xc0] sm:$0xff] %vm468, %v5559
          %5596 = vst.msk [vmem:[#allocation2 + $0xc8] sm:$0xff] %vm468, %v5560
          %5597 = vst.msk [vmem:[#allocation2 + $0xd0] sm:$0xff] %vm468, %v5561
          %5598 = vst.msk [vmem:[#allocation2 + $0xd8] sm:$0xff] %vm468, %v5562
          %5599 = vst.msk [vmem:[#allocation2 + $0xe0] sm:$0xff] %vm468, %v5563
          %5600 = vst.msk [vmem:[#allocation2 + $0xe8] sm:$0xff] %vm468, %v5564
          %5601 = vst.msk [vmem:[#allocation2 + $0xf0] sm:$0xff] %vm468, %v5565
          %5602 = vst.msk [vmem:[#allocation2 + $0xf8] sm:$0xff] %vm468, %v5566
          %5603 = vst.msk [vmem:[#allocation2 + $0x100] sm:$0xff] %vm468, %v5567
          %5604 = vst.msk [vmem:[#allocation2 + $0x108] sm:$0xff] %vm468, %v5568
          %5605 = vst.msk [vmem:[#allocation2 + $0x110] sm:$0xff] %vm468, %v5569
          %5606 = vst.msk [vmem:[#allocation2 + $0x118] sm:$0xff] %vm468, %v5570
          %v5607 = vld [vmem:[#allocation3 + $0x14] sm:$0xff]
          %v5608 = vld [vmem:[#allocation3 + $0x1c] sm:$0xff]
          %v5609 = vld [vmem:[#allocation3 + $0x24] sm:$0xff]
          %v5610 = vld [vmem:[#allocation3 + $0x2c] sm:$0xff]
          %v5611 = vld [vmem:[#allocation3 + $0x34] sm:$0xff]
          %v5612 = vld [vmem:[#allocation3 + $0x3c] sm:$0xff]
          %v5613 = vld [vmem:[#allocation3 + $0x44] sm:$0xff]
          %v5614 = vld [vmem:[#allocation3 + $0x4c] sm:$0xff]
          %v5615 = vld [vmem:[#allocation3 + $0x54] sm:$0xff]
          %v5616 = vld [vmem:[#allocation3 + $0x5c] sm:$0xff]
          %v5617 = vld [vmem:[#allocation3 + $0x64] sm:$0xff]
          %v5618 = vld [vmem:[#allocation3 + $0x6c] sm:$0xff]
          %v5619 = vld [vmem:[#allocation3 + $0x74] sm:$0xff]
          %v5620 = vld [vmem:[#allocation3 + $0x7c] sm:$0xff]
          %v5621 = vld [vmem:[#allocation3 + $0x84] sm:$0xff]
          %v5622 = vld [vmem:[#allocation3 + $0x8c] sm:$0xff]
          %v5623 = vld [vmem:[#allocation3 + $0x94] sm:$0xff]
          %v5624 = vld [vmem:[#allocation3 + $0x9c] sm:$0xff]
          %v5625 = vld [vmem:[#allocation3 + $0xa4] sm:$0xff]
          %v5626 = vld [vmem:[#allocation3 + $0xac] sm:$0xff]
          %v5627 = vld [vmem:[#allocation3 + $0xb4] sm:$0xff]
          %v5628 = vld [vmem:[#allocation3 + $0xbc] sm:$0xff]
          %v5629 = vld [vmem:[#allocation3 + $0xc4] sm:$0xff]
          %v5630 = vld [vmem:[#allocation3 + $0xcc] sm:$0xff]
          %v5631 = vld [vmem:[#allocation3 + $0xd4] sm:$0xff]
          %v5632 = vld [vmem:[#allocation3 + $0xdc] sm:$0xff]
          %v5633 = vld [vmem:[#allocation3 + $0xe4] sm:$0xff]
          %v5634 = vld [vmem:[#allocation3 + $0xec] sm:$0xff]
          %v5635 = vld [vmem:[#allocation3 + $0xf4] sm:$0xff]
          %v5636 = vld [vmem:[#allocation3 + $0xfc] sm:$0xff]
          %v5637 = vld [vmem:[#allocation3 + $0x104] sm:$0xff]
          %v5638 = vld [vmem:[#allocation3 + $0x10c] sm:$0xff]
          %v5639 = vld [vmem:[#allocation3 + $0x114] sm:$0xff]
          %v5640 = vld [vmem:[#allocation3 + $0x11c] sm:$0xff]
          %v5641 = vld [vmem:[#allocation3 + $0x124] sm:$0xff]
          %v5642 = vld [vmem:[#allocation3 + $0x12c] sm:$0xff]
          %v5643 = vpack.c.bf16 %v5608, %v5607
          %v5644 = vpack.c.bf16 %v5610, %v5609
          %v5645 = vpack.c.bf16 %v5612, %v5611
          %v5646 = vpack.c.bf16 %v5614, %v5613
          %v5647 = vpack.c.bf16 %v5616, %v5615
          %v5648 = vpack.c.bf16 %v5618, %v5617
          %v5649 = vpack.c.bf16 %v5620, %v5619
          %v5650 = vpack.c.bf16 %v5622, %v5621
          %v5651 = vpack.c.bf16 %v5624, %v5623
          %v5652 = vpack.c.bf16 %v5626, %v5625
          %v5653 = vpack.c.bf16 %v5628, %v5627
          %v5654 = vpack.c.bf16 %v5630, %v5629
          %v5655 = vpack.c.bf16 %v5632, %v5631
          %v5656 = vpack.c.bf16 %v5634, %v5633
          %v5657 = vpack.c.bf16 %v5636, %v5635
          %v5658 = vpack.c.bf16 %v5638, %v5637
          %v5659 = vpack.c.bf16 %v5640, %v5639
          %v5660 = vpack.c.bf16 %v5642, %v5641
          %v5661 = vld [vmem:[#allocation2] sm:$0xff]
          %v5662 = vld [vmem:[#allocation2 + $0x8] sm:$0xff]
          %v5663 = vld [vmem:[#allocation2 + $0x10] sm:$0xff]
          %v5664 = vld [vmem:[#allocation2 + $0x18] sm:$0xff]
          %v5665 = vld [vmem:[#allocation2 + $0x20] sm:$0xff]
          %v5666 = vld [vmem:[#allocation2 + $0x28] sm:$0xff]
          %v5667 = vld [vmem:[#allocation2 + $0x30] sm:$0xff]
          %v5668 = vld [vmem:[#allocation2 + $0x38] sm:$0xff]
          %v5669 = vld [vmem:[#allocation2 + $0x40] sm:$0xff]
          %v5670 = vld [vmem:[#allocation2 + $0x48] sm:$0xff]
          %v5671 = vld [vmem:[#allocation2 + $0x50] sm:$0xff]
          %v5672 = vld [vmem:[#allocation2 + $0x58] sm:$0xff]
          %v5673 = vld [vmem:[#allocation2 + $0x60] sm:$0xff]
          %v5674 = vld [vmem:[#allocation2 + $0x68] sm:$0xff]
          %v5675 = vld [vmem:[#allocation2 + $0x70] sm:$0xff]
          %v5676 = vld [vmem:[#allocation2 + $0x78] sm:$0xff]
          %v5677 = vld [vmem:[#allocation2 + $0x80] sm:$0xff]
          %v5678 = vld [vmem:[#allocation2 + $0x88] sm:$0xff]
          %v5679 = vld [vmem:[#allocation2 + $0x90] sm:$0xff]
          %v5680 = vld [vmem:[#allocation2 + $0x98] sm:$0xff]
          %v5681 = vld [vmem:[#allocation2 + $0xa0] sm:$0xff]
          %v5682 = vld [vmem:[#allocation2 + $0xa8] sm:$0xff]
          %v5683 = vld [vmem:[#allocation2 + $0xb0] sm:$0xff]
          %v5684 = vld [vmem:[#allocation2 + $0xb8] sm:$0xff]
          %v5685 = vld [vmem:[#allocation2 + $0xc0] sm:$0xff]
          %v5686 = vld [vmem:[#allocation2 + $0xc8] sm:$0xff]
          %v5687 = vld [vmem:[#allocation2 + $0xd0] sm:$0xff]
          %v5688 = vld [vmem:[#allocation2 + $0xd8] sm:$0xff]
          %v5689 = vld [vmem:[#allocation2 + $0xe0] sm:$0xff]
          %v5690 = vld [vmem:[#allocation2 + $0xe8] sm:$0xff]
          %v5691 = vld [vmem:[#allocation2 + $0xf0] sm:$0xff]
          %v5692 = vld [vmem:[#allocation2 + $0xf8] sm:$0xff]
          %v5693 = vld [vmem:[#allocation2 + $0x100] sm:$0xff]
          %v5694 = vld [vmem:[#allocation2 + $0x108] sm:$0xff]
          %v5695 = vld [vmem:[#allocation2 + $0x110] sm:$0xff]
          %v5696 = vld [vmem:[#allocation2 + $0x118] sm:$0xff]
          %v5705 = vunpack.c.l.b16 %v3840
          %v5706 = vunpack.c.l.b16 %v3841
          %v5707 = vunpack.c.l.b16 %v3842
          %v5708 = vunpack.c.l.b16 %v3843
          %v5709 = vunpack.c.l.b16 %v3844
          %v5710 = vunpack.c.l.b16 %v3845
          %v5711 = vunpack.c.l.b16 %v3846
          %v5712 = vunpack.c.l.b16 %v3847
          %v5713 = vpack.c.b16 %v5706, %v5705
          %v5714 = vpack.c.b16 %v5708, %v5707
          %v5715 = vpack.c.b16 %v5710, %v5709
          %v5716 = vpack.c.b16 %v5712, %v5711
          %v5722 = vsel %vm468, %v5643, 0
          %v5725 = vsel %vm468, %v5644, 0
          %v5728 = vsel %vm468, %v5645, 0
          %v5731 = vsel %vm468, %v5646, 0
          %v5734 = vsel %vm468, %v5647, 0
          %v5737 = vsel %vm468, %v5648, 0
          %v5740 = vsel %vm468, %v5649, 0
          %v5743 = vsel %vm468, %v5650, 0
          %v5746 = vsel %vm468, %v5651, 0
          %v5749 = vsel %vm468, %v5652, 0
          %v5752 = vsel %vm468, %v5653, 0
          %v5755 = vsel %vm468, %v5654, 0
          %v5758 = vsel %vm468, %v5655, 0
          %v5761 = vsel %vm468, %v5656, 0
          %v5764 = vsel %vm468, %v5657, 0
          %v5767 = vsel %vm468, %v5658, 0
          %v5770 = vsel %vm468, %v5659, 0
          %v5773 = vsel %vm468, %v5660, 0
          %5775 = vmatpush.bf16.msra.mxu0 0
          %5776 = vmatpush.bf16.msra.mxu0 0
          %5777 = vmatpush.bf16.msra.mxu0 0
          %5778 = vmatpush.bf16.msra.mxu0 0
          %5779 = vmatpush.bf16.msra.mxu0 %v5716
          %5780 = vmatpush.bf16.msra.mxu0 %v5715
          %5781 = vmatpush.bf16.msra.mxu0 %v5714
          %5782 = vmatpush.bf16.msra.mxu0 %v5713
          %5783 = vmatmul.bf16.gmra.mxu0 %v5722
          %v5784 = vpop.f32.mrf.mxu0
          %v5785 = vadd.f32 0.0, %v5784
          %v5786 = vpop.f32.mrf.mxu0
          %v5787 = vadd.f32 0.0, %v5786
          %5788 = vmatmul.bf16.gmra.mxu0 %v5725
          %v5789 = vpop.f32.mrf.mxu0
          %v5790 = vadd.f32 0.0, %v5789
          %v5791 = vpop.f32.mrf.mxu0
          %v5792 = vadd.f32 0.0, %v5791
          %5793 = vmatmul.bf16.gmra.mxu0 %v5728
          %v5794 = vpop.f32.mrf.mxu0
          %v5795 = vadd.f32 0.0, %v5794
          %v5796 = vpop.f32.mrf.mxu0
          %v5797 = vadd.f32 0.0, %v5796
          %5798 = vmatmul.bf16.gmra.mxu0 %v5731
          %v5799 = vpop.f32.mrf.mxu0
          %v5800 = vadd.f32 0.0, %v5799
          %v5801 = vpop.f32.mrf.mxu0
          %v5802 = vadd.f32 0.0, %v5801
          %5803 = vmatmul.bf16.gmra.mxu0 %v5734
          %v5804 = vpop.f32.mrf.mxu0
          %v5805 = vadd.f32 0.0, %v5804
          %v5806 = vpop.f32.mrf.mxu0
          %v5807 = vadd.f32 0.0, %v5806
          %5808 = vmatmul.bf16.gmra.mxu0 %v5737
          %v5809 = vpop.f32.mrf.mxu0
          %v5810 = vadd.f32 0.0, %v5809
          %v5811 = vpop.f32.mrf.mxu0
          %v5812 = vadd.f32 0.0, %v5811
          %5813 = vmatmul.bf16.gmra.mxu0 %v5740
          %v5814 = vpop.f32.mrf.mxu0
          %v5815 = vadd.f32 0.0, %v5814
          %v5816 = vpop.f32.mrf.mxu0
          %v5817 = vadd.f32 0.0, %v5816
          %5818 = vmatmul.bf16.gmra.mxu0 %v5743
          %v5819 = vpop.f32.mrf.mxu0
          %v5820 = vadd.f32 0.0, %v5819
          %v5821 = vpop.f32.mrf.mxu0
          %v5822 = vadd.f32 0.0, %v5821
          %5823 = vmatmul.bf16.gmra.mxu0 %v5746
          %v5824 = vpop.f32.mrf.mxu0
          %v5825 = vadd.f32 0.0, %v5824
          %v5826 = vpop.f32.mrf.mxu0
          %v5827 = vadd.f32 0.0, %v5826
          %5828 = vmatmul.bf16.gmra.mxu0 %v5749
          %v5829 = vpop.f32.mrf.mxu0
          %v5830 = vadd.f32 0.0, %v5829
          %v5831 = vpop.f32.mrf.mxu0
          %v5832 = vadd.f32 0.0, %v5831
          %5833 = vmatmul.bf16.gmra.mxu0 %v5752
          %v5834 = vpop.f32.mrf.mxu0
          %v5835 = vadd.f32 0.0, %v5834
          %v5836 = vpop.f32.mrf.mxu0
          %v5837 = vadd.f32 0.0, %v5836
          %5838 = vmatmul.bf16.gmra.mxu0 %v5755
          %v5839 = vpop.f32.mrf.mxu0
          %v5840 = vadd.f32 0.0, %v5839
          %v5841 = vpop.f32.mrf.mxu0
          %v5842 = vadd.f32 0.0, %v5841
          %5843 = vmatmul.bf16.gmra.mxu0 %v5758
          %v5844 = vpop.f32.mrf.mxu0
          %v5845 = vadd.f32 0.0, %v5844
          %v5846 = vpop.f32.mrf.mxu0
          %v5847 = vadd.f32 0.0, %v5846
          %5848 = vmatmul.bf16.gmra.mxu0 %v5761
          %v5849 = vpop.f32.mrf.mxu0
          %v5850 = vadd.f32 0.0, %v5849
          %v5851 = vpop.f32.mrf.mxu0
          %v5852 = vadd.f32 0.0, %v5851
          %5853 = vmatmul.bf16.gmra.mxu0 %v5764
          %v5854 = vpop.f32.mrf.mxu0
          %v5855 = vadd.f32 0.0, %v5854
          %v5856 = vpop.f32.mrf.mxu0
          %v5857 = vadd.f32 0.0, %v5856
          %5858 = vmatmul.bf16.gmra.mxu0 %v5767
          %v5859 = vpop.f32.mrf.mxu0
          %v5860 = vadd.f32 0.0, %v5859
          %v5861 = vpop.f32.mrf.mxu0
          %v5862 = vadd.f32 0.0, %v5861
          %5863 = vmatmul.bf16.gmra.mxu0 %v5770
          %v5864 = vpop.f32.mrf.mxu0
          %v5865 = vadd.f32 0.0, %v5864
          %v5866 = vpop.f32.mrf.mxu0
          %v5867 = vadd.f32 0.0, %v5866
          %5868 = vmatmul.bf16.gmra.mxu0 %v5773
          %v5869 = vpop.f32.mrf.mxu0
          %v5870 = vadd.f32 0.0, %v5869
          %v5871 = vpop.f32.mrf.mxu0
          %v5872 = vadd.f32 0.0, %v5871
          %5873 = vdwg.mxu0
          %v5874 = vadd.f32 %v5661, %v5785
          %v5875 = vadd.f32 %v5662, %v5787
          %v5876 = vadd.f32 %v5663, %v5790
          %v5877 = vadd.f32 %v5664, %v5792
          %v5878 = vadd.f32 %v5665, %v5795
          %v5879 = vadd.f32 %v5666, %v5797
          %v5880 = vadd.f32 %v5667, %v5800
          %v5881 = vadd.f32 %v5668, %v5802
          %v5882 = vadd.f32 %v5669, %v5805
          %v5883 = vadd.f32 %v5670, %v5807
          %v5884 = vadd.f32 %v5671, %v5810
          %v5885 = vadd.f32 %v5672, %v5812
          %v5886 = vadd.f32 %v5673, %v5815
          %v5887 = vadd.f32 %v5674, %v5817
          %v5888 = vadd.f32 %v5675, %v5820
          %v5889 = vadd.f32 %v5676, %v5822
          %v5890 = vadd.f32 %v5677, %v5825
          %v5891 = vadd.f32 %v5678, %v5827
          %v5892 = vadd.f32 %v5679, %v5830
          %v5893 = vadd.f32 %v5680, %v5832
          %v5894 = vadd.f32 %v5681, %v5835
          %v5895 = vadd.f32 %v5682, %v5837
          %v5896 = vadd.f32 %v5683, %v5840
          %v5897 = vadd.f32 %v5684, %v5842
          %v5898 = vadd.f32 %v5685, %v5845
          %v5899 = vadd.f32 %v5686, %v5847
          %v5900 = vadd.f32 %v5687, %v5850
          %v5901 = vadd.f32 %v5688, %v5852
          %v5902 = vadd.f32 %v5689, %v5855
          %v5903 = vadd.f32 %v5690, %v5857
          %v5904 = vadd.f32 %v5691, %v5860
          %v5905 = vadd.f32 %v5692, %v5862
          %v5906 = vadd.f32 %v5693, %v5865
          %v5907 = vadd.f32 %v5694, %v5867
          %v5908 = vadd.f32 %v5695, %v5870
          %v5909 = vadd.f32 %v5696, %v5872
          %5910 = vst.msk [vmem:[#allocation2] sm:$0xff] %vm468, %v5874
          %5911 = vst.msk [vmem:[#allocation2 + $0x8] sm:$0xff] %vm468, %v5875
          %5912 = vst.msk [vmem:[#allocation2 + $0x10] sm:$0xff] %vm468, %v5876
          %5913 = vst.msk [vmem:[#allocation2 + $0x18] sm:$0xff] %vm468, %v5877
          %5914 = vst.msk [vmem:[#allocation2 + $0x20] sm:$0xff] %vm468, %v5878
          %5915 = vst.msk [vmem:[#allocation2 + $0x28] sm:$0xff] %vm468, %v5879
          %5916 = vst.msk [vmem:[#allocation2 + $0x30] sm:$0xff] %vm468, %v5880
          %5917 = vst.msk [vmem:[#allocation2 + $0x38] sm:$0xff] %vm468, %v5881
          %5918 = vst.msk [vmem:[#allocation2 + $0x40] sm:$0xff] %vm468, %v5882
          %5919 = vst.msk [vmem:[#allocation2 + $0x48] sm:$0xff] %vm468, %v5883
          %5920 = vst.msk [vmem:[#allocation2 + $0x50] sm:$0xff] %vm468, %v5884
          %5921 = vst.msk [vmem:[#allocation2 + $0x58] sm:$0xff] %vm468, %v5885
          %5922 = vst.msk [vmem:[#allocation2 + $0x60] sm:$0xff] %vm468, %v5886
          %5923 = vst.msk [vmem:[#allocation2 + $0x68] sm:$0xff] %vm468, %v5887
          %5924 = vst.msk [vmem:[#allocation2 + $0x70] sm:$0xff] %vm468, %v5888
          %5925 = vst.msk [vmem:[#allocation2 + $0x78] sm:$0xff] %vm468, %v5889
          %5926 = vst.msk [vmem:[#allocation2 + $0x80] sm:$0xff] %vm468, %v5890
          %5927 = vst.msk [vmem:[#allocation2 + $0x88] sm:$0xff] %vm468, %v5891
          %5928 = vst.msk [vmem:[#allocation2 + $0x90] sm:$0xff] %vm468, %v5892
          %5929 = vst.msk [vmem:[#allocation2 + $0x98] sm:$0xff] %vm468, %v5893
          %5930 = vst.msk [vmem:[#allocation2 + $0xa0] sm:$0xff] %vm468, %v5894
          %5931 = vst.msk [vmem:[#allocation2 + $0xa8] sm:$0xff] %vm468, %v5895
          %5932 = vst.msk [vmem:[#allocation2 + $0xb0] sm:$0xff] %vm468, %v5896
          %5933 = vst.msk [vmem:[#allocation2 + $0xb8] sm:$0xff] %vm468, %v5897
          %5934 = vst.msk [vmem:[#allocation2 + $0xc0] sm:$0xff] %vm468, %v5898
          %5935 = vst.msk [vmem:[#allocation2 + $0xc8] sm:$0xff] %vm468, %v5899
          %5936 = vst.msk [vmem:[#allocation2 + $0xd0] sm:$0xff] %vm468, %v5900
          %5937 = vst.msk [vmem:[#allocation2 + $0xd8] sm:$0xff] %vm468, %v5901
          %5938 = vst.msk [vmem:[#allocation2 + $0xe0] sm:$0xff] %vm468, %v5902
          %5939 = vst.msk [vmem:[#allocation2 + $0xe8] sm:$0xff] %vm468, %v5903
          %5940 = vst.msk [vmem:[#allocation2 + $0xf0] sm:$0xff] %vm468, %v5904
          %5941 = vst.msk [vmem:[#allocation2 + $0xf8] sm:$0xff] %vm468, %v5905
          %5942 = vst.msk [vmem:[#allocation2 + $0x100] sm:$0xff] %vm468, %v5906
          %5943 = vst.msk [vmem:[#allocation2 + $0x108] sm:$0xff] %vm468, %v5907
          %5944 = vst.msk [vmem:[#allocation2 + $0x110] sm:$0xff] %vm468, %v5908
          %5945 = vst.msk [vmem:[#allocation2 + $0x118] sm:$0xff] %vm468, %v5909
          %v5946 = vld [vmem:[#allocation3 + $0x24] sm:$0xff]
          %v5947 = vld [vmem:[#allocation3 + $0x2c] sm:$0xff]
          %v5948 = vld [vmem:[#allocation3 + $0x34] sm:$0xff]
          %v5949 = vld [vmem:[#allocation3 + $0x3c] sm:$0xff]
          %v5950 = vld [vmem:[#allocation3 + $0x44] sm:$0xff]
          %v5951 = vld [vmem:[#allocation3 + $0x4c] sm:$0xff]
          %v5952 = vld [vmem:[#allocation3 + $0x54] sm:$0xff]
          %v5953 = vld [vmem:[#allocation3 + $0x5c] sm:$0xff]
          %v5954 = vld [vmem:[#allocation3 + $0x64] sm:$0xff]
          %v5955 = vld [vmem:[#allocation3 + $0x6c] sm:$0xff]
          %v5956 = vld [vmem:[#allocation3 + $0x74] sm:$0xff]
          %v5957 = vld [vmem:[#allocation3 + $0x7c] sm:$0xff]
          %v5958 = vld [vmem:[#allocation3 + $0x84] sm:$0xff]
          %v5959 = vld [vmem:[#allocation3 + $0x8c] sm:$0xff]
          %v5960 = vld [vmem:[#allocation3 + $0x94] sm:$0xff]
          %v5961 = vld [vmem:[#allocation3 + $0x9c] sm:$0xff]
          %v5962 = vld [vmem:[#allocation3 + $0xa4] sm:$0xff]
          %v5963 = vld [vmem:[#allocation3 + $0xac] sm:$0xff]
          %v5964 = vld [vmem:[#allocation3 + $0xb4] sm:$0xff]
          %v5965 = vld [vmem:[#allocation3 + $0xbc] sm:$0xff]
          %v5966 = vld [vmem:[#allocation3 + $0xc4] sm:$0xff]
          %v5967 = vld [vmem:[#allocation3 + $0xcc] sm:$0xff]
          %v5968 = vld [vmem:[#allocation3 + $0xd4] sm:$0xff]
          %v5969 = vld [vmem:[#allocation3 + $0xdc] sm:$0xff]
          %v5970 = vld [vmem:[#allocation3 + $0xe4] sm:$0xff]
          %v5971 = vld [vmem:[#allocation3 + $0xec] sm:$0xff]
          %v5972 = vld [vmem:[#allocation3 + $0xf4] sm:$0xff]
          %v5973 = vld [vmem:[#allocation3 + $0xfc] sm:$0xff]
          %v5974 = vld [vmem:[#allocation3 + $0x104] sm:$0xff]
          %v5975 = vld [vmem:[#allocation3 + $0x10c] sm:$0xff]
          %v5976 = vld [vmem:[#allocation3 + $0x114] sm:$0xff]
          %v5977 = vld [vmem:[#allocation3 + $0x11c] sm:$0xff]
          %v5978 = vld [vmem:[#allocation3 + $0x124] sm:$0xff]
          %v5979 = vld [vmem:[#allocation3 + $0x12c] sm:$0xff]
          %v5980 = vld [vmem:[#allocation3 + $0x134] sm:$0xff]
          %v5981 = vld [vmem:[#allocation3 + $0x13c] sm:$0xff]
          %v5982 = vpack.c.bf16 %v5947, %v5946
          %v5983 = vpack.c.bf16 %v5949, %v5948
          %v5984 = vpack.c.bf16 %v5951, %v5950
          %v5985 = vpack.c.bf16 %v5953, %v5952
          %v5986 = vpack.c.bf16 %v5955, %v5954
          %v5987 = vpack.c.bf16 %v5957, %v5956
          %v5988 = vpack.c.bf16 %v5959, %v5958
          %v5989 = vpack.c.bf16 %v5961, %v5960
          %v5990 = vpack.c.bf16 %v5963, %v5962
          %v5991 = vpack.c.bf16 %v5965, %v5964
          %v5992 = vpack.c.bf16 %v5967, %v5966
          %v5993 = vpack.c.bf16 %v5969, %v5968
          %v5994 = vpack.c.bf16 %v5971, %v5970
          %v5995 = vpack.c.bf16 %v5973, %v5972
          %v5996 = vpack.c.bf16 %v5975, %v5974
          %v5997 = vpack.c.bf16 %v5977, %v5976
          %v5998 = vpack.c.bf16 %v5979, %v5978
          %v5999 = vpack.c.bf16 %v5981, %v5980
          %v6000 = vld [vmem:[#allocation2] sm:$0xff]
          %v6001 = vld [vmem:[#allocation2 + $0x8] sm:$0xff]
          %v6002 = vld [vmem:[#allocation2 + $0x10] sm:$0xff]
          %v6003 = vld [vmem:[#allocation2 + $0x18] sm:$0xff]
          %v6004 = vld [vmem:[#allocation2 + $0x20] sm:$0xff]
          %v6005 = vld [vmem:[#allocation2 + $0x28] sm:$0xff]
          %v6006 = vld [vmem:[#allocation2 + $0x30] sm:$0xff]
          %v6007 = vld [vmem:[#allocation2 + $0x38] sm:$0xff]
          %v6008 = vld [vmem:[#allocation2 + $0x40] sm:$0xff]
          %v6009 = vld [vmem:[#allocation2 + $0x48] sm:$0xff]
          %v6010 = vld [vmem:[#allocation2 + $0x50] sm:$0xff]
          %v6011 = vld [vmem:[#allocation2 + $0x58] sm:$0xff]
          %v6012 = vld [vmem:[#allocation2 + $0x60] sm:$0xff]
          %v6013 = vld [vmem:[#allocation2 + $0x68] sm:$0xff]
          %v6014 = vld [vmem:[#allocation2 + $0x70] sm:$0xff]
          %v6015 = vld [vmem:[#allocation2 + $0x78] sm:$0xff]
          %v6016 = vld [vmem:[#allocation2 + $0x80] sm:$0xff]
          %v6017 = vld [vmem:[#allocation2 + $0x88] sm:$0xff]
          %v6018 = vld [vmem:[#allocation2 + $0x90] sm:$0xff]
          %v6019 = vld [vmem:[#allocation2 + $0x98] sm:$0xff]
          %v6020 = vld [vmem:[#allocation2 + $0xa0] sm:$0xff]
          %v6021 = vld [vmem:[#allocation2 + $0xa8] sm:$0xff]
          %v6022 = vld [vmem:[#allocation2 + $0xb0] sm:$0xff]
          %v6023 = vld [vmem:[#allocation2 + $0xb8] sm:$0xff]
          %v6024 = vld [vmem:[#allocation2 + $0xc0] sm:$0xff]
          %v6025 = vld [vmem:[#allocation2 + $0xc8] sm:$0xff]
          %v6026 = vld [vmem:[#allocation2 + $0xd0] sm:$0xff]
          %v6027 = vld [vmem:[#allocation2 + $0xd8] sm:$0xff]
          %v6028 = vld [vmem:[#allocation2 + $0xe0] sm:$0xff]
          %v6029 = vld [vmem:[#allocation2 + $0xe8] sm:$0xff]
          %v6030 = vld [vmem:[#allocation2 + $0xf0] sm:$0xff]
          %v6031 = vld [vmem:[#allocation2 + $0xf8] sm:$0xff]
          %v6032 = vld [vmem:[#allocation2 + $0x100] sm:$0xff]
          %v6033 = vld [vmem:[#allocation2 + $0x108] sm:$0xff]
          %v6034 = vld [vmem:[#allocation2 + $0x110] sm:$0xff]
          %v6035 = vld [vmem:[#allocation2 + $0x118] sm:$0xff]
          %v6044 = vunpack.c.l.b16 %v3848
          %v6045 = vunpack.c.l.b16 %v3849
          %v6046 = vunpack.c.l.b16 %v3850
          %v6047 = vunpack.c.l.b16 %v3851
          %v6048 = vunpack.c.l.b16 %v3852
          %v6049 = vunpack.c.l.b16 %v3853
          %v6050 = vunpack.c.l.b16 %v3854
          %v6051 = vunpack.c.l.b16 %v3855
          %v6052 = vpack.c.b16 %v6045, %v6044
          %v6053 = vpack.c.b16 %v6047, %v6046
          %v6054 = vpack.c.b16 %v6049, %v6048
          %v6055 = vpack.c.b16 %v6051, %v6050
          %v6061 = vsel %vm468, %v5982, 0
          %v6064 = vsel %vm468, %v5983, 0
          %v6067 = vsel %vm468, %v5984, 0
          %v6070 = vsel %vm468, %v5985, 0
          %v6073 = vsel %vm468, %v5986, 0
          %v6076 = vsel %vm468, %v5987, 0
          %v6079 = vsel %vm468, %v5988, 0
          %v6082 = vsel %vm468, %v5989, 0
          %v6085 = vsel %vm468, %v5990, 0
          %v6088 = vsel %vm468, %v5991, 0
          %v6091 = vsel %vm468, %v5992, 0
          %v6094 = vsel %vm468, %v5993, 0
          %v6097 = vsel %vm468, %v5994, 0
          %v6100 = vsel %vm468, %v5995, 0
          %v6103 = vsel %vm468, %v5996, 0
          %v6106 = vsel %vm468, %v5997, 0
          %v6109 = vsel %vm468, %v5998, 0
          %v6112 = vsel %vm468, %v5999, 0
          %6114 = vmatpush.bf16.msra.mxu0 0
          %6115 = vmatpush.bf16.msra.mxu0 0
          %6116 = vmatpush.bf16.msra.mxu0 0
          %6117 = vmatpush.bf16.msra.mxu0 0
          %6118 = vmatpush.bf16.msra.mxu0 %v6055
          %6119 = vmatpush.bf16.msra.mxu0 %v6054
          %6120 = vmatpush.bf16.msra.mxu0 %v6053
          %6121 = vmatpush.bf16.msra.mxu0 %v6052
          %6122 = vmatmul.bf16.gmra.mxu0 %v6061
          %v6123 = vpop.f32.mrf.mxu0
          %v6124 = vadd.f32 0.0, %v6123
          %v6125 = vpop.f32.mrf.mxu0
          %v6126 = vadd.f32 0.0, %v6125
          %6127 = vmatmul.bf16.gmra.mxu0 %v6064
          %v6128 = vpop.f32.mrf.mxu0
          %v6129 = vadd.f32 0.0, %v6128
          %v6130 = vpop.f32.mrf.mxu0
          %v6131 = vadd.f32 0.0, %v6130
          %6132 = vmatmul.bf16.gmra.mxu0 %v6067
          %v6133 = vpop.f32.mrf.mxu0
          %v6134 = vadd.f32 0.0, %v6133
          %v6135 = vpop.f32.mrf.mxu0
          %v6136 = vadd.f32 0.0, %v6135
          %6137 = vmatmul.bf16.gmra.mxu0 %v6070
          %v6138 = vpop.f32.mrf.mxu0
          %v6139 = vadd.f32 0.0, %v6138
          %v6140 = vpop.f32.mrf.mxu0
          %v6141 = vadd.f32 0.0, %v6140
          %6142 = vmatmul.bf16.gmra.mxu0 %v6073
          %v6143 = vpop.f32.mrf.mxu0
          %v6144 = vadd.f32 0.0, %v6143
          %v6145 = vpop.f32.mrf.mxu0
          %v6146 = vadd.f32 0.0, %v6145
          %6147 = vmatmul.bf16.gmra.mxu0 %v6076
          %v6148 = vpop.f32.mrf.mxu0
          %v6149 = vadd.f32 0.0, %v6148
          %v6150 = vpop.f32.mrf.mxu0
          %v6151 = vadd.f32 0.0, %v6150
          %6152 = vmatmul.bf16.gmra.mxu0 %v6079
          %v6153 = vpop.f32.mrf.mxu0
          %v6154 = vadd.f32 0.0, %v6153
          %v6155 = vpop.f32.mrf.mxu0
          %v6156 = vadd.f32 0.0, %v6155
          %6157 = vmatmul.bf16.gmra.mxu0 %v6082
          %v6158 = vpop.f32.mrf.mxu0
          %v6159 = vadd.f32 0.0, %v6158
          %v6160 = vpop.f32.mrf.mxu0
          %v6161 = vadd.f32 0.0, %v6160
          %6162 = vmatmul.bf16.gmra.mxu0 %v6085
          %v6163 = vpop.f32.mrf.mxu0
          %v6164 = vadd.f32 0.0, %v6163
          %v6165 = vpop.f32.mrf.mxu0
          %v6166 = vadd.f32 0.0, %v6165
          %6167 = vmatmul.bf16.gmra.mxu0 %v6088
          %v6168 = vpop.f32.mrf.mxu0
          %v6169 = vadd.f32 0.0, %v6168
          %v6170 = vpop.f32.mrf.mxu0
          %v6171 = vadd.f32 0.0, %v6170
          %6172 = vmatmul.bf16.gmra.mxu0 %v6091
          %v6173 = vpop.f32.mrf.mxu0
          %v6174 = vadd.f32 0.0, %v6173
          %v6175 = vpop.f32.mrf.mxu0
          %v6176 = vadd.f32 0.0, %v6175
          %6177 = vmatmul.bf16.gmra.mxu0 %v6094
          %v6178 = vpop.f32.mrf.mxu0
          %v6179 = vadd.f32 0.0, %v6178
          %v6180 = vpop.f32.mrf.mxu0
          %v6181 = vadd.f32 0.0, %v6180
          %6182 = vmatmul.bf16.gmra.mxu0 %v6097
          %v6183 = vpop.f32.mrf.mxu0
          %v6184 = vadd.f32 0.0, %v6183
          %v6185 = vpop.f32.mrf.mxu0
          %v6186 = vadd.f32 0.0, %v6185
          %6187 = vmatmul.bf16.gmra.mxu0 %v6100
          %v6188 = vpop.f32.mrf.mxu0
          %v6189 = vadd.f32 0.0, %v6188
          %v6190 = vpop.f32.mrf.mxu0
          %v6191 = vadd.f32 0.0, %v6190
          %6192 = vmatmul.bf16.gmra.mxu0 %v6103
          %v6193 = vpop.f32.mrf.mxu0
          %v6194 = vadd.f32 0.0, %v6193
          %v6195 = vpop.f32.mrf.mxu0
          %v6196 = vadd.f32 0.0, %v6195
          %6197 = vmatmul.bf16.gmra.mxu0 %v6106
          %v6198 = vpop.f32.mrf.mxu0
          %v6199 = vadd.f32 0.0, %v6198
          %v6200 = vpop.f32.mrf.mxu0
          %v6201 = vadd.f32 0.0, %v6200
          %6202 = vmatmul.bf16.gmra.mxu0 %v6109
          %v6203 = vpop.f32.mrf.mxu0
          %v6204 = vadd.f32 0.0, %v6203
          %v6205 = vpop.f32.mrf.mxu0
          %v6206 = vadd.f32 0.0, %v6205
          %6207 = vmatmul.bf16.gmra.mxu0 %v6112
          %v6208 = vpop.f32.mrf.mxu0
          %v6209 = vadd.f32 0.0, %v6208
          %v6210 = vpop.f32.mrf.mxu0
          %v6211 = vadd.f32 0.0, %v6210
          %6212 = vdwg.mxu0
          %v6213 = vadd.f32 %v6000, %v6124
          %v6214 = vadd.f32 %v6001, %v6126
          %v6215 = vadd.f32 %v6002, %v6129
          %v6216 = vadd.f32 %v6003, %v6131
          %v6217 = vadd.f32 %v6004, %v6134
          %v6218 = vadd.f32 %v6005, %v6136
          %v6219 = vadd.f32 %v6006, %v6139
          %v6220 = vadd.f32 %v6007, %v6141
          %v6221 = vadd.f32 %v6008, %v6144
          %v6222 = vadd.f32 %v6009, %v6146
          %v6223 = vadd.f32 %v6010, %v6149
          %v6224 = vadd.f32 %v6011, %v6151
          %v6225 = vadd.f32 %v6012, %v6154
          %v6226 = vadd.f32 %v6013, %v6156
          %v6227 = vadd.f32 %v6014, %v6159
          %v6228 = vadd.f32 %v6015, %v6161
          %v6229 = vadd.f32 %v6016, %v6164
          %v6230 = vadd.f32 %v6017, %v6166
          %v6231 = vadd.f32 %v6018, %v6169
          %v6232 = vadd.f32 %v6019, %v6171
          %v6233 = vadd.f32 %v6020, %v6174
          %v6234 = vadd.f32 %v6021, %v6176
          %v6235 = vadd.f32 %v6022, %v6179
          %v6236 = vadd.f32 %v6023, %v6181
          %v6237 = vadd.f32 %v6024, %v6184
          %v6238 = vadd.f32 %v6025, %v6186
          %v6239 = vadd.f32 %v6026, %v6189
          %v6240 = vadd.f32 %v6027, %v6191
          %v6241 = vadd.f32 %v6028, %v6194
          %v6242 = vadd.f32 %v6029, %v6196
          %v6243 = vadd.f32 %v6030, %v6199
          %v6244 = vadd.f32 %v6031, %v6201
          %v6245 = vadd.f32 %v6032, %v6204
          %v6246 = vadd.f32 %v6033, %v6206
          %v6247 = vadd.f32 %v6034, %v6209
          %v6248 = vadd.f32 %v6035, %v6211
          %6249 = vst.msk [vmem:[#allocation2] sm:$0xff] %vm468, %v6213
          %6250 = vst.msk [vmem:[#allocation2 + $0x8] sm:$0xff] %vm468, %v6214
          %6251 = vst.msk [vmem:[#allocation2 + $0x10] sm:$0xff] %vm468, %v6215
          %6252 = vst.msk [vmem:[#allocation2 + $0x18] sm:$0xff] %vm468, %v6216
          %6253 = vst.msk [vmem:[#allocation2 + $0x20] sm:$0xff] %vm468, %v6217
          %6254 = vst.msk [vmem:[#allocation2 + $0x28] sm:$0xff] %vm468, %v6218
          %6255 = vst.msk [vmem:[#allocation2 + $0x30] sm:$0xff] %vm468, %v6219
          %6256 = vst.msk [vmem:[#allocation2 + $0x38] sm:$0xff] %vm468, %v6220
          %6257 = vst.msk [vmem:[#allocation2 + $0x40] sm:$0xff] %vm468, %v6221
          %6258 = vst.msk [vmem:[#allocation2 + $0x48] sm:$0xff] %vm468, %v6222
          %6259 = vst.msk [vmem:[#allocation2 + $0x50] sm:$0xff] %vm468, %v6223
          %6260 = vst.msk [vmem:[#allocation2 + $0x58] sm:$0xff] %vm468, %v6224
          %6261 = vst.msk [vmem:[#allocation2 + $0x60] sm:$0xff] %vm468, %v6225
          %6262 = vst.msk [vmem:[#allocation2 + $0x68] sm:$0xff] %vm468, %v6226
          %6263 = vst.msk [vmem:[#allocation2 + $0x70] sm:$0xff] %vm468, %v6227
          %6264 = vst.msk [vmem:[#allocation2 + $0x78] sm:$0xff] %vm468, %v6228
          %6265 = vst.msk [vmem:[#allocation2 + $0x80] sm:$0xff] %vm468, %v6229
          %6266 = vst.msk [vmem:[#allocation2 + $0x88] sm:$0xff] %vm468, %v6230
          %6267 = vst.msk [vmem:[#allocation2 + $0x90] sm:$0xff] %vm468, %v6231
          %6268 = vst.msk [vmem:[#allocation2 + $0x98] sm:$0xff] %vm468, %v6232
          %6269 = vst.msk [vmem:[#allocation2 + $0xa0] sm:$0xff] %vm468, %v6233
          %6270 = vst.msk [vmem:[#allocation2 + $0xa8] sm:$0xff] %vm468, %v6234
          %6271 = vst.msk [vmem:[#allocation2 + $0xb0] sm:$0xff] %vm468, %v6235
          %6272 = vst.msk [vmem:[#allocation2 + $0xb8] sm:$0xff] %vm468, %v6236
          %6273 = vst.msk [vmem:[#allocation2 + $0xc0] sm:$0xff] %vm468, %v6237
          %6274 = vst.msk [vmem:[#allocation2 + $0xc8] sm:$0xff] %vm468, %v6238
          %6275 = vst.msk [vmem:[#allocation2 + $0xd0] sm:$0xff] %vm468, %v6239
          %6276 = vst.msk [vmem:[#allocation2 + $0xd8] sm:$0xff] %vm468, %v6240
          %6277 = vst.msk [vmem:[#allocation2 + $0xe0] sm:$0xff] %vm468, %v6241
          %6278 = vst.msk [vmem:[#allocation2 + $0xe8] sm:$0xff] %vm468, %v6242
          %6279 = vst.msk [vmem:[#allocation2 + $0xf0] sm:$0xff] %vm468, %v6243
          %6280 = vst.msk [vmem:[#allocation2 + $0xf8] sm:$0xff] %vm468, %v6244
          %6281 = vst.msk [vmem:[#allocation2 + $0x100] sm:$0xff] %vm468, %v6245
          %6282 = vst.msk [vmem:[#allocation2 + $0x108] sm:$0xff] %vm468, %v6246
          %6283 = vst.msk [vmem:[#allocation2 + $0x110] sm:$0xff] %vm468, %v6247
          %6284 = vst.msk [vmem:[#allocation2 + $0x118] sm:$0xff] %vm468, %v6248
          %v6285 = vld [vmem:[#allocation3 + $0x25] sm:$0xff]
          %v6286 = vld [vmem:[#allocation3 + $0x2d] sm:$0xff]
          %v6287 = vld [vmem:[#allocation3 + $0x35] sm:$0xff]
          %v6288 = vld [vmem:[#allocation3 + $0x3d] sm:$0xff]
          %v6289 = vld [vmem:[#allocation3 + $0x45] sm:$0xff]
          %v6290 = vld [vmem:[#allocation3 + $0x4d] sm:$0xff]
          %v6291 = vld [vmem:[#allocation3 + $0x55] sm:$0xff]
          %v6292 = vld [vmem:[#allocation3 + $0x5d] sm:$0xff]
          %v6293 = vld [vmem:[#allocation3 + $0x65] sm:$0xff]
          %v6294 = vld [vmem:[#allocation3 + $0x6d] sm:$0xff]
          %v6295 = vld [vmem:[#allocation3 + $0x75] sm:$0xff]
          %v6296 = vld [vmem:[#allocation3 + $0x7d] sm:$0xff]
          %v6297 = vld [vmem:[#allocation3 + $0x85] sm:$0xff]
          %v6298 = vld [vmem:[#allocation3 + $0x8d] sm:$0xff]
          %v6299 = vld [vmem:[#allocation3 + $0x95] sm:$0xff]
          %v6300 = vld [vmem:[#allocation3 + $0x9d] sm:$0xff]
          %v6301 = vld [vmem:[#allocation3 + $0xa5] sm:$0xff]
          %v6302 = vld [vmem:[#allocation3 + $0xad] sm:$0xff]
          %v6303 = vld [vmem:[#allocation3 + $0xb5] sm:$0xff]
          %v6304 = vld [vmem:[#allocation3 + $0xbd] sm:$0xff]
          %v6305 = vld [vmem:[#allocation3 + $0xc5] sm:$0xff]
          %v6306 = vld [vmem:[#allocation3 + $0xcd] sm:$0xff]
          %v6307 = vld [vmem:[#allocation3 + $0xd5] sm:$0xff]
          %v6308 = vld [vmem:[#allocation3 + $0xdd] sm:$0xff]
          %v6309 = vld [vmem:[#allocation3 + $0xe5] sm:$0xff]
          %v6310 = vld [vmem:[#allocation3 + $0xed] sm:$0xff]
          %v6311 = vld [vmem:[#allocation3 + $0xf5] sm:$0xff]
          %v6312 = vld [vmem:[#allocation3 + $0xfd] sm:$0xff]
          %v6313 = vld [vmem:[#allocation3 + $0x105] sm:$0xff]
          %v6314 = vld [vmem:[#allocation3 + $0x10d] sm:$0xff]
          %v6315 = vld [vmem:[#allocation3 + $0x115] sm:$0xff]
          %v6316 = vld [vmem:[#allocation3 + $0x11d] sm:$0xff]
          %v6317 = vld [vmem:[#allocation3 + $0x125] sm:$0xff]
          %v6318 = vld [vmem:[#allocation3 + $0x12d] sm:$0xff]
          %v6319 = vld [vmem:[#allocation3 + $0x135] sm:$0xff]
          %v6320 = vld [vmem:[#allocation3 + $0x13d] sm:$0xff]
          %v6321 = vpack.c.bf16 %v6286, %v6285
          %v6322 = vpack.c.bf16 %v6288, %v6287
          %v6323 = vpack.c.bf16 %v6290, %v6289
          %v6324 = vpack.c.bf16 %v6292, %v6291
          %v6325 = vpack.c.bf16 %v6294, %v6293
          %v6326 = vpack.c.bf16 %v6296, %v6295
          %v6327 = vpack.c.bf16 %v6298, %v6297
          %v6328 = vpack.c.bf16 %v6300, %v6299
          %v6329 = vpack.c.bf16 %v6302, %v6301
          %v6330 = vpack.c.bf16 %v6304, %v6303
          %v6331 = vpack.c.bf16 %v6306, %v6305
          %v6332 = vpack.c.bf16 %v6308, %v6307
          %v6333 = vpack.c.bf16 %v6310, %v6309
          %v6334 = vpack.c.bf16 %v6312, %v6311
          %v6335 = vpack.c.bf16 %v6314, %v6313
          %v6336 = vpack.c.bf16 %v6316, %v6315
          %v6337 = vpack.c.bf16 %v6318, %v6317
          %v6338 = vpack.c.bf16 %v6320, %v6319
          %v6339 = vld [vmem:[#allocation2] sm:$0xff]
          %v6340 = vld [vmem:[#allocation2 + $0x8] sm:$0xff]
          %v6341 = vld [vmem:[#allocation2 + $0x10] sm:$0xff]
          %v6342 = vld [vmem:[#allocation2 + $0x18] sm:$0xff]
          %v6343 = vld [vmem:[#allocation2 + $0x20] sm:$0xff]
          %v6344 = vld [vmem:[#allocation2 + $0x28] sm:$0xff]
          %v6345 = vld [vmem:[#allocation2 + $0x30] sm:$0xff]
          %v6346 = vld [vmem:[#allocation2 + $0x38] sm:$0xff]
          %v6347 = vld [vmem:[#allocation2 + $0x40] sm:$0xff]
          %v6348 = vld [vmem:[#allocation2 + $0x48] sm:$0xff]
          %v6349 = vld [vmem:[#allocation2 + $0x50] sm:$0xff]
          %v6350 = vld [vmem:[#allocation2 + $0x58] sm:$0xff]
          %v6351 = vld [vmem:[#allocation2 + $0x60] sm:$0xff]
          %v6352 = vld [vmem:[#allocation2 + $0x68] sm:$0xff]
          %v6353 = vld [vmem:[#allocation2 + $0x70] sm:$0xff]
          %v6354 = vld [vmem:[#allocation2 + $0x78] sm:$0xff]
          %v6355 = vld [vmem:[#allocation2 + $0x80] sm:$0xff]
          %v6356 = vld [vmem:[#allocation2 + $0x88] sm:$0xff]
          %v6357 = vld [vmem:[#allocation2 + $0x90] sm:$0xff]
          %v6358 = vld [vmem:[#allocation2 + $0x98] sm:$0xff]
          %v6359 = vld [vmem:[#allocation2 + $0xa0] sm:$0xff]
          %v6360 = vld [vmem:[#allocation2 + $0xa8] sm:$0xff]
          %v6361 = vld [vmem:[#allocation2 + $0xb0] sm:$0xff]
          %v6362 = vld [vmem:[#allocation2 + $0xb8] sm:$0xff]
          %v6363 = vld [vmem:[#allocation2 + $0xc0] sm:$0xff]
          %v6364 = vld [vmem:[#allocation2 + $0xc8] sm:$0xff]
          %v6365 = vld [vmem:[#allocation2 + $0xd0] sm:$0xff]
          %v6366 = vld [vmem:[#allocation2 + $0xd8] sm:$0xff]
          %v6367 = vld [vmem:[#allocation2 + $0xe0] sm:$0xff]
          %v6368 = vld [vmem:[#allocation2 + $0xe8] sm:$0xff]
          %v6369 = vld [vmem:[#allocation2 + $0xf0] sm:$0xff]
          %v6370 = vld [vmem:[#allocation2 + $0xf8] sm:$0xff]
          %v6371 = vld [vmem:[#allocation2 + $0x100] sm:$0xff]
          %v6372 = vld [vmem:[#allocation2 + $0x108] sm:$0xff]
          %v6373 = vld [vmem:[#allocation2 + $0x110] sm:$0xff]
          %v6374 = vld [vmem:[#allocation2 + $0x118] sm:$0xff]
          %v6383 = vunpack.c.l.b16 %v3856
          %v6384 = vunpack.c.l.b16 %v3857
          %v6385 = vunpack.c.l.b16 %v3858
          %v6386 = vunpack.c.l.b16 %v3859
          %v6387 = vunpack.c.l.b16 %v3860
          %v6388 = vunpack.c.l.b16 %v3861
          %v6389 = vunpack.c.l.b16 %v3862
          %v6390 = vunpack.c.l.b16 %v3863
          %v6391 = vpack.c.b16 %v6384, %v6383
          %v6392 = vpack.c.b16 %v6386, %v6385
          %v6393 = vpack.c.b16 %v6388, %v6387
          %v6394 = vpack.c.b16 %v6390, %v6389
          %v6400 = vsel %vm468, %v6321, 0
          %v6403 = vsel %vm468, %v6322, 0
          %v6406 = vsel %vm468, %v6323, 0
          %v6409 = vsel %vm468, %v6324, 0
          %v6412 = vsel %vm468, %v6325, 0
          %v6415 = vsel %vm468, %v6326, 0
          %v6418 = vsel %vm468, %v6327, 0
          %v6421 = vsel %vm468, %v6328, 0
          %v6424 = vsel %vm468, %v6329, 0
          %v6427 = vsel %vm468, %v6330, 0
          %v6430 = vsel %vm468, %v6331, 0
          %v6433 = vsel %vm468, %v6332, 0
          %v6436 = vsel %vm468, %v6333, 0
          %v6439 = vsel %vm468, %v6334, 0
          %v6442 = vsel %vm468, %v6335, 0
          %v6445 = vsel %vm468, %v6336, 0
          %v6448 = vsel %vm468, %v6337, 0
          %v6451 = vsel %vm468, %v6338, 0
          %6453 = vmatpush.bf16.msra.mxu0 0
          %6454 = vmatpush.bf16.msra.mxu0 0
          %6455 = vmatpush.bf16.msra.mxu0 0
          %6456 = vmatpush.bf16.msra.mxu0 0
          %6457 = vmatpush.bf16.msra.mxu0 %v6394
          %6458 = vmatpush.bf16.msra.mxu0 %v6393
          %6459 = vmatpush.bf16.msra.mxu0 %v6392
          %6460 = vmatpush.bf16.msra.mxu0 %v6391
          %6461 = vmatmul.bf16.gmra.mxu0 %v6400
          %v6462 = vpop.f32.mrf.mxu0
          %v6463 = vadd.f32 0.0, %v6462
          %v6464 = vpop.f32.mrf.mxu0
          %v6465 = vadd.f32 0.0, %v6464
          %6466 = vmatmul.bf16.gmra.mxu0 %v6403
          %v6467 = vpop.f32.mrf.mxu0
          %v6468 = vadd.f32 0.0, %v6467
          %v6469 = vpop.f32.mrf.mxu0
          %v6470 = vadd.f32 0.0, %v6469
          %6471 = vmatmul.bf16.gmra.mxu0 %v6406
          %v6472 = vpop.f32.mrf.mxu0
          %v6473 = vadd.f32 0.0, %v6472
          %v6474 = vpop.f32.mrf.mxu0
          %v6475 = vadd.f32 0.0, %v6474
          %6476 = vmatmul.bf16.gmra.mxu0 %v6409
          %v6477 = vpop.f32.mrf.mxu0
          %v6478 = vadd.f32 0.0, %v6477
          %v6479 = vpop.f32.mrf.mxu0
          %v6480 = vadd.f32 0.0, %v6479
          %6481 = vmatmul.bf16.gmra.mxu0 %v6412
          %v6482 = vpop.f32.mrf.mxu0
          %v6483 = vadd.f32 0.0, %v6482
          %v6484 = vpop.f32.mrf.mxu0
          %v6485 = vadd.f32 0.0, %v6484
          %6486 = vmatmul.bf16.gmra.mxu0 %v6415
          %v6487 = vpop.f32.mrf.mxu0
          %v6488 = vadd.f32 0.0, %v6487
          %v6489 = vpop.f32.mrf.mxu0
          %v6490 = vadd.f32 0.0, %v6489
          %6491 = vmatmul.bf16.gmra.mxu0 %v6418
          %v6492 = vpop.f32.mrf.mxu0
          %v6493 = vadd.f32 0.0, %v6492
          %v6494 = vpop.f32.mrf.mxu0
          %v6495 = vadd.f32 0.0, %v6494
          %6496 = vmatmul.bf16.gmra.mxu0 %v6421
          %v6497 = vpop.f32.mrf.mxu0
          %v6498 = vadd.f32 0.0, %v6497
          %v6499 = vpop.f32.mrf.mxu0
          %v6500 = vadd.f32 0.0, %v6499
          %6501 = vmatmul.bf16.gmra.mxu0 %v6424
          %v6502 = vpop.f32.mrf.mxu0
          %v6503 = vadd.f32 0.0, %v6502
          %v6504 = vpop.f32.mrf.mxu0
          %v6505 = vadd.f32 0.0, %v6504
          %6506 = vmatmul.bf16.gmra.mxu0 %v6427
          %v6507 = vpop.f32.mrf.mxu0
          %v6508 = vadd.f32 0.0, %v6507
          %v6509 = vpop.f32.mrf.mxu0
          %v6510 = vadd.f32 0.0, %v6509
          %6511 = vmatmul.bf16.gmra.mxu0 %v6430
          %v6512 = vpop.f32.mrf.mxu0
          %v6513 = vadd.f32 0.0, %v6512
          %v6514 = vpop.f32.mrf.mxu0
          %v6515 = vadd.f32 0.0, %v6514
          %6516 = vmatmul.bf16.gmra.mxu0 %v6433
          %v6517 = vpop.f32.mrf.mxu0
          %v6518 = vadd.f32 0.0, %v6517
          %v6519 = vpop.f32.mrf.mxu0
          %v6520 = vadd.f32 0.0, %v6519
          %6521 = vmatmul.bf16.gmra.mxu0 %v6436
          %v6522 = vpop.f32.mrf.mxu0
          %v6523 = vadd.f32 0.0, %v6522
          %v6524 = vpop.f32.mrf.mxu0
          %v6525 = vadd.f32 0.0, %v6524
          %6526 = vmatmul.bf16.gmra.mxu0 %v6439
          %v6527 = vpop.f32.mrf.mxu0
          %v6528 = vadd.f32 0.0, %v6527
          %v6529 = vpop.f32.mrf.mxu0
          %v6530 = vadd.f32 0.0, %v6529
          %6531 = vmatmul.bf16.gmra.mxu0 %v6442
          %v6532 = vpop.f32.mrf.mxu0
          %v6533 = vadd.f32 0.0, %v6532
          %v6534 = vpop.f32.mrf.mxu0
          %v6535 = vadd.f32 0.0, %v6534
          %6536 = vmatmul.bf16.gmra.mxu0 %v6445
          %v6537 = vpop.f32.mrf.mxu0
          %v6538 = vadd.f32 0.0, %v6537
          %v6539 = vpop.f32.mrf.mxu0
          %v6540 = vadd.f32 0.0, %v6539
          %6541 = vmatmul.bf16.gmra.mxu0 %v6448
          %v6542 = vpop.f32.mrf.mxu0
          %v6543 = vadd.f32 0.0, %v6542
          %v6544 = vpop.f32.mrf.mxu0
          %v6545 = vadd.f32 0.0, %v6544
          %6546 = vmatmul.bf16.gmra.mxu0 %v6451
          %v6547 = vpop.f32.mrf.mxu0
          %v6548 = vadd.f32 0.0, %v6547
          %v6549 = vpop.f32.mrf.mxu0
          %v6550 = vadd.f32 0.0, %v6549
          %6551 = vdwg.mxu0
          %v6552 = vadd.f32 %v6339, %v6463
          %v6553 = vadd.f32 %v6340, %v6465
          %v6554 = vadd.f32 %v6341, %v6468
          %v6555 = vadd.f32 %v6342, %v6470
          %v6556 = vadd.f32 %v6343, %v6473
          %v6557 = vadd.f32 %v6344, %v6475
          %v6558 = vadd.f32 %v6345, %v6478
          %v6559 = vadd.f32 %v6346, %v6480
          %v6560 = vadd.f32 %v6347, %v6483
          %v6561 = vadd.f32 %v6348, %v6485
          %v6562 = vadd.f32 %v6349, %v6488
          %v6563 = vadd.f32 %v6350, %v6490
          %v6564 = vadd.f32 %v6351, %v6493
          %v6565 = vadd.f32 %v6352, %v6495
          %v6566 = vadd.f32 %v6353, %v6498
          %v6567 = vadd.f32 %v6354, %v6500
          %v6568 = vadd.f32 %v6355, %v6503
          %v6569 = vadd.f32 %v6356, %v6505
          %v6570 = vadd.f32 %v6357, %v6508
          %v6571 = vadd.f32 %v6358, %v6510
          %v6572 = vadd.f32 %v6359, %v6513
          %v6573 = vadd.f32 %v6360, %v6515
          %v6574 = vadd.f32 %v6361, %v6518
          %v6575 = vadd.f32 %v6362, %v6520
          %v6576 = vadd.f32 %v6363, %v6523
          %v6577 = vadd.f32 %v6364, %v6525
          %v6578 = vadd.f32 %v6365, %v6528
          %v6579 = vadd.f32 %v6366, %v6530
          %v6580 = vadd.f32 %v6367, %v6533
          %v6581 = vadd.f32 %v6368, %v6535
          %v6582 = vadd.f32 %v6369, %v6538
          %v6583 = vadd.f32 %v6370, %v6540
          %v6584 = vadd.f32 %v6371, %v6543
          %v6585 = vadd.f32 %v6372, %v6545
          %v6586 = vadd.f32 %v6373, %v6548
          %v6587 = vadd.f32 %v6374, %v6550
          %6588 = vst.msk [vmem:[#allocation2] sm:$0xff] %vm468, %v6552
          %6589 = vst.msk [vmem:[#allocation2 + $0x8] sm:$0xff] %vm468, %v6553
          %6590 = vst.msk [vmem:[#allocation2 + $0x10] sm:$0xff] %vm468, %v6554
          %6591 = vst.msk [vmem:[#allocation2 + $0x18] sm:$0xff] %vm468, %v6555
          %6592 = vst.msk [vmem:[#allocation2 + $0x20] sm:$0xff] %vm468, %v6556
          %6593 = vst.msk [vmem:[#allocation2 + $0x28] sm:$0xff] %vm468, %v6557
          %6594 = vst.msk [vmem:[#allocation2 + $0x30] sm:$0xff] %vm468, %v6558
          %6595 = vst.msk [vmem:[#allocation2 + $0x38] sm:$0xff] %vm468, %v6559
          %6596 = vst.msk [vmem:[#allocation2 + $0x40] sm:$0xff] %vm468, %v6560
          %6597 = vst.msk [vmem:[#allocation2 + $0x48] sm:$0xff] %vm468, %v6561
          %6598 = vst.msk [vmem:[#allocation2 + $0x50] sm:$0xff] %vm468, %v6562
          %6599 = vst.msk [vmem:[#allocation2 + $0x58] sm:$0xff] %vm468, %v6563
          %6600 = vst.msk [vmem:[#allocation2 + $0x60] sm:$0xff] %vm468, %v6564
          %6601 = vst.msk [vmem:[#allocation2 + $0x68] sm:$0xff] %vm468, %v6565
          %6602 = vst.msk [vmem:[#allocation2 + $0x70] sm:$0xff] %vm468, %v6566
          %6603 = vst.msk [vmem:[#allocation2 + $0x78] sm:$0xff] %vm468, %v6567
          %6604 = vst.msk [vmem:[#allocation2 + $0x80] sm:$0xff] %vm468, %v6568
          %6605 = vst.msk [vmem:[#allocation2 + $0x88] sm:$0xff] %vm468, %v6569
          %6606 = vst.msk [vmem:[#allocation2 + $0x90] sm:$0xff] %vm468, %v6570
          %6607 = vst.msk [vmem:[#allocation2 + $0x98] sm:$0xff] %vm468, %v6571
          %6608 = vst.msk [vmem:[#allocation2 + $0xa0] sm:$0xff] %vm468, %v6572
          %6609 = vst.msk [vmem:[#allocation2 + $0xa8] sm:$0xff] %vm468, %v6573
          %6610 = vst.msk [vmem:[#allocation2 + $0xb0] sm:$0xff] %vm468, %v6574
          %6611 = vst.msk [vmem:[#allocation2 + $0xb8] sm:$0xff] %vm468, %v6575
          %6612 = vst.msk [vmem:[#allocation2 + $0xc0] sm:$0xff] %vm468, %v6576
          %6613 = vst.msk [vmem:[#allocation2 + $0xc8] sm:$0xff] %vm468, %v6577
          %6614 = vst.msk [vmem:[#allocation2 + $0xd0] sm:$0xff] %vm468, %v6578
          %6615 = vst.msk [vmem:[#allocation2 + $0xd8] sm:$0xff] %vm468, %v6579
          %6616 = vst.msk [vmem:[#allocation2 + $0xe0] sm:$0xff] %vm468, %v6580
          %6617 = vst.msk [vmem:[#allocation2 + $0xe8] sm:$0xff] %vm468, %v6581
          %6618 = vst.msk [vmem:[#allocation2 + $0xf0] sm:$0xff] %vm468, %v6582
          %6619 = vst.msk [vmem:[#allocation2 + $0xf8] sm:$0xff] %vm468, %v6583
          %6620 = vst.msk [vmem:[#allocation2 + $0x100] sm:$0xff] %vm468, %v6584
          %6621 = vst.msk [vmem:[#allocation2 + $0x108] sm:$0xff] %vm468, %v6585
          %6622 = vst.msk [vmem:[#allocation2 + $0x110] sm:$0xff] %vm468, %v6586
          %6623 = vst.msk [vmem:[#allocation2 + $0x118] sm:$0xff] %vm468, %v6587
          %v6624 = vld [vmem:[#allocation3 + $0x26] sm:$0xff]
          %v6625 = vld [vmem:[#allocation3 + $0x2e] sm:$0xff]
          %v6626 = vld [vmem:[#allocation3 + $0x36] sm:$0xff]
          %v6627 = vld [vmem:[#allocation3 + $0x3e] sm:$0xff]
          %v6628 = vld [vmem:[#allocation3 + $0x46] sm:$0xff]
          %v6629 = vld [vmem:[#allocation3 + $0x4e] sm:$0xff]
          %v6630 = vld [vmem:[#allocation3 + $0x56] sm:$0xff]
          %v6631 = vld [vmem:[#allocation3 + $0x5e] sm:$0xff]
          %v6632 = vld [vmem:[#allocation3 + $0x66] sm:$0xff]
          %v6633 = vld [vmem:[#allocation3 + $0x6e] sm:$0xff]
          %v6634 = vld [vmem:[#allocation3 + $0x76] sm:$0xff]
          %v6635 = vld [vmem:[#allocation3 + $0x7e] sm:$0xff]
          %v6636 = vld [vmem:[#allocation3 + $0x86] sm:$0xff]
          %v6637 = vld [vmem:[#allocation3 + $0x8e] sm:$0xff]
          %v6638 = vld [vmem:[#allocation3 + $0x96] sm:$0xff]
          %v6639 = vld [vmem:[#allocation3 + $0x9e] sm:$0xff]
          %v6640 = vld [vmem:[#allocation3 + $0xa6] sm:$0xff]
          %v6641 = vld [vmem:[#allocation3 + $0xae] sm:$0xff]
          %v6642 = vld [vmem:[#allocation3 + $0xb6] sm:$0xff]
          %v6643 = vld [vmem:[#allocation3 + $0xbe] sm:$0xff]
          %v6644 = vld [vmem:[#allocation3 + $0xc6] sm:$0xff]
          %v6645 = vld [vmem:[#allocation3 + $0xce] sm:$0xff]
          %v6646 = vld [vmem:[#allocation3 + $0xd6] sm:$0xff]
          %v6647 = vld [vmem:[#allocation3 + $0xde] sm:$0xff]
          %v6648 = vld [vmem:[#allocation3 + $0xe6] sm:$0xff]
          %v6649 = vld [vmem:[#allocation3 + $0xee] sm:$0xff]
          %v6650 = vld [vmem:[#allocation3 + $0xf6] sm:$0xff]
          %v6651 = vld [vmem:[#allocation3 + $0xfe] sm:$0xff]
          %v6652 = vld [vmem:[#allocation3 + $0x106] sm:$0xff]
          %v6653 = vld [vmem:[#allocation3 + $0x10e] sm:$0xff]
          %v6654 = vld [vmem:[#allocation3 + $0x116] sm:$0xff]
          %v6655 = vld [vmem:[#allocation3 + $0x11e] sm:$0xff]
          %v6656 = vld [vmem:[#allocation3 + $0x126] sm:$0xff]
          %v6657 = vld [vmem:[#allocation3 + $0x12e] sm:$0xff]
          %v6658 = vld [vmem:[#allocation3 + $0x136] sm:$0xff]
          %v6659 = vld [vmem:[#allocation3 + $0x13e] sm:$0xff]
          %v6660 = vpack.c.bf16 %v6625, %v6624
          %v6661 = vpack.c.bf16 %v6627, %v6626
          %v6662 = vpack.c.bf16 %v6629, %v6628
          %v6663 = vpack.c.bf16 %v6631, %v6630
          %v6664 = vpack.c.bf16 %v6633, %v6632
          %v6665 = vpack.c.bf16 %v6635, %v6634
          %v6666 = vpack.c.bf16 %v6637, %v6636
          %v6667 = vpack.c.bf16 %v6639, %v6638
          %v6668 = vpack.c.bf16 %v6641, %v6640
          %v6669 = vpack.c.bf16 %v6643, %v6642
          %v6670 = vpack.c.bf16 %v6645, %v6644
          %v6671 = vpack.c.bf16 %v6647, %v6646
          %v6672 = vpack.c.bf16 %v6649, %v6648
          %v6673 = vpack.c.bf16 %v6651, %v6650
          %v6674 = vpack.c.bf16 %v6653, %v6652
          %v6675 = vpack.c.bf16 %v6655, %v6654
          %v6676 = vpack.c.bf16 %v6657, %v6656
          %v6677 = vpack.c.bf16 %v6659, %v6658
          %v6678 = vld [vmem:[#allocation2] sm:$0xff]
          %v6679 = vld [vmem:[#allocation2 + $0x8] sm:$0xff]
          %v6680 = vld [vmem:[#allocation2 + $0x10] sm:$0xff]
          %v6681 = vld [vmem:[#allocation2 + $0x18] sm:$0xff]
          %v6682 = vld [vmem:[#allocation2 + $0x20] sm:$0xff]
          %v6683 = vld [vmem:[#allocation2 + $0x28] sm:$0xff]
          %v6684 = vld [vmem:[#allocation2 + $0x30] sm:$0xff]
          %v6685 = vld [vmem:[#allocation2 + $0x38] sm:$0xff]
          %v6686 = vld [vmem:[#allocation2 + $0x40] sm:$0xff]
          %v6687 = vld [vmem:[#allocation2 + $0x48] sm:$0xff]
          %v6688 = vld [vmem:[#allocation2 + $0x50] sm:$0xff]
          %v6689 = vld [vmem:[#allocation2 + $0x58] sm:$0xff]
          %v6690 = vld [vmem:[#allocation2 + $0x60] sm:$0xff]
          %v6691 = vld [vmem:[#allocation2 + $0x68] sm:$0xff]
          %v6692 = vld [vmem:[#allocation2 + $0x70] sm:$0xff]
          %v6693 = vld [vmem:[#allocation2 + $0x78] sm:$0xff]
          %v6694 = vld [vmem:[#allocation2 + $0x80] sm:$0xff]
          %v6695 = vld [vmem:[#allocation2 + $0x88] sm:$0xff]
          %v6696 = vld [vmem:[#allocation2 + $0x90] sm:$0xff]
          %v6697 = vld [vmem:[#allocation2 + $0x98] sm:$0xff]
          %v6698 = vld [vmem:[#allocation2 + $0xa0] sm:$0xff]
          %v6699 = vld [vmem:[#allocation2 + $0xa8] sm:$0xff]
          %v6700 = vld [vmem:[#allocation2 + $0xb0] sm:$0xff]
          %v6701 = vld [vmem:[#allocation2 + $0xb8] sm:$0xff]
          %v6702 = vld [vmem:[#allocation2 + $0xc0] sm:$0xff]
          %v6703 = vld [vmem:[#allocation2 + $0xc8] sm:$0xff]
          %v6704 = vld [vmem:[#allocation2 + $0xd0] sm:$0xff]
          %v6705 = vld [vmem:[#allocation2 + $0xd8] sm:$0xff]
          %v6706 = vld [vmem:[#allocation2 + $0xe0] sm:$0xff]
          %v6707 = vld [vmem:[#allocation2 + $0xe8] sm:$0xff]
          %v6708 = vld [vmem:[#allocation2 + $0xf0] sm:$0xff]
          %v6709 = vld [vmem:[#allocation2 + $0xf8] sm:$0xff]
          %v6710 = vld [vmem:[#allocation2 + $0x100] sm:$0xff]
          %v6711 = vld [vmem:[#allocation2 + $0x108] sm:$0xff]
          %v6712 = vld [vmem:[#allocation2 + $0x110] sm:$0xff]
          %v6713 = vld [vmem:[#allocation2 + $0x118] sm:$0xff]
          %v6722 = vunpack.c.l.b16 %v3864
          %v6723 = vunpack.c.l.b16 %v3865
          %v6724 = vunpack.c.l.b16 %v3866
          %v6725 = vunpack.c.l.b16 %v3867
          %v6726 = vunpack.c.l.b16 %v3868
          %v6727 = vunpack.c.l.b16 %v3869
          %v6728 = vunpack.c.l.b16 %v3870
          %v6729 = vunpack.c.l.b16 %v3871
          %v6730 = vpack.c.b16 %v6723, %v6722
          %v6731 = vpack.c.b16 %v6725, %v6724
          %v6732 = vpack.c.b16 %v6727, %v6726
          %v6733 = vpack.c.b16 %v6729, %v6728
          %v6739 = vsel %vm468, %v6660, 0
          %v6742 = vsel %vm468, %v6661, 0
          %v6745 = vsel %vm468, %v6662, 0
          %v6748 = vsel %vm468, %v6663, 0
          %v6751 = vsel %vm468, %v6664, 0
          %v6754 = vsel %vm468, %v6665, 0
          %v6757 = vsel %vm468, %v6666, 0
          %v6760 = vsel %vm468, %v6667, 0
          %v6763 = vsel %vm468, %v6668, 0
          %v6766 = vsel %vm468, %v6669, 0
          %v6769 = vsel %vm468, %v6670, 0
          %v6772 = vsel %vm468, %v6671, 0
          %v6775 = vsel %vm468, %v6672, 0
          %v6778 = vsel %vm468, %v6673, 0
          %v6781 = vsel %vm468, %v6674, 0
          %v6784 = vsel %vm468, %v6675, 0
          %v6787 = vsel %vm468, %v6676, 0
          %v6790 = vsel %vm468, %v6677, 0
          %6792 = vmatpush.bf16.msra.mxu0 0
          %6793 = vmatpush.bf16.msra.mxu0 0
          %6794 = vmatpush.bf16.msra.mxu0 0
          %6795 = vmatpush.bf16.msra.mxu0 0
          %6796 = vmatpush.bf16.msra.mxu0 %v6733
          %6797 = vmatpush.bf16.msra.mxu0 %v6732
          %6798 = vmatpush.bf16.msra.mxu0 %v6731
          %6799 = vmatpush.bf16.msra.mxu0 %v6730
          %6800 = vmatmul.bf16.gmra.mxu0 %v6739
          %v6801 = vpop.f32.mrf.mxu0
          %v6802 = vadd.f32 0.0, %v6801
          %v6803 = vpop.f32.mrf.mxu0
          %v6804 = vadd.f32 0.0, %v6803
          %6805 = vmatmul.bf16.gmra.mxu0 %v6742
          %v6806 = vpop.f32.mrf.mxu0
          %v6807 = vadd.f32 0.0, %v6806
          %v6808 = vpop.f32.mrf.mxu0
          %v6809 = vadd.f32 0.0, %v6808
          %6810 = vmatmul.bf16.gmra.mxu0 %v6745
          %v6811 = vpop.f32.mrf.mxu0
          %v6812 = vadd.f32 0.0, %v6811
          %v6813 = vpop.f32.mrf.mxu0
          %v6814 = vadd.f32 0.0, %v6813
          %6815 = vmatmul.bf16.gmra.mxu0 %v6748
          %v6816 = vpop.f32.mrf.mxu0
          %v6817 = vadd.f32 0.0, %v6816
          %v6818 = vpop.f32.mrf.mxu0
          %v6819 = vadd.f32 0.0, %v6818
          %6820 = vmatmul.bf16.gmra.mxu0 %v6751
          %v6821 = vpop.f32.mrf.mxu0
          %v6822 = vadd.f32 0.0, %v6821
          %v6823 = vpop.f32.mrf.mxu0
          %v6824 = vadd.f32 0.0, %v6823
          %6825 = vmatmul.bf16.gmra.mxu0 %v6754
          %v6826 = vpop.f32.mrf.mxu0
          %v6827 = vadd.f32 0.0, %v6826
          %v6828 = vpop.f32.mrf.mxu0
          %v6829 = vadd.f32 0.0, %v6828
          %6830 = vmatmul.bf16.gmra.mxu0 %v6757
          %v6831 = vpop.f32.mrf.mxu0
          %v6832 = vadd.f32 0.0, %v6831
          %v6833 = vpop.f32.mrf.mxu0
          %v6834 = vadd.f32 0.0, %v6833
          %6835 = vmatmul.bf16.gmra.mxu0 %v6760
          %v6836 = vpop.f32.mrf.mxu0
          %v6837 = vadd.f32 0.0, %v6836
          %v6838 = vpop.f32.mrf.mxu0
          %v6839 = vadd.f32 0.0, %v6838
          %6840 = vmatmul.bf16.gmra.mxu0 %v6763
          %v6841 = vpop.f32.mrf.mxu0
          %v6842 = vadd.f32 0.0, %v6841
          %v6843 = vpop.f32.mrf.mxu0
          %v6844 = vadd.f32 0.0, %v6843
          %6845 = vmatmul.bf16.gmra.mxu0 %v6766
          %v6846 = vpop.f32.mrf.mxu0
          %v6847 = vadd.f32 0.0, %v6846
          %v6848 = vpop.f32.mrf.mxu0
          %v6849 = vadd.f32 0.0, %v6848
          %6850 = vmatmul.bf16.gmra.mxu0 %v6769
          %v6851 = vpop.f32.mrf.mxu0
          %v6852 = vadd.f32 0.0, %v6851
          %v6853 = vpop.f32.mrf.mxu0
          %v6854 = vadd.f32 0.0, %v6853
          %6855 = vmatmul.bf16.gmra.mxu0 %v6772
          %v6856 = vpop.f32.mrf.mxu0
          %v6857 = vadd.f32 0.0, %v6856
          %v6858 = vpop.f32.mrf.mxu0
          %v6859 = vadd.f32 0.0, %v6858
          %6860 = vmatmul.bf16.gmra.mxu0 %v6775
          %v6861 = vpop.f32.mrf.mxu0
          %v6862 = vadd.f32 0.0, %v6861
          %v6863 = vpop.f32.mrf.mxu0
          %v6864 = vadd.f32 0.0, %v6863
          %6865 = vmatmul.bf16.gmra.mxu0 %v6778
          %v6866 = vpop.f32.mrf.mxu0
          %v6867 = vadd.f32 0.0, %v6866
          %v6868 = vpop.f32.mrf.mxu0
          %v6869 = vadd.f32 0.0, %v6868
          %6870 = vmatmul.bf16.gmra.mxu0 %v6781
          %v6871 = vpop.f32.mrf.mxu0
          %v6872 = vadd.f32 0.0, %v6871
          %v6873 = vpop.f32.mrf.mxu0
          %v6874 = vadd.f32 0.0, %v6873
          %6875 = vmatmul.bf16.gmra.mxu0 %v6784
          %v6876 = vpop.f32.mrf.mxu0
          %v6877 = vadd.f32 0.0, %v6876
          %v6878 = vpop.f32.mrf.mxu0
          %v6879 = vadd.f32 0.0, %v6878
          %6880 = vmatmul.bf16.gmra.mxu0 %v6787
          %v6881 = vpop.f32.mrf.mxu0
          %v6882 = vadd.f32 0.0, %v6881
          %v6883 = vpop.f32.mrf.mxu0
          %v6884 = vadd.f32 0.0, %v6883
          %6885 = vmatmul.bf16.gmra.mxu0 %v6790
          %v6886 = vpop.f32.mrf.mxu0
          %v6887 = vadd.f32 0.0, %v6886
          %v6888 = vpop.f32.mrf.mxu0
          %v6889 = vadd.f32 0.0, %v6888
          %6890 = vdwg.mxu0
          %v6891 = vadd.f32 %v6678, %v6802
          %v6892 = vadd.f32 %v6679, %v6804
          %v6893 = vadd.f32 %v6680, %v6807
          %v6894 = vadd.f32 %v6681, %v6809
          %v6895 = vadd.f32 %v6682, %v6812
          %v6896 = vadd.f32 %v6683, %v6814
          %v6897 = vadd.f32 %v6684, %v6817
          %v6898 = vadd.f32 %v6685, %v6819
          %v6899 = vadd.f32 %v6686, %v6822
          %v6900 = vadd.f32 %v6687, %v6824
          %v6901 = vadd.f32 %v6688, %v6827
          %v6902 = vadd.f32 %v6689, %v6829
          %v6903 = vadd.f32 %v6690, %v6832
          %v6904 = vadd.f32 %v6691, %v6834
          %v6905 = vadd.f32 %v6692, %v6837
          %v6906 = vadd.f32 %v6693, %v6839
          %v6907 = vadd.f32 %v6694, %v6842
          %v6908 = vadd.f32 %v6695, %v6844
          %v6909 = vadd.f32 %v6696, %v6847
          %v6910 = vadd.f32 %v6697, %v6849
          %v6911 = vadd.f32 %v6698, %v6852
          %v6912 = vadd.f32 %v6699, %v6854
          %v6913 = vadd.f32 %v6700, %v6857
          %v6914 = vadd.f32 %v6701, %v6859
          %v6915 = vadd.f32 %v6702, %v6862
          %v6916 = vadd.f32 %v6703, %v6864
          %v6917 = vadd.f32 %v6704, %v6867
          %v6918 = vadd.f32 %v6705, %v6869
          %v6919 = vadd.f32 %v6706, %v6872
          %v6920 = vadd.f32 %v6707, %v6874
          %v6921 = vadd.f32 %v6708, %v6877
          %v6922 = vadd.f32 %v6709, %v6879
          %v6923 = vadd.f32 %v6710, %v6882
          %v6924 = vadd.f32 %v6711, %v6884
          %v6925 = vadd.f32 %v6712, %v6887
          %v6926 = vadd.f32 %v6713, %v6889
          %6927 = vst.msk [vmem:[#allocation2] sm:$0xff] %vm468, %v6891
          %6928 = vst.msk [vmem:[#allocation2 + $0x8] sm:$0xff] %vm468, %v6892
          %6929 = vst.msk [vmem:[#allocation2 + $0x10] sm:$0xff] %vm468, %v6893
          %6930 = vst.msk [vmem:[#allocation2 + $0x18] sm:$0xff] %vm468, %v6894
          %6931 = vst.msk [vmem:[#allocation2 + $0x20] sm:$0xff] %vm468, %v6895
          %6932 = vst.msk [vmem:[#allocation2 + $0x28] sm:$0xff] %vm468, %v6896
          %6933 = vst.msk [vmem:[#allocation2 + $0x30] sm:$0xff] %vm468, %v6897
          %6934 = vst.msk [vmem:[#allocation2 + $0x38] sm:$0xff] %vm468, %v6898
          %6935 = vst.msk [vmem:[#allocation2 + $0x40] sm:$0xff] %vm468, %v6899
          %6936 = vst.msk [vmem:[#allocation2 + $0x48] sm:$0xff] %vm468, %v6900
          %6937 = vst.msk [vmem:[#allocation2 + $0x50] sm:$0xff] %vm468, %v6901
          %6938 = vst.msk [vmem:[#allocation2 + $0x58] sm:$0xff] %vm468, %v6902
          %6939 = vst.msk [vmem:[#allocation2 + $0x60] sm:$0xff] %vm468, %v6903
          %6940 = vst.msk [vmem:[#allocation2 + $0x68] sm:$0xff] %vm468, %v6904
          %6941 = vst.msk [vmem:[#allocation2 + $0x70] sm:$0xff] %vm468, %v6905
          %6942 = vst.msk [vmem:[#allocation2 + $0x78] sm:$0xff] %vm468, %v6906
          %6943 = vst.msk [vmem:[#allocation2 + $0x80] sm:$0xff] %vm468, %v6907
          %6944 = vst.msk [vmem:[#allocation2 + $0x88] sm:$0xff] %vm468, %v6908
          %6945 = vst.msk [vmem:[#allocation2 + $0x90] sm:$0xff] %vm468, %v6909
          %6946 = vst.msk [vmem:[#allocation2 + $0x98] sm:$0xff] %vm468, %v6910
          %6947 = vst.msk [vmem:[#allocation2 + $0xa0] sm:$0xff] %vm468, %v6911
          %6948 = vst.msk [vmem:[#allocation2 + $0xa8] sm:$0xff] %vm468, %v6912
          %6949 = vst.msk [vmem:[#allocation2 + $0xb0] sm:$0xff] %vm468, %v6913
          %6950 = vst.msk [vmem:[#allocation2 + $0xb8] sm:$0xff] %vm468, %v6914
          %6951 = vst.msk [vmem:[#allocation2 + $0xc0] sm:$0xff] %vm468, %v6915
          %6952 = vst.msk [vmem:[#allocation2 + $0xc8] sm:$0xff] %vm468, %v6916
          %6953 = vst.msk [vmem:[#allocation2 + $0xd0] sm:$0xff] %vm468, %v6917
          %6954 = vst.msk [vmem:[#allocation2 + $0xd8] sm:$0xff] %vm468, %v6918
          %6955 = vst.msk [vmem:[#allocation2 + $0xe0] sm:$0xff] %vm468, %v6919
          %6956 = vst.msk [vmem:[#allocation2 + $0xe8] sm:$0xff] %vm468, %v6920
          %6957 = vst.msk [vmem:[#allocation2 + $0xf0] sm:$0xff] %vm468, %v6921
          %6958 = vst.msk [vmem:[#allocation2 + $0xf8] sm:$0xff] %vm468, %v6922
          %6959 = vst.msk [vmem:[#allocation2 + $0x100] sm:$0xff] %vm468, %v6923
          %6960 = vst.msk [vmem:[#allocation2 + $0x108] sm:$0xff] %vm468, %v6924
          %6961 = vst.msk [vmem:[#allocation2 + $0x110] sm:$0xff] %vm468, %v6925
          %6962 = vst.msk [vmem:[#allocation2 + $0x118] sm:$0xff] %vm468, %v6926
          %v6963 = vld [vmem:[#allocation2] sm:$0xff]
          %v6964 = vld [vmem:[#allocation2 + $0x8] sm:$0xff]
          %v6965 = vld [vmem:[#allocation2 + $0x10] sm:$0xff]
          %v6966 = vld [vmem:[#allocation2 + $0x18] sm:$0xff]
          %v6967 = vld [vmem:[#allocation2 + $0x20] sm:$0xff]
          %v6968 = vld [vmem:[#allocation2 + $0x28] sm:$0xff]
          %v6969 = vld [vmem:[#allocation2 + $0x30] sm:$0xff]
          %v6970 = vld [vmem:[#allocation2 + $0x38] sm:$0xff]
          %v6971 = vld [vmem:[#allocation2 + $0x40] sm:$0xff]
          %v6972 = vld [vmem:[#allocation2 + $0x48] sm:$0xff]
          %v6973 = vld [vmem:[#allocation2 + $0x50] sm:$0xff]
          %v6974 = vld [vmem:[#allocation2 + $0x58] sm:$0xff]
          %v6975 = vld [vmem:[#allocation2 + $0x60] sm:$0xff]
          %v6976 = vld [vmem:[#allocation2 + $0x68] sm:$0xff]
          %v6977 = vld [vmem:[#allocation2 + $0x70] sm:$0xff]
          %v6978 = vld [vmem:[#allocation2 + $0x78] sm:$0xff]
          %v6979 = vld [vmem:[#allocation2 + $0x80] sm:$0xff]
          %v6980 = vld [vmem:[#allocation2 + $0x88] sm:$0xff]
          %v6981 = vld [vmem:[#allocation2 + $0x90] sm:$0xff]
          %v6982 = vld [vmem:[#allocation2 + $0x98] sm:$0xff]
          %v6983 = vld [vmem:[#allocation2 + $0xa0] sm:$0xff]
          %v6984 = vld [vmem:[#allocation2 + $0xa8] sm:$0xff]
          %v6985 = vld [vmem:[#allocation2 + $0xb0] sm:$0xff]
          %v6986 = vld [vmem:[#allocation2 + $0xb8] sm:$0xff]
          %v6987 = vld [vmem:[#allocation2 + $0xc0] sm:$0xff]
          %v6988 = vld [vmem:[#allocation2 + $0xc8] sm:$0xff]
          %v6989 = vld [vmem:[#allocation2 + $0xd0] sm:$0xff]
          %v6990 = vld [vmem:[#allocation2 + $0xd8] sm:$0xff]
          %v6991 = vld [vmem:[#allocation2 + $0xe0] sm:$0xff]
          %v6992 = vld [vmem:[#allocation2 + $0xe8] sm:$0xff]
          %v6993 = vld [vmem:[#allocation2 + $0xf0] sm:$0xff]
          %v6994 = vld [vmem:[#allocation2 + $0xf8] sm:$0xff]
          %v6995 = vld [vmem:[#allocation2 + $0x100] sm:$0xff]
          %v6996 = vld [vmem:[#allocation2 + $0x108] sm:$0xff]
          %v6997 = vld [vmem:[#allocation2 + $0x110] sm:$0xff]
          %v6998 = vld [vmem:[#allocation2 + $0x118] sm:$0xff]
          %v7000 = vperm.slane %v3873, 0
          %v7002 = vmul.f32 %v6963, %v7000
          %v7003 = vmul.f32 %v6964, %v7000
          %v7004 = vmul.f32 %v6965, %v7000
          %v7005 = vmul.f32 %v6966, %v7000
          %v7006 = vmul.f32 %v6967, %v7000
          %v7007 = vmul.f32 %v6968, %v7000
          %v7008 = vmul.f32 %v6969, %v7000
          %v7009 = vmul.f32 %v6970, %v7000
          %v7010 = vmul.f32 %v6971, %v7000
          %v7011 = vmul.f32 %v6972, %v7000
          %v7012 = vmul.f32 %v6973, %v7000
          %v7013 = vmul.f32 %v6974, %v7000
          %v7014 = vmul.f32 %v6975, %v7000
          %v7015 = vmul.f32 %v6976, %v7000
          %v7016 = vmul.f32 %v6977, %v7000
          %v7017 = vmul.f32 %v6978, %v7000
          %v7018 = vmul.f32 %v6979, %v7000
          %v7019 = vmul.f32 %v6980, %v7000
          %v7020 = vmul.f32 %v6981, %v7000
          %v7021 = vmul.f32 %v6982, %v7000
          %v7022 = vmul.f32 %v6983, %v7000
          %v7023 = vmul.f32 %v6984, %v7000
          %v7024 = vmul.f32 %v6985, %v7000
          %v7025 = vmul.f32 %v6986, %v7000
          %v7026 = vmul.f32 %v6987, %v7000
          %v7027 = vmul.f32 %v6988, %v7000
          %v7028 = vmul.f32 %v6989, %v7000
          %v7029 = vmul.f32 %v6990, %v7000
          %v7030 = vmul.f32 %v6991, %v7000
          %v7031 = vmul.f32 %v6992, %v7000
          %v7032 = vmul.f32 %v6993, %v7000
          %v7033 = vmul.f32 %v6994, %v7000
          %v7034 = vmul.f32 %v6995, %v7000
          %v7035 = vmul.f32 %v6996, %v7000
          %v7036 = vmul.f32 %v6997, %v7000
          %v7037 = vmul.f32 %v6998, %v7000
          %v7039 = vperm.slane %v3875, 0
          %v7041 = vadd.f32 %v7002, %v7039
          %v7042 = vadd.f32 %v7003, %v7039
          %v7043 = vadd.f32 %v7004, %v7039
          %v7044 = vadd.f32 %v7005, %v7039
          %v7045 = vadd.f32 %v7006, %v7039
          %v7046 = vadd.f32 %v7007, %v7039
          %v7047 = vadd.f32 %v7008, %v7039
          %v7048 = vadd.f32 %v7009, %v7039
          %v7049 = vadd.f32 %v7010, %v7039
          %v7050 = vadd.f32 %v7011, %v7039
          %v7051 = vadd.f32 %v7012, %v7039
          %v7052 = vadd.f32 %v7013, %v7039
          %v7053 = vadd.f32 %v7014, %v7039
          %v7054 = vadd.f32 %v7015, %v7039
          %v7055 = vadd.f32 %v7016, %v7039
          %v7056 = vadd.f32 %v7017, %v7039
          %v7057 = vadd.f32 %v7018, %v7039
          %v7058 = vadd.f32 %v7019, %v7039
          %v7059 = vadd.f32 %v7020, %v7039
          %v7060 = vadd.f32 %v7021, %v7039
          %v7061 = vadd.f32 %v7022, %v7039
          %v7062 = vadd.f32 %v7023, %v7039
          %v7063 = vadd.f32 %v7024, %v7039
          %v7064 = vadd.f32 %v7025, %v7039
          %v7065 = vadd.f32 %v7026, %v7039
          %v7066 = vadd.f32 %v7027, %v7039
          %v7067 = vadd.f32 %v7028, %v7039
          %v7068 = vadd.f32 %v7029, %v7039
          %v7069 = vadd.f32 %v7030, %v7039
          %v7070 = vadd.f32 %v7031, %v7039
          %v7071 = vadd.f32 %v7032, %v7039
          %v7072 = vadd.f32 %v7033, %v7039
          %v7073 = vadd.f32 %v7034, %v7039
          %v7074 = vadd.f32 %v7035, %v7039
          %v7075 = vadd.f32 %v7036, %v7039
          %v7076 = vadd.f32 %v7037, %v7039
          %v7077 = vmax.f32 %v7041, 0.0
          %v7078 = vmax.f32 %v7042, 0.0
          %v7079 = vmax.f32 %v7043, 0.0
          %v7080 = vmax.f32 %v7044, 0.0
          %v7081 = vmax.f32 %v7045, 0.0
          %v7082 = vmax.f32 %v7046, 0.0
          %v7083 = vmax.f32 %v7047, 0.0
          %v7084 = vmax.f32 %v7048, 0.0
          %v7085 = vmax.f32 %v7049, 0.0
          %v7086 = vmax.f32 %v7050, 0.0
          %v7087 = vmax.f32 %v7051, 0.0
          %v7088 = vmax.f32 %v7052, 0.0
          %v7089 = vmax.f32 %v7053, 0.0
          %v7090 = vmax.f32 %v7054, 0.0
          %v7091 = vmax.f32 %v7055, 0.0
          %v7092 = vmax.f32 %v7056, 0.0
          %v7093 = vmax.f32 %v7057, 0.0
          %v7094 = vmax.f32 %v7058, 0.0
          %v7095 = vmax.f32 %v7059, 0.0
          %v7096 = vmax.f32 %v7060, 0.0
          %v7097 = vmax.f32 %v7061, 0.0
          %v7098 = vmax.f32 %v7062, 0.0
          %v7099 = vmax.f32 %v7063, 0.0
          %v7100 = vmax.f32 %v7064, 0.0
          %v7101 = vmax.f32 %v7065, 0.0
          %v7102 = vmax.f32 %v7066, 0.0
          %v7103 = vmax.f32 %v7067, 0.0
          %v7104 = vmax.f32 %v7068, 0.0
          %v7105 = vmax.f32 %v7069, 0.0
          %v7106 = vmax.f32 %v7070, 0.0
          %v7107 = vmax.f32 %v7071, 0.0
          %v7108 = vmax.f32 %v7072, 0.0
          %v7109 = vmax.f32 %v7073, 0.0
          %v7110 = vmax.f32 %v7074, 0.0
          %v7111 = vmax.f32 %v7075, 0.0
          %v7112 = vmax.f32 %v7076, 0.0
          %v7113 = vmul.f32 %v7077, %v3542
          %v7114 = vmul.f32 %v7078, %v3547
          %v7115 = vmul.f32 %v7079, %v3552
          %v7116 = vmul.f32 %v7080, %v3557
          %v7117 = vmul.f32 %v7081, %v3562
          %v7118 = vmul.f32 %v7082, %v3567
          %v7119 = vmul.f32 %v7083, %v3572
          %v7120 = vmul.f32 %v7084, %v3577
          %v7121 = vmul.f32 %v7085, %v3582
          %v7122 = vmul.f32 %v7086, %v3587
          %v7123 = vmul.f32 %v7087, %v3592
          %v7124 = vmul.f32 %v7088, %v3597
          %v7125 = vmul.f32 %v7089, %v3602
          %v7126 = vmul.f32 %v7090, %v3607
          %v7127 = vmul.f32 %v7091, %v3612
          %v7128 = vmul.f32 %v7092, %v3617
          %v7129 = vmul.f32 %v7093, %v3622
          %v7130 = vmul.f32 %v7094, %v3627
          %v7131 = vmul.f32 %v7095, %v3632
          %v7132 = vmul.f32 %v7096, %v3637
          %v7133 = vmul.f32 %v7097, %v3642
          %v7134 = vmul.f32 %v7098, %v3647
          %v7135 = vmul.f32 %v7099, %v3652
          %v7136 = vmul.f32 %v7100, %v3657
          %v7137 = vmul.f32 %v7101, %v3662
          %v7138 = vmul.f32 %v7102, %v3667
          %v7139 = vmul.f32 %v7103, %v3672
          %v7140 = vmul.f32 %v7104, %v3677
          %v7141 = vmul.f32 %v7105, %v3682
          %v7142 = vmul.f32 %v7106, %v3687
          %v7143 = vmul.f32 %v7107, %v3692
          %v7144 = vmul.f32 %v7108, %v3697
          %v7145 = vmul.f32 %v7109, %v3702
          %v7146 = vmul.f32 %v7110, %v3707
          %v7147 = vmul.f32 %v7111, %v3712
          %v7148 = vmul.f32 %v7112, %v3717
          %7149 = vst.msk [vmem:[#allocation3 + $0x13] sm:$0xff] %vm468, %v7113
          %7150 = vst.msk [vmem:[#allocation3 + $0x1b] sm:$0xff] %vm468, %v7114
          %7151 = vst.msk [vmem:[#allocation3 + $0x23] sm:$0xff] %vm468, %v7115
          %7152 = vst.msk [vmem:[#allocation3 + $0x2b] sm:$0xff] %vm468, %v7116
          %7153 = vst.msk [vmem:[#allocation3 + $0x33] sm:$0xff] %vm468, %v7117
          %7154 = vst.msk [vmem:[#allocation3 + $0x3b] sm:$0xff] %vm468, %v7118
          %7155 = vst.msk [vmem:[#allocation3 + $0x43] sm:$0xff] %vm468, %v7119
          %7156 = vst.msk [vmem:[#allocation3 + $0x4b] sm:$0xff] %vm468, %v7120
          %7157 = vst.msk [vmem:[#allocation3 + $0x53] sm:$0xff] %vm468, %v7121
          %7158 = vst.msk [vmem:[#allocation3 + $0x5b] sm:$0xff] %vm468, %v7122
          %7159 = vst.msk [vmem:[#allocation3 + $0x63] sm:$0xff] %vm468, %v7123
          %7160 = vst.msk [vmem:[#allocation3 + $0x6b] sm:$0xff] %vm468, %v7124
          %7161 = vst.msk [vmem:[#allocation3 + $0x73] sm:$0xff] %vm468, %v7125
          %7162 = vst.msk [vmem:[#allocation3 + $0x7b] sm:$0xff] %vm468, %v7126
          %7163 = vst.msk [vmem:[#allocation3 + $0x83] sm:$0xff] %vm468, %v7127
          %7164 = vst.msk [vmem:[#allocation3 + $0x8b] sm:$0xff] %vm468, %v7128
          %7165 = vst.msk [vmem:[#allocation3 + $0x93] sm:$0xff] %vm468, %v7129
          %7166 = vst.msk [vmem:[#allocation3 + $0x9b] sm:$0xff] %vm468, %v7130
          %7167 = vst.msk [vmem:[#allocation3 + $0xa3] sm:$0xff] %vm468, %v7131
          %7168 = vst.msk [vmem:[#allocation3 + $0xab] sm:$0xff] %vm468, %v7132
          %7169 = vst.msk [vmem:[#allocation3 + $0xb3] sm:$0xff] %vm468, %v7133
          %7170 = vst.msk [vmem:[#allocation3 + $0xbb] sm:$0xff] %vm468, %v7134
          %7171 = vst.msk [vmem:[#allocation3 + $0xc3] sm:$0xff] %vm468, %v7135
          %7172 = vst.msk [vmem:[#allocation3 + $0xcb] sm:$0xff] %vm468, %v7136
          %7173 = vst.msk [vmem:[#allocation3 + $0xd3] sm:$0xff] %vm468, %v7137
          %7174 = vst.msk [vmem:[#allocation3 + $0xdb] sm:$0xff] %vm468, %v7138
          %7175 = vst.msk [vmem:[#allocation3 + $0xe3] sm:$0xff] %vm468, %v7139
          %7176 = vst.msk [vmem:[#allocation3 + $0xeb] sm:$0xff] %vm468, %v7140
          %7177 = vst.msk [vmem:[#allocation3 + $0xf3] sm:$0xff] %vm468, %v7141
          %7178 = vst.msk [vmem:[#allocation3 + $0xfb] sm:$0xff] %vm468, %v7142
          %7179 = vst.msk [vmem:[#allocation3 + $0x103] sm:$0xff] %vm468, %v7143
          %7180 = vst.msk [vmem:[#allocation3 + $0x10b] sm:$0xff] %vm468, %v7144
          %7181 = vst.msk [vmem:[#allocation3 + $0x113] sm:$0xff] %vm468, %v7145
          %7182 = vst.msk [vmem:[#allocation3 + $0x11b] sm:$0xff] %vm468, %v7146
          %7183 = vst.msk [vmem:[#allocation3 + $0x123] sm:$0xff] %vm468, %v7147
          %7184 = vst.msk [vmem:[#allocation3 + $0x12b] sm:$0xff] %vm468, %v7148
        $region85: #{_lambda_.1} parent=55 // loop_footer
          %s3796 = sadd.s32 1, %s3792
        $region86: #{_lambda_.1} parent=55 // loop_footer_branch
          %3791 = sbr.rel target = $region82
        $region87: #{_lambda_.1} parent=55 // loop_exit
          _
        %v7185 = vld [vmem:[#allocation3] sm:$0xff]
        %v7186 = vld [vmem:[#allocation3 + $0x8] sm:$0xff]
        %v7187 = vld [vmem:[#allocation3 + $0x10] sm:$0xff]
        %v7188 = vld [vmem:[#allocation3 + $0x18] sm:$0xff]
        %v7189 = vld [vmem:[#allocation3 + $0x20] sm:$0xff]
        %v7190 = vld [vmem:[#allocation3 + $0x28] sm:$0xff]
        %v7191 = vld [vmem:[#allocation3 + $0x30] sm:$0xff]
        %v7192 = vld [vmem:[#allocation3 + $0x38] sm:$0xff]
        %v7193 = vld [vmem:[#allocation3 + $0x40] sm:$0xff]
        %v7194 = vld [vmem:[#allocation3 + $0x48] sm:$0xff]
        %v7195 = vld [vmem:[#allocation3 + $0x50] sm:$0xff]
        %v7196 = vld [vmem:[#allocation3 + $0x58] sm:$0xff]
        %v7197 = vld [vmem:[#allocation3 + $0x60] sm:$0xff]
        %v7198 = vld [vmem:[#allocation3 + $0x68] sm:$0xff]
        %v7199 = vld [vmem:[#allocation3 + $0x70] sm:$0xff]
        %v7200 = vld [vmem:[#allocation3 + $0x78] sm:$0xff]
        %v7201 = vld [vmem:[#allocation3 + $0x80] sm:$0xff]
        %v7202 = vld [vmem:[#allocation3 + $0x88] sm:$0xff]
        %v7203 = vld [vmem:[#allocation3 + $0x90] sm:$0xff]
        %v7204 = vld [vmem:[#allocation3 + $0x98] sm:$0xff]
        %v7205 = vld [vmem:[#allocation3 + $0xa0] sm:$0xff]
        %v7206 = vld [vmem:[#allocation3 + $0xa8] sm:$0xff]
        %v7207 = vld [vmem:[#allocation3 + $0xb0] sm:$0xff]
        %v7208 = vld [vmem:[#allocation3 + $0xb8] sm:$0xff]
        %v7209 = vld [vmem:[#allocation3 + $0xc0] sm:$0xff]
        %v7210 = vld [vmem:[#allocation3 + $0xc8] sm:$0xff]
        %v7211 = vld [vmem:[#allocation3 + $0xd0] sm:$0xff]
        %v7212 = vld [vmem:[#allocation3 + $0xd8] sm:$0xff]
        %v7213 = vld [vmem:[#allocation3 + $0xe0] sm:$0xff]
        %v7214 = vld [vmem:[#allocation3 + $0xe8] sm:$0xff]
        %v7215 = vld [vmem:[#allocation3 + $0xf0] sm:$0xff]
        %v7216 = vld [vmem:[#allocation3 + $0xf8] sm:$0xff]
        %v7217 = vld [vmem:[#allocation3 + $0x100] sm:$0xff]
        %v7218 = vld [vmem:[#allocation3 + $0x108] sm:$0xff]
        %v7219 = vld [vmem:[#allocation3 + $0x110] sm:$0xff]
        %v7220 = vld [vmem:[#allocation3 + $0x118] sm:$0xff]
        %v7221 = vpack.c.bf16 %v7186, %v7185
        %v7222 = vpack.c.bf16 %v7188, %v7187
        %v7223 = vpack.c.bf16 %v7190, %v7189
        %v7224 = vpack.c.bf16 %v7192, %v7191
        %v7225 = vpack.c.bf16 %v7194, %v7193
        %v7226 = vpack.c.bf16 %v7196, %v7195
        %v7227 = vpack.c.bf16 %v7198, %v7197
        %v7228 = vpack.c.bf16 %v7200, %v7199
        %v7229 = vpack.c.bf16 %v7202, %v7201
        %v7230 = vpack.c.bf16 %v7204, %v7203
        %v7231 = vpack.c.bf16 %v7206, %v7205
        %v7232 = vpack.c.bf16 %v7208, %v7207
        %v7233 = vpack.c.bf16 %v7210, %v7209
        %v7234 = vpack.c.bf16 %v7212, %v7211
        %v7235 = vpack.c.bf16 %v7214, %v7213
        %v7236 = vpack.c.bf16 %v7216, %v7215
        %v7237 = vpack.c.bf16 %v7218, %v7217
        %v7238 = vpack.c.bf16 %v7220, %v7219
        %v7239 = vld [vmem:[#allocation12] sm:$0xf]
        %v7240 = vld [vmem:[#allocation12 + $0x4] sm:$0xf]
        %v7241 = vld [vmem:[#allocation12 + $0x8] sm:$0xf]
        %v7242 = vld [vmem:[#allocation12 + $0xc] sm:$0xf]
        %v7243 = vld [vmem:[#allocation12 + $0x10] sm:$0xf]
        %v7244 = vld [vmem:[#allocation12 + $0x14] sm:$0xf]
        %v7245 = vld [vmem:[#allocation12 + $0x18] sm:$0xf]
        %v7246 = vld [vmem:[#allocation12 + $0x1c] sm:$0xf]
        %v7247 = vld [vmem:[#allocation3 + $0x1] sm:$0xff]
        %v7248 = vld [vmem:[#allocation3 + $0x9] sm:$0xff]
        %v7249 = vld [vmem:[#allocation3 + $0x11] sm:$0xff]
        %v7250 = vld [vmem:[#allocation3 + $0x19] sm:$0xff]
        %v7251 = vld [vmem:[#allocation3 + $0x21] sm:$0xff]
        %v7252 = vld [vmem:[#allocation3 + $0x29] sm:$0xff]
        %v7253 = vld [vmem:[#allocation3 + $0x31] sm:$0xff]
        %v7254 = vld [vmem:[#allocation3 + $0x39] sm:$0xff]
        %v7255 = vld [vmem:[#allocation3 + $0x41] sm:$0xff]
        %v7256 = vld [vmem:[#allocation3 + $0x49] sm:$0xff]
        %v7257 = vld [vmem:[#allocation3 + $0x51] sm:$0xff]
        %v7258 = vld [vmem:[#allocation3 + $0x59] sm:$0xff]
        %v7259 = vld [vmem:[#allocation3 + $0x61] sm:$0xff]
        %v7260 = vld [vmem:[#allocation3 + $0x69] sm:$0xff]
        %v7261 = vld [vmem:[#allocation3 + $0x71] sm:$0xff]
        %v7262 = vld [vmem:[#allocation3 + $0x79] sm:$0xff]
        %v7263 = vld [vmem:[#allocation3 + $0x81] sm:$0xff]
        %v7264 = vld [vmem:[#allocation3 + $0x89] sm:$0xff]
        %v7265 = vld [vmem:[#allocation3 + $0x91] sm:$0xff]
        %v7266 = vld [vmem:[#allocation3 + $0x99] sm:$0xff]
        %v7267 = vld [vmem:[#allocation3 + $0xa1] sm:$0xff]
        %v7268 = vld [vmem:[#allocation3 + $0xa9] sm:$0xff]
        %v7269 = vld [vmem:[#allocation3 + $0xb1] sm:$0xff]
        %v7270 = vld [vmem:[#allocation3 + $0xb9] sm:$0xff]
        %v7271 = vld [vmem:[#allocation3 + $0xc1] sm:$0xff]
        %v7272 = vld [vmem:[#allocation3 + $0xc9] sm:$0xff]
        %v7273 = vld [vmem:[#allocation3 + $0xd1] sm:$0xff]
        %v7274 = vld [vmem:[#allocation3 + $0xd9] sm:$0xff]
        %v7275 = vld [vmem:[#allocation3 + $0xe1] sm:$0xff]
        %v7276 = vld [vmem:[#allocation3 + $0xe9] sm:$0xff]
        %v7277 = vld [vmem:[#allocation3 + $0xf1] sm:$0xff]
        %v7278 = vld [vmem:[#allocation3 + $0xf9] sm:$0xff]
        %v7279 = vld [vmem:[#allocation3 + $0x101] sm:$0xff]
        %v7280 = vld [vmem:[#allocation3 + $0x109] sm:$0xff]
        %v7281 = vld [vmem:[#allocation3 + $0x111] sm:$0xff]
        %v7282 = vld [vmem:[#allocation3 + $0x119] sm:$0xff]
        %v7283 = vpack.c.bf16 %v7248, %v7247
        %v7284 = vpack.c.bf16 %v7250, %v7249
        %v7285 = vpack.c.bf16 %v7252, %v7251
        %v7286 = vpack.c.bf16 %v7254, %v7253
        %v7287 = vpack.c.bf16 %v7256, %v7255
        %v7288 = vpack.c.bf16 %v7258, %v7257
        %v7289 = vpack.c.bf16 %v7260, %v7259
        %v7290 = vpack.c.bf16 %v7262, %v7261
        %v7291 = vpack.c.bf16 %v7264, %v7263
        %v7292 = vpack.c.bf16 %v7266, %v7265
        %v7293 = vpack.c.bf16 %v7268, %v7267
        %v7294 = vpack.c.bf16 %v7270, %v7269
        %v7295 = vpack.c.bf16 %v7272, %v7271
        %v7296 = vpack.c.bf16 %v7274, %v7273
        %v7297 = vpack.c.bf16 %v7276, %v7275
        %v7298 = vpack.c.bf16 %v7278, %v7277
        %v7299 = vpack.c.bf16 %v7280, %v7279
        %v7300 = vpack.c.bf16 %v7282, %v7281
        %s7301 = scalar_lea.vmem [#allocation12], 32
        %v7302 = vld [vmem:[%s7301] sm:$0xf]
        %v7303 = vld [vmem:[%s7301 + $0x4] sm:$0xf]
        %v7304 = vld [vmem:[%s7301 + $0x8] sm:$0xf]
        %v7305 = vld [vmem:[%s7301 + $0xc] sm:$0xf]
        %v7306 = vld [vmem:[%s7301 + $0x10] sm:$0xf]
        %v7307 = vld [vmem:[%s7301 + $0x14] sm:$0xf]
        %v7308 = vld [vmem:[%s7301 + $0x18] sm:$0xf]
        %v7309 = vld [vmem:[%s7301 + $0x1c] sm:$0xf]
        %v7318 = vunpack.c.l.b16 %v7302
        %v7319 = vunpack.c.l.b16 %v7303
        %v7320 = vunpack.c.l.b16 %v7304
        %v7321 = vunpack.c.l.b16 %v7305
        %v7322 = vunpack.c.l.b16 %v7306
        %v7323 = vunpack.c.l.b16 %v7307
        %v7324 = vunpack.c.l.b16 %v7308
        %v7325 = vunpack.c.l.b16 %v7309
        %v7326 = vpack.c.b16 %v7319, %v7318
        %v7327 = vpack.c.b16 %v7321, %v7320
        %v7328 = vpack.c.b16 %v7323, %v7322
        %v7329 = vpack.c.b16 %v7325, %v7324
        %v7335 = vsel %vm468, %v7283, 0
        %v7338 = vsel %vm468, %v7284, 0
        %v7341 = vsel %vm468, %v7285, 0
        %v7344 = vsel %vm468, %v7286, 0
        %v7347 = vsel %vm468, %v7287, 0
        %v7350 = vsel %vm468, %v7288, 0
        %v7353 = vsel %vm468, %v7289, 0
        %v7356 = vsel %vm468, %v7290, 0
        %v7359 = vsel %vm468, %v7291, 0
        %v7362 = vsel %vm468, %v7292, 0
        %v7365 = vsel %vm468, %v7293, 0
        %v7368 = vsel %vm468, %v7294, 0
        %v7371 = vsel %vm468, %v7295, 0
        %v7374 = vsel %vm468, %v7296, 0
        %v7377 = vsel %vm468, %v7297, 0
        %v7380 = vsel %vm468, %v7298, 0
        %v7383 = vsel %vm468, %v7299, 0
        %v7386 = vsel %vm468, %v7300, 0
        %7388 = vmatpush.bf16.msra.mxu0 0
        %7389 = vmatpush.bf16.msra.mxu0 0
        %7390 = vmatpush.bf16.msra.mxu0 0
        %7391 = vmatpush.bf16.msra.mxu0 0
        %7392 = vmatpush.bf16.msra.mxu0 %v7329
        %7393 = vmatpush.bf16.msra.mxu0 %v7328
        %7394 = vmatpush.bf16.msra.mxu0 %v7327
        %7395 = vmatpush.bf16.msra.mxu0 %v7326
        %7396 = vmatmul.bf16.gmra.mxu0 %v7335
        %v7397 = vpop.f32.mrf.mxu0
        %v7398 = vadd.f32 0.0, %v7397
        %v7399 = vpop.f32.mrf.mxu0
        %v7400 = vadd.f32 0.0, %v7399
        %7401 = vmatmul.bf16.gmra.mxu0 %v7338
        %v7402 = vpop.f32.mrf.mxu0
        %v7403 = vadd.f32 0.0, %v7402
        %v7404 = vpop.f32.mrf.mxu0
        %v7405 = vadd.f32 0.0, %v7404
        %7406 = vmatmul.bf16.gmra.mxu0 %v7341
        %v7407 = vpop.f32.mrf.mxu0
        %v7408 = vadd.f32 0.0, %v7407
        %v7409 = vpop.f32.mrf.mxu0
        %v7410 = vadd.f32 0.0, %v7409
        %7411 = vmatmul.bf16.gmra.mxu0 %v7344
        %v7412 = vpop.f32.mrf.mxu0
        %v7413 = vadd.f32 0.0, %v7412
        %v7414 = vpop.f32.mrf.mxu0
        %v7415 = vadd.f32 0.0, %v7414
        %7416 = vmatmul.bf16.gmra.mxu0 %v7347
        %v7417 = vpop.f32.mrf.mxu0
        %v7418 = vadd.f32 0.0, %v7417
        %v7419 = vpop.f32.mrf.mxu0
        %v7420 = vadd.f32 0.0, %v7419
        %7421 = vmatmul.bf16.gmra.mxu0 %v7350
        %v7422 = vpop.f32.mrf.mxu0
        %v7423 = vadd.f32 0.0, %v7422
        %v7424 = vpop.f32.mrf.mxu0
        %v7425 = vadd.f32 0.0, %v7424
        %7426 = vmatmul.bf16.gmra.mxu0 %v7353
        %v7427 = vpop.f32.mrf.mxu0
        %v7428 = vadd.f32 0.0, %v7427
        %v7429 = vpop.f32.mrf.mxu0
        %v7430 = vadd.f32 0.0, %v7429
        %7431 = vmatmul.bf16.gmra.mxu0 %v7356
        %v7432 = vpop.f32.mrf.mxu0
        %v7433 = vadd.f32 0.0, %v7432
        %v7434 = vpop.f32.mrf.mxu0
        %v7435 = vadd.f32 0.0, %v7434
        %7436 = vmatmul.bf16.gmra.mxu0 %v7359
        %v7437 = vpop.f32.mrf.mxu0
        %v7438 = vadd.f32 0.0, %v7437
        %v7439 = vpop.f32.mrf.mxu0
        %v7440 = vadd.f32 0.0, %v7439
        %7441 = vmatmul.bf16.gmra.mxu0 %v7362
        %v7442 = vpop.f32.mrf.mxu0
        %v7443 = vadd.f32 0.0, %v7442
        %v7444 = vpop.f32.mrf.mxu0
        %v7445 = vadd.f32 0.0, %v7444
        %7446 = vmatmul.bf16.gmra.mxu0 %v7365
        %v7447 = vpop.f32.mrf.mxu0
        %v7448 = vadd.f32 0.0, %v7447
        %v7449 = vpop.f32.mrf.mxu0
        %v7450 = vadd.f32 0.0, %v7449
        %7451 = vmatmul.bf16.gmra.mxu0 %v7368
        %v7452 = vpop.f32.mrf.mxu0
        %v7453 = vadd.f32 0.0, %v7452
        %v7454 = vpop.f32.mrf.mxu0
        %v7455 = vadd.f32 0.0, %v7454
        %7456 = vmatmul.bf16.gmra.mxu0 %v7371
        %v7457 = vpop.f32.mrf.mxu0
        %v7458 = vadd.f32 0.0, %v7457
        %v7459 = vpop.f32.mrf.mxu0
        %v7460 = vadd.f32 0.0, %v7459
        %7461 = vmatmul.bf16.gmra.mxu0 %v7374
        %v7462 = vpop.f32.mrf.mxu0
        %v7463 = vadd.f32 0.0, %v7462
        %v7464 = vpop.f32.mrf.mxu0
        %v7465 = vadd.f32 0.0, %v7464
        %7466 = vmatmul.bf16.gmra.mxu0 %v7377
        %v7467 = vpop.f32.mrf.mxu0
        %v7468 = vadd.f32 0.0, %v7467
        %v7469 = vpop.f32.mrf.mxu0
        %v7470 = vadd.f32 0.0, %v7469
        %7471 = vmatmul.bf16.gmra.mxu0 %v7380
        %v7472 = vpop.f32.mrf.mxu0
        %v7473 = vadd.f32 0.0, %v7472
        %v7474 = vpop.f32.mrf.mxu0
        %v7475 = vadd.f32 0.0, %v7474
        %7476 = vmatmul.bf16.gmra.mxu0 %v7383
        %v7477 = vpop.f32.mrf.mxu0
        %v7478 = vadd.f32 0.0, %v7477
        %v7479 = vpop.f32.mrf.mxu0
        %v7480 = vadd.f32 0.0, %v7479
        %7481 = vmatmul.bf16.gmra.mxu0 %v7386
        %v7482 = vpop.f32.mrf.mxu0
        %v7483 = vadd.f32 0.0, %v7482
        %v7484 = vpop.f32.mrf.mxu0
        %v7485 = vadd.f32 0.0, %v7484
        %7486 = vdwg.mxu0
        %v7495 = vunpack.c.l.b16 %v7239
        %v7496 = vunpack.c.l.b16 %v7240
        %v7497 = vunpack.c.l.b16 %v7241
        %v7498 = vunpack.c.l.b16 %v7242
        %v7499 = vunpack.c.l.b16 %v7243
        %v7500 = vunpack.c.l.b16 %v7244
        %v7501 = vunpack.c.l.b16 %v7245
        %v7502 = vunpack.c.l.b16 %v7246
        %v7503 = vpack.c.b16 %v7496, %v7495
        %v7504 = vpack.c.b16 %v7498, %v7497
        %v7505 = vpack.c.b16 %v7500, %v7499
        %v7506 = vpack.c.b16 %v7502, %v7501
        %v7512 = vsel %vm468, %v7221, 0
        %v7515 = vsel %vm468, %v7222, 0
        %v7518 = vsel %vm468, %v7223, 0
        %v7521 = vsel %vm468, %v7224, 0
        %v7524 = vsel %vm468, %v7225, 0
        %v7527 = vsel %vm468, %v7226, 0
        %v7530 = vsel %vm468, %v7227, 0
        %v7533 = vsel %vm468, %v7228, 0
        %v7536 = vsel %vm468, %v7229, 0
        %v7539 = vsel %vm468, %v7230, 0
        %v7542 = vsel %vm468, %v7231, 0
        %v7545 = vsel %vm468, %v7232, 0
        %v7548 = vsel %vm468, %v7233, 0
        %v7551 = vsel %vm468, %v7234, 0
        %v7554 = vsel %vm468, %v7235, 0
        %v7557 = vsel %vm468, %v7236, 0
        %v7560 = vsel %vm468, %v7237, 0
        %v7563 = vsel %vm468, %v7238, 0
        %7565 = vmatpush.bf16.msra.mxu0 0
        %7566 = vmatpush.bf16.msra.mxu0 0
        %7567 = vmatpush.bf16.msra.mxu0 0
        %7568 = vmatpush.bf16.msra.mxu0 0
        %7569 = vmatpush.bf16.msra.mxu0 %v7506
        %7570 = vmatpush.bf16.msra.mxu0 %v7505
        %7571 = vmatpush.bf16.msra.mxu0 %v7504
        %7572 = vmatpush.bf16.msra.mxu0 %v7503
        %7573 = vmatmul.bf16.gmra.mxu0 %v7512
        %v7574 = vpop.f32.mrf.mxu0
        %v7575 = vadd.f32 %v7398, %v7574
        %v7576 = vpop.f32.mrf.mxu0
        %v7577 = vadd.f32 %v7400, %v7576
        %7578 = vmatmul.bf16.gmra.mxu0 %v7515
        %v7579 = vpop.f32.mrf.mxu0
        %v7580 = vadd.f32 %v7403, %v7579
        %v7581 = vpop.f32.mrf.mxu0
        %v7582 = vadd.f32 %v7405, %v7581
        %7583 = vmatmul.bf16.gmra.mxu0 %v7518
        %v7584 = vpop.f32.mrf.mxu0
        %v7585 = vadd.f32 %v7408, %v7584
        %v7586 = vpop.f32.mrf.mxu0
        %v7587 = vadd.f32 %v7410, %v7586
        %7588 = vmatmul.bf16.gmra.mxu0 %v7521
        %v7589 = vpop.f32.mrf.mxu0
        %v7590 = vadd.f32 %v7413, %v7589
        %v7591 = vpop.f32.mrf.mxu0
        %v7592 = vadd.f32 %v7415, %v7591
        %7593 = vmatmul.bf16.gmra.mxu0 %v7524
        %v7594 = vpop.f32.mrf.mxu0
        %v7595 = vadd.f32 %v7418, %v7594
        %v7596 = vpop.f32.mrf.mxu0
        %v7597 = vadd.f32 %v7420, %v7596
        %7598 = vmatmul.bf16.gmra.mxu0 %v7527
        %v7599 = vpop.f32.mrf.mxu0
        %v7600 = vadd.f32 %v7423, %v7599
        %v7601 = vpop.f32.mrf.mxu0
        %v7602 = vadd.f32 %v7425, %v7601
        %7603 = vmatmul.bf16.gmra.mxu0 %v7530
        %v7604 = vpop.f32.mrf.mxu0
        %v7605 = vadd.f32 %v7428, %v7604
        %v7606 = vpop.f32.mrf.mxu0
        %v7607 = vadd.f32 %v7430, %v7606
        %7608 = vmatmul.bf16.gmra.mxu0 %v7533
        %v7609 = vpop.f32.mrf.mxu0
        %v7610 = vadd.f32 %v7433, %v7609
        %v7611 = vpop.f32.mrf.mxu0
        %v7612 = vadd.f32 %v7435, %v7611
        %7613 = vmatmul.bf16.gmra.mxu0 %v7536
        %v7614 = vpop.f32.mrf.mxu0
        %v7615 = vadd.f32 %v7438, %v7614
        %v7616 = vpop.f32.mrf.mxu0
        %v7617 = vadd.f32 %v7440, %v7616
        %7618 = vmatmul.bf16.gmra.mxu0 %v7539
        %v7619 = vpop.f32.mrf.mxu0
        %v7620 = vadd.f32 %v7443, %v7619
        %v7621 = vpop.f32.mrf.mxu0
        %v7622 = vadd.f32 %v7445, %v7621
        %7623 = vmatmul.bf16.gmra.mxu0 %v7542
        %v7624 = vpop.f32.mrf.mxu0
        %v7625 = vadd.f32 %v7448, %v7624
        %v7626 = vpop.f32.mrf.mxu0
        %v7627 = vadd.f32 %v7450, %v7626
        %7628 = vmatmul.bf16.gmra.mxu0 %v7545
        %v7629 = vpop.f32.mrf.mxu0
        %v7630 = vadd.f32 %v7453, %v7629
        %v7631 = vpop.f32.mrf.mxu0
        %v7632 = vadd.f32 %v7455, %v7631
        %7633 = vmatmul.bf16.gmra.mxu0 %v7548
        %v7634 = vpop.f32.mrf.mxu0
        %v7635 = vadd.f32 %v7458, %v7634
        %v7636 = vpop.f32.mrf.mxu0
        %v7637 = vadd.f32 %v7460, %v7636
        %7638 = vmatmul.bf16.gmra.mxu0 %v7551
        %v7639 = vpop.f32.mrf.mxu0
        %v7640 = vadd.f32 %v7463, %v7639
        %v7641 = vpop.f32.mrf.mxu0
        %v7642 = vadd.f32 %v7465, %v7641
        %7643 = vmatmul.bf16.gmra.mxu0 %v7554
        %v7644 = vpop.f32.mrf.mxu0
        %v7645 = vadd.f32 %v7468, %v7644
        %v7646 = vpop.f32.mrf.mxu0
        %v7647 = vadd.f32 %v7470, %v7646
        %7648 = vmatmul.bf16.gmra.mxu0 %v7557
        %v7649 = vpop.f32.mrf.mxu0
        %v7650 = vadd.f32 %v7473, %v7649
        %v7651 = vpop.f32.mrf.mxu0
        %v7652 = vadd.f32 %v7475, %v7651
        %7653 = vmatmul.bf16.gmra.mxu0 %v7560
        %v7654 = vpop.f32.mrf.mxu0
        %v7655 = vadd.f32 %v7478, %v7654
        %v7656 = vpop.f32.mrf.mxu0
        %v7657 = vadd.f32 %v7480, %v7656
        %7658 = vmatmul.bf16.gmra.mxu0 %v7563
        %v7659 = vpop.f32.mrf.mxu0
        %v7660 = vadd.f32 %v7483, %v7659
        %v7661 = vpop.f32.mrf.mxu0
        %v7662 = vadd.f32 %v7485, %v7661
        %7663 = vdwg.mxu0
        %v7664 = vld [vmem:[#allocation3 + $0x2] sm:$0xff]
        %v7665 = vld [vmem:[#allocation3 + $0xa] sm:$0xff]
        %v7666 = vld [vmem:[#allocation3 + $0x12] sm:$0xff]
        %v7667 = vld [vmem:[#allocation3 + $0x1a] sm:$0xff]
        %v7668 = vld [vmem:[#allocation3 + $0x22] sm:$0xff]
        %v7669 = vld [vmem:[#allocation3 + $0x2a] sm:$0xff]
        %v7670 = vld [vmem:[#allocation3 + $0x32] sm:$0xff]
        %v7671 = vld [vmem:[#allocation3 + $0x3a] sm:$0xff]
        %v7672 = vld [vmem:[#allocation3 + $0x42] sm:$0xff]
        %v7673 = vld [vmem:[#allocation3 + $0x4a] sm:$0xff]
        %v7674 = vld [vmem:[#allocation3 + $0x52] sm:$0xff]
        %v7675 = vld [vmem:[#allocation3 + $0x5a] sm:$0xff]
        %v7676 = vld [vmem:[#allocation3 + $0x62] sm:$0xff]
        %v7677 = vld [vmem:[#allocation3 + $0x6a] sm:$0xff]
        %v7678 = vld [vmem:[#allocation3 + $0x72] sm:$0xff]
        %v7679 = vld [vmem:[#allocation3 + $0x7a] sm:$0xff]
        %v7680 = vld [vmem:[#allocation3 + $0x82] sm:$0xff]
        %v7681 = vld [vmem:[#allocation3 + $0x8a] sm:$0xff]
        %v7682 = vld [vmem:[#allocation3 + $0x92] sm:$0xff]
        %v7683 = vld [vmem:[#allocation3 + $0x9a] sm:$0xff]
        %v7684 = vld [vmem:[#allocation3 + $0xa2] sm:$0xff]
        %v7685 = vld [vmem:[#allocation3 + $0xaa] sm:$0xff]
        %v7686 = vld [vmem:[#allocation3 + $0xb2] sm:$0xff]
        %v7687 = vld [vmem:[#allocation3 + $0xba] sm:$0xff]
        %v7688 = vld [vmem:[#allocation3 + $0xc2] sm:$0xff]
        %v7689 = vld [vmem:[#allocation3 + $0xca] sm:$0xff]
        %v7690 = vld [vmem:[#allocation3 + $0xd2] sm:$0xff]
        %v7691 = vld [vmem:[#allocation3 + $0xda] sm:$0xff]
        %v7692 = vld [vmem:[#allocation3 + $0xe2] sm:$0xff]
        %v7693 = vld [vmem:[#allocation3 + $0xea] sm:$0xff]
        %v7694 = vld [vmem:[#allocation3 + $0xf2] sm:$0xff]
        %v7695 = vld [vmem:[#allocation3 + $0xfa] sm:$0xff]
        %v7696 = vld [vmem:[#allocation3 + $0x102] sm:$0xff]
        %v7697 = vld [vmem:[#allocation3 + $0x10a] sm:$0xff]
        %v7698 = vld [vmem:[#allocation3 + $0x112] sm:$0xff]
        %v7699 = vld [vmem:[#allocation3 + $0x11a] sm:$0xff]
        %v7700 = vpack.c.bf16 %v7665, %v7664
        %v7701 = vpack.c.bf16 %v7667, %v7666
        %v7702 = vpack.c.bf16 %v7669, %v7668
        %v7703 = vpack.c.bf16 %v7671, %v7670
        %v7704 = vpack.c.bf16 %v7673, %v7672
        %v7705 = vpack.c.bf16 %v7675, %v7674
        %v7706 = vpack.c.bf16 %v7677, %v7676
        %v7707 = vpack.c.bf16 %v7679, %v7678
        %v7708 = vpack.c.bf16 %v7681, %v7680
        %v7709 = vpack.c.bf16 %v7683, %v7682
        %v7710 = vpack.c.bf16 %v7685, %v7684
        %v7711 = vpack.c.bf16 %v7687, %v7686
        %v7712 = vpack.c.bf16 %v7689, %v7688
        %v7713 = vpack.c.bf16 %v7691, %v7690
        %v7714 = vpack.c.bf16 %v7693, %v7692
        %v7715 = vpack.c.bf16 %v7695, %v7694
        %v7716 = vpack.c.bf16 %v7697, %v7696
        %v7717 = vpack.c.bf16 %v7699, %v7698
        %s7718 = scalar_lea.vmem [#allocation12], 64
        %v7719 = vld [vmem:[%s7718] sm:$0xf]
        %v7720 = vld [vmem:[%s7718 + $0x4] sm:$0xf]
        %v7721 = vld [vmem:[%s7718 + $0x8] sm:$0xf]
        %v7722 = vld [vmem:[%s7718 + $0xc] sm:$0xf]
        %v7723 = vld [vmem:[%s7718 + $0x10] sm:$0xf]
        %v7724 = vld [vmem:[%s7718 + $0x14] sm:$0xf]
        %v7725 = vld [vmem:[%s7718 + $0x18] sm:$0xf]
        %v7726 = vld [vmem:[%s7718 + $0x1c] sm:$0xf]
        %v7735 = vunpack.c.l.b16 %v7719
        %v7736 = vunpack.c.l.b16 %v7720
        %v7737 = vunpack.c.l.b16 %v7721
        %v7738 = vunpack.c.l.b16 %v7722
        %v7739 = vunpack.c.l.b16 %v7723
        %v7740 = vunpack.c.l.b16 %v7724
        %v7741 = vunpack.c.l.b16 %v7725
        %v7742 = vunpack.c.l.b16 %v7726
        %v7743 = vpack.c.b16 %v7736, %v7735
        %v7744 = vpack.c.b16 %v7738, %v7737
        %v7745 = vpack.c.b16 %v7740, %v7739
        %v7746 = vpack.c.b16 %v7742, %v7741
        %v7752 = vsel %vm468, %v7700, 0
        %v7755 = vsel %vm468, %v7701, 0
        %v7758 = vsel %vm468, %v7702, 0
        %v7761 = vsel %vm468, %v7703, 0
        %v7764 = vsel %vm468, %v7704, 0
        %v7767 = vsel %vm468, %v7705, 0
        %v7770 = vsel %vm468, %v7706, 0
        %v7773 = vsel %vm468, %v7707, 0
        %v7776 = vsel %vm468, %v7708, 0
        %v7779 = vsel %vm468, %v7709, 0
        %v7782 = vsel %vm468, %v7710, 0
        %v7785 = vsel %vm468, %v7711, 0
        %v7788 = vsel %vm468, %v7712, 0
        %v7791 = vsel %vm468, %v7713, 0
        %v7794 = vsel %vm468, %v7714, 0
        %v7797 = vsel %vm468, %v7715, 0
        %v7800 = vsel %vm468, %v7716, 0
        %v7803 = vsel %vm468, %v7717, 0
        %7805 = vmatpush.bf16.msra.mxu0 0
        %7806 = vmatpush.bf16.msra.mxu0 0
        %7807 = vmatpush.bf16.msra.mxu0 0
        %7808 = vmatpush.bf16.msra.mxu0 0
        %7809 = vmatpush.bf16.msra.mxu0 %v7746
        %7810 = vmatpush.bf16.msra.mxu0 %v7745
        %7811 = vmatpush.bf16.msra.mxu0 %v7744
        %7812 = vmatpush.bf16.msra.mxu0 %v7743
        %7813 = vmatmul.bf16.gmra.mxu0 %v7752
        %v7814 = vpop.f32.mrf.mxu0
        %v7815 = vadd.f32 0.0, %v7814
        %v7816 = vpop.f32.mrf.mxu0
        %v7817 = vadd.f32 0.0, %v7816
        %7818 = vmatmul.bf16.gmra.mxu0 %v7755
        %v7819 = vpop.f32.mrf.mxu0
        %v7820 = vadd.f32 0.0, %v7819
        %v7821 = vpop.f32.mrf.mxu0
        %v7822 = vadd.f32 0.0, %v7821
        %7823 = vmatmul.bf16.gmra.mxu0 %v7758
        %v7824 = vpop.f32.mrf.mxu0
        %v7825 = vadd.f32 0.0, %v7824
        %v7826 = vpop.f32.mrf.mxu0
        %v7827 = vadd.f32 0.0, %v7826
        %7828 = vmatmul.bf16.gmra.mxu0 %v7761
        %v7829 = vpop.f32.mrf.mxu0
        %v7830 = vadd.f32 0.0, %v7829
        %v7831 = vpop.f32.mrf.mxu0
        %v7832 = vadd.f32 0.0, %v7831
        %7833 = vmatmul.bf16.gmra.mxu0 %v7764
        %v7834 = vpop.f32.mrf.mxu0
        %v7835 = vadd.f32 0.0, %v7834
        %v7836 = vpop.f32.mrf.mxu0
        %v7837 = vadd.f32 0.0, %v7836
        %7838 = vmatmul.bf16.gmra.mxu0 %v7767
        %v7839 = vpop.f32.mrf.mxu0
        %v7840 = vadd.f32 0.0, %v7839
        %v7841 = vpop.f32.mrf.mxu0
        %v7842 = vadd.f32 0.0, %v7841
        %7843 = vmatmul.bf16.gmra.mxu0 %v7770
        %v7844 = vpop.f32.mrf.mxu0
        %v7845 = vadd.f32 0.0, %v7844
        %v7846 = vpop.f32.mrf.mxu0
        %v7847 = vadd.f32 0.0, %v7846
        %7848 = vmatmul.bf16.gmra.mxu0 %v7773
        %v7849 = vpop.f32.mrf.mxu0
        %v7850 = vadd.f32 0.0, %v7849
        %v7851 = vpop.f32.mrf.mxu0
        %v7852 = vadd.f32 0.0, %v7851
        %7853 = vmatmul.bf16.gmra.mxu0 %v7776
        %v7854 = vpop.f32.mrf.mxu0
        %v7855 = vadd.f32 0.0, %v7854
        %v7856 = vpop.f32.mrf.mxu0
        %v7857 = vadd.f32 0.0, %v7856
        %7858 = vmatmul.bf16.gmra.mxu0 %v7779
        %v7859 = vpop.f32.mrf.mxu0
        %v7860 = vadd.f32 0.0, %v7859
        %v7861 = vpop.f32.mrf.mxu0
        %v7862 = vadd.f32 0.0, %v7861
        %7863 = vmatmul.bf16.gmra.mxu0 %v7782
        %v7864 = vpop.f32.mrf.mxu0
        %v7865 = vadd.f32 0.0, %v7864
        %v7866 = vpop.f32.mrf.mxu0
        %v7867 = vadd.f32 0.0, %v7866
        %7868 = vmatmul.bf16.gmra.mxu0 %v7785
        %v7869 = vpop.f32.mrf.mxu0
        %v7870 = vadd.f32 0.0, %v7869
        %v7871 = vpop.f32.mrf.mxu0
        %v7872 = vadd.f32 0.0, %v7871
        %7873 = vmatmul.bf16.gmra.mxu0 %v7788
        %v7874 = vpop.f32.mrf.mxu0
        %v7875 = vadd.f32 0.0, %v7874
        %v7876 = vpop.f32.mrf.mxu0
        %v7877 = vadd.f32 0.0, %v7876
        %7878 = vmatmul.bf16.gmra.mxu0 %v7791
        %v7879 = vpop.f32.mrf.mxu0
        %v7880 = vadd.f32 0.0, %v7879
        %v7881 = vpop.f32.mrf.mxu0
        %v7882 = vadd.f32 0.0, %v7881
        %7883 = vmatmul.bf16.gmra.mxu0 %v7794
        %v7884 = vpop.f32.mrf.mxu0
        %v7885 = vadd.f32 0.0, %v7884
        %v7886 = vpop.f32.mrf.mxu0
        %v7887 = vadd.f32 0.0, %v7886
        %7888 = vmatmul.bf16.gmra.mxu0 %v7797
        %v7889 = vpop.f32.mrf.mxu0
        %v7890 = vadd.f32 0.0, %v7889
        %v7891 = vpop.f32.mrf.mxu0
        %v7892 = vadd.f32 0.0, %v7891
        %7893 = vmatmul.bf16.gmra.mxu0 %v7800
        %v7894 = vpop.f32.mrf.mxu0
        %v7895 = vadd.f32 0.0, %v7894
        %v7896 = vpop.f32.mrf.mxu0
        %v7897 = vadd.f32 0.0, %v7896
        %7898 = vmatmul.bf16.gmra.mxu0 %v7803
        %v7899 = vpop.f32.mrf.mxu0
        %v7900 = vadd.f32 0.0, %v7899
        %v7901 = vpop.f32.mrf.mxu0
        %v7902 = vadd.f32 0.0, %v7901
        %7903 = vdwg.mxu0
        %v7904 = vadd.f32 %v7575, %v7815
        %v7905 = vadd.f32 %v7577, %v7817
        %v7906 = vadd.f32 %v7580, %v7820
        %v7907 = vadd.f32 %v7582, %v7822
        %v7908 = vadd.f32 %v7585, %v7825
        %v7909 = vadd.f32 %v7587, %v7827
        %v7910 = vadd.f32 %v7590, %v7830
        %v7911 = vadd.f32 %v7592, %v7832
        %v7912 = vadd.f32 %v7595, %v7835
        %v7913 = vadd.f32 %v7597, %v7837
        %v7914 = vadd.f32 %v7600, %v7840
        %v7915 = vadd.f32 %v7602, %v7842
        %v7916 = vadd.f32 %v7605, %v7845
        %v7917 = vadd.f32 %v7607, %v7847
        %v7918 = vadd.f32 %v7610, %v7850
        %v7919 = vadd.f32 %v7612, %v7852
        %v7920 = vadd.f32 %v7615, %v7855
        %v7921 = vadd.f32 %v7617, %v7857
        %v7922 = vadd.f32 %v7620, %v7860
        %v7923 = vadd.f32 %v7622, %v7862
        %v7924 = vadd.f32 %v7625, %v7865
        %v7925 = vadd.f32 %v7627, %v7867
        %v7926 = vadd.f32 %v7630, %v7870
        %v7927 = vadd.f32 %v7632, %v7872
        %v7928 = vadd.f32 %v7635, %v7875
        %v7929 = vadd.f32 %v7637, %v7877
        %v7930 = vadd.f32 %v7640, %v7880
        %v7931 = vadd.f32 %v7642, %v7882
        %v7932 = vadd.f32 %v7645, %v7885
        %v7933 = vadd.f32 %v7647, %v7887
        %v7934 = vadd.f32 %v7650, %v7890
        %v7935 = vadd.f32 %v7652, %v7892
        %v7936 = vadd.f32 %v7655, %v7895
        %v7937 = vadd.f32 %v7657, %v7897
        %v7938 = vadd.f32 %v7660, %v7900
        %v7939 = vadd.f32 %v7662, %v7902
        %v7940 = vld [vmem:[#allocation3 + $0x12] sm:$0xff]
        %v7941 = vld [vmem:[#allocation3 + $0x1a] sm:$0xff]
        %v7942 = vld [vmem:[#allocation3 + $0x22] sm:$0xff]
        %v7943 = vld [vmem:[#allocation3 + $0x2a] sm:$0xff]
        %v7944 = vld [vmem:[#allocation3 + $0x32] sm:$0xff]
        %v7945 = vld [vmem:[#allocation3 + $0x3a] sm:$0xff]
        %v7946 = vld [vmem:[#allocation3 + $0x42] sm:$0xff]
        %v7947 = vld [vmem:[#allocation3 + $0x4a] sm:$0xff]
        %v7948 = vld [vmem:[#allocation3 + $0x52] sm:$0xff]
        %v7949 = vld [vmem:[#allocation3 + $0x5a] sm:$0xff]
        %v7950 = vld [vmem:[#allocation3 + $0x62] sm:$0xff]
        %v7951 = vld [vmem:[#allocation3 + $0x6a] sm:$0xff]
        %v7952 = vld [vmem:[#allocation3 + $0x72] sm:$0xff]
        %v7953 = vld [vmem:[#allocation3 + $0x7a] sm:$0xff]
        %v7954 = vld [vmem:[#allocation3 + $0x82] sm:$0xff]
        %v7955 = vld [vmem:[#allocation3 + $0x8a] sm:$0xff]
        %v7956 = vld [vmem:[#allocation3 + $0x92] sm:$0xff]
        %v7957 = vld [vmem:[#allocation3 + $0x9a] sm:$0xff]
        %v7958 = vld [vmem:[#allocation3 + $0xa2] sm:$0xff]
        %v7959 = vld [vmem:[#allocation3 + $0xaa] sm:$0xff]
        %v7960 = vld [vmem:[#allocation3 + $0xb2] sm:$0xff]
        %v7961 = vld [vmem:[#allocation3 + $0xba] sm:$0xff]
        %v7962 = vld [vmem:[#allocation3 + $0xc2] sm:$0xff]
        %v7963 = vld [vmem:[#allocation3 + $0xca] sm:$0xff]
        %v7964 = vld [vmem:[#allocation3 + $0xd2] sm:$0xff]
        %v7965 = vld [vmem:[#allocation3 + $0xda] sm:$0xff]
        %v7966 = vld [vmem:[#allocation3 + $0xe2] sm:$0xff]
        %v7967 = vld [vmem:[#allocation3 + $0xea] sm:$0xff]
        %v7968 = vld [vmem:[#allocation3 + $0xf2] sm:$0xff]
        %v7969 = vld [vmem:[#allocation3 + $0xfa] sm:$0xff]
        %v7970 = vld [vmem:[#allocation3 + $0x102] sm:$0xff]
        %v7971 = vld [vmem:[#allocation3 + $0x10a] sm:$0xff]
        %v7972 = vld [vmem:[#allocation3 + $0x112] sm:$0xff]
        %v7973 = vld [vmem:[#allocation3 + $0x11a] sm:$0xff]
        %v7974 = vld [vmem:[#allocation3 + $0x122] sm:$0xff]
        %v7975 = vld [vmem:[#allocation3 + $0x12a] sm:$0xff]
        %v7976 = vpack.c.bf16 %v7941, %v7940
        %v7977 = vpack.c.bf16 %v7943, %v7942
        %v7978 = vpack.c.bf16 %v7945, %v7944
        %v7979 = vpack.c.bf16 %v7947, %v7946
        %v7980 = vpack.c.bf16 %v7949, %v7948
        %v7981 = vpack.c.bf16 %v7951, %v7950
        %v7982 = vpack.c.bf16 %v7953, %v7952
        %v7983 = vpack.c.bf16 %v7955, %v7954
        %v7984 = vpack.c.bf16 %v7957, %v7956
        %v7985 = vpack.c.bf16 %v7959, %v7958
        %v7986 = vpack.c.bf16 %v7961, %v7960
        %v7987 = vpack.c.bf16 %v7963, %v7962
        %v7988 = vpack.c.bf16 %v7965, %v7964
        %v7989 = vpack.c.bf16 %v7967, %v7966
        %v7990 = vpack.c.bf16 %v7969, %v7968
        %v7991 = vpack.c.bf16 %v7971, %v7970
        %v7992 = vpack.c.bf16 %v7973, %v7972
        %v7993 = vpack.c.bf16 %v7975, %v7974
        %s7994 = scalar_lea.vmem [#allocation12], 96
        %v7995 = vld [vmem:[%s7994] sm:$0xf]
        %v7996 = vld [vmem:[%s7994 + $0x4] sm:$0xf]
        %v7997 = vld [vmem:[%s7994 + $0x8] sm:$0xf]
        %v7998 = vld [vmem:[%s7994 + $0xc] sm:$0xf]
        %v7999 = vld [vmem:[%s7994 + $0x10] sm:$0xf]
        %v8000 = vld [vmem:[%s7994 + $0x14] sm:$0xf]
        %v8001 = vld [vmem:[%s7994 + $0x18] sm:$0xf]
        %v8002 = vld [vmem:[%s7994 + $0x1c] sm:$0xf]
        %v8011 = vunpack.c.l.b16 %v7995
        %v8012 = vunpack.c.l.b16 %v7996
        %v8013 = vunpack.c.l.b16 %v7997
        %v8014 = vunpack.c.l.b16 %v7998
        %v8015 = vunpack.c.l.b16 %v7999
        %v8016 = vunpack.c.l.b16 %v8000
        %v8017 = vunpack.c.l.b16 %v8001
        %v8018 = vunpack.c.l.b16 %v8002
        %v8019 = vpack.c.b16 %v8012, %v8011
        %v8020 = vpack.c.b16 %v8014, %v8013
        %v8021 = vpack.c.b16 %v8016, %v8015
        %v8022 = vpack.c.b16 %v8018, %v8017
        %v8028 = vsel %vm468, %v7976, 0
        %v8031 = vsel %vm468, %v7977, 0
        %v8034 = vsel %vm468, %v7978, 0
        %v8037 = vsel %vm468, %v7979, 0
        %v8040 = vsel %vm468, %v7980, 0
        %v8043 = vsel %vm468, %v7981, 0
        %v8046 = vsel %vm468, %v7982, 0
        %v8049 = vsel %vm468, %v7983, 0
        %v8052 = vsel %vm468, %v7984, 0
        %v8055 = vsel %vm468, %v7985, 0
        %v8058 = vsel %vm468, %v7986, 0
        %v8061 = vsel %vm468, %v7987, 0
        %v8064 = vsel %vm468, %v7988, 0
        %v8067 = vsel %vm468, %v7989, 0
        %v8070 = vsel %vm468, %v7990, 0
        %v8073 = vsel %vm468, %v7991, 0
        %v8076 = vsel %vm468, %v7992, 0
        %v8079 = vsel %vm468, %v7993, 0
        %8081 = vmatpush.bf16.msra.mxu0 0
        %8082 = vmatpush.bf16.msra.mxu0 0
        %8083 = vmatpush.bf16.msra.mxu0 0
        %8084 = vmatpush.bf16.msra.mxu0 0
        %8085 = vmatpush.bf16.msra.mxu0 %v8022
        %8086 = vmatpush.bf16.msra.mxu0 %v8021
        %8087 = vmatpush.bf16.msra.mxu0 %v8020
        %8088 = vmatpush.bf16.msra.mxu0 %v8019
        %8089 = vmatmul.bf16.gmra.mxu0 %v8028
        %v8090 = vpop.f32.mrf.mxu0
        %v8091 = vadd.f32 0.0, %v8090
        %v8092 = vpop.f32.mrf.mxu0
        %v8093 = vadd.f32 0.0, %v8092
        %8094 = vmatmul.bf16.gmra.mxu0 %v8031
        %v8095 = vpop.f32.mrf.mxu0
        %v8096 = vadd.f32 0.0, %v8095
        %v8097 = vpop.f32.mrf.mxu0
        %v8098 = vadd.f32 0.0, %v8097
        %8099 = vmatmul.bf16.gmra.mxu0 %v8034
        %v8100 = vpop.f32.mrf.mxu0
        %v8101 = vadd.f32 0.0, %v8100
        %v8102 = vpop.f32.mrf.mxu0
        %v8103 = vadd.f32 0.0, %v8102
        %8104 = vmatmul.bf16.gmra.mxu0 %v8037
        %v8105 = vpop.f32.mrf.mxu0
        %v8106 = vadd.f32 0.0, %v8105
        %v8107 = vpop.f32.mrf.mxu0
        %v8108 = vadd.f32 0.0, %v8107
        %8109 = vmatmul.bf16.gmra.mxu0 %v8040
        %v8110 = vpop.f32.mrf.mxu0
        %v8111 = vadd.f32 0.0, %v8110
        %v8112 = vpop.f32.mrf.mxu0
        %v8113 = vadd.f32 0.0, %v8112
        %8114 = vmatmul.bf16.gmra.mxu0 %v8043
        %v8115 = vpop.f32.mrf.mxu0
        %v8116 = vadd.f32 0.0, %v8115
        %v8117 = vpop.f32.mrf.mxu0
        %v8118 = vadd.f32 0.0, %v8117
        %8119 = vmatmul.bf16.gmra.mxu0 %v8046
        %v8120 = vpop.f32.mrf.mxu0
        %v8121 = vadd.f32 0.0, %v8120
        %v8122 = vpop.f32.mrf.mxu0
        %v8123 = vadd.f32 0.0, %v8122
        %8124 = vmatmul.bf16.gmra.mxu0 %v8049
        %v8125 = vpop.f32.mrf.mxu0
        %v8126 = vadd.f32 0.0, %v8125
        %v8127 = vpop.f32.mrf.mxu0
        %v8128 = vadd.f32 0.0, %v8127
        %8129 = vmatmul.bf16.gmra.mxu0 %v8052
        %v8130 = vpop.f32.mrf.mxu0
        %v8131 = vadd.f32 0.0, %v8130
        %v8132 = vpop.f32.mrf.mxu0
        %v8133 = vadd.f32 0.0, %v8132
        %8134 = vmatmul.bf16.gmra.mxu0 %v8055
        %v8135 = vpop.f32.mrf.mxu0
        %v8136 = vadd.f32 0.0, %v8135
        %v8137 = vpop.f32.mrf.mxu0
        %v8138 = vadd.f32 0.0, %v8137
        %8139 = vmatmul.bf16.gmra.mxu0 %v8058
        %v8140 = vpop.f32.mrf.mxu0
        %v8141 = vadd.f32 0.0, %v8140
        %v8142 = vpop.f32.mrf.mxu0
        %v8143 = vadd.f32 0.0, %v8142
        %8144 = vmatmul.bf16.gmra.mxu0 %v8061
        %v8145 = vpop.f32.mrf.mxu0
        %v8146 = vadd.f32 0.0, %v8145
        %v8147 = vpop.f32.mrf.mxu0
        %v8148 = vadd.f32 0.0, %v8147
        %8149 = vmatmul.bf16.gmra.mxu0 %v8064
        %v8150 = vpop.f32.mrf.mxu0
        %v8151 = vadd.f32 0.0, %v8150
        %v8152 = vpop.f32.mrf.mxu0
        %v8153 = vadd.f32 0.0, %v8152
        %8154 = vmatmul.bf16.gmra.mxu0 %v8067
        %v8155 = vpop.f32.mrf.mxu0
        %v8156 = vadd.f32 0.0, %v8155
        %v8157 = vpop.f32.mrf.mxu0
        %v8158 = vadd.f32 0.0, %v8157
        %8159 = vmatmul.bf16.gmra.mxu0 %v8070
        %v8160 = vpop.f32.mrf.mxu0
        %v8161 = vadd.f32 0.0, %v8160
        %v8162 = vpop.f32.mrf.mxu0
        %v8163 = vadd.f32 0.0, %v8162
        %8164 = vmatmul.bf16.gmra.mxu0 %v8073
        %v8165 = vpop.f32.mrf.mxu0
        %v8166 = vadd.f32 0.0, %v8165
        %v8167 = vpop.f32.mrf.mxu0
        %v8168 = vadd.f32 0.0, %v8167
        %8169 = vmatmul.bf16.gmra.mxu0 %v8076
        %v8170 = vpop.f32.mrf.mxu0
        %v8171 = vadd.f32 0.0, %v8170
        %v8172 = vpop.f32.mrf.mxu0
        %v8173 = vadd.f32 0.0, %v8172
        %8174 = vmatmul.bf16.gmra.mxu0 %v8079
        %v8175 = vpop.f32.mrf.mxu0
        %v8176 = vadd.f32 0.0, %v8175
        %v8177 = vpop.f32.mrf.mxu0
        %v8178 = vadd.f32 0.0, %v8177
        %8179 = vdwg.mxu0
        %v8180 = vadd.f32 %v7904, %v8091
        %v8181 = vadd.f32 %v7905, %v8093
        %v8182 = vadd.f32 %v7906, %v8096
        %v8183 = vadd.f32 %v7907, %v8098
        %v8184 = vadd.f32 %v7908, %v8101
        %v8185 = vadd.f32 %v7909, %v8103
        %v8186 = vadd.f32 %v7910, %v8106
        %v8187 = vadd.f32 %v7911, %v8108
        %v8188 = vadd.f32 %v7912, %v8111
        %v8189 = vadd.f32 %v7913, %v8113
        %v8190 = vadd.f32 %v7914, %v8116
        %v8191 = vadd.f32 %v7915, %v8118
        %v8192 = vadd.f32 %v7916, %v8121
        %v8193 = vadd.f32 %v7917, %v8123
        %v8194 = vadd.f32 %v7918, %v8126
        %v8195 = vadd.f32 %v7919, %v8128
        %v8196 = vadd.f32 %v7920, %v8131
        %v8197 = vadd.f32 %v7921, %v8133
        %v8198 = vadd.f32 %v7922, %v8136
        %v8199 = vadd.f32 %v7923, %v8138
        %v8200 = vadd.f32 %v7924, %v8141
        %v8201 = vadd.f32 %v7925, %v8143
        %v8202 = vadd.f32 %v7926, %v8146
        %v8203 = vadd.f32 %v7927, %v8148
        %v8204 = vadd.f32 %v7928, %v8151
        %v8205 = vadd.f32 %v7929, %v8153
        %v8206 = vadd.f32 %v7930, %v8156
        %v8207 = vadd.f32 %v7931, %v8158
        %v8208 = vadd.f32 %v7932, %v8161
        %v8209 = vadd.f32 %v7933, %v8163
        %v8210 = vadd.f32 %v7934, %v8166
        %v8211 = vadd.f32 %v7935, %v8168
        %v8212 = vadd.f32 %v7936, %v8171
        %v8213 = vadd.f32 %v7937, %v8173
        %v8214 = vadd.f32 %v7938, %v8176
        %v8215 = vadd.f32 %v7939, %v8178
        %v8216 = vld [vmem:[#allocation3 + $0x13] sm:$0xff]
        %v8217 = vld [vmem:[#allocation3 + $0x1b] sm:$0xff]
        %v8218 = vld [vmem:[#allocation3 + $0x23] sm:$0xff]
        %v8219 = vld [vmem:[#allocation3 + $0x2b] sm:$0xff]
        %v8220 = vld [vmem:[#allocation3 + $0x33] sm:$0xff]
        %v8221 = vld [vmem:[#allocation3 + $0x3b] sm:$0xff]
        %v8222 = vld [vmem:[#allocation3 + $0x43] sm:$0xff]
        %v8223 = vld [vmem:[#allocation3 + $0x4b] sm:$0xff]
        %v8224 = vld [vmem:[#allocation3 + $0x53] sm:$0xff]
        %v8225 = vld [vmem:[#allocation3 + $0x5b] sm:$0xff]
        %v8226 = vld [vmem:[#allocation3 + $0x63] sm:$0xff]
        %v8227 = vld [vmem:[#allocation3 + $0x6b] sm:$0xff]
        %v8228 = vld [vmem:[#allocation3 + $0x73] sm:$0xff]
        %v8229 = vld [vmem:[#allocation3 + $0x7b] sm:$0xff]
        %v8230 = vld [vmem:[#allocation3 + $0x83] sm:$0xff]
        %v8231 = vld [vmem:[#allocation3 + $0x8b] sm:$0xff]
        %v8232 = vld [vmem:[#allocation3 + $0x93] sm:$0xff]
        %v8233 = vld [vmem:[#allocation3 + $0x9b] sm:$0xff]
        %v8234 = vld [vmem:[#allocation3 + $0xa3] sm:$0xff]
        %v8235 = vld [vmem:[#allocation3 + $0xab] sm:$0xff]
        %v8236 = vld [vmem:[#allocation3 + $0xb3] sm:$0xff]
        %v8237 = vld [vmem:[#allocation3 + $0xbb] sm:$0xff]
        %v8238 = vld [vmem:[#allocation3 + $0xc3] sm:$0xff]
        %v8239 = vld [vmem:[#allocation3 + $0xcb] sm:$0xff]
        %v8240 = vld [vmem:[#allocation3 + $0xd3] sm:$0xff]
        %v8241 = vld [vmem:[#allocation3 + $0xdb] sm:$0xff]
        %v8242 = vld [vmem:[#allocation3 + $0xe3] sm:$0xff]
        %v8243 = vld [vmem:[#allocation3 + $0xeb] sm:$0xff]
        %v8244 = vld [vmem:[#allocation3 + $0xf3] sm:$0xff]
        %v8245 = vld [vmem:[#allocation3 + $0xfb] sm:$0xff]
        %v8246 = vld [vmem:[#allocation3 + $0x103] sm:$0xff]
        %v8247 = vld [vmem:[#allocation3 + $0x10b] sm:$0xff]
        %v8248 = vld [vmem:[#allocation3 + $0x113] sm:$0xff]
        %v8249 = vld [vmem:[#allocation3 + $0x11b] sm:$0xff]
        %v8250 = vld [vmem:[#allocation3 + $0x123] sm:$0xff]
        %v8251 = vld [vmem:[#allocation3 + $0x12b] sm:$0xff]
        %v8252 = vpack.c.bf16 %v8217, %v8216
        %v8253 = vpack.c.bf16 %v8219, %v8218
        %v8254 = vpack.c.bf16 %v8221, %v8220
        %v8255 = vpack.c.bf16 %v8223, %v8222
        %v8256 = vpack.c.bf16 %v8225, %v8224
        %v8257 = vpack.c.bf16 %v8227, %v8226
        %v8258 = vpack.c.bf16 %v8229, %v8228
        %v8259 = vpack.c.bf16 %v8231, %v8230
        %v8260 = vpack.c.bf16 %v8233, %v8232
        %v8261 = vpack.c.bf16 %v8235, %v8234
        %v8262 = vpack.c.bf16 %v8237, %v8236
        %v8263 = vpack.c.bf16 %v8239, %v8238
        %v8264 = vpack.c.bf16 %v8241, %v8240
        %v8265 = vpack.c.bf16 %v8243, %v8242
        %v8266 = vpack.c.bf16 %v8245, %v8244
        %v8267 = vpack.c.bf16 %v8247, %v8246
        %v8268 = vpack.c.bf16 %v8249, %v8248
        %v8269 = vpack.c.bf16 %v8251, %v8250
        %s8270 = scalar_lea.vmem [#allocation12], 128
        %v8271 = vld [vmem:[%s8270] sm:$0xf]
        %v8272 = vld [vmem:[%s8270 + $0x4] sm:$0xf]
        %v8273 = vld [vmem:[%s8270 + $0x8] sm:$0xf]
        %v8274 = vld [vmem:[%s8270 + $0xc] sm:$0xf]
        %v8275 = vld [vmem:[%s8270 + $0x10] sm:$0xf]
        %v8276 = vld [vmem:[%s8270 + $0x14] sm:$0xf]
        %v8277 = vld [vmem:[%s8270 + $0x18] sm:$0xf]
        %v8278 = vld [vmem:[%s8270 + $0x1c] sm:$0xf]
        %v8287 = vunpack.c.l.b16 %v8271
        %v8288 = vunpack.c.l.b16 %v8272
        %v8289 = vunpack.c.l.b16 %v8273
        %v8290 = vunpack.c.l.b16 %v8274
        %v8291 = vunpack.c.l.b16 %v8275
        %v8292 = vunpack.c.l.b16 %v8276
        %v8293 = vunpack.c.l.b16 %v8277
        %v8294 = vunpack.c.l.b16 %v8278
        %v8295 = vpack.c.b16 %v8288, %v8287
        %v8296 = vpack.c.b16 %v8290, %v8289
        %v8297 = vpack.c.b16 %v8292, %v8291
        %v8298 = vpack.c.b16 %v8294, %v8293
        %v8304 = vsel %vm468, %v8252, 0
        %v8307 = vsel %vm468, %v8253, 0
        %v8310 = vsel %vm468, %v8254, 0
        %v8313 = vsel %vm468, %v8255, 0
        %v8316 = vsel %vm468, %v8256, 0
        %v8319 = vsel %vm468, %v8257, 0
        %v8322 = vsel %vm468, %v8258, 0
        %v8325 = vsel %vm468, %v8259, 0
        %v8328 = vsel %vm468, %v8260, 0
        %v8331 = vsel %vm468, %v8261, 0
        %v8334 = vsel %vm468, %v8262, 0
        %v8337 = vsel %vm468, %v8263, 0
        %v8340 = vsel %vm468, %v8264, 0
        %v8343 = vsel %vm468, %v8265, 0
        %v8346 = vsel %vm468, %v8266, 0
        %v8349 = vsel %vm468, %v8267, 0
        %v8352 = vsel %vm468, %v8268, 0
        %v8355 = vsel %vm468, %v8269, 0
        %8357 = vmatpush.bf16.msra.mxu0 0
        %8358 = vmatpush.bf16.msra.mxu0 0
        %8359 = vmatpush.bf16.msra.mxu0 0
        %8360 = vmatpush.bf16.msra.mxu0 0
        %8361 = vmatpush.bf16.msra.mxu0 %v8298
        %8362 = vmatpush.bf16.msra.mxu0 %v8297
        %8363 = vmatpush.bf16.msra.mxu0 %v8296
        %8364 = vmatpush.bf16.msra.mxu0 %v8295
        %8365 = vmatmul.bf16.gmra.mxu0 %v8304
        %v8366 = vpop.f32.mrf.mxu0
        %v8367 = vadd.f32 0.0, %v8366
        %v8368 = vpop.f32.mrf.mxu0
        %v8369 = vadd.f32 0.0, %v8368
        %8370 = vmatmul.bf16.gmra.mxu0 %v8307
        %v8371 = vpop.f32.mrf.mxu0
        %v8372 = vadd.f32 0.0, %v8371
        %v8373 = vpop.f32.mrf.mxu0
        %v8374 = vadd.f32 0.0, %v8373
        %8375 = vmatmul.bf16.gmra.mxu0 %v8310
        %v8376 = vpop.f32.mrf.mxu0
        %v8377 = vadd.f32 0.0, %v8376
        %v8378 = vpop.f32.mrf.mxu0
        %v8379 = vadd.f32 0.0, %v8378
        %8380 = vmatmul.bf16.gmra.mxu0 %v8313
        %v8381 = vpop.f32.mrf.mxu0
        %v8382 = vadd.f32 0.0, %v8381
        %v8383 = vpop.f32.mrf.mxu0
        %v8384 = vadd.f32 0.0, %v8383
        %8385 = vmatmul.bf16.gmra.mxu0 %v8316
        %v8386 = vpop.f32.mrf.mxu0
        %v8387 = vadd.f32 0.0, %v8386
        %v8388 = vpop.f32.mrf.mxu0
        %v8389 = vadd.f32 0.0, %v8388
        %8390 = vmatmul.bf16.gmra.mxu0 %v8319
        %v8391 = vpop.f32.mrf.mxu0
        %v8392 = vadd.f32 0.0, %v8391
        %v8393 = vpop.f32.mrf.mxu0
        %v8394 = vadd.f32 0.0, %v8393
        %8395 = vmatmul.bf16.gmra.mxu0 %v8322
        %v8396 = vpop.f32.mrf.mxu0
        %v8397 = vadd.f32 0.0, %v8396
        %v8398 = vpop.f32.mrf.mxu0
        %v8399 = vadd.f32 0.0, %v8398
        %8400 = vmatmul.bf16.gmra.mxu0 %v8325
        %v8401 = vpop.f32.mrf.mxu0
        %v8402 = vadd.f32 0.0, %v8401
        %v8403 = vpop.f32.mrf.mxu0
        %v8404 = vadd.f32 0.0, %v8403
        %8405 = vmatmul.bf16.gmra.mxu0 %v8328
        %v8406 = vpop.f32.mrf.mxu0
        %v8407 = vadd.f32 0.0, %v8406
        %v8408 = vpop.f32.mrf.mxu0
        %v8409 = vadd.f32 0.0, %v8408
        %8410 = vmatmul.bf16.gmra.mxu0 %v8331
        %v8411 = vpop.f32.mrf.mxu0
        %v8412 = vadd.f32 0.0, %v8411
        %v8413 = vpop.f32.mrf.mxu0
        %v8414 = vadd.f32 0.0, %v8413
        %8415 = vmatmul.bf16.gmra.mxu0 %v8334
        %v8416 = vpop.f32.mrf.mxu0
        %v8417 = vadd.f32 0.0, %v8416
        %v8418 = vpop.f32.mrf.mxu0
        %v8419 = vadd.f32 0.0, %v8418
        %8420 = vmatmul.bf16.gmra.mxu0 %v8337
        %v8421 = vpop.f32.mrf.mxu0
        %v8422 = vadd.f32 0.0, %v8421
        %v8423 = vpop.f32.mrf.mxu0
        %v8424 = vadd.f32 0.0, %v8423
        %8425 = vmatmul.bf16.gmra.mxu0 %v8340
        %v8426 = vpop.f32.mrf.mxu0
        %v8427 = vadd.f32 0.0, %v8426
        %v8428 = vpop.f32.mrf.mxu0
        %v8429 = vadd.f32 0.0, %v8428
        %8430 = vmatmul.bf16.gmra.mxu0 %v8343
        %v8431 = vpop.f32.mrf.mxu0
        %v8432 = vadd.f32 0.0, %v8431
        %v8433 = vpop.f32.mrf.mxu0
        %v8434 = vadd.f32 0.0, %v8433
        %8435 = vmatmul.bf16.gmra.mxu0 %v8346
        %v8436 = vpop.f32.mrf.mxu0
        %v8437 = vadd.f32 0.0, %v8436
        %v8438 = vpop.f32.mrf.mxu0
        %v8439 = vadd.f32 0.0, %v8438
        %8440 = vmatmul.bf16.gmra.mxu0 %v8349
        %v8441 = vpop.f32.mrf.mxu0
        %v8442 = vadd.f32 0.0, %v8441
        %v8443 = vpop.f32.mrf.mxu0
        %v8444 = vadd.f32 0.0, %v8443
        %8445 = vmatmul.bf16.gmra.mxu0 %v8352
        %v8446 = vpop.f32.mrf.mxu0
        %v8447 = vadd.f32 0.0, %v8446
        %v8448 = vpop.f32.mrf.mxu0
        %v8449 = vadd.f32 0.0, %v8448
        %8450 = vmatmul.bf16.gmra.mxu0 %v8355
        %v8451 = vpop.f32.mrf.mxu0
        %v8452 = vadd.f32 0.0, %v8451
        %v8453 = vpop.f32.mrf.mxu0
        %v8454 = vadd.f32 0.0, %v8453
        %8455 = vdwg.mxu0
        %v8456 = vadd.f32 %v8180, %v8367
        %v8457 = vadd.f32 %v8181, %v8369
        %v8458 = vadd.f32 %v8182, %v8372
        %v8459 = vadd.f32 %v8183, %v8374
        %v8460 = vadd.f32 %v8184, %v8377
        %v8461 = vadd.f32 %v8185, %v8379
        %v8462 = vadd.f32 %v8186, %v8382
        %v8463 = vadd.f32 %v8187, %v8384
        %v8464 = vadd.f32 %v8188, %v8387
        %v8465 = vadd.f32 %v8189, %v8389
        %v8466 = vadd.f32 %v8190, %v8392
        %v8467 = vadd.f32 %v8191, %v8394
        %v8468 = vadd.f32 %v8192, %v8397
        %v8469 = vadd.f32 %v8193, %v8399
        %v8470 = vadd.f32 %v8194, %v8402
        %v8471 = vadd.f32 %v8195, %v8404
        %v8472 = vadd.f32 %v8196, %v8407
        %v8473 = vadd.f32 %v8197, %v8409
        %v8474 = vadd.f32 %v8198, %v8412
        %v8475 = vadd.f32 %v8199, %v8414
        %v8476 = vadd.f32 %v8200, %v8417
        %v8477 = vadd.f32 %v8201, %v8419
        %v8478 = vadd.f32 %v8202, %v8422
        %v8479 = vadd.f32 %v8203, %v8424
        %v8480 = vadd.f32 %v8204, %v8427
        %v8481 = vadd.f32 %v8205, %v8429
        %v8482 = vadd.f32 %v8206, %v8432
        %v8483 = vadd.f32 %v8207, %v8434
        %v8484 = vadd.f32 %v8208, %v8437
        %v8485 = vadd.f32 %v8209, %v8439
        %v8486 = vadd.f32 %v8210, %v8442
        %v8487 = vadd.f32 %v8211, %v8444
        %v8488 = vadd.f32 %v8212, %v8447
        %v8489 = vadd.f32 %v8213, %v8449
        %v8490 = vadd.f32 %v8214, %v8452
        %v8491 = vadd.f32 %v8215, %v8454
        %v8492 = vld [vmem:[#allocation3 + $0x14] sm:$0xff]
        %v8493 = vld [vmem:[#allocation3 + $0x1c] sm:$0xff]
        %v8494 = vld [vmem:[#allocation3 + $0x24] sm:$0xff]
        %v8495 = vld [vmem:[#allocation3 + $0x2c] sm:$0xff]
        %v8496 = vld [vmem:[#allocation3 + $0x34] sm:$0xff]
        %v8497 = vld [vmem:[#allocation3 + $0x3c] sm:$0xff]
        %v8498 = vld [vmem:[#allocation3 + $0x44] sm:$0xff]
        %v8499 = vld [vmem:[#allocation3 + $0x4c] sm:$0xff]
        %v8500 = vld [vmem:[#allocation3 + $0x54] sm:$0xff]
        %v8501 = vld [vmem:[#allocation3 + $0x5c] sm:$0xff]
        %v8502 = vld [vmem:[#allocation3 + $0x64] sm:$0xff]
        %v8503 = vld [vmem:[#allocation3 + $0x6c] sm:$0xff]
        %v8504 = vld [vmem:[#allocation3 + $0x74] sm:$0xff]
        %v8505 = vld [vmem:[#allocation3 + $0x7c] sm:$0xff]
        %v8506 = vld [vmem:[#allocation3 + $0x84] sm:$0xff]
        %v8507 = vld [vmem:[#allocation3 + $0x8c] sm:$0xff]
        %v8508 = vld [vmem:[#allocation3 + $0x94] sm:$0xff]
        %v8509 = vld [vmem:[#allocation3 + $0x9c] sm:$0xff]
        %v8510 = vld [vmem:[#allocation3 + $0xa4] sm:$0xff]
        %v8511 = vld [vmem:[#allocation3 + $0xac] sm:$0xff]
        %v8512 = vld [vmem:[#allocation3 + $0xb4] sm:$0xff]
        %v8513 = vld [vmem:[#allocation3 + $0xbc] sm:$0xff]
        %v8514 = vld [vmem:[#allocation3 + $0xc4] sm:$0xff]
        %v8515 = vld [vmem:[#allocation3 + $0xcc] sm:$0xff]
        %v8516 = vld [vmem:[#allocation3 + $0xd4] sm:$0xff]
        %v8517 = vld [vmem:[#allocation3 + $0xdc] sm:$0xff]
        %v8518 = vld [vmem:[#allocation3 + $0xe4] sm:$0xff]
        %v8519 = vld [vmem:[#allocation3 + $0xec] sm:$0xff]
        %v8520 = vld [vmem:[#allocation3 + $0xf4] sm:$0xff]
        %v8521 = vld [vmem:[#allocation3 + $0xfc] sm:$0xff]
        %v8522 = vld [vmem:[#allocation3 + $0x104] sm:$0xff]
        %v8523 = vld [vmem:[#allocation3 + $0x10c] sm:$0xff]
        %v8524 = vld [vmem:[#allocation3 + $0x114] sm:$0xff]
        %v8525 = vld [vmem:[#allocation3 + $0x11c] sm:$0xff]
        %v8526 = vld [vmem:[#allocation3 + $0x124] sm:$0xff]
        %v8527 = vld [vmem:[#allocation3 + $0x12c] sm:$0xff]
        %v8528 = vpack.c.bf16 %v8493, %v8492
        %v8529 = vpack.c.bf16 %v8495, %v8494
        %v8530 = vpack.c.bf16 %v8497, %v8496
        %v8531 = vpack.c.bf16 %v8499, %v8498
        %v8532 = vpack.c.bf16 %v8501, %v8500
        %v8533 = vpack.c.bf16 %v8503, %v8502
        %v8534 = vpack.c.bf16 %v8505, %v8504
        %v8535 = vpack.c.bf16 %v8507, %v8506
        %v8536 = vpack.c.bf16 %v8509, %v8508
        %v8537 = vpack.c.bf16 %v8511, %v8510
        %v8538 = vpack.c.bf16 %v8513, %v8512
        %v8539 = vpack.c.bf16 %v8515, %v8514
        %v8540 = vpack.c.bf16 %v8517, %v8516
        %v8541 = vpack.c.bf16 %v8519, %v8518
        %v8542 = vpack.c.bf16 %v8521, %v8520
        %v8543 = vpack.c.bf16 %v8523, %v8522
        %v8544 = vpack.c.bf16 %v8525, %v8524
        %v8545 = vpack.c.bf16 %v8527, %v8526
        %s8546 = scalar_lea.vmem [#allocation12], 160
        %v8547 = vld [vmem:[%s8546] sm:$0xf]
        %v8548 = vld [vmem:[%s8546 + $0x4] sm:$0xf]
        %v8549 = vld [vmem:[%s8546 + $0x8] sm:$0xf]
        %v8550 = vld [vmem:[%s8546 + $0xc] sm:$0xf]
        %v8551 = vld [vmem:[%s8546 + $0x10] sm:$0xf]
        %v8552 = vld [vmem:[%s8546 + $0x14] sm:$0xf]
        %v8553 = vld [vmem:[%s8546 + $0x18] sm:$0xf]
        %v8554 = vld [vmem:[%s8546 + $0x1c] sm:$0xf]
        %v8563 = vunpack.c.l.b16 %v8547
        %v8564 = vunpack.c.l.b16 %v8548
        %v8565 = vunpack.c.l.b16 %v8549
        %v8566 = vunpack.c.l.b16 %v8550
        %v8567 = vunpack.c.l.b16 %v8551
        %v8568 = vunpack.c.l.b16 %v8552
        %v8569 = vunpack.c.l.b16 %v8553
        %v8570 = vunpack.c.l.b16 %v8554
        %v8571 = vpack.c.b16 %v8564, %v8563
        %v8572 = vpack.c.b16 %v8566, %v8565
        %v8573 = vpack.c.b16 %v8568, %v8567
        %v8574 = vpack.c.b16 %v8570, %v8569
        %v8580 = vsel %vm468, %v8528, 0
        %v8583 = vsel %vm468, %v8529, 0
        %v8586 = vsel %vm468, %v8530, 0
        %v8589 = vsel %vm468, %v8531, 0
        %v8592 = vsel %vm468, %v8532, 0
        %v8595 = vsel %vm468, %v8533, 0
        %v8598 = vsel %vm468, %v8534, 0
        %v8601 = vsel %vm468, %v8535, 0
        %v8604 = vsel %vm468, %v8536, 0
        %v8607 = vsel %vm468, %v8537, 0
        %v8610 = vsel %vm468, %v8538, 0
        %v8613 = vsel %vm468, %v8539, 0
        %v8616 = vsel %vm468, %v8540, 0
        %v8619 = vsel %vm468, %v8541, 0
        %v8622 = vsel %vm468, %v8542, 0
        %v8625 = vsel %vm468, %v8543, 0
        %v8628 = vsel %vm468, %v8544, 0
        %v8631 = vsel %vm468, %v8545, 0
        %8633 = vmatpush.bf16.msra.mxu0 0
        %8634 = vmatpush.bf16.msra.mxu0 0
        %8635 = vmatpush.bf16.msra.mxu0 0
        %8636 = vmatpush.bf16.msra.mxu0 0
        %8637 = vmatpush.bf16.msra.mxu0 %v8574
        %8638 = vmatpush.bf16.msra.mxu0 %v8573
        %8639 = vmatpush.bf16.msra.mxu0 %v8572
        %8640 = vmatpush.bf16.msra.mxu0 %v8571
        %8641 = vmatmul.bf16.gmra.mxu0 %v8580
        %v8642 = vpop.f32.mrf.mxu0
        %v8643 = vadd.f32 0.0, %v8642
        %v8644 = vpop.f32.mrf.mxu0
        %v8645 = vadd.f32 0.0, %v8644
        %8646 = vmatmul.bf16.gmra.mxu0 %v8583
        %v8647 = vpop.f32.mrf.mxu0
        %v8648 = vadd.f32 0.0, %v8647
        %v8649 = vpop.f32.mrf.mxu0
        %v8650 = vadd.f32 0.0, %v8649
        %8651 = vmatmul.bf16.gmra.mxu0 %v8586
        %v8652 = vpop.f32.mrf.mxu0
        %v8653 = vadd.f32 0.0, %v8652
        %v8654 = vpop.f32.mrf.mxu0
        %v8655 = vadd.f32 0.0, %v8654
        %8656 = vmatmul.bf16.gmra.mxu0 %v8589
        %v8657 = vpop.f32.mrf.mxu0
        %v8658 = vadd.f32 0.0, %v8657
        %v8659 = vpop.f32.mrf.mxu0
        %v8660 = vadd.f32 0.0, %v8659
        %8661 = vmatmul.bf16.gmra.mxu0 %v8592
        %v8662 = vpop.f32.mrf.mxu0
        %v8663 = vadd.f32 0.0, %v8662
        %v8664 = vpop.f32.mrf.mxu0
        %v8665 = vadd.f32 0.0, %v8664
        %8666 = vmatmul.bf16.gmra.mxu0 %v8595
        %v8667 = vpop.f32.mrf.mxu0
        %v8668 = vadd.f32 0.0, %v8667
        %v8669 = vpop.f32.mrf.mxu0
        %v8670 = vadd.f32 0.0, %v8669
        %8671 = vmatmul.bf16.gmra.mxu0 %v8598
        %v8672 = vpop.f32.mrf.mxu0
        %v8673 = vadd.f32 0.0, %v8672
        %v8674 = vpop.f32.mrf.mxu0
        %v8675 = vadd.f32 0.0, %v8674
        %8676 = vmatmul.bf16.gmra.mxu0 %v8601
        %v8677 = vpop.f32.mrf.mxu0
        %v8678 = vadd.f32 0.0, %v8677
        %v8679 = vpop.f32.mrf.mxu0
        %v8680 = vadd.f32 0.0, %v8679
        %8681 = vmatmul.bf16.gmra.mxu0 %v8604
        %v8682 = vpop.f32.mrf.mxu0
        %v8683 = vadd.f32 0.0, %v8682
        %v8684 = vpop.f32.mrf.mxu0
        %v8685 = vadd.f32 0.0, %v8684
        %8686 = vmatmul.bf16.gmra.mxu0 %v8607
        %v8687 = vpop.f32.mrf.mxu0
        %v8688 = vadd.f32 0.0, %v8687
        %v8689 = vpop.f32.mrf.mxu0
        %v8690 = vadd.f32 0.0, %v8689
        %8691 = vmatmul.bf16.gmra.mxu0 %v8610
        %v8692 = vpop.f32.mrf.mxu0
        %v8693 = vadd.f32 0.0, %v8692
        %v8694 = vpop.f32.mrf.mxu0
        %v8695 = vadd.f32 0.0, %v8694
        %8696 = vmatmul.bf16.gmra.mxu0 %v8613
        %v8697 = vpop.f32.mrf.mxu0
        %v8698 = vadd.f32 0.0, %v8697
        %v8699 = vpop.f32.mrf.mxu0
        %v8700 = vadd.f32 0.0, %v8699
        %8701 = vmatmul.bf16.gmra.mxu0 %v8616
        %v8702 = vpop.f32.mrf.mxu0
        %v8703 = vadd.f32 0.0, %v8702
        %v8704 = vpop.f32.mrf.mxu0
        %v8705 = vadd.f32 0.0, %v8704
        %8706 = vmatmul.bf16.gmra.mxu0 %v8619
        %v8707 = vpop.f32.mrf.mxu0
        %v8708 = vadd.f32 0.0, %v8707
        %v8709 = vpop.f32.mrf.mxu0
        %v8710 = vadd.f32 0.0, %v8709
        %8711 = vmatmul.bf16.gmra.mxu0 %v8622
        %v8712 = vpop.f32.mrf.mxu0
        %v8713 = vadd.f32 0.0, %v8712
        %v8714 = vpop.f32.mrf.mxu0
        %v8715 = vadd.f32 0.0, %v8714
        %8716 = vmatmul.bf16.gmra.mxu0 %v8625
        %v8717 = vpop.f32.mrf.mxu0
        %v8718 = vadd.f32 0.0, %v8717
        %v8719 = vpop.f32.mrf.mxu0
        %v8720 = vadd.f32 0.0, %v8719
        %8721 = vmatmul.bf16.gmra.mxu0 %v8628
        %v8722 = vpop.f32.mrf.mxu0
        %v8723 = vadd.f32 0.0, %v8722
        %v8724 = vpop.f32.mrf.mxu0
        %v8725 = vadd.f32 0.0, %v8724
        %8726 = vmatmul.bf16.gmra.mxu0 %v8631
        %v8727 = vpop.f32.mrf.mxu0
        %v8728 = vadd.f32 0.0, %v8727
        %v8729 = vpop.f32.mrf.mxu0
        %v8730 = vadd.f32 0.0, %v8729
        %8731 = vdwg.mxu0
        %v8732 = vadd.f32 %v8456, %v8643
        %v8733 = vadd.f32 %v8457, %v8645
        %v8734 = vadd.f32 %v8458, %v8648
        %v8735 = vadd.f32 %v8459, %v8650
        %v8736 = vadd.f32 %v8460, %v8653
        %v8737 = vadd.f32 %v8461, %v8655
        %v8738 = vadd.f32 %v8462, %v8658
        %v8739 = vadd.f32 %v8463, %v8660
        %v8740 = vadd.f32 %v8464, %v8663
        %v8741 = vadd.f32 %v8465, %v8665
        %v8742 = vadd.f32 %v8466, %v8668
        %v8743 = vadd.f32 %v8467, %v8670
        %v8744 = vadd.f32 %v8468, %v8673
        %v8745 = vadd.f32 %v8469, %v8675
        %v8746 = vadd.f32 %v8470, %v8678
        %v8747 = vadd.f32 %v8471, %v8680
        %v8748 = vadd.f32 %v8472, %v8683
        %v8749 = vadd.f32 %v8473, %v8685
        %v8750 = vadd.f32 %v8474, %v8688
        %v8751 = vadd.f32 %v8475, %v8690
        %v8752 = vadd.f32 %v8476, %v8693
        %v8753 = vadd.f32 %v8477, %v8695
        %v8754 = vadd.f32 %v8478, %v8698
        %v8755 = vadd.f32 %v8479, %v8700
        %v8756 = vadd.f32 %v8480, %v8703
        %v8757 = vadd.f32 %v8481, %v8705
        %v8758 = vadd.f32 %v8482, %v8708
        %v8759 = vadd.f32 %v8483, %v8710
        %v8760 = vadd.f32 %v8484, %v8713
        %v8761 = vadd.f32 %v8485, %v8715
        %v8762 = vadd.f32 %v8486, %v8718
        %v8763 = vadd.f32 %v8487, %v8720
        %v8764 = vadd.f32 %v8488, %v8723
        %v8765 = vadd.f32 %v8489, %v8725
        %v8766 = vadd.f32 %v8490, %v8728
        %v8767 = vadd.f32 %v8491, %v8730
        %v8768 = vld [vmem:[#allocation3 + $0x24] sm:$0xff]
        %v8769 = vld [vmem:[#allocation3 + $0x2c] sm:$0xff]
        %v8770 = vld [vmem:[#allocation3 + $0x34] sm:$0xff]
        %v8771 = vld [vmem:[#allocation3 + $0x3c] sm:$0xff]
        %v8772 = vld [vmem:[#allocation3 + $0x44] sm:$0xff]
        %v8773 = vld [vmem:[#allocation3 + $0x4c] sm:$0xff]
        %v8774 = vld [vmem:[#allocation3 + $0x54] sm:$0xff]
        %v8775 = vld [vmem:[#allocation3 + $0x5c] sm:$0xff]
        %v8776 = vld [vmem:[#allocation3 + $0x64] sm:$0xff]
        %v8777 = vld [vmem:[#allocation3 + $0x6c] sm:$0xff]
        %v8778 = vld [vmem:[#allocation3 + $0x74] sm:$0xff]
        %v8779 = vld [vmem:[#allocation3 + $0x7c] sm:$0xff]
        %v8780 = vld [vmem:[#allocation3 + $0x84] sm:$0xff]
        %v8781 = vld [vmem:[#allocation3 + $0x8c] sm:$0xff]
        %v8782 = vld [vmem:[#allocation3 + $0x94] sm:$0xff]
        %v8783 = vld [vmem:[#allocation3 + $0x9c] sm:$0xff]
        %v8784 = vld [vmem:[#allocation3 + $0xa4] sm:$0xff]
        %v8785 = vld [vmem:[#allocation3 + $0xac] sm:$0xff]
        %v8786 = vld [vmem:[#allocation3 + $0xb4] sm:$0xff]
        %v8787 = vld [vmem:[#allocation3 + $0xbc] sm:$0xff]
        %v8788 = vld [vmem:[#allocation3 + $0xc4] sm:$0xff]
        %v8789 = vld [vmem:[#allocation3 + $0xcc] sm:$0xff]
        %v8790 = vld [vmem:[#allocation3 + $0xd4] sm:$0xff]
        %v8791 = vld [vmem:[#allocation3 + $0xdc] sm:$0xff]
        %v8792 = vld [vmem:[#allocation3 + $0xe4] sm:$0xff]
        %v8793 = vld [vmem:[#allocation3 + $0xec] sm:$0xff]
        %v8794 = vld [vmem:[#allocation3 + $0xf4] sm:$0xff]
        %v8795 = vld [vmem:[#allocation3 + $0xfc] sm:$0xff]
        %v8796 = vld [vmem:[#allocation3 + $0x104] sm:$0xff]
        %v8797 = vld [vmem:[#allocation3 + $0x10c] sm:$0xff]
        %v8798 = vld [vmem:[#allocation3 + $0x114] sm:$0xff]
        %v8799 = vld [vmem:[#allocation3 + $0x11c] sm:$0xff]
        %v8800 = vld [vmem:[#allocation3 + $0x124] sm:$0xff]
        %v8801 = vld [vmem:[#allocation3 + $0x12c] sm:$0xff]
        %v8802 = vld [vmem:[#allocation3 + $0x134] sm:$0xff]
        %v8803 = vld [vmem:[#allocation3 + $0x13c] sm:$0xff]
        %v8804 = vpack.c.bf16 %v8769, %v8768
        %v8805 = vpack.c.bf16 %v8771, %v8770
        %v8806 = vpack.c.bf16 %v8773, %v8772
        %v8807 = vpack.c.bf16 %v8775, %v8774
        %v8808 = vpack.c.bf16 %v8777, %v8776
        %v8809 = vpack.c.bf16 %v8779, %v8778
        %v8810 = vpack.c.bf16 %v8781, %v8780
        %v8811 = vpack.c.bf16 %v8783, %v8782
        %v8812 = vpack.c.bf16 %v8785, %v8784
        %v8813 = vpack.c.bf16 %v8787, %v8786
        %v8814 = vpack.c.bf16 %v8789, %v8788
        %v8815 = vpack.c.bf16 %v8791, %v8790
        %v8816 = vpack.c.bf16 %v8793, %v8792
        %v8817 = vpack.c.bf16 %v8795, %v8794
        %v8818 = vpack.c.bf16 %v8797, %v8796
        %v8819 = vpack.c.bf16 %v8799, %v8798
        %v8820 = vpack.c.bf16 %v8801, %v8800
        %v8821 = vpack.c.bf16 %v8803, %v8802
        %s8822 = scalar_lea.vmem [#allocation12], 192
        %v8823 = vld [vmem:[%s8822] sm:$0xf]
        %v8824 = vld [vmem:[%s8822 + $0x4] sm:$0xf]
        %v8825 = vld [vmem:[%s8822 + $0x8] sm:$0xf]
        %v8826 = vld [vmem:[%s8822 + $0xc] sm:$0xf]
        %v8827 = vld [vmem:[%s8822 + $0x10] sm:$0xf]
        %v8828 = vld [vmem:[%s8822 + $0x14] sm:$0xf]
        %v8829 = vld [vmem:[%s8822 + $0x18] sm:$0xf]
        %v8830 = vld [vmem:[%s8822 + $0x1c] sm:$0xf]
        %v8839 = vunpack.c.l.b16 %v8823
        %v8840 = vunpack.c.l.b16 %v8824
        %v8841 = vunpack.c.l.b16 %v8825
        %v8842 = vunpack.c.l.b16 %v8826
        %v8843 = vunpack.c.l.b16 %v8827
        %v8844 = vunpack.c.l.b16 %v8828
        %v8845 = vunpack.c.l.b16 %v8829
        %v8846 = vunpack.c.l.b16 %v8830
        %v8847 = vpack.c.b16 %v8840, %v8839
        %v8848 = vpack.c.b16 %v8842, %v8841
        %v8849 = vpack.c.b16 %v8844, %v8843
        %v8850 = vpack.c.b16 %v8846, %v8845
        %v8856 = vsel %vm468, %v8804, 0
        %v8859 = vsel %vm468, %v8805, 0
        %v8862 = vsel %vm468, %v8806, 0
        %v8865 = vsel %vm468, %v8807, 0
        %v8868 = vsel %vm468, %v8808, 0
        %v8871 = vsel %vm468, %v8809, 0
        %v8874 = vsel %vm468, %v8810, 0
        %v8877 = vsel %vm468, %v8811, 0
        %v8880 = vsel %vm468, %v8812, 0
        %v8883 = vsel %vm468, %v8813, 0
        %v8886 = vsel %vm468, %v8814, 0
        %v8889 = vsel %vm468, %v8815, 0
        %v8892 = vsel %vm468, %v8816, 0
        %v8895 = vsel %vm468, %v8817, 0
        %v8898 = vsel %vm468, %v8818, 0
        %v8901 = vsel %vm468, %v8819, 0
        %v8904 = vsel %vm468, %v8820, 0
        %v8907 = vsel %vm468, %v8821, 0
        %8909 = vmatpush.bf16.msra.mxu0 0
        %8910 = vmatpush.bf16.msra.mxu0 0
        %8911 = vmatpush.bf16.msra.mxu0 0
        %8912 = vmatpush.bf16.msra.mxu0 0
        %8913 = vmatpush.bf16.msra.mxu0 %v8850
        %8914 = vmatpush.bf16.msra.mxu0 %v8849
        %8915 = vmatpush.bf16.msra.mxu0 %v8848
        %8916 = vmatpush.bf16.msra.mxu0 %v8847
        %8917 = vmatmul.bf16.gmra.mxu0 %v8856
        %v8918 = vpop.f32.mrf.mxu0
        %v8919 = vadd.f32 0.0, %v8918
        %v8920 = vpop.f32.mrf.mxu0
        %v8921 = vadd.f32 0.0, %v8920
        %8922 = vmatmul.bf16.gmra.mxu0 %v8859
        %v8923 = vpop.f32.mrf.mxu0
        %v8924 = vadd.f32 0.0, %v8923
        %v8925 = vpop.f32.mrf.mxu0
        %v8926 = vadd.f32 0.0, %v8925
        %8927 = vmatmul.bf16.gmra.mxu0 %v8862
        %v8928 = vpop.f32.mrf.mxu0
        %v8929 = vadd.f32 0.0, %v8928
        %v8930 = vpop.f32.mrf.mxu0
        %v8931 = vadd.f32 0.0, %v8930
        %8932 = vmatmul.bf16.gmra.mxu0 %v8865
        %v8933 = vpop.f32.mrf.mxu0
        %v8934 = vadd.f32 0.0, %v8933
        %v8935 = vpop.f32.mrf.mxu0
        %v8936 = vadd.f32 0.0, %v8935
        %8937 = vmatmul.bf16.gmra.mxu0 %v8868
        %v8938 = vpop.f32.mrf.mxu0
        %v8939 = vadd.f32 0.0, %v8938
        %v8940 = vpop.f32.mrf.mxu0
        %v8941 = vadd.f32 0.0, %v8940
        %8942 = vmatmul.bf16.gmra.mxu0 %v8871
        %v8943 = vpop.f32.mrf.mxu0
        %v8944 = vadd.f32 0.0, %v8943
        %v8945 = vpop.f32.mrf.mxu0
        %v8946 = vadd.f32 0.0, %v8945
        %8947 = vmatmul.bf16.gmra.mxu0 %v8874
        %v8948 = vpop.f32.mrf.mxu0
        %v8949 = vadd.f32 0.0, %v8948
        %v8950 = vpop.f32.mrf.mxu0
        %v8951 = vadd.f32 0.0, %v8950
        %8952 = vmatmul.bf16.gmra.mxu0 %v8877
        %v8953 = vpop.f32.mrf.mxu0
        %v8954 = vadd.f32 0.0, %v8953
        %v8955 = vpop.f32.mrf.mxu0
        %v8956 = vadd.f32 0.0, %v8955
        %8957 = vmatmul.bf16.gmra.mxu0 %v8880
        %v8958 = vpop.f32.mrf.mxu0
        %v8959 = vadd.f32 0.0, %v8958
        %v8960 = vpop.f32.mrf.mxu0
        %v8961 = vadd.f32 0.0, %v8960
        %8962 = vmatmul.bf16.gmra.mxu0 %v8883
        %v8963 = vpop.f32.mrf.mxu0
        %v8964 = vadd.f32 0.0, %v8963
        %v8965 = vpop.f32.mrf.mxu0
        %v8966 = vadd.f32 0.0, %v8965
        %8967 = vmatmul.bf16.gmra.mxu0 %v8886
        %v8968 = vpop.f32.mrf.mxu0
        %v8969 = vadd.f32 0.0, %v8968
        %v8970 = vpop.f32.mrf.mxu0
        %v8971 = vadd.f32 0.0, %v8970
        %8972 = vmatmul.bf16.gmra.mxu0 %v8889
        %v8973 = vpop.f32.mrf.mxu0
        %v8974 = vadd.f32 0.0, %v8973
        %v8975 = vpop.f32.mrf.mxu0
        %v8976 = vadd.f32 0.0, %v8975
        %8977 = vmatmul.bf16.gmra.mxu0 %v8892
        %v8978 = vpop.f32.mrf.mxu0
        %v8979 = vadd.f32 0.0, %v8978
        %v8980 = vpop.f32.mrf.mxu0
        %v8981 = vadd.f32 0.0, %v8980
        %8982 = vmatmul.bf16.gmra.mxu0 %v8895
        %v8983 = vpop.f32.mrf.mxu0
        %v8984 = vadd.f32 0.0, %v8983
        %v8985 = vpop.f32.mrf.mxu0
        %v8986 = vadd.f32 0.0, %v8985
        %8987 = vmatmul.bf16.gmra.mxu0 %v8898
        %v8988 = vpop.f32.mrf.mxu0
        %v8989 = vadd.f32 0.0, %v8988
        %v8990 = vpop.f32.mrf.mxu0
        %v8991 = vadd.f32 0.0, %v8990
        %8992 = vmatmul.bf16.gmra.mxu0 %v8901
        %v8993 = vpop.f32.mrf.mxu0
        %v8994 = vadd.f32 0.0, %v8993
        %v8995 = vpop.f32.mrf.mxu0
        %v8996 = vadd.f32 0.0, %v8995
        %8997 = vmatmul.bf16.gmra.mxu0 %v8904
        %v8998 = vpop.f32.mrf.mxu0
        %v8999 = vadd.f32 0.0, %v8998
        %v9000 = vpop.f32.mrf.mxu0
        %v9001 = vadd.f32 0.0, %v9000
        %9002 = vmatmul.bf16.gmra.mxu0 %v8907
        %v9003 = vpop.f32.mrf.mxu0
        %v9004 = vadd.f32 0.0, %v9003
        %v9005 = vpop.f32.mrf.mxu0
        %v9006 = vadd.f32 0.0, %v9005
        %9007 = vdwg.mxu0
        %v9008 = vadd.f32 %v8732, %v8919
        %v9009 = vadd.f32 %v8733, %v8921
        %v9010 = vadd.f32 %v8734, %v8924
        %v9011 = vadd.f32 %v8735, %v8926
        %v9012 = vadd.f32 %v8736, %v8929
        %v9013 = vadd.f32 %v8737, %v8931
        %v9014 = vadd.f32 %v8738, %v8934
        %v9015 = vadd.f32 %v8739, %v8936
        %v9016 = vadd.f32 %v8740, %v8939
        %v9017 = vadd.f32 %v8741, %v8941
        %v9018 = vadd.f32 %v8742, %v8944
        %v9019 = vadd.f32 %v8743, %v8946
        %v9020 = vadd.f32 %v8744, %v8949
        %v9021 = vadd.f32 %v8745, %v8951
        %v9022 = vadd.f32 %v8746, %v8954
        %v9023 = vadd.f32 %v8747, %v8956
        %v9024 = vadd.f32 %v8748, %v8959
        %v9025 = vadd.f32 %v8749, %v8961
        %v9026 = vadd.f32 %v8750, %v8964
        %v9027 = vadd.f32 %v8751, %v8966
        %v9028 = vadd.f32 %v8752, %v8969
        %v9029 = vadd.f32 %v8753, %v8971
        %v9030 = vadd.f32 %v8754, %v8974
        %v9031 = vadd.f32 %v8755, %v8976
        %v9032 = vadd.f32 %v8756, %v8979
        %v9033 = vadd.f32 %v8757, %v8981
        %v9034 = vadd.f32 %v8758, %v8984
        %v9035 = vadd.f32 %v8759, %v8986
        %v9036 = vadd.f32 %v8760, %v8989
        %v9037 = vadd.f32 %v8761, %v8991
        %v9038 = vadd.f32 %v8762, %v8994
        %v9039 = vadd.f32 %v8763, %v8996
        %v9040 = vadd.f32 %v8764, %v8999
        %v9041 = vadd.f32 %v8765, %v9001
        %v9042 = vadd.f32 %v8766, %v9004
        %v9043 = vadd.f32 %v8767, %v9006
        %v9044 = vld [vmem:[#allocation3 + $0x25] sm:$0xff]
        %v9045 = vld [vmem:[#allocation3 + $0x2d] sm:$0xff]
        %v9046 = vld [vmem:[#allocation3 + $0x35] sm:$0xff]
        %v9047 = vld [vmem:[#allocation3 + $0x3d] sm:$0xff]
        %v9048 = vld [vmem:[#allocation3 + $0x45] sm:$0xff]
        %v9049 = vld [vmem:[#allocation3 + $0x4d] sm:$0xff]
        %v9050 = vld [vmem:[#allocation3 + $0x55] sm:$0xff]
        %v9051 = vld [vmem:[#allocation3 + $0x5d] sm:$0xff]
        %v9052 = vld [vmem:[#allocation3 + $0x65] sm:$0xff]
        %v9053 = vld [vmem:[#allocation3 + $0x6d] sm:$0xff]
        %v9054 = vld [vmem:[#allocation3 + $0x75] sm:$0xff]
        %v9055 = vld [vmem:[#allocation3 + $0x7d] sm:$0xff]
        %v9056 = vld [vmem:[#allocation3 + $0x85] sm:$0xff]
        %v9057 = vld [vmem:[#allocation3 + $0x8d] sm:$0xff]
        %v9058 = vld [vmem:[#allocation3 + $0x95] sm:$0xff]
        %v9059 = vld [vmem:[#allocation3 + $0x9d] sm:$0xff]
        %v9060 = vld [vmem:[#allocation3 + $0xa5] sm:$0xff]
        %v9061 = vld [vmem:[#allocation3 + $0xad] sm:$0xff]
        %v9062 = vld [vmem:[#allocation3 + $0xb5] sm:$0xff]
        %v9063 = vld [vmem:[#allocation3 + $0xbd] sm:$0xff]
        %v9064 = vld [vmem:[#allocation3 + $0xc5] sm:$0xff]
        %v9065 = vld [vmem:[#allocation3 + $0xcd] sm:$0xff]
        %v9066 = vld [vmem:[#allocation3 + $0xd5] sm:$0xff]
        %v9067 = vld [vmem:[#allocation3 + $0xdd] sm:$0xff]
        %v9068 = vld [vmem:[#allocation3 + $0xe5] sm:$0xff]
        %v9069 = vld [vmem:[#allocation3 + $0xed] sm:$0xff]
        %v9070 = vld [vmem:[#allocation3 + $0xf5] sm:$0xff]
        %v9071 = vld [vmem:[#allocation3 + $0xfd] sm:$0xff]
        %v9072 = vld [vmem:[#allocation3 + $0x105] sm:$0xff]
        %v9073 = vld [vmem:[#allocation3 + $0x10d] sm:$0xff]
        %v9074 = vld [vmem:[#allocation3 + $0x115] sm:$0xff]
        %v9075 = vld [vmem:[#allocation3 + $0x11d] sm:$0xff]
        %v9076 = vld [vmem:[#allocation3 + $0x125] sm:$0xff]
        %v9077 = vld [vmem:[#allocation3 + $0x12d] sm:$0xff]
        %v9078 = vld [vmem:[#allocation3 + $0x135] sm:$0xff]
        %v9079 = vld [vmem:[#allocation3 + $0x13d] sm:$0xff]
        %v9080 = vpack.c.bf16 %v9045, %v9044
        %v9081 = vpack.c.bf16 %v9047, %v9046
        %v9082 = vpack.c.bf16 %v9049, %v9048
        %v9083 = vpack.c.bf16 %v9051, %v9050
        %v9084 = vpack.c.bf16 %v9053, %v9052
        %v9085 = vpack.c.bf16 %v9055, %v9054
        %v9086 = vpack.c.bf16 %v9057, %v9056
        %v9087 = vpack.c.bf16 %v9059, %v9058
        %v9088 = vpack.c.bf16 %v9061, %v9060
        %v9089 = vpack.c.bf16 %v9063, %v9062
        %v9090 = vpack.c.bf16 %v9065, %v9064
        %v9091 = vpack.c.bf16 %v9067, %v9066
        %v9092 = vpack.c.bf16 %v9069, %v9068
        %v9093 = vpack.c.bf16 %v9071, %v9070
        %v9094 = vpack.c.bf16 %v9073, %v9072
        %v9095 = vpack.c.bf16 %v9075, %v9074
        %v9096 = vpack.c.bf16 %v9077, %v9076
        %v9097 = vpack.c.bf16 %v9079, %v9078
        %s9098 = scalar_lea.vmem [#allocation12], 224
        %v9099 = vld [vmem:[%s9098] sm:$0xf]
        %v9100 = vld [vmem:[%s9098 + $0x4] sm:$0xf]
        %v9101 = vld [vmem:[%s9098 + $0x8] sm:$0xf]
        %v9102 = vld [vmem:[%s9098 + $0xc] sm:$0xf]
        %v9103 = vld [vmem:[%s9098 + $0x10] sm:$0xf]
        %v9104 = vld [vmem:[%s9098 + $0x14] sm:$0xf]
        %v9105 = vld [vmem:[%s9098 + $0x18] sm:$0xf]
        %v9106 = vld [vmem:[%s9098 + $0x1c] sm:$0xf]
        %v9115 = vunpack.c.l.b16 %v9099
        %v9116 = vunpack.c.l.b16 %v9100
        %v9117 = vunpack.c.l.b16 %v9101
        %v9118 = vunpack.c.l.b16 %v9102
        %v9119 = vunpack.c.l.b16 %v9103
        %v9120 = vunpack.c.l.b16 %v9104
        %v9121 = vunpack.c.l.b16 %v9105
        %v9122 = vunpack.c.l.b16 %v9106
        %v9123 = vpack.c.b16 %v9116, %v9115
        %v9124 = vpack.c.b16 %v9118, %v9117
        %v9125 = vpack.c.b16 %v9120, %v9119
        %v9126 = vpack.c.b16 %v9122, %v9121
        %v9132 = vsel %vm468, %v9080, 0
        %v9135 = vsel %vm468, %v9081, 0
        %v9138 = vsel %vm468, %v9082, 0
        %v9141 = vsel %vm468, %v9083, 0
        %v9144 = vsel %vm468, %v9084, 0
        %v9147 = vsel %vm468, %v9085, 0
        %v9150 = vsel %vm468, %v9086, 0
        %v9153 = vsel %vm468, %v9087, 0
        %v9156 = vsel %vm468, %v9088, 0
        %v9159 = vsel %vm468, %v9089, 0
        %v9162 = vsel %vm468, %v9090, 0
        %v9165 = vsel %vm468, %v9091, 0
        %v9168 = vsel %vm468, %v9092, 0
        %v9171 = vsel %vm468, %v9093, 0
        %v9174 = vsel %vm468, %v9094, 0
        %v9177 = vsel %vm468, %v9095, 0
        %v9180 = vsel %vm468, %v9096, 0
        %v9183 = vsel %vm468, %v9097, 0
        %9185 = vmatpush.bf16.msra.mxu0 0
        %9186 = vmatpush.bf16.msra.mxu0 0
        %9187 = vmatpush.bf16.msra.mxu0 0
        %9188 = vmatpush.bf16.msra.mxu0 0
        %9189 = vmatpush.bf16.msra.mxu0 %v9126
        %9190 = vmatpush.bf16.msra.mxu0 %v9125
        %9191 = vmatpush.bf16.msra.mxu0 %v9124
        %9192 = vmatpush.bf16.msra.mxu0 %v9123
        %9193 = vmatmul.bf16.gmra.mxu0 %v9132
        %v9194 = vpop.f32.mrf.mxu0
        %v9195 = vadd.f32 0.0, %v9194
        %v9196 = vpop.f32.mrf.mxu0
        %v9197 = vadd.f32 0.0, %v9196
        %9198 = vmatmul.bf16.gmra.mxu0 %v9135
        %v9199 = vpop.f32.mrf.mxu0
        %v9200 = vadd.f32 0.0, %v9199
        %v9201 = vpop.f32.mrf.mxu0
        %v9202 = vadd.f32 0.0, %v9201
        %9203 = vmatmul.bf16.gmra.mxu0 %v9138
        %v9204 = vpop.f32.mrf.mxu0
        %v9205 = vadd.f32 0.0, %v9204
        %v9206 = vpop.f32.mrf.mxu0
        %v9207 = vadd.f32 0.0, %v9206
        %9208 = vmatmul.bf16.gmra.mxu0 %v9141
        %v9209 = vpop.f32.mrf.mxu0
        %v9210 = vadd.f32 0.0, %v9209
        %v9211 = vpop.f32.mrf.mxu0
        %v9212 = vadd.f32 0.0, %v9211
        %9213 = vmatmul.bf16.gmra.mxu0 %v9144
        %v9214 = vpop.f32.mrf.mxu0
        %v9215 = vadd.f32 0.0, %v9214
        %v9216 = vpop.f32.mrf.mxu0
        %v9217 = vadd.f32 0.0, %v9216
        %9218 = vmatmul.bf16.gmra.mxu0 %v9147
        %v9219 = vpop.f32.mrf.mxu0
        %v9220 = vadd.f32 0.0, %v9219
        %v9221 = vpop.f32.mrf.mxu0
        %v9222 = vadd.f32 0.0, %v9221
        %9223 = vmatmul.bf16.gmra.mxu0 %v9150
        %v9224 = vpop.f32.mrf.mxu0
        %v9225 = vadd.f32 0.0, %v9224
        %v9226 = vpop.f32.mrf.mxu0
        %v9227 = vadd.f32 0.0, %v9226
        %9228 = vmatmul.bf16.gmra.mxu0 %v9153
        %v9229 = vpop.f32.mrf.mxu0
        %v9230 = vadd.f32 0.0, %v9229
        %v9231 = vpop.f32.mrf.mxu0
        %v9232 = vadd.f32 0.0, %v9231
        %9233 = vmatmul.bf16.gmra.mxu0 %v9156
        %v9234 = vpop.f32.mrf.mxu0
        %v9235 = vadd.f32 0.0, %v9234
        %v9236 = vpop.f32.mrf.mxu0
        %v9237 = vadd.f32 0.0, %v9236
        %9238 = vmatmul.bf16.gmra.mxu0 %v9159
        %v9239 = vpop.f32.mrf.mxu0
        %v9240 = vadd.f32 0.0, %v9239
        %v9241 = vpop.f32.mrf.mxu0
        %v9242 = vadd.f32 0.0, %v9241
        %9243 = vmatmul.bf16.gmra.mxu0 %v9162
        %v9244 = vpop.f32.mrf.mxu0
        %v9245 = vadd.f32 0.0, %v9244
        %v9246 = vpop.f32.mrf.mxu0
        %v9247 = vadd.f32 0.0, %v9246
        %9248 = vmatmul.bf16.gmra.mxu0 %v9165
        %v9249 = vpop.f32.mrf.mxu0
        %v9250 = vadd.f32 0.0, %v9249
        %v9251 = vpop.f32.mrf.mxu0
        %v9252 = vadd.f32 0.0, %v9251
        %9253 = vmatmul.bf16.gmra.mxu0 %v9168
        %v9254 = vpop.f32.mrf.mxu0
        %v9255 = vadd.f32 0.0, %v9254
        %v9256 = vpop.f32.mrf.mxu0
        %v9257 = vadd.f32 0.0, %v9256
        %9258 = vmatmul.bf16.gmra.mxu0 %v9171
        %v9259 = vpop.f32.mrf.mxu0
        %v9260 = vadd.f32 0.0, %v9259
        %v9261 = vpop.f32.mrf.mxu0
        %v9262 = vadd.f32 0.0, %v9261
        %9263 = vmatmul.bf16.gmra.mxu0 %v9174
        %v9264 = vpop.f32.mrf.mxu0
        %v9265 = vadd.f32 0.0, %v9264
        %v9266 = vpop.f32.mrf.mxu0
        %v9267 = vadd.f32 0.0, %v9266
        %9268 = vmatmul.bf16.gmra.mxu0 %v9177
        %v9269 = vpop.f32.mrf.mxu0
        %v9270 = vadd.f32 0.0, %v9269
        %v9271 = vpop.f32.mrf.mxu0
        %v9272 = vadd.f32 0.0, %v9271
        %9273 = vmatmul.bf16.gmra.mxu0 %v9180
        %v9274 = vpop.f32.mrf.mxu0
        %v9275 = vadd.f32 0.0, %v9274
        %v9276 = vpop.f32.mrf.mxu0
        %v9277 = vadd.f32 0.0, %v9276
        %9278 = vmatmul.bf16.gmra.mxu0 %v9183
        %v9279 = vpop.f32.mrf.mxu0
        %v9280 = vadd.f32 0.0, %v9279
        %v9281 = vpop.f32.mrf.mxu0
        %v9282 = vadd.f32 0.0, %v9281
        %9283 = vdwg.mxu0
        %v9284 = vadd.f32 %v9008, %v9195
        %v9285 = vadd.f32 %v9009, %v9197
        %v9286 = vadd.f32 %v9010, %v9200
        %v9287 = vadd.f32 %v9011, %v9202
        %v9288 = vadd.f32 %v9012, %v9205
        %v9289 = vadd.f32 %v9013, %v9207
        %v9290 = vadd.f32 %v9014, %v9210
        %v9291 = vadd.f32 %v9015, %v9212
        %v9292 = vadd.f32 %v9016, %v9215
        %v9293 = vadd.f32 %v9017, %v9217
        %v9294 = vadd.f32 %v9018, %v9220
        %v9295 = vadd.f32 %v9019, %v9222
        %v9296 = vadd.f32 %v9020, %v9225
        %v9297 = vadd.f32 %v9021, %v9227
        %v9298 = vadd.f32 %v9022, %v9230
        %v9299 = vadd.f32 %v9023, %v9232
        %v9300 = vadd.f32 %v9024, %v9235
        %v9301 = vadd.f32 %v9025, %v9237
        %v9302 = vadd.f32 %v9026, %v9240
        %v9303 = vadd.f32 %v9027, %v9242
        %v9304 = vadd.f32 %v9028, %v9245
        %v9305 = vadd.f32 %v9029, %v9247
        %v9306 = vadd.f32 %v9030, %v9250
        %v9307 = vadd.f32 %v9031, %v9252
        %v9308 = vadd.f32 %v9032, %v9255
        %v9309 = vadd.f32 %v9033, %v9257
        %v9310 = vadd.f32 %v9034, %v9260
        %v9311 = vadd.f32 %v9035, %v9262
        %v9312 = vadd.f32 %v9036, %v9265
        %v9313 = vadd.f32 %v9037, %v9267
        %v9314 = vadd.f32 %v9038, %v9270
        %v9315 = vadd.f32 %v9039, %v9272
        %v9316 = vadd.f32 %v9040, %v9275
        %v9317 = vadd.f32 %v9041, %v9277
        %v9318 = vadd.f32 %v9042, %v9280
        %v9319 = vadd.f32 %v9043, %v9282
        %v9320 = vld [vmem:[#allocation3 + $0x26] sm:$0xff]
        %v9321 = vld [vmem:[#allocation3 + $0x2e] sm:$0xff]
        %v9322 = vld [vmem:[#allocation3 + $0x36] sm:$0xff]
        %v9323 = vld [vmem:[#allocation3 + $0x3e] sm:$0xff]
        %v9324 = vld [vmem:[#allocation3 + $0x46] sm:$0xff]
        %v9325 = vld [vmem:[#allocation3 + $0x4e] sm:$0xff]
        %v9326 = vld [vmem:[#allocation3 + $0x56] sm:$0xff]
        %v9327 = vld [vmem:[#allocation3 + $0x5e] sm:$0xff]
        %v9328 = vld [vmem:[#allocation3 + $0x66] sm:$0xff]
        %v9329 = vld [vmem:[#allocation3 + $0x6e] sm:$0xff]
        %v9330 = vld [vmem:[#allocation3 + $0x76] sm:$0xff]
        %v9331 = vld [vmem:[#allocation3 + $0x7e] sm:$0xff]
        %v9332 = vld [vmem:[#allocation3 + $0x86] sm:$0xff]
        %v9333 = vld [vmem:[#allocation3 + $0x8e] sm:$0xff]
        %v9334 = vld [vmem:[#allocation3 + $0x96] sm:$0xff]
        %v9335 = vld [vmem:[#allocation3 + $0x9e] sm:$0xff]
        %v9336 = vld [vmem:[#allocation3 + $0xa6] sm:$0xff]
        %v9337 = vld [vmem:[#allocation3 + $0xae] sm:$0xff]
        %v9338 = vld [vmem:[#allocation3 + $0xb6] sm:$0xff]
        %v9339 = vld [vmem:[#allocation3 + $0xbe] sm:$0xff]
        %v9340 = vld [vmem:[#allocation3 + $0xc6] sm:$0xff]
        %v9341 = vld [vmem:[#allocation3 + $0xce] sm:$0xff]
        %v9342 = vld [vmem:[#allocation3 + $0xd6] sm:$0xff]
        %v9343 = vld [vmem:[#allocation3 + $0xde] sm:$0xff]
        %v9344 = vld [vmem:[#allocation3 + $0xe6] sm:$0xff]
        %v9345 = vld [vmem:[#allocation3 + $0xee] sm:$0xff]
        %v9346 = vld [vmem:[#allocation3 + $0xf6] sm:$0xff]
        %v9347 = vld [vmem:[#allocation3 + $0xfe] sm:$0xff]
        %v9348 = vld [vmem:[#allocation3 + $0x106] sm:$0xff]
        %v9349 = vld [vmem:[#allocation3 + $0x10e] sm:$0xff]
        %v9350 = vld [vmem:[#allocation3 + $0x116] sm:$0xff]
        %v9351 = vld [vmem:[#allocation3 + $0x11e] sm:$0xff]
        %v9352 = vld [vmem:[#allocation3 + $0x126] sm:$0xff]
        %v9353 = vld [vmem:[#allocation3 + $0x12e] sm:$0xff]
        %v9354 = vld [vmem:[#allocation3 + $0x136] sm:$0xff]
        %v9355 = vld [vmem:[#allocation3 + $0x13e] sm:$0xff]
        %v9356 = vpack.c.bf16 %v9321, %v9320
        %v9357 = vpack.c.bf16 %v9323, %v9322
        %v9358 = vpack.c.bf16 %v9325, %v9324
        %v9359 = vpack.c.bf16 %v9327, %v9326
        %v9360 = vpack.c.bf16 %v9329, %v9328
        %v9361 = vpack.c.bf16 %v9331, %v9330
        %v9362 = vpack.c.bf16 %v9333, %v9332
        %v9363 = vpack.c.bf16 %v9335, %v9334
        %v9364 = vpack.c.bf16 %v9337, %v9336
        %v9365 = vpack.c.bf16 %v9339, %v9338
        %v9366 = vpack.c.bf16 %v9341, %v9340
        %v9367 = vpack.c.bf16 %v9343, %v9342
        %v9368 = vpack.c.bf16 %v9345, %v9344
        %v9369 = vpack.c.bf16 %v9347, %v9346
        %v9370 = vpack.c.bf16 %v9349, %v9348
        %v9371 = vpack.c.bf16 %v9351, %v9350
        %v9372 = vpack.c.bf16 %v9353, %v9352
        %v9373 = vpack.c.bf16 %v9355, %v9354
        %s9374 = scalar_lea.vmem [#allocation12], 256
        %v9375 = vld [vmem:[%s9374] sm:$0xf]
        %v9376 = vld [vmem:[%s9374 + $0x4] sm:$0xf]
        %v9377 = vld [vmem:[%s9374 + $0x8] sm:$0xf]
        %v9378 = vld [vmem:[%s9374 + $0xc] sm:$0xf]
        %v9379 = vld [vmem:[%s9374 + $0x10] sm:$0xf]
        %v9380 = vld [vmem:[%s9374 + $0x14] sm:$0xf]
        %v9381 = vld [vmem:[%s9374 + $0x18] sm:$0xf]
        %v9382 = vld [vmem:[%s9374 + $0x1c] sm:$0xf]
        %v9391 = vunpack.c.l.b16 %v9375
        %v9392 = vunpack.c.l.b16 %v9376
        %v9393 = vunpack.c.l.b16 %v9377
        %v9394 = vunpack.c.l.b16 %v9378
        %v9395 = vunpack.c.l.b16 %v9379
        %v9396 = vunpack.c.l.b16 %v9380
        %v9397 = vunpack.c.l.b16 %v9381
        %v9398 = vunpack.c.l.b16 %v9382
        %v9399 = vpack.c.b16 %v9392, %v9391
        %v9400 = vpack.c.b16 %v9394, %v9393
        %v9401 = vpack.c.b16 %v9396, %v9395
        %v9402 = vpack.c.b16 %v9398, %v9397
        %v9408 = vsel %vm468, %v9356, 0
        %v9411 = vsel %vm468, %v9357, 0
        %v9414 = vsel %vm468, %v9358, 0
        %v9417 = vsel %vm468, %v9359, 0
        %v9420 = vsel %vm468, %v9360, 0
        %v9423 = vsel %vm468, %v9361, 0
        %v9426 = vsel %vm468, %v9362, 0
        %v9429 = vsel %vm468, %v9363, 0
        %v9432 = vsel %vm468, %v9364, 0
        %v9435 = vsel %vm468, %v9365, 0
        %v9438 = vsel %vm468, %v9366, 0
        %v9441 = vsel %vm468, %v9367, 0
        %v9444 = vsel %vm468, %v9368, 0
        %v9447 = vsel %vm468, %v9369, 0
        %v9450 = vsel %vm468, %v9370, 0
        %v9453 = vsel %vm468, %v9371, 0
        %v9456 = vsel %vm468, %v9372, 0
        %v9459 = vsel %vm468, %v9373, 0
        %9461 = vmatpush.bf16.msra.mxu0 0
        %9462 = vmatpush.bf16.msra.mxu0 0
        %9463 = vmatpush.bf16.msra.mxu0 0
        %9464 = vmatpush.bf16.msra.mxu0 0
        %9465 = vmatpush.bf16.msra.mxu0 %v9402
        %9466 = vmatpush.bf16.msra.mxu0 %v9401
        %9467 = vmatpush.bf16.msra.mxu0 %v9400
        %9468 = vmatpush.bf16.msra.mxu0 %v9399
        %9469 = vmatmul.bf16.gmra.mxu0 %v9408
        %v9470 = vpop.f32.mrf.mxu0
        %v9471 = vadd.f32 0.0, %v9470
        %v9472 = vpop.f32.mrf.mxu0
        %v9473 = vadd.f32 0.0, %v9472
        %9474 = vmatmul.bf16.gmra.mxu0 %v9411
        %v9475 = vpop.f32.mrf.mxu0
        %v9476 = vadd.f32 0.0, %v9475
        %v9477 = vpop.f32.mrf.mxu0
        %v9478 = vadd.f32 0.0, %v9477
        %9479 = vmatmul.bf16.gmra.mxu0 %v9414
        %v9480 = vpop.f32.mrf.mxu0
        %v9481 = vadd.f32 0.0, %v9480
        %v9482 = vpop.f32.mrf.mxu0
        %v9483 = vadd.f32 0.0, %v9482
        %9484 = vmatmul.bf16.gmra.mxu0 %v9417
        %v9485 = vpop.f32.mrf.mxu0
        %v9486 = vadd.f32 0.0, %v9485
        %v9487 = vpop.f32.mrf.mxu0
        %v9488 = vadd.f32 0.0, %v9487
        %9489 = vmatmul.bf16.gmra.mxu0 %v9420
        %v9490 = vpop.f32.mrf.mxu0
        %v9491 = vadd.f32 0.0, %v9490
        %v9492 = vpop.f32.mrf.mxu0
        %v9493 = vadd.f32 0.0, %v9492
        %9494 = vmatmul.bf16.gmra.mxu0 %v9423
        %v9495 = vpop.f32.mrf.mxu0
        %v9496 = vadd.f32 0.0, %v9495
        %v9497 = vpop.f32.mrf.mxu0
        %v9498 = vadd.f32 0.0, %v9497
        %9499 = vmatmul.bf16.gmra.mxu0 %v9426
        %v9500 = vpop.f32.mrf.mxu0
        %v9501 = vadd.f32 0.0, %v9500
        %v9502 = vpop.f32.mrf.mxu0
        %v9503 = vadd.f32 0.0, %v9502
        %9504 = vmatmul.bf16.gmra.mxu0 %v9429
        %v9505 = vpop.f32.mrf.mxu0
        %v9506 = vadd.f32 0.0, %v9505
        %v9507 = vpop.f32.mrf.mxu0
        %v9508 = vadd.f32 0.0, %v9507
        %9509 = vmatmul.bf16.gmra.mxu0 %v9432
        %v9510 = vpop.f32.mrf.mxu0
        %v9511 = vadd.f32 0.0, %v9510
        %v9512 = vpop.f32.mrf.mxu0
        %v9513 = vadd.f32 0.0, %v9512
        %9514 = vmatmul.bf16.gmra.mxu0 %v9435
        %v9515 = vpop.f32.mrf.mxu0
        %v9516 = vadd.f32 0.0, %v9515
        %v9517 = vpop.f32.mrf.mxu0
        %v9518 = vadd.f32 0.0, %v9517
        %9519 = vmatmul.bf16.gmra.mxu0 %v9438
        %v9520 = vpop.f32.mrf.mxu0
        %v9521 = vadd.f32 0.0, %v9520
        %v9522 = vpop.f32.mrf.mxu0
        %v9523 = vadd.f32 0.0, %v9522
        %9524 = vmatmul.bf16.gmra.mxu0 %v9441
        %v9525 = vpop.f32.mrf.mxu0
        %v9526 = vadd.f32 0.0, %v9525
        %v9527 = vpop.f32.mrf.mxu0
        %v9528 = vadd.f32 0.0, %v9527
        %9529 = vmatmul.bf16.gmra.mxu0 %v9444
        %v9530 = vpop.f32.mrf.mxu0
        %v9531 = vadd.f32 0.0, %v9530
        %v9532 = vpop.f32.mrf.mxu0
        %v9533 = vadd.f32 0.0, %v9532
        %9534 = vmatmul.bf16.gmra.mxu0 %v9447
        %v9535 = vpop.f32.mrf.mxu0
        %v9536 = vadd.f32 0.0, %v9535
        %v9537 = vpop.f32.mrf.mxu0
        %v9538 = vadd.f32 0.0, %v9537
        %9539 = vmatmul.bf16.gmra.mxu0 %v9450
        %v9540 = vpop.f32.mrf.mxu0
        %v9541 = vadd.f32 0.0, %v9540
        %v9542 = vpop.f32.mrf.mxu0
        %v9543 = vadd.f32 0.0, %v9542
        %9544 = vmatmul.bf16.gmra.mxu0 %v9453
        %v9545 = vpop.f32.mrf.mxu0
        %v9546 = vadd.f32 0.0, %v9545
        %v9547 = vpop.f32.mrf.mxu0
        %v9548 = vadd.f32 0.0, %v9547
        %9549 = vmatmul.bf16.gmra.mxu0 %v9456
        %v9550 = vpop.f32.mrf.mxu0
        %v9551 = vadd.f32 0.0, %v9550
        %v9552 = vpop.f32.mrf.mxu0
        %v9553 = vadd.f32 0.0, %v9552
        %9554 = vmatmul.bf16.gmra.mxu0 %v9459
        %v9555 = vpop.f32.mrf.mxu0
        %v9556 = vadd.f32 0.0, %v9555
        %v9557 = vpop.f32.mrf.mxu0
        %v9558 = vadd.f32 0.0, %v9557
        %9559 = vdwg.mxu0
        %v9560 = vadd.f32 %v9284, %v9471
        %v9561 = vadd.f32 %v9285, %v9473
        %v9562 = vadd.f32 %v9286, %v9476
        %v9563 = vadd.f32 %v9287, %v9478
        %v9564 = vadd.f32 %v9288, %v9481
        %v9565 = vadd.f32 %v9289, %v9483
        %v9566 = vadd.f32 %v9290, %v9486
        %v9567 = vadd.f32 %v9291, %v9488
        %v9568 = vadd.f32 %v9292, %v9491
        %v9569 = vadd.f32 %v9293, %v9493
        %v9570 = vadd.f32 %v9294, %v9496
        %v9571 = vadd.f32 %v9295, %v9498
        %v9572 = vadd.f32 %v9296, %v9501
        %v9573 = vadd.f32 %v9297, %v9503
        %v9574 = vadd.f32 %v9298, %v9506
        %v9575 = vadd.f32 %v9299, %v9508
        %v9576 = vadd.f32 %v9300, %v9511
        %v9577 = vadd.f32 %v9301, %v9513
        %v9578 = vadd.f32 %v9302, %v9516
        %v9579 = vadd.f32 %v9303, %v9518
        %v9580 = vadd.f32 %v9304, %v9521
        %v9581 = vadd.f32 %v9305, %v9523
        %v9582 = vadd.f32 %v9306, %v9526
        %v9583 = vadd.f32 %v9307, %v9528
        %v9584 = vadd.f32 %v9308, %v9531
        %v9585 = vadd.f32 %v9309, %v9533
        %v9586 = vadd.f32 %v9310, %v9536
        %v9587 = vadd.f32 %v9311, %v9538
        %v9588 = vadd.f32 %v9312, %v9541
        %v9589 = vadd.f32 %v9313, %v9543
        %v9590 = vadd.f32 %v9314, %v9546
        %v9591 = vadd.f32 %v9315, %v9548
        %v9592 = vadd.f32 %v9316, %v9551
        %v9593 = vadd.f32 %v9317, %v9553
        %v9594 = vadd.f32 %v9318, %v9556
        %v9595 = vadd.f32 %v9319, %v9558
        %v9596 = vld [vmem:[%s8] sm:$0x1]
        %v9598 = vperm.slane %v9596, 0
        %v9600 = vadd.f32 %v9560, %v9598
        %v9601 = vadd.f32 %v9561, %v9598
        %v9602 = vadd.f32 %v9562, %v9598
        %v9603 = vadd.f32 %v9563, %v9598
        %v9604 = vadd.f32 %v9564, %v9598
        %v9605 = vadd.f32 %v9565, %v9598
        %v9606 = vadd.f32 %v9566, %v9598
        %v9607 = vadd.f32 %v9567, %v9598
        %v9608 = vadd.f32 %v9568, %v9598
        %v9609 = vadd.f32 %v9569, %v9598
        %v9610 = vadd.f32 %v9570, %v9598
        %v9611 = vadd.f32 %v9571, %v9598
        %v9612 = vadd.f32 %v9572, %v9598
        %v9613 = vadd.f32 %v9573, %v9598
        %v9614 = vadd.f32 %v9574, %v9598
        %v9615 = vadd.f32 %v9575, %v9598
        %v9616 = vadd.f32 %v9576, %v9598
        %v9617 = vadd.f32 %v9577, %v9598
        %v9618 = vadd.f32 %v9578, %v9598
        %v9619 = vadd.f32 %v9579, %v9598
        %v9620 = vadd.f32 %v9580, %v9598
        %v9621 = vadd.f32 %v9581, %v9598
        %v9622 = vadd.f32 %v9582, %v9598
        %v9623 = vadd.f32 %v9583, %v9598
        %v9624 = vadd.f32 %v9584, %v9598
        %v9625 = vadd.f32 %v9585, %v9598
        %v9626 = vadd.f32 %v9586, %v9598
        %v9627 = vadd.f32 %v9587, %v9598
        %v9628 = vadd.f32 %v9588, %v9598
        %v9629 = vadd.f32 %v9589, %v9598
        %v9630 = vadd.f32 %v9590, %v9598
        %v9631 = vadd.f32 %v9591, %v9598
        %v9632 = vadd.f32 %v9592, %v9598
        %v9633 = vadd.f32 %v9593, %v9598
        %v9634 = vadd.f32 %v9594, %v9598
        %v9635 = vadd.f32 %v9595, %v9598
        %v9636 = vld [vmem:[%s425 + $0x13] sm:$0xff]
        %v9637 = vld [vmem:[%s425 + $0x1b] sm:$0xff]
        %v9638 = vld [vmem:[%s425 + $0x23] sm:$0xff]
        %v9639 = vld [vmem:[%s425 + $0x2b] sm:$0xff]
        %v9640 = vld [vmem:[%s425 + $0x33] sm:$0xff]
        %v9641 = vld [vmem:[%s425 + $0x3b] sm:$0xff]
        %v9642 = vld [vmem:[%s425 + $0x43] sm:$0xff]
        %v9643 = vld [vmem:[%s425 + $0x4b] sm:$0xff]
        %v9644 = vld [vmem:[%s425 + $0x53] sm:$0xff]
        %v9645 = vld [vmem:[%s425 + $0x5b] sm:$0xff]
        %v9646 = vld [vmem:[%s425 + $0x63] sm:$0xff]
        %v9647 = vld [vmem:[%s425 + $0x6b] sm:$0xff]
        %v9648 = vld [vmem:[%s425 + $0x73] sm:$0xff]
        %v9649 = vld [vmem:[%s425 + $0x7b] sm:$0xff]
        %v9650 = vld [vmem:[%s425 + $0x83] sm:$0xff]
        %v9651 = vld [vmem:[%s425 + $0x8b] sm:$0xff]
        %v9652 = vld [vmem:[%s425 + $0x93] sm:$0xff]
        %v9653 = vld [vmem:[%s425 + $0x9b] sm:$0xff]
        %v9654 = vld [vmem:[%s425 + $0xa3] sm:$0xff]
        %v9655 = vld [vmem:[%s425 + $0xab] sm:$0xff]
        %v9656 = vld [vmem:[%s425 + $0xb3] sm:$0xff]
        %v9657 = vld [vmem:[%s425 + $0xbb] sm:$0xff]
        %v9658 = vld [vmem:[%s425 + $0xc3] sm:$0xff]
        %v9659 = vld [vmem:[%s425 + $0xcb] sm:$0xff]
        %v9660 = vld [vmem:[%s425 + $0xd3] sm:$0xff]
        %v9661 = vld [vmem:[%s425 + $0xdb] sm:$0xff]
        %v9662 = vld [vmem:[%s425 + $0xe3] sm:$0xff]
        %v9663 = vld [vmem:[%s425 + $0xeb] sm:$0xff]
        %v9664 = vld [vmem:[%s425 + $0xf3] sm:$0xff]
        %v9665 = vld [vmem:[%s425 + $0xfb] sm:$0xff]
        %v9666 = vld [vmem:[%s425 + $0x103] sm:$0xff]
        %v9667 = vld [vmem:[%s425 + $0x10b] sm:$0xff]
        %v9668 = vld [vmem:[%s425 + $0x113] sm:$0xff]
        %v9669 = vld [vmem:[%s425 + $0x11b] sm:$0xff]
        %v9670 = vld [vmem:[%s425 + $0x123] sm:$0xff]
        %v9671 = vld [vmem:[%s425 + $0x12b] sm:$0xff]
        %9672 = vst.msk [vmem:[%s430] sm:$0xff] %vm637, 0.0
        %9673 = vst.msk [vmem:[%s430 + $0x8] sm:$0xff] %vm637, 0.0
        %9674 = vst.msk [vmem:[%s430 + $0x10] sm:$0xff] %vm637, 0.0
        %9675 = vst.msk [vmem:[%s430 + $0x18] sm:$0xff] %vm637, 0.0
        %9676 = vst.msk [vmem:[%s430 + $0x20] sm:$0xff] %vm637, 0.0
        %9677 = vst.msk [vmem:[%s430 + $0x28] sm:$0xff] %vm637, 0.0
        %9678 = vst.msk [vmem:[%s430 + $0x30] sm:$0xff] %vm637, 0.0
        %9679 = vst.msk [vmem:[%s430 + $0x38] sm:$0xff] %vm637, 0.0
        %9680 = vst.msk [vmem:[%s430 + $0x40] sm:$0xff] %vm637, 0.0
        %9681 = vst.msk [vmem:[%s430 + $0x48] sm:$0xff] %vm637, 0.0
        %9682 = vst.msk [vmem:[%s430 + $0x50] sm:$0xff] %vm637, 0.0
        %9683 = vst.msk [vmem:[%s430 + $0x58] sm:$0xff] %vm637, 0.0
        %9684 = vst.msk [vmem:[%s430 + $0x60] sm:$0xff] %vm637, 0.0
        %9685 = vst.msk [vmem:[%s430 + $0x68] sm:$0xff] %vm637, 0.0
        %9686 = vst.msk [vmem:[%s430 + $0x70] sm:$0xff] %vm637, 0.0
        %9687 = vst.msk [vmem:[%s430 + $0x78] sm:$0xff] %vm637, 0.0
        %9688 = vst.msk [vmem:[%s430 + $0x80] sm:$0xff] %vm637, 0.0
        %9689 = vst.msk [vmem:[%s430 + $0x88] sm:$0xff] %vm637, 0.0
        %9690 = vst.msk [vmem:[%s430 + $0x90] sm:$0xff] %vm637, 0.0
        %9691 = vst.msk [vmem:[%s430 + $0x98] sm:$0xff] %vm637, 0.0
        %9692 = vst.msk [vmem:[%s430 + $0xa0] sm:$0xff] %vm637, 0.0
        %9693 = vst.msk [vmem:[%s430 + $0xa8] sm:$0xff] %vm637, 0.0
        %9694 = vst.msk [vmem:[%s430 + $0xb0] sm:$0xff] %vm637, 0.0
        %9695 = vst.msk [vmem:[%s430 + $0xb8] sm:$0xff] %vm637, 0.0
        %9696 = vst.msk [vmem:[%s430 + $0xc0] sm:$0xff] %vm637, 0.0
        %9697 = vst.msk [vmem:[%s430 + $0xc8] sm:$0xff] %vm637, 0.0
        %9698 = vst.msk [vmem:[%s430 + $0xd0] sm:$0xff] %vm637, 0.0
        %9699 = vst.msk [vmem:[%s430 + $0xd8] sm:$0xff] %vm637, 0.0
        %9700 = vst.msk [vmem:[%s430 + $0xe0] sm:$0xff] %vm637, 0.0
        %9701 = vst.msk [vmem:[%s430 + $0xe8] sm:$0xff] %vm637, 0.0
        %9702 = vst.msk [vmem:[%s430 + $0xf0] sm:$0xff] %vm637, 0.0
        %9703 = vst.msk [vmem:[%s430 + $0xf8] sm:$0xff] %vm637, 0.0
        %9704 = vst.msk [vmem:[%s430 + $0x100] sm:$0xff] %vm637, 0.0
        %9705 = vst.msk [vmem:[%s430 + $0x108] sm:$0xff] %vm637, 0.0
        %9706 = vst.msk [vmem:[%s430 + $0x110] sm:$0xff] %vm637, 0.0
        %9707 = vst.msk [vmem:[%s430 + $0x118] sm:$0xff] %vm637, 0.0
        %9708 = vst.msk [vmem:[%s430 + $0x120] sm:$0xff] %vm637, 0.0
        %9709 = vst.msk [vmem:[%s430 + $0x128] sm:$0xff] %vm637, 0.0
        %9710 = vst.msk [vmem:[%s430 + $0x130] sm:$0xff] %vm637, 0.0
        %9711 = vst.msk [vmem:[%s430 + $0x138] sm:$0xff] %vm637, 0.0
        %9712 = vst.msk [vmem:[%s430 + $0x140] sm:$0xff] %vm637, 0.0
        %v9713 = vsub.f32 %v9636, %v9600
        %v9714 = vsub.f32 %v9637, %v9601
        %v9715 = vsub.f32 %v9638, %v9602
        %v9716 = vsub.f32 %v9639, %v9603
        %v9717 = vsub.f32 %v9640, %v9604
        %v9718 = vsub.f32 %v9641, %v9605
        %v9719 = vsub.f32 %v9642, %v9606
        %v9720 = vsub.f32 %v9643, %v9607
        %v9721 = vsub.f32 %v9644, %v9608
        %v9722 = vsub.f32 %v9645, %v9609
        %v9723 = vsub.f32 %v9646, %v9610
        %v9724 = vsub.f32 %v9647, %v9611
        %v9725 = vsub.f32 %v9648, %v9612
        %v9726 = vsub.f32 %v9649, %v9613
        %v9727 = vsub.f32 %v9650, %v9614
        %v9728 = vsub.f32 %v9651, %v9615
        %v9729 = vsub.f32 %v9652, %v9616
        %v9730 = vsub.f32 %v9653, %v9617
        %v9731 = vsub.f32 %v9654, %v9618
        %v9732 = vsub.f32 %v9655, %v9619
        %v9733 = vsub.f32 %v9656, %v9620
        %v9734 = vsub.f32 %v9657, %v9621
        %v9735 = vsub.f32 %v9658, %v9622
        %v9736 = vsub.f32 %v9659, %v9623
        %v9737 = vsub.f32 %v9660, %v9624
        %v9738 = vsub.f32 %v9661, %v9625
        %v9739 = vsub.f32 %v9662, %v9626
        %v9740 = vsub.f32 %v9663, %v9627
        %v9741 = vsub.f32 %v9664, %v9628
        %v9742 = vsub.f32 %v9665, %v9629
        %v9743 = vsub.f32 %v9666, %v9630
        %v9744 = vsub.f32 %v9667, %v9631
        %v9745 = vsub.f32 %v9668, %v9632
        %v9746 = vsub.f32 %v9669, %v9633
        %v9747 = vsub.f32 %v9670, %v9634
        %v9748 = vsub.f32 %v9671, %v9635
        %9749 = vst.msk [vmem:[%s430 + $0x13] sm:$0xff] %vm637, %v9713
        %9750 = vst.msk [vmem:[%s430 + $0x1b] sm:$0xff] %vm637, %v9714
        %9751 = vst.msk [vmem:[%s430 + $0x23] sm:$0xff] %vm637, %v9715
        %9752 = vst.msk [vmem:[%s430 + $0x2b] sm:$0xff] %vm637, %v9716
        %9753 = vst.msk [vmem:[%s430 + $0x33] sm:$0xff] %vm637, %v9717
        %9754 = vst.msk [vmem:[%s430 + $0x3b] sm:$0xff] %vm637, %v9718
        %9755 = vst.msk [vmem:[%s430 + $0x43] sm:$0xff] %vm637, %v9719
        %9756 = vst.msk [vmem:[%s430 + $0x4b] sm:$0xff] %vm637, %v9720
        %9757 = vst.msk [vmem:[%s430 + $0x53] sm:$0xff] %vm637, %v9721
        %9758 = vst.msk [vmem:[%s430 + $0x5b] sm:$0xff] %vm637, %v9722
        %9759 = vst.msk [vmem:[%s430 + $0x63] sm:$0xff] %vm637, %v9723
        %9760 = vst.msk [vmem:[%s430 + $0x6b] sm:$0xff] %vm637, %v9724
        %9761 = vst.msk [vmem:[%s430 + $0x73] sm:$0xff] %vm637, %v9725
        %9762 = vst.msk [vmem:[%s430 + $0x7b] sm:$0xff] %vm637, %v9726
        %9763 = vst.msk [vmem:[%s430 + $0x83] sm:$0xff] %vm637, %v9727
        %9764 = vst.msk [vmem:[%s430 + $0x8b] sm:$0xff] %vm637, %v9728
        %9765 = vst.msk [vmem:[%s430 + $0x93] sm:$0xff] %vm637, %v9729
        %9766 = vst.msk [vmem:[%s430 + $0x9b] sm:$0xff] %vm637, %v9730
        %9767 = vst.msk [vmem:[%s430 + $0xa3] sm:$0xff] %vm637, %v9731
        %9768 = vst.msk [vmem:[%s430 + $0xab] sm:$0xff] %vm637, %v9732
        %9769 = vst.msk [vmem:[%s430 + $0xb3] sm:$0xff] %vm637, %v9733
        %9770 = vst.msk [vmem:[%s430 + $0xbb] sm:$0xff] %vm637, %v9734
        %9771 = vst.msk [vmem:[%s430 + $0xc3] sm:$0xff] %vm637, %v9735
        %9772 = vst.msk [vmem:[%s430 + $0xcb] sm:$0xff] %vm637, %v9736
        %9773 = vst.msk [vmem:[%s430 + $0xd3] sm:$0xff] %vm637, %v9737
        %9774 = vst.msk [vmem:[%s430 + $0xdb] sm:$0xff] %vm637, %v9738
        %9775 = vst.msk [vmem:[%s430 + $0xe3] sm:$0xff] %vm637, %v9739
        %9776 = vst.msk [vmem:[%s430 + $0xeb] sm:$0xff] %vm637, %v9740
        %9777 = vst.msk [vmem:[%s430 + $0xf3] sm:$0xff] %vm637, %v9741
        %9778 = vst.msk [vmem:[%s430 + $0xfb] sm:$0xff] %vm637, %v9742
        %9779 = vst.msk [vmem:[%s430 + $0x103] sm:$0xff] %vm637, %v9743
        %9780 = vst.msk [vmem:[%s430 + $0x10b] sm:$0xff] %vm637, %v9744
        %9781 = vst.msk [vmem:[%s430 + $0x113] sm:$0xff] %vm637, %v9745
        %9782 = vst.msk [vmem:[%s430 + $0x11b] sm:$0xff] %vm637, %v9746
        %9783 = vst.msk [vmem:[%s430 + $0x123] sm:$0xff] %vm637, %v9747
        %9784 = vst.msk [vmem:[%s430 + $0x12b] sm:$0xff] %vm637, %v9748
        %p9785 = scmp.lt.s32.totalorder %s24, 1
        %s9786 = scalar_select %p9785, %s24, 1
        %s9787 = smul.addr %s9786, 41
        %s9788 = smul.addr %s9787, 8
        %s9789 = scalar_lea.vmem %s9, %s9788
        // Predicated region
        $region88: #{_lambda_.1} parent=55 // pred_check
          %p9790 = pneg %p236
        $region89: #{_lambda_.1} parent=55 // pred_check_branch
          %9792 = sbr.rel (%p9790) target = $region91
        $region90: #{_lambda_.1} parent=55 // pred_region
          _
        $region91: #{_lambda_.1} parent=55 // pred_fallthru
          _
      $region56: #{_lambda_.1} parent=5 // pred_fallthru
        _
      %p9793 = scmp.le.s32.totalorder 2, %s19
      // Predicated region
      $region92: #{_lambda_.1} parent=5 // pred_check
        %p9794 = pneg %p9793
      $region93: #{_lambda_.1} parent=5 // pred_check_branch
        %9796 = sbr.rel (%p9794) target = $region95
      $region94: #{_lambda_.1} parent=5 // pred_region
        %s9797 = ssub.s32 %s19, 2
        // Predicated region
        $region96: #{_lambda_.1} parent=94 // pred_check
          %p9798 = pneg %p242
        $region97: #{_lambda_.1} parent=94 // pred_check_branch
          %9800 = sbr.rel (%p9798) target = $region99
        $region98: #{_lambda_.1} parent=94 // pred_region
          %p9801 = scmp.lt.s32.totalorder %s25, 1
          %s9802 = scalar_select %p9801, %s25, 1
          %s9803 = smul.addr %s9802, 41
          %s9804 = smul.addr %s9803, 8
          %s9805 = scalar_lea.vmem %s9, %s9804
        $region99: #{_lambda_.1} parent=94 // pred_fallthru
          _
      $region95: #{_lambda_.1} parent=5 // pred_fallthru
        _
    $region6: #{_lambda_.1} parent=1 // loop_footer
      %s23 = sadd.s32 1, %s19
    $region7: #{_lambda_.1} parent=1 // loop_footer_branch
      %18 = sbr.rel target = $region3
    $region8: #{_lambda_.1} parent=1 // loop_exit
      _
    %9806 = vsyncpa [#allocation5], 1
    %s9807 = scalar_lea.sflag [#allocation5], 1
    %9808 = vsyncpa %s9807, 1
    %9809 = vsyncpa [#allocation7], 1
    %9810 = vsyncpa [#allocation10], 1
    %9811 = vsyncpa [#allocation13], 1

</llo_original>
